<compile_context>
chip_gen: v7x
topology: tpu7x:2x2x1
jax: 0.10.0
libtpu: 0.0.40
codegen_flags: <defaults>
</compile_context>

<pallas_src>
import functools

import jax
import jax.numpy as jnp
from jax import lax
from jax.experimental import pallas as pl
from jax.experimental.pallas import tpu as pltpu

EPS = 1e-5

_OFFSETS = ((-1, -1), (-1, 0), (-1, 1),
            (0, -1), (0, 0), (0, 1),
            (1, -1), (1, 0), (1, 1))


# ----------------------------------------------------------------------------
# In-kernel im2col helpers (stride-1 3x3, padding 1)
# ----------------------------------------------------------------------------
def _tap_masks(ho, wo):
    """(M,1) f32 validity masks for the four boundary directions."""
    m = ho * wo
    row = lax.broadcasted_iota(jnp.int32, (m, 1), 0)
    col = row % wo
    return {
        (-1, 0): (row >= wo).astype(jnp.float32),            # has a row above
        (1, 0): (row < (ho - 1) * wo).astype(jnp.float32),   # has a row below
        (0, -1): (col != 0).astype(jnp.float32),             # has a col left
        (0, 1): (col != wo - 1).astype(jnp.float32),         # has a col right
    }


def _build_taps(src, tap_ref, masks, ho, wo, co):
    """Write the 9 shifted/masked copies of `src` (M, C) f32 into the bf16 tap
    scratch (M, 9*C): the in-VMEM im2col for a stride-1 3x3 conv.

    Every store is full-height and lane-aligned (columns are multiples of 128);
    row shifts use pltpu.roll (XLU) and boundary rows are zeroed via masks, so
    no scratch zero-init and no partial / misaligned stores are needed."""
    m = ho * wo
    for k, (dy, dx) in enumerate(_OFFSETS):
        s = dy * wo + dx                          # flattened row shift
        v = src if s == 0 else pltpu.roll(src, (-s) % m, axis=0)
        msk = None
        if dy != 0:
            msk = masks[(dy, 0)]
        if dx != 0:
            msk = masks[(0, dx)] if msk is None else msk * masks[(0, dx)]
        if msk is not None:
            v = v * msk                           # zero wrapped-around rows
        tap_ref[:, k * co:(k + 1) * co] = v.astype(tap_ref.dtype)


# ----------------------------------------------------------------------------
# Fused BasicBlock kernels (one grid step == one image)
# ----------------------------------------------------------------------------
def _block_kernel_identity(x_ref, w1_ref, s1_ref, b1_ref, w2_ref, s2_ref,
                           b2_ref, out_ref, tap_ref, *, ho, wo, co):
    """stride=1, Ci==Co: raw x in VMEM, both convs' taps built in-kernel."""
    masks = _tap_masks(ho, wo)

    # conv1 + BN + ReLU: taps from raw x, one (M, 9*C) @ (9*C, Co) MXU GEMM.
    _build_taps(x_ref[...], tap_ref, masks, ho, wo, co)
    y1 = jnp.dot(tap_ref[...], w1_ref[...], preferred_element_type=jnp.float32)
    y1 = jnp.maximum(y1 * s1_ref[...] + b1_ref[...], 0.0)

    # conv2 + BN: scratch reused for the second tap build / deep GEMM.
    _build_taps(y1, tap_ref, masks, ho, wo, co)
    y2 = jnp.dot(tap_ref[...], w2_ref[...], preferred_element_type=jnp.float32)
    y2 = y2 * s2_ref[...] + b2_ref[...]

    # identity shortcut in f32 (re-read from VMEM to keep vreg pressure low).
    out_ref[...] = jnp.maximum(y2 + x_ref[...], 0.0)


def _block_kernel_downsample(xcol_ref, w1d_ref, s1_ref, b1_ref, sd_ref, bd_ref,
                             w2_ref, s2_ref, b2_ref, out_ref, tap_ref,
                             *, ho, wo, co):
    """stride!=1 or Ci!=Co: conv1 uses an HBM im2col; the 1x1 downsample is
    fused into conv1's GEMM via an (K, 2*Co) RHS (wd in the center-tap rows)."""
    masks = _tap_masks(ho, wo)

    y = jnp.dot(xcol_ref[...], w1d_ref[...],
                preferred_element_type=jnp.float32)            # (M, 2*Co) f32
    y1 = jnp.maximum(y[:, :co] * s1_ref[...] + b1_ref[...], 0.0)
    idn = y[:, co:] * sd_ref[...] + bd_ref[...]                # shortcut

    _build_taps(y1, tap_ref, masks, ho, wo, co)
    y2 = jnp.dot(tap_ref[...], w2_ref[...], preferred_element_type=jnp.float32)
    y2 = y2 * s2_ref[...] + b2_ref[...]

    out_ref[...] = jnp.maximum(y2 + idn, 0.0)


# ----------------------------------------------------------------------------
# Wrapper: layout glue + pallas_call
# ----------------------------------------------------------------------------
def _fold_bn(bn, co):
    scale = bn['gamma'] / jnp.sqrt(bn['var'] + EPS)
    bias = bn['beta'] - bn['mean'] * scale
    return (scale.reshape(1, co).astype(jnp.float32),
            bias.reshape(1, co).astype(jnp.float32))


def _const_spec(shape):
    nd = len(shape)
    return pl.BlockSpec(shape, lambda i, _nd=nd: (0,) * _nd)


def basic_block_forward(x_nchw, params):
    """Fused BasicBlock forward.  x_nchw: (N, Ci, H, W) f32 -> (N, Co, Ho, Wo)."""
    stride = params['stride']
    x = jnp.transpose(x_nchw, (0, 2, 3, 1)).astype(jnp.float32)   # NHWC
    n, h, w, ci = x.shape
    co = params['w1'].shape[-1]
    ho = (h + 2 - 3) // stride + 1
    wo = (w + 2 - 3) // stride + 1
    m_img = ho * wo
    m_tot = n * m_img

    s1, b1 = _fold_bn(params['bn1'], co)
    s2, b2 = _fold_bn(params['bn2'], co)
    w2 = params['w2'].reshape(9 * co, co).astype(jnp.bfloat16)

    has_ds = 'wd' in params
    if not has_ds:
        assert stride == 1 and ci == co
        # Raw image (no 9x im2col in HBM); also serves as the f32 identity.
        x_flat = x.reshape(m_tot, ci)
        w1 = params['w1'].reshape(9 * ci, co).astype(jnp.bfloat16)
        args = [x_flat, w1, s1, b1, w2, s2, b2]
        in_specs = [
            pl.BlockSpec((m_img, ci), lambda i: (i, 0)),
            _const_spec(w1.shape), _const_spec(s1.shape), _const_spec(b1.shape),
            _const_spec(w2.shape), _const_spec(s2.shape), _const_spec(b2.shape),
        ]
        kern = functools.partial(_block_kernel_identity, ho=ho, wo=wo, co=co)
    else:
        # im2col for conv1 (handles stride != 1); pure layout glue in XLA.
        xp = jnp.pad(x, ((0, 0), (1, 1), (1, 1), (0, 0)))
        cols = [xp[:, dy:dy + stride * ho:stride, dx:dx + stride * wo:stride, :]
                for dy in range(3) for dx in range(3)]
        xcol = jnp.concatenate(cols, axis=-1).reshape(m_tot, 9 * ci)
        k1 = 9 * ci
        k1p = ((k1 + 127) // 128) * 128           # pad K so MXU passes are dense
        if k1p != k1:
            xcol = jnp.pad(xcol, ((0, 0), (0, k1p - k1)))
        xcol = xcol.astype(jnp.bfloat16)

        # Fused RHS: columns [:co] = w1, columns [co:] = wd placed in the
        # center-tap rows (those rows of xcol are exactly x[::stride, ::stride]).
        w1 = params['w1'].reshape(9 * ci, co)
        wd_emb = jnp.zeros((9 * ci, co), jnp.float32)
        wd_emb = wd_emb.at[4 * ci:5 * ci, :].set(params['wd'].reshape(ci, co))
        rhs = jnp.concatenate([w1, wd_emb], axis=1)            # (9*Ci, 2*Co)
        if k1p != k1:
            rhs = jnp.pad(rhs, ((0, k1p - k1), (0, 0)))
        rhs = rhs.astype(jnp.bfloat16)
        sd, bd = _fold_bn(params['bnd'], co)

        args = [xcol, rhs, s1, b1, sd, bd, w2, s2, b2]
        in_specs = [
            pl.BlockSpec((m_img, k1p), lambda i: (i, 0)),
            _const_spec(rhs.shape), _const_spec(s1.shape), _const_spec(b1.shape),
            _const_spec(sd.shape), _const_spec(bd.shape),
            _const_spec(w2.shape), _const_spec(s2.shape), _const_spec(b2.shape),
        ]
        kern = functools.partial(_block_kernel_downsample, ho=ho, wo=wo, co=co)

    out = pl.pallas_call(
        kern,
        out_shape=jax.ShapeDtypeStruct((m_tot, co), jnp.float32),
        grid=(n,),                                    # one image per grid step
        in_specs=in_specs,
        out_specs=pl.BlockSpec((m_img, co), lambda i: (i, 0)),
        scratch_shapes=[pltpu.VMEM((m_img, 9 * co), jnp.bfloat16)],
        compiler_params=pltpu.CompilerParams(
            dimension_semantics=("parallel",),        # v7x: 2 TCs split batch
            vmem_limit_bytes=48 * 1024 * 1024),
    )(*args)

    out = out.reshape(n, ho, wo, co)
    return jnp.transpose(out, (0, 3, 1, 2))           # back to NCHW


# ----------------------------------------------------------------------------
# Parameters + pure-JAX reference (for correctness check)
# ----------------------------------------------------------------------------
def _kaiming(key, kh, kw, cin, cout):
    std = (2.0 / (cout * kh * kw)) ** 0.5
    return std * jax.random.normal(key, (kh, kw, cin, cout), jnp.float32)


def _bn_init(key, c):
    kg, kb, km, kv = jax.random.split(key, 4)
    return {'gamma': 1.0 + 0.1 * jax.random.normal(kg, (c,), jnp.float32),
            'beta': 0.1 * jax.random.normal(kb, (c,), jnp.float32),
            'mean': 0.1 * jax.random.normal(km, (c,), jnp.float32),
            'var': jax.random.uniform(kv, (c,), jnp.float32, 0.5, 1.5)}


def make_block_params(key, inplanes, planes, stride):
    ks = jax.random.split(key, 6)
    p = {'stride': stride,
         'w1': _kaiming(ks[0], 3, 3, inplanes, planes),
         'bn1': _bn_init(ks[1], planes),
         'w2': _kaiming(ks[2], 3, 3, planes, planes),
         'bn2': _bn_init(ks[3], planes)}
    if stride != 1 or inplanes != planes:
        p['wd'] = _kaiming(ks[4], 1, 1, inplanes, planes)
        p['bnd'] = _bn_init(ks[5], planes)
    return p


def _q(v):
    # match the kernel's MXU operand precision (bf16 values, f32 accumulate)
    return v.astype(jnp.bfloat16).astype(jnp.float32)


def _conv_ref(x, w, stride, pad):
    return jax.lax.conv_general_dilated(
        _q(x), _q(w), window_strides=(stride, stride),
        padding=((pad, pad), (pad, pad)),
        dimension_numbers=('NHWC', 'HWIO', 'NHWC'))


def basic_block_reference(x_nchw, params):
    x = jnp.transpose(x_nchw, (0, 2, 3, 1)).astype(jnp.float32)
    stride = params['stride']
    co = params['w1'].shape[-1]
    s1, b1 = _fold_bn(params['bn1'], co)
    s2, b2 = _fold_bn(params['bn2'], co)
    out = jnp.maximum(_conv_ref(x, params['w1'], stride, 1) * s1 + b1, 0.0)
    out = _conv_ref(out, params['w2'], 1, 1) * s2 + b2
    if 'wd' in params:
        sd, bd = _fold_bn(params['bnd'], co)
        idn = _conv_ref(x, params['wd'], stride, 0) * sd + bd
    else:
        idn = x
    y = jnp.maximum(out + idn, 0.0)
    return jnp.transpose(y, (0, 3, 1, 2))


# ----------------------------------------------------------------------------
if __name__ == "__main__":
    import numpy as np

    root = jax.random.PRNGKey(0)
    kpa, kpb, kxa, kxb = jax.random.split(root, 4)

    # Block A: inplanes = planes = 128, stride 1, identity shortcut.
    params_a = make_block_params(kpa, 128, 128, stride=1)
    x_a = jax.random.normal(kxa, (2, 128, 16, 16), jnp.float32)
    fwd_a = jax.jit(lambda xx: basic_block_forward(xx, params_a))
    out_a = jax.block_until_ready(fwd_a(x_a))
    ref_a = basic_block_reference(x_a, params_a)
    assert out_a.shape == (2, 128, 16, 16) and out_a.dtype == jnp.float32
    np.testing.assert_allclose(np.asarray(out_a), np.asarray(ref_a),
                               rtol=5e-3, atol=5e-3)

    # Block B: inplanes 64 -> planes 128, stride 2, 1x1-conv downsample.
    params_b = make_block_params(kpb, 64, 128, stride=2)
    x_b = jax.random.normal(kxb, (2, 64, 16, 16), jnp.float32)
    fwd_b = jax.jit(lambda xx: basic_block_forward(xx, params_b))
    out_b = jax.block_until_ready(fwd_b(x_b))
    ref_b = basic_block_reference(x_b, params_b)
    assert out_b.shape == (2, 128, 8, 8) and out_b.dtype == jnp.float32
    np.testing.assert_allclose(np.asarray(out_b), np.asarray(ref_b),
                               rtol=5e-3, atol=5e-3)

    print("KERNEL_OK")
</pallas_src>

<mosaic_0001>
module attributes {stable_mosaic.version = 11 : i64} {
  func.func @_block_kernel_identity(%arg0: i32, %arg1: memref<256x128xf32, #tpu.memory_space<vmem>>, %arg2: memref<1152x128xbf16, #tpu.memory_space<vmem>>, %arg3: memref<1x128xf32, #tpu.memory_space<vmem>>, %arg4: memref<1x128xf32, #tpu.memory_space<vmem>>, %arg5: memref<1152x128xbf16, #tpu.memory_space<vmem>>, %arg6: memref<1x128xf32, #tpu.memory_space<vmem>>, %arg7: memref<1x128xf32, #tpu.memory_space<vmem>>, %arg8: memref<256x128xf32, #tpu.memory_space<vmem>>, %arg9: memref<256x1152xbf16, #tpu.memory_space<vmem>>) attributes {dimension_semantics = [#tpu.dimension_semantics<parallel>], iteration_bounds = array<i64: 2>, scalar_prefetch = 0 : i64, scratch_operands = 1 : i64, tpu.core_type = #tpu.core_type<tc>, window_params = [{transform_indices = @transform_0, window_bounds = array<i64: 256, 128>}, {pipeline_mode = #tpu.pipeline_mode<synchronous>, transform_indices = @transform_1, window_bounds = array<i64: 1152, 128>}, {pipeline_mode = #tpu.pipeline_mode<synchronous>, transform_indices = @transform_2, window_bounds = array<i64: 1, 128>}, {pipeline_mode = #tpu.pipeline_mode<synchronous>, transform_indices = @transform_3, window_bounds = array<i64: 1, 128>}, {pipeline_mode = #tpu.pipeline_mode<synchronous>, transform_indices = @transform_4, window_bounds = array<i64: 1152, 128>}, {pipeline_mode = #tpu.pipeline_mode<synchronous>, transform_indices = @transform_5, window_bounds = array<i64: 1, 128>}, {pipeline_mode = #tpu.pipeline_mode<synchronous>, transform_indices = @transform_6, window_bounds = array<i64: 1, 128>}, {transform_indices = @transform_7, window_bounds = array<i64: 256, 128>}]} {
    %0 = tpu.iota {dimensions = array<i32: 0>} : vector<256x1xi32>
    %c16_i32 = arith.constant 16 : i32
    %c0_i32 = arith.constant 0 : i32
    %1 = arith.cmpi eq, %c16_i32, %c0_i32 : i32
    %c1_i32 = arith.constant 1 : i32
    %2 = arith.select %1, %c1_i32, %c16_i32 : i32
    %3 = vector.broadcast %2 : i32 to vector<256x1xi32>
    %4 = arith.remsi %0, %3 : vector<256x1xi32>
    %c0_i32_0 = arith.constant 0 : i32
    %5 = vector.broadcast %c0_i32_0 : i32 to vector<256x1xi32>
    %6 = arith.cmpi ne, %4, %5 : vector<256x1xi32>
    %c0_i32_1 = arith.constant 0 : i32
    %7 = vector.broadcast %c0_i32_1 : i32 to vector<256x1xi32>
    %8 = arith.cmpi slt, %4, %7 : vector<256x1xi32>
    %c0_i32_2 = arith.constant 0 : i32
    %9 = arith.cmpi slt, %2, %c0_i32_2 : i32
    %10 = vector.broadcast %9 : i1 to vector<256x1xi1>
    %11 = vector.broadcast %10 : vector<256x1xi1> to vector<256x1xi1>
    %12 = arith.xori %8, %11 : vector<256x1xi1>
    %13 = arith.andi %12, %6 : vector<256x1xi1>
    %14 = vector.broadcast %2 : i32 to vector<256x1xi32>
    %15 = arith.addi %4, %14 : vector<256x1xi32>
    %16 = arith.select %13, %15, %4 : vector<256x1xi1>, vector<256x1xi32>
    %c16_i32_3 = arith.constant 16 : i32
    %17 = vector.broadcast %c16_i32_3 : i32 to vector<256x1xi32>
    %18 = arith.cmpi sge, %0, %17 : vector<256x1xi32>
    %19 = arith.extui %18 : vector<256x1xi1> to vector<256x1xi32>
    %20 = arith.sitofp %19 : vector<256x1xi32> to vector<256x1xf32>
    %c240_i32 = arith.constant 240 : i32
    %21 = vector.broadcast %c240_i32 : i32 to vector<256x1xi32>
    %22 = arith.cmpi slt, %0, %21 : vector<256x1xi32>
    %23 = arith.extui %22 : vector<256x1xi1> to vector<256x1xi32>
    %24 = arith.sitofp %23 : vector<256x1xi32> to vector<256x1xf32>
    %c0_i32_4 = arith.constant 0 : i32
    %25 = vector.broadcast %c0_i32_4 : i32 to vector<256x1xi32>
    %26 = arith.cmpi ne, %16, %25 : vector<256x1xi32>
    %27 = arith.extui %26 : vector<256x1xi1> to vector<256x1xi32>
    %28 = arith.sitofp %27 : vector<256x1xi32> to vector<256x1xf32>
    %c15_i32 = arith.constant 15 : i32
    %29 = vector.broadcast %c15_i32 : i32 to vector<256x1xi32>
    %30 = arith.cmpi ne, %16, %29 : vector<256x1xi32>
    %31 = arith.extui %30 : vector<256x1xi1> to vector<256x1xi32>
    %32 = arith.sitofp %31 : vector<256x1xi32> to vector<256x1xf32>
    %c0 = arith.constant 0 : index
    %c0_5 = arith.constant 0 : index
    %33 = vector.load %arg1[%c0, %c0_5] : memref<256x128xf32, #tpu.memory_space<vmem>>, vector<256x128xf32>
    %c17_i32 = arith.constant 17 : i32
    %34 = tpu.dynamic_rotate %33 by %c17_i32 dim 0 : vector<256x128xf32>, i32 -> vector<256x128xf32>
    %35 = arith.mulf %20, %28 : vector<256x1xf32>
    %36 = vector.broadcast %35 : vector<256x1xf32> to vector<256x128xf32>
    %37 = arith.mulf %34, %36 : vector<256x128xf32>
    %38 = arith.truncf %37 : vector<256x128xf32> to vector<256x128xbf16>
    %c0_6 = arith.constant 0 : index
    %c0_7 = arith.constant 0 : index
    %39 = vector.load %arg9[%c0_6, %c0_7] : memref<256x1152xbf16, #tpu.memory_space<vmem>>, vector<256x128xbf16>
    tpu.vector_store %arg9[%c0_6, %c0_7], %38 {strides = array<i32>} : memref<256x1152xbf16, #tpu.memory_space<vmem>>, vector<256x128xbf16>,
    %c16_i32_8 = arith.constant 16 : i32
    %40 = tpu.dynamic_rotate %33 by %c16_i32_8 dim 0 : vector<256x128xf32>, i32 -> vector<256x128xf32>
    %41 = vector.broadcast %20 : vector<256x1xf32> to vector<256x128xf32>
    %42 = arith.mulf %40, %41 : vector<256x128xf32>
    %43 = arith.truncf %42 : vector<256x128xf32> to vector<256x128xbf16>
    %c0_9 = arith.constant 0 : index
    %c128 = arith.constant 128 : index
    %44 = vector.load %arg9[%c0_9, %c128] : memref<256x1152xbf16, #tpu.memory_space<vmem>>, vector<256x128xbf16>
    tpu.vector_store %arg9[%c0_9, %c128], %43 {strides = array<i32>} : memref<256x1152xbf16, #tpu.memory_space<vmem>>, vector<256x128xbf16>,
    %c15_i32_10 = arith.constant 15 : i32
    %45 = tpu.dynamic_rotate %33 by %c15_i32_10 dim 0 : vector<256x128xf32>, i32 -> vector<256x128xf32>
    %46 = arith.mulf %20, %32 : vector<256x1xf32>
    %47 = vector.broadcast %46 : vector<256x1xf32> to vector<256x128xf32>
    %48 = arith.mulf %45, %47 : vector<256x128xf32>
    %49 = arith.truncf %48 : vector<256x128xf32> to vector<256x128xbf16>
    %c0_11 = arith.constant 0 : index
    %c256 = arith.constant 256 : index
    %50 = vector.load %arg9[%c0_11, %c256] : memref<256x1152xbf16, #tpu.memory_space<vmem>>, vector<256x128xbf16>
    tpu.vector_store %arg9[%c0_11, %c256], %49 {strides = array<i32>} : memref<256x1152xbf16, #tpu.memory_space<vmem>>, vector<256x128xbf16>,
    %c1_i32_12 = arith.constant 1 : i32
    %51 = tpu.dynamic_rotate %33 by %c1_i32_12 dim 0 : vector<256x128xf32>, i32 -> vector<256x128xf32>
    %52 = vector.broadcast %28 : vector<256x1xf32> to vector<256x128xf32>
    %53 = arith.mulf %51, %52 : vector<256x128xf32>
    %54 = arith.truncf %53 : vector<256x128xf32> to vector<256x128xbf16>
    %c0_13 = arith.constant 0 : index
    %c384 = arith.constant 384 : index
    %55 = vector.load %arg9[%c0_13, %c384] : memref<256x1152xbf16, #tpu.memory_space<vmem>>, vector<256x128xbf16>
    tpu.vector_store %arg9[%c0_13, %c384], %54 {strides = array<i32>} : memref<256x1152xbf16, #tpu.memory_space<vmem>>, vector<256x128xbf16>,
    %56 = arith.truncf %33 : vector<256x128xf32> to vector<256x128xbf16>
    %c0_14 = arith.constant 0 : index
    %c512 = arith.constant 512 : index
    %57 = vector.load %arg9[%c0_14, %c512] : memref<256x1152xbf16, #tpu.memory_space<vmem>>, vector<256x128xbf16>
    tpu.vector_store %arg9[%c0_14, %c512], %56 {strides = array<i32>} : memref<256x1152xbf16, #tpu.memory_space<vmem>>, vector<256x128xbf16>,
    %c255_i32 = arith.constant 255 : i32
    %58 = tpu.dynamic_rotate %33 by %c255_i32 dim 0 : vector<256x128xf32>, i32 -> vector<256x128xf32>
    %59 = vector.broadcast %32 : vector<256x1xf32> to vector<256x128xf32>
    %60 = arith.mulf %58, %59 : vector<256x128xf32>
    %61 = arith.truncf %60 : vector<256x128xf32> to vector<256x128xbf16>
    %c0_15 = arith.constant 0 : index
    %c640 = arith.constant 640 : index
    %62 = vector.load %arg9[%c0_15, %c640] : memref<256x1152xbf16, #tpu.memory_space<vmem>>, vector<256x128xbf16>
    tpu.vector_store %arg9[%c0_15, %c640], %61 {strides = array<i32>} : memref<256x1152xbf16, #tpu.memory_space<vmem>>, vector<256x128xbf16>,
    %c241_i32 = arith.constant 241 : i32
    %63 = tpu.dynamic_rotate %33 by %c241_i32 dim 0 : vector<256x128xf32>, i32 -> vector<256x128xf32>
    %64 = arith.mulf %24, %28 : vector<256x1xf32>
    %65 = vector.broadcast %64 : vector<256x1xf32> to vector<256x128xf32>
    %66 = arith.mulf %63, %65 : vector<256x128xf32>
    %67 = arith.truncf %66 : vector<256x128xf32> to vector<256x128xbf16>
    %c0_16 = arith.constant 0 : index
    %c768 = arith.constant 768 : index
    %68 = vector.load %arg9[%c0_16, %c768] : memref<256x1152xbf16, #tpu.memory_space<vmem>>, vector<256x128xbf16>
    tpu.vector_store %arg9[%c0_16, %c768], %67 {strides = array<i32>} : memref<256x1152xbf16, #tpu.memory_space<vmem>>, vector<256x128xbf16>,
    %c240_i32_17 = arith.constant 240 : i32
    %69 = tpu.dynamic_rotate %33 by %c240_i32_17 dim 0 : vector<256x128xf32>, i32 -> vector<256x128xf32>
    %70 = vector.broadcast %24 : vector<256x1xf32> to vector<256x128xf32>
    %71 = arith.mulf %69, %70 : vector<256x128xf32>
    %72 = arith.truncf %71 : vector<256x128xf32> to vector<256x128xbf16>
    %c0_18 = arith.constant 0 : index
    %c896 = arith.constant 896 : index
    %73 = vector.load %arg9[%c0_18, %c896] : memref<256x1152xbf16, #tpu.memory_space<vmem>>, vector<256x128xbf16>
    tpu.vector_store %arg9[%c0_18, %c896], %72 {strides = array<i32>} : memref<256x1152xbf16, #tpu.memory_space<vmem>>, vector<256x128xbf16>,
    %c239_i32 = arith.constant 239 : i32
    %74 = tpu.dynamic_rotate %33 by %c239_i32 dim 0 : vector<256x128xf32>, i32 -> vector<256x128xf32>
    %75 = arith.mulf %24, %32 : vector<256x1xf32>
    %76 = vector.broadcast %75 : vector<256x1xf32> to vector<256x128xf32>
    %77 = arith.mulf %74, %76 : vector<256x128xf32>
    %78 = arith.truncf %77 : vector<256x128xf32> to vector<256x128xbf16>
    %c0_19 = arith.constant 0 : index
    %c1024 = arith.constant 1024 : index
    %79 = vector.load %arg9[%c0_19, %c1024] : memref<256x1152xbf16, #tpu.memory_space<vmem>>, vector<256x128xbf16>
    tpu.vector_store %arg9[%c0_19, %c1024], %78 {strides = array<i32>} : memref<256x1152xbf16, #tpu.memory_space<vmem>>, vector<256x128xbf16>,
    %c0_20 = arith.constant 0 : index
    %c0_21 = arith.constant 0 : index
    %80 = vector.load %arg9[%c0_20, %c0_21] : memref<256x1152xbf16, #tpu.memory_space<vmem>>, vector<256x1152xbf16>
    %c0_22 = arith.constant 0 : index
    %c0_23 = arith.constant 0 : index
    %81 = vector.load %arg2[%c0_22, %c0_23] : memref<1152x128xbf16, #tpu.memory_space<vmem>>, vector<1152x128xbf16>
    %cst = arith.constant dense<0.000000e+00> : vector<256x128xf32>
    %82 = tpu.matmul %80, %81, %cst {dimension_numbers = #tpu.dot_dimension_numbers<[1], [0], [0], [1], [0, 0, 1, 1], [], []>} : vector<256x1152xbf16>, vector<1152x128xbf16>, vector<256x128xf32> -> vector<256x128xf32>
    %c0_24 = arith.constant 0 : index
    %c0_25 = arith.constant 0 : index
    %83 = vector.load %arg3[%c0_24, %c0_25] : memref<1x128xf32, #tpu.memory_space<vmem>>, vector<1x128xf32>
    %84 = vector.broadcast %83 : vector<1x128xf32> to vector<256x128xf32>
    %85 = arith.mulf %82, %84 : vector<256x128xf32>
    %c0_26 = arith.constant 0 : index
    %c0_27 = arith.constant 0 : index
    %86 = vector.load %arg4[%c0_26, %c0_27] : memref<1x128xf32, #tpu.memory_space<vmem>>, vector<1x128xf32>
    %87 = vector.broadcast %86 : vector<1x128xf32> to vector<256x128xf32>
    %88 = arith.addf %85, %87 : vector<256x128xf32>
    %cst_28 = arith.constant 0.000000e+00 : f32
    %89 = vector.broadcast %cst_28 : f32 to vector<256x128xf32>
    %90 = arith.maximumf %88, %89 : vector<256x128xf32>
    %c17_i32_29 = arith.constant 17 : i32
    %91 = tpu.dynamic_rotate %90 by %c17_i32_29 dim 0 : vector<256x128xf32>, i32 -> vector<256x128xf32>
    %92 = arith.mulf %20, %28 : vector<256x1xf32>
    %93 = vector.broadcast %92 : vector<256x1xf32> to vector<256x128xf32>
    %94 = arith.mulf %91, %93 : vector<256x128xf32>
    %95 = arith.truncf %94 : vector<256x128xf32> to vector<256x128xbf16>
    %c0_30 = arith.constant 0 : index
    %c0_31 = arith.constant 0 : index
    %96 = vector.load %arg9[%c0_30, %c0_31] : memref<256x1152xbf16, #tpu.memory_space<vmem>>, vector<256x128xbf16>
    tpu.vector_store %arg9[%c0_30, %c0_31], %95 {strides = array<i32>} : memref<256x1152xbf16, #tpu.memory_space<vmem>>, vector<256x128xbf16>,
    %c16_i32_32 = arith.constant 16 : i32
    %97 = tpu.dynamic_rotate %90 by %c16_i32_32 dim 0 : vector<256x128xf32>, i32 -> vector<256x128xf32>
    %98 = vector.broadcast %20 : vector<256x1xf32> to vector<256x128xf32>
    %99 = arith.mulf %97, %98 : vector<256x128xf32>
    %100 = arith.truncf %99 : vector<256x128xf32> to vector<256x128xbf16>
    %c0_33 = arith.constant 0 : index
    %c128_34 = arith.constant 128 : index
    %101 = vector.load %arg9[%c0_33, %c128_34] : memref<256x1152xbf16, #tpu.memory_space<vmem>>, vector<256x128xbf16>
    tpu.vector_store %arg9[%c0_33, %c128_34], %100 {strides = array<i32>} : memref<256x1152xbf16, #tpu.memory_space<vmem>>, vector<256x128xbf16>,
    %c15_i32_35 = arith.constant 15 : i32
    %102 = tpu.dynamic_rotate %90 by %c15_i32_35 dim 0 : vector<256x128xf32>, i32 -> vector<256x128xf32>
    %103 = arith.mulf %20, %32 : vector<256x1xf32>
    %104 = vector.broadcast %103 : vector<256x1xf32> to vector<256x128xf32>
    %105 = arith.mulf %102, %104 : vector<256x128xf32>
    %106 = arith.truncf %105 : vector<256x128xf32> to vector<256x128xbf16>
    %c0_36 = arith.constant 0 : index
    %c256_37 = arith.constant 256 : index
    %107 = vector.load %arg9[%c0_36, %c256_37] : memref<256x1152xbf16, #tpu.memory_space<vmem>>, vector<256x128xbf16>
    tpu.vector_store %arg9[%c0_36, %c256_37], %106 {strides = array<i32>} : memref<256x1152xbf16, #tpu.memory_space<vmem>>, vector<256x128xbf16>,
    %c1_i32_38 = arith.constant 1 : i32
    %108 = tpu.dynamic_rotate %90 by %c1_i32_38 dim 0 : vector<256x128xf32>, i32 -> vector<256x128xf32>
    %109 = vector.broadcast %28 : vector<256x1xf32> to vector<256x128xf32>
    %110 = arith.mulf %108, %109 : vector<256x128xf32>
    %111 = arith.truncf %110 : vector<256x128xf32> to vector<256x128xbf16>
    %c0_39 = arith.constant 0 : index
    %c384_40 = arith.constant 384 : index
    %112 = vector.load %arg9[%c0_39, %c384_40] : memref<256x1152xbf16, #tpu.memory_space<vmem>>, vector<256x128xbf16>
    tpu.vector_store %arg9[%c0_39, %c384_40], %111 {strides = array<i32>} : memref<256x1152xbf16, #tpu.memory_space<vmem>>, vector<256x128xbf16>,
    %113 = arith.truncf %90 : vector<256x128xf32> to vector<256x128xbf16>
    %c0_41 = arith.constant 0 : index
    %c512_42 = arith.constant 512 : index
    %114 = vector.load %arg9[%c0_41, %c512_42] : memref<256x1152xbf16, #tpu.memory_space<vmem>>, vector<256x128xbf16>
    tpu.vector_store %arg9[%c0_41, %c512_42], %113 {strides = array<i32>} : memref<256x1152xbf16, #tpu.memory_space<vmem>>, vector<256x128xbf16>,
    %c255_i32_43 = arith.constant 255 : i32
    %115 = tpu.dynamic_rotate %90 by %c255_i32_43 dim 0 : vector<256x128xf32>, i32 -> vector<256x128xf32>
    %116 = vector.broadcast %32 : vector<256x1xf32> to vector<256x128xf32>
    %117 = arith.mulf %115, %116 : vector<256x128xf32>
    %118 = arith.truncf %117 : vector<256x128xf32> to vector<256x128xbf16>
    %c0_44 = arith.constant 0 : index
    %c640_45 = arith.constant 640 : index
    %119 = vector.load %arg9[%c0_44, %c640_45] : memref<256x1152xbf16, #tpu.memory_space<vmem>>, vector<256x128xbf16>
    tpu.vector_store %arg9[%c0_44, %c640_45], %118 {strides = array<i32>} : memref<256x1152xbf16, #tpu.memory_space<vmem>>, vector<256x128xbf16>,
    %c241_i32_46 = arith.constant 241 : i32
    %120 = tpu.dynamic_rotate %90 by %c241_i32_46 dim 0 : vector<256x128xf32>, i32 -> vector<256x128xf32>
    %121 = arith.mulf %24, %28 : vector<256x1xf32>
    %122 = vector.broadcast %121 : vector<256x1xf32> to vector<256x128xf32>
    %123 = arith.mulf %120, %122 : vector<256x128xf32>
    %124 = arith.truncf %123 : vector<256x128xf32> to vector<256x128xbf16>
    %c0_47 = arith.constant 0 : index
    %c768_48 = arith.constant 768 : index
    %125 = vector.load %arg9[%c0_47, %c768_48] : memref<256x1152xbf16, #tpu.memory_space<vmem>>, vector<256x128xbf16>
    tpu.vector_store %arg9[%c0_47, %c768_48], %124 {strides = array<i32>} : memref<256x1152xbf16, #tpu.memory_space<vmem>>, vector<256x128xbf16>,
    %c240_i32_49 = arith.constant 240 : i32
    %126 = tpu.dynamic_rotate %90 by %c240_i32_49 dim 0 : vector<256x128xf32>, i32 -> vector<256x128xf32>
    %127 = vector.broadcast %24 : vector<256x1xf32> to vector<256x128xf32>
    %128 = arith.mulf %126, %127 : vector<256x128xf32>
    %129 = arith.truncf %128 : vector<256x128xf32> to vector<256x128xbf16>
    %c0_50 = arith.constant 0 : index
    %c896_51 = arith.constant 896 : index
    %130 = vector.load %arg9[%c0_50, %c896_51] : memref<256x1152xbf16, #tpu.memory_space<vmem>>, vector<256x128xbf16>
    tpu.vector_store %arg9[%c0_50, %c896_51], %129 {strides = array<i32>} : memref<256x1152xbf16, #tpu.memory_space<vmem>>, vector<256x128xbf16>,
    %c239_i32_52 = arith.constant 239 : i32
    %131 = tpu.dynamic_rotate %90 by %c239_i32_52 dim 0 : vector<256x128xf32>, i32 -> vector<256x128xf32>
    %132 = arith.mulf %24, %32 : vector<256x1xf32>
    %133 = vector.broadcast %132 : vector<256x1xf32> to vector<256x128xf32>
    %134 = arith.mulf %131, %133 : vector<256x128xf32>
    %135 = arith.truncf %134 : vector<256x128xf32> to vector<256x128xbf16>
    %c0_53 = arith.constant 0 : index
    %c1024_54 = arith.constant 1024 : index
    %136 = vector.load %arg9[%c0_53, %c1024_54] : memref<256x1152xbf16, #tpu.memory_space<vmem>>, vector<256x128xbf16>
    tpu.vector_store %arg9[%c0_53, %c1024_54], %135 {strides = array<i32>} : memref<256x1152xbf16, #tpu.memory_space<vmem>>, vector<256x128xbf16>,
    %c0_55 = arith.constant 0 : index
    %c0_56 = arith.constant 0 : index
    %137 = vector.load %arg9[%c0_55, %c0_56] : memref<256x1152xbf16, #tpu.memory_space<vmem>>, vector<256x1152xbf16>
    %c0_57 = arith.constant 0 : index
    %c0_58 = arith.constant 0 : index
    %138 = vector.load %arg5[%c0_57, %c0_58] : memref<1152x128xbf16, #tpu.memory_space<vmem>>, vector<1152x128xbf16>
    %cst_59 = arith.constant dense<0.000000e+00> : vector<256x128xf32>
    %139 = tpu.matmul %137, %138, %cst_59 {dimension_numbers = #tpu.dot_dimension_numbers<[1], [0], [0], [1], [0, 0, 1, 1], [], []>} : vector<256x1152xbf16>, vector<1152x128xbf16>, vector<256x128xf32> -> vector<256x128xf32>
    %c0_60 = arith.constant 0 : index
    %c0_61 = arith.constant 0 : index
    %140 = vector.load %arg6[%c0_60, %c0_61] : memref<1x128xf32, #tpu.memory_space<vmem>>, vector<1x128xf32>
    %141 = vector.broadcast %140 : vector<1x128xf32> to vector<256x128xf32>
    %142 = arith.mulf %139, %141 : vector<256x128xf32>
    %c0_62 = arith.constant 0 : index
    %c0_63 = arith.constant 0 : index
    %143 = vector.load %arg7[%c0_62, %c0_63] : memref<1x128xf32, #tpu.memory_space<vmem>>, vector<1x128xf32>
    %144 = vector.broadcast %143 : vector<1x128xf32> to vector<256x128xf32>
    %145 = arith.addf %142, %144 : vector<256x128xf32>
    %c0_64 = arith.constant 0 : index
    %c0_65 = arith.constant 0 : index
    %146 = vector.load %arg1[%c0_64, %c0_65] : memref<256x128xf32, #tpu.memory_space<vmem>>, vector<256x128xf32>
    %147 = arith.addf %145, %146 : vector<256x128xf32>
    %cst_66 = arith.constant 0.000000e+00 : f32
    %148 = vector.broadcast %cst_66 : f32 to vector<256x128xf32>
    %149 = arith.maximumf %147, %148 : vector<256x128xf32>
    %c0_67 = arith.constant 0 : index
    %c0_68 = arith.constant 0 : index
    %150 = vector.load %arg8[%c0_67, %c0_68] : memref<256x128xf32, #tpu.memory_space<vmem>>, vector<256x128xf32>
    tpu.vector_store %arg8[%c0_67, %c0_68], %149 {strides = array<i32>} : memref<256x128xf32, #tpu.memory_space<vmem>>, vector<256x128xf32>,
    return
  }
  func.func @transform_0(%arg0: i32) -> (i32, i32) {
    %c0_i32 = arith.constant 0 : i32
    %c0_i32_0 = arith.constant 0 : i32
    return %arg0, %c0_i32 : i32, i32
  }
  func.func @transform_1(%arg0: i32) -> (i32, i32) {
    %c0_i32 = arith.constant 0 : i32
    %c0_i32_0 = arith.constant 0 : i32
    %c0_i32_1 = arith.constant 0 : i32
    return %c0_i32, %c0_i32_0 : i32, i32
  }
  func.func @transform_2(%arg0: i32) -> (i32, i32) {
    %c0_i32 = arith.constant 0 : i32
    %c0_i32_0 = arith.constant 0 : i32
    %c0_i32_1 = arith.constant 0 : i32
    return %c0_i32, %c0_i32_0 : i32, i32
  }
  func.func @transform_3(%arg0: i32) -> (i32, i32) {
    %c0_i32 = arith.constant 0 : i32
    %c0_i32_0 = arith.constant 0 : i32
    %c0_i32_1 = arith.constant 0 : i32
    return %c0_i32, %c0_i32_0 : i32, i32
  }
  func.func @transform_4(%arg0: i32) -> (i32, i32) {
    %c0_i32 = arith.constant 0 : i32
    %c0_i32_0 = arith.constant 0 : i32
    %c0_i32_1 = arith.constant 0 : i32
    return %c0_i32, %c0_i32_0 : i32, i32
  }
  func.func @transform_5(%arg0: i32) -> (i32, i32) {
    %c0_i32 = arith.constant 0 : i32
    %c0_i32_0 = arith.constant 0 : i32
    %c0_i32_1 = arith.constant 0 : i32
    return %c0_i32, %c0_i32_0 : i32, i32
  }
  func.func @transform_6(%arg0: i32) -> (i32, i32) {
    %c0_i32 = arith.constant 0 : i32
    %c0_i32_0 = arith.constant 0 : i32
    %c0_i32_1 = arith.constant 0 : i32
    return %c0_i32, %c0_i32_0 : i32, i32
  }
  func.func @transform_7(%arg0: i32) -> (i32, i32) {
    %c0_i32 = arith.constant 0 : i32
    %c0_i32_0 = arith.constant 0 : i32
    return %arg0, %c0_i32 : i32, i32
  }
}

</mosaic_0001>

<llo_original>
// kernel: _lambda_.1
$region0: #{_lambda_.1}
  #allocation0 [shape = 'u32[]', space=smem, size = 0x4, offset = 0x4, fixed_abs, tag = 'smem constant byte address 0x4 - core index']
  #allocation1 [shape = 'u32[144,128]{1,0:T(1,128)}', space=vmem, size = 0x12000, scoped, tag = 'internal scratch']
  #allocation2 [shape = 'bf16[256,1152]{1,0:T(16,128)(2,1)}', space=vmem, size = 0x90000, scoped, tag = 'scratch operand']
  %s0 = inlined_call_operand.hbm [shape: f32[512,128], index: 0, kind: input, shape index: {}]
  %s1 = inlined_call_operand.hbm [shape: bf16[1152,128], index: 1, kind: input, shape index: {}]
  %s2 = inlined_call_operand.vmem [shape: f32[1,128], index: 2, kind: input, shape index: {}]
  %s3 = inlined_call_operand.vmem [shape: f32[1,128], index: 3, kind: input, shape index: {}]
  %s4 = inlined_call_operand.hbm [shape: bf16[1152,128], index: 4, kind: input, shape index: {}]
  %s5 = inlined_call_operand.vmem [shape: f32[1,128], index: 5, kind: input, shape index: {}]
  %s6 = inlined_call_operand.vmem [shape: f32[1,128], index: 6, kind: input, shape index: {}]
  %s7 = inlined_call_operand.hbm [shape: f32[512,128], index: 7, kind: output, shape index: {}]
  %s8 = sld [smem:[#allocation0]]
  $region73: #{_lambda_.1} parent=0
    _
  %s10 = ssub.s32 1, %s8
  %s11 = scalar_select 0, %s10, %s8
  $region1: #{_lambda_.1} parent=0
    #allocation3 [shape = 'u8[262144]{0}', space=vmem, size = 0x40000, scoped, tag = 'input window, operand 0']
    #allocation4 [shape = 's32[2]{0}', space=sflag, size = 0x8, scoped, tag = 'scoped memory for _lambda_.1']
    #allocation5 [shape = 's32[2]{0}', space=sflag, size = 0x8, scoped, tag = 'scoped memory for _lambda_.1']
    #allocation6 [shape = 'u8[294912]{0}', space=vmem, size = 0x48000, scoped, tag = 'input window, operand 1, single buffered']
    #allocation7 [shape = 's32[1]{0}', space=sflag, size = 0x4, scoped, tag = 'scoped memory for _lambda_.1']
    #allocation8 [shape = 'u8[294912]{0}', space=vmem, size = 0x48000, scoped, tag = 'input window, operand 4, single buffered']
    #allocation9 [shape = 'u8[262144]{0}', space=vmem, size = 0x40000, scoped, tag = 'output window, operand 0']
    %12 = vsyncpa [#allocation4], 0
    %s13 = scalar_lea.sflag [#allocation4], 1
    %14 = vsyncpa %s13, 0
    %15 = vsyncpa [#allocation7], 0
    %16 = vsyncpa [#allocation5], 0
    %s17 = scalar_lea.sflag [#allocation5], 1
    %18 = vsyncpa %s17, 0
    loop: start=0, step=1, limit=4
    $region2: #{_lambda_.1} parent=1 // loop_pre_header
      _
    $region3: #{_lambda_.1} parent=1 // loop_header
      %s20 = sphi 0, %s24
      %p21 = scmp.ge.s32.totalorder %s20, 4
      %s30 = sphi 0, %s32
      %s33 = sphi 0, %s30
      %s34 = sphi 0, %s33
      %s50 = sphi 0, %s34
      %s54 = sphi 0, %s54
      %s56 = sphi 0, %s54
      %s57 = sphi 0, %s56
      %s71 = sphi 0, %s57
      %s75 = sphi 0, %s75
      %s77 = sphi 0, %s75
      %s78 = sphi 0, %s77
      %s92 = sphi 0, %s78
      %s96 = sphi 0, %s96
      %s98 = sphi 0, %s96
      %s99 = sphi 0, %s98
      %s113 = sphi 0, %s99
      %s117 = sphi 0, %s117
      %s119 = sphi 0, %s117
      %s120 = sphi 0, %s119
      %s134 = sphi 0, %s120
      %s138 = sphi 0, %s138
      %s140 = sphi 0, %s138
      %s141 = sphi 0, %s140
      %s155 = sphi 0, %s141
      %s159 = sphi 0, %s159
      %s161 = sphi 0, %s159
      %s162 = sphi 0, %s161
      %s176 = sphi 0, %s162
      %s182 = sphi 0, %s184
      %s185 = sphi 0, %s182
      %s186 = sphi 0, %s185
      %s202 = sphi 0, %s186
    $region4: #{_lambda_.1} parent=1 // loop_header_branch
      %23 = sbr.rel (%p21) target = $region8
    $region5: #{_lambda_.1} parent=1 // loop_body
      %s25 = ssub.s32 %s20, 1
      %s26 = ssub.s32 %s20, 2
      %s27 = sadd.s32 %s20, 1
      %s28 = ssub.s32 %s20, %s27
      %p29 = scmp.eq.s32.totalorder %s28, 0
      %s31 = sadd.s32 %s30, 1
      %s32 = scalar_select %p29, %s30, %s31
      %p35 = pneg %p29
      %p36 = scmp.eq.s32.totalorder %s20, 1
      %p37 = por %p35, %p36
      %p38 = scmp.ne.s32.totalorder %s30, %s33
      %p39 = scmp.eq.s32.totalorder %s20, 0
      %p40 = por %p38, %p39
      %p41 = scmp.ne.s32.totalorder %s30, %s33
      %p42 = scmp.eq.s32.totalorder %s25, 1
      %p43 = por %p41, %p42
      %p44 = scmp.ne.s32.totalorder %s33, %s34
      %p45 = scmp.eq.s32.totalorder %s25, 0
      %p46 = por %p44, %p45
      %p47 = scmp.ne.s32.totalorder %s33, %s34
      %p48 = scmp.eq.s32.totalorder %s26, 1
      %p49 = por %p47, %p48
      %p51 = scmp.ne.s32.totalorder %s34, %s50
      %p52 = scmp.eq.s32.totalorder %s26, 0
      %p53 = por %p51, %p52
      %s55 = sadd.s32 %s54, 1
      %p58 = scmp.eq.s32.totalorder %s20, 1
      %p59 = scmp.ne.s32.totalorder %s54, %s56
      %p60 = scmp.eq.s32.totalorder %s20, 0
      %p61 = por %p59, %p60
      %p62 = scmp.ne.s32.totalorder %s54, %s56
      %p63 = scmp.eq.s32.totalorder %s25, 1
      %p64 = por %p62, %p63
      %p65 = scmp.ne.s32.totalorder %s56, %s57
      %p66 = scmp.eq.s32.totalorder %s25, 0
      %p67 = por %p65, %p66
      %p68 = scmp.ne.s32.totalorder %s56, %s57
      %p69 = scmp.eq.s32.totalorder %s26, 1
      %p70 = por %p68, %p69
      %p72 = scmp.ne.s32.totalorder %s57, %s71
      %p73 = scmp.eq.s32.totalorder %s26, 0
      %p74 = por %p72, %p73
      %s76 = sadd.s32 %s75, 1
      %p79 = scmp.eq.s32.totalorder %s20, 1
      %p80 = scmp.ne.s32.totalorder %s75, %s77
      %p81 = scmp.eq.s32.totalorder %s20, 0
      %p82 = por %p80, %p81
      %p83 = scmp.ne.s32.totalorder %s75, %s77
      %p84 = scmp.eq.s32.totalorder %s25, 1
      %p85 = por %p83, %p84
      %p86 = scmp.ne.s32.totalorder %s77, %s78
      %p87 = scmp.eq.s32.totalorder %s25, 0
      %p88 = por %p86, %p87
      %p89 = scmp.ne.s32.totalorder %s77, %s78
      %p90 = scmp.eq.s32.totalorder %s26, 1
      %p91 = por %p89, %p90
      %p93 = scmp.ne.s32.totalorder %s78, %s92
      %p94 = scmp.eq.s32.totalorder %s26, 0
      %p95 = por %p93, %p94
      %s97 = sadd.s32 %s96, 1
      %p100 = scmp.eq.s32.totalorder %s20, 1
      %p101 = scmp.ne.s32.totalorder %s96, %s98
      %p102 = scmp.eq.s32.totalorder %s20, 0
      %p103 = por %p101, %p102
      %p104 = scmp.ne.s32.totalorder %s96, %s98
      %p105 = scmp.eq.s32.totalorder %s25, 1
      %p106 = por %p104, %p105
      %p107 = scmp.ne.s32.totalorder %s98, %s99
      %p108 = scmp.eq.s32.totalorder %s25, 0
      %p109 = por %p107, %p108
      %p110 = scmp.ne.s32.totalorder %s98, %s99
      %p111 = scmp.eq.s32.totalorder %s26, 1
      %p112 = por %p110, %p111
      %p114 = scmp.ne.s32.totalorder %s99, %s113
      %p115 = scmp.eq.s32.totalorder %s26, 0
      %p116 = por %p114, %p115
      %s118 = sadd.s32 %s117, 1
      %p121 = scmp.eq.s32.totalorder %s20, 1
      %p122 = scmp.ne.s32.totalorder %s117, %s119
      %p123 = scmp.eq.s32.totalorder %s20, 0
      %p124 = por %p122, %p123
      %p125 = scmp.ne.s32.totalorder %s117, %s119
      %p126 = scmp.eq.s32.totalorder %s25, 1
      %p127 = por %p125, %p126
      %p128 = scmp.ne.s32.totalorder %s119, %s120
      %p129 = scmp.eq.s32.totalorder %s25, 0
      %p130 = por %p128, %p129
      %p131 = scmp.ne.s32.totalorder %s119, %s120
      %p132 = scmp.eq.s32.totalorder %s26, 1
      %p133 = por %p131, %p132
      %p135 = scmp.ne.s32.totalorder %s120, %s134
      %p136 = scmp.eq.s32.totalorder %s26, 0
      %p137 = por %p135, %p136
      %s139 = sadd.s32 %s138, 1
      %p142 = scmp.eq.s32.totalorder %s20, 1
      %p143 = scmp.ne.s32.totalorder %s138, %s140
      %p144 = scmp.eq.s32.totalorder %s20, 0
      %p145 = por %p143, %p144
      %p146 = scmp.ne.s32.totalorder %s138, %s140
      %p147 = scmp.eq.s32.totalorder %s25, 1
      %p148 = por %p146, %p147
      %p149 = scmp.ne.s32.totalorder %s140, %s141
      %p150 = scmp.eq.s32.totalorder %s25, 0
      %p151 = por %p149, %p150
      %p152 = scmp.ne.s32.totalorder %s140, %s141
      %p153 = scmp.eq.s32.totalorder %s26, 1
      %p154 = por %p152, %p153
      %p156 = scmp.ne.s32.totalorder %s141, %s155
      %p157 = scmp.eq.s32.totalorder %s26, 0
      %p158 = por %p156, %p157
      %s160 = sadd.s32 %s159, 1
      %p163 = scmp.eq.s32.totalorder %s20, 1
      %p164 = scmp.ne.s32.totalorder %s159, %s161
      %p165 = scmp.eq.s32.totalorder %s20, 0
      %p166 = por %p164, %p165
      %p167 = scmp.ne.s32.totalorder %s159, %s161
      %p168 = scmp.eq.s32.totalorder %s25, 1
      %p169 = por %p167, %p168
      %p170 = scmp.ne.s32.totalorder %s161, %s162
      %p171 = scmp.eq.s32.totalorder %s25, 0
      %p172 = por %p170, %p171
      %p173 = scmp.ne.s32.totalorder %s161, %s162
      %p174 = scmp.eq.s32.totalorder %s26, 1
      %p175 = por %p173, %p174
      %p177 = scmp.ne.s32.totalorder %s162, %s176
      %p178 = scmp.eq.s32.totalorder %s26, 0
      %p179 = por %p177, %p178
      %s180 = ssub.s32 %s20, %s27
      %p181 = scmp.eq.s32.totalorder %s180, 0
      %s183 = sadd.s32 %s182, 1
      %s184 = scalar_select %p181, %s182, %s183
      %p187 = pneg %p181
      %p188 = scmp.eq.s32.totalorder %s20, 1
      %p189 = por %p187, %p188
      %p190 = scmp.ne.s32.totalorder %s182, %s185
      %p191 = scmp.eq.s32.totalorder %s20, 0
      %p192 = por %p190, %p191
      %p193 = scmp.ne.s32.totalorder %s182, %s185
      %p194 = scmp.eq.s32.totalorder %s25, 1
      %p195 = por %p193, %p194
      %p196 = scmp.ne.s32.totalorder %s185, %s186
      %p197 = scmp.eq.s32.totalorder %s25, 0
      %p198 = por %p196, %p197
      %p199 = scmp.ne.s32.totalorder %s185, %s186
      %p200 = scmp.eq.s32.totalorder %s26, 1
      %p201 = por %p199, %p200
      %p203 = scmp.ne.s32.totalorder %s186, %s202
      %p204 = scmp.eq.s32.totalorder %s26, 0
      %p205 = por %p203, %p204
      %p206 = scmp.le.s32.totalorder 1, %s20
      %p207 = scmp.lt.s32.totalorder %s20, 3
      %p208 = pnand %p206, %p207
      %p209 = pneg %p208
      // Predicated region
      $region9: #{_lambda_.1} parent=5 // pred_check
        _
      $region10: #{_lambda_.1} parent=5 // pred_check_branch
        %211 = sbr.rel (%p208) target = $region12
      $region11: #{_lambda_.1} parent=5 // pred_region
        %s212 = ssub.s32 %s20, 1
        // Predicated region
        $region13: #{_lambda_.1} parent=11 // pred_check
          %p213 = pneg %p67
        $region14: #{_lambda_.1} parent=11 // pred_check_branch
          %215 = sbr.rel (%p213) target = $region16
        $region15: #{_lambda_.1} parent=11 // pred_region
          %s217 = ssub.s32 9216, 9216
          %218 = vsyncadd [#allocation7], %s217
          %s219 = sshll.u32 [#allocation6], 4
          %s220 = int_to_ptr.vmem [resolvable:$true] %s219
          %225 = dma.hbm_to_vmem [thread:$0]  %s1, 9216, %s220, [#allocation7], 64, 64, 4
        $region16: #{_lambda_.1} parent=11 // pred_fallthru
          _
        // Predicated region
        $region17: #{_lambda_.1} parent=11 // pred_check
          %p226 = pneg %p88
        $region18: #{_lambda_.1} parent=11 // pred_check_branch
          %228 = sbr.rel (%p226) target = $region20
        $region19: #{_lambda_.1} parent=11 // pred_region
          _
        $region20: #{_lambda_.1} parent=11 // pred_fallthru
          _
        // Predicated region
        $region21: #{_lambda_.1} parent=11 // pred_check
          %p229 = pneg %p109
        $region22: #{_lambda_.1} parent=11 // pred_check_branch
          %231 = sbr.rel (%p229) target = $region24
        $region23: #{_lambda_.1} parent=11 // pred_region
          _
        $region24: #{_lambda_.1} parent=11 // pred_fallthru
          _
        // Predicated region
        $region25: #{_lambda_.1} parent=11 // pred_check
          %p232 = pneg %p130
        $region26: #{_lambda_.1} parent=11 // pred_check_branch
          %234 = sbr.rel (%p232) target = $region28
        $region27: #{_lambda_.1} parent=11 // pred_region
          %s236 = ssub.s32 9216, 9216
          %237 = vsyncadd [#allocation7], %s236
          %s238 = sshll.u32 [#allocation8], 4
          %s239 = int_to_ptr.vmem [resolvable:$true] %s238
          %244 = dma.hbm_to_vmem [thread:$0]  %s4, 9216, %s239, [#allocation7], 64, 64, 4
        $region28: #{_lambda_.1} parent=11 // pred_fallthru
          _
        // Predicated region
        $region29: #{_lambda_.1} parent=11 // pred_check
          %p245 = pneg %p151
        $region30: #{_lambda_.1} parent=11 // pred_check_branch
          %247 = sbr.rel (%p245) target = $region32
        $region31: #{_lambda_.1} parent=11 // pred_region
          _
        $region32: #{_lambda_.1} parent=11 // pred_fallthru
          _
        // Predicated region
        $region33: #{_lambda_.1} parent=11 // pred_check
          %p248 = pneg %p172
        $region34: #{_lambda_.1} parent=11 // pred_check_branch
          %250 = sbr.rel (%p248) target = $region36
        $region35: #{_lambda_.1} parent=11 // pred_region
          _
        $region36: #{_lambda_.1} parent=11 // pred_fallthru
          _
      $region12: #{_lambda_.1} parent=5 // pred_fallthru
        _
      %p251 = scmp.lt.s32.totalorder %s20, 2
      // Predicated region
      $region37: #{_lambda_.1} parent=5 // pred_check
        %p252 = pneg %p251
      $region38: #{_lambda_.1} parent=5 // pred_check_branch
        %254 = sbr.rel (%p252) target = $region40
      $region39: #{_lambda_.1} parent=5 // pred_region
        // Predicated region
        $region41: #{_lambda_.1} parent=39 // pred_check
          %p255 = pneg %p40
        $region42: #{_lambda_.1} parent=39 // pred_check_branch
          %257 = sbr.rel (%p255) target = $region44
        $region43: #{_lambda_.1} parent=39 // pred_region
          %s258 = sand.u32 %s30, 1
          %s259 = scalar_lea.sflag [#allocation4], %s258
          %s260 = sand.u32 %s30, 1
          %s261 = smul.addr %s260, 256
          %s262 = scalar_lea.vmem [#allocation3], %s261
          %s263 = smul.u32 32, %s20
          %s265 = ssub.s32 4096, 4096
          %266 = vsyncadd %s259, %s265
          %s267 = smul.addr %s263, 128
          %s268 = scalar_lea.hbm %s0, %s267
          %s269 = sshll.u32 %s262, 4
          %s270 = int_to_ptr.vmem [resolvable:$true] %s269
          %275 = dma.hbm_to_vmem [thread:$0]  %s268, 4096, %s270, %s259, 128, 128, 8
        $region44: #{_lambda_.1} parent=39 // pred_fallthru
          _
      $region40: #{_lambda_.1} parent=5 // pred_fallthru
        _
      %p276 = scmp.le.s32.totalorder 1, %s20
      %p277 = scmp.lt.s32.totalorder %s20, 3
      %p278 = pnand %p276, %p277
      %p279 = pneg %p278
      // Predicated region
      $region45: #{_lambda_.1} parent=5 // pred_check
        _
      $region46: #{_lambda_.1} parent=5 // pred_check_branch
        %281 = sbr.rel (%p278) target = $region48
      $region47: #{_lambda_.1} parent=5 // pred_region
        %s282 = ssub.s32 %s20, 1
        %s283 = sand.u32 %s33, 1
        %s284 = scalar_lea.sflag [#allocation4], %s283
        %s285 = sand.u32 %s33, 1
        %s286 = smul.addr %s285, 256
        %s287 = scalar_lea.vmem [#allocation3], %s286
        // Predicated region
        $region49: #{_lambda_.1} parent=47 // pred_check
          %p288 = pneg %p46
        $region50: #{_lambda_.1} parent=47 // pred_check_branch
          %290 = sbr.rel (%p288) target = $region52
        $region51: #{_lambda_.1} parent=47 // pred_region
          %291 = dma.done %s284, 4096
        $region52: #{_lambda_.1} parent=47 // pred_fallthru
          _
        // Predicated region
        $region53: #{_lambda_.1} parent=47 // pred_check
          %p292 = pneg %p67
        $region54: #{_lambda_.1} parent=47 // pred_check_branch
          %294 = sbr.rel (%p292) target = $region56
        $region55: #{_lambda_.1} parent=47 // pred_region
          %295 = dma.done [#allocation7], 9216
        $region56: #{_lambda_.1} parent=47 // pred_fallthru
          _
        // Predicated region
        $region57: #{_lambda_.1} parent=47 // pred_check
          %p296 = pneg %p130
        $region58: #{_lambda_.1} parent=47 // pred_check_branch
          %298 = sbr.rel (%p296) target = $region60
        $region59: #{_lambda_.1} parent=47 // pred_region
          %299 = dma.done [#allocation7], 9216
        $region60: #{_lambda_.1} parent=47 // pred_fallthru
          _
        %s300 = sand.u32 %s33, 1
        %s301 = scalar_lea.sflag [#allocation4], %s300
        %s302 = sand.u32 %s33, 1
        %s303 = smul.addr %s302, 256
        %s304 = scalar_lea.vmem [#allocation3], %s303
        %p305 = pneg %p46
        %p306 = pneg %p43
        %p307 = pneg %p67
        %p308 = pneg %p64
        %p309 = pneg %p88
        %p310 = pneg %p85
        %p311 = pneg %p109
        %p312 = pneg %p106
        %p313 = pneg %p130
        %p314 = pneg %p127
        %p315 = pneg %p151
        %p316 = pneg %p148
        %p317 = pneg %p172
        %p318 = pneg %p169
        %p319 = pneg %p198
        %p320 = pneg %p195
        %s321 = sand.u32 %s185, 1
        %s322 = scalar_lea.sflag [#allocation5], %s321
        %s323 = sand.u32 %s185, 1
        %s324 = smul.addr %s323, 256
        %s325 = scalar_lea.vmem [#allocation9], %s324
        %s326 = smul.u32 32, %s25
        %s327 = smul.u32 32, %s25
        %v329 = vlaneseq
        %v330 = vshrl.u32 %v329, 7
        %v331 = vadd.s32 %v330, 8
        %v332 = vadd.s32 %v330, 16
        %v333 = vadd.s32 %v330, 24
        %v334 = vadd.s32 %v330, 32
        %v335 = vadd.s32 %v330, 40
        %v336 = vadd.s32 %v330, 48
        %v337 = vadd.s32 %v330, 56
        %v338 = vadd.s32 %v330, 64
        %v339 = vadd.s32 %v330, 72
        %v340 = vadd.s32 %v330, 80
        %v341 = vadd.s32 %v330, 88
        %v342 = vadd.s32 %v330, 96
        %v343 = vadd.s32 %v330, 104
        %v344 = vadd.s32 %v330, 112
        %v345 = vadd.s32 %v330, 120
        %v346 = vadd.s32 %v330, 128
        %v347 = vadd.s32 %v330, 136
        %v348 = vadd.s32 %v330, 144
        %v349 = vadd.s32 %v330, 152
        %v350 = vadd.s32 %v330, 160
        %v351 = vadd.s32 %v330, 168
        %v352 = vadd.s32 %v330, 176
        %v353 = vadd.s32 %v330, 184
        %v354 = vadd.s32 %v330, 192
        %v355 = vadd.s32 %v330, 200
        %v356 = vadd.s32 %v330, 208
        %v357 = vadd.s32 %v330, 216
        %v358 = vadd.s32 %v330, 224
        %v359 = vadd.s32 %v330, 232
        %v360 = vadd.s32 %v330, 240
        %v361 = vadd.s32 %v330, 248
        %vm362 = vcmp.lt.s32.totalorder %v330, 0
        %v363 = vsub.s32 0, %v330
        %v364 = vsel %vm362, %v363, %v330
        %v365 = vshrl.u32 %v364, 4
        %v366 = vand.u32 %v364, 15
        %v367 = vsub.s32 0, %v366
        %v368 = vsel %vm362, %v367, %v366
        %vm369 = vcmp.lt.s32.totalorder %v331, 0
        %v370 = vsub.s32 0, %v331
        %v371 = vsel %vm369, %v370, %v331
        %v372 = vshrl.u32 %v371, 4
        %v373 = vand.u32 %v371, 15
        %v374 = vsub.s32 0, %v373
        %v375 = vsel %vm369, %v374, %v373
        %vm376 = vcmp.lt.s32.totalorder %v332, 0
        %v377 = vsub.s32 0, %v332
        %v378 = vsel %vm376, %v377, %v332
        %v379 = vshrl.u32 %v378, 4
        %v380 = vand.u32 %v378, 15
        %v381 = vsub.s32 0, %v380
        %v382 = vsel %vm376, %v381, %v380
        %vm383 = vcmp.lt.s32.totalorder %v333, 0
        %v384 = vsub.s32 0, %v333
        %v385 = vsel %vm383, %v384, %v333
        %v386 = vshrl.u32 %v385, 4
        %v387 = vand.u32 %v385, 15
        %v388 = vsub.s32 0, %v387
        %v389 = vsel %vm383, %v388, %v387
        %vm390 = vcmp.lt.s32.totalorder %v334, 0
        %v391 = vsub.s32 0, %v334
        %v392 = vsel %vm390, %v391, %v334
        %v393 = vshrl.u32 %v392, 4
        %v394 = vand.u32 %v392, 15
        %v395 = vsub.s32 0, %v394
        %v396 = vsel %vm390, %v395, %v394
        %vm397 = vcmp.lt.s32.totalorder %v335, 0
        %v398 = vsub.s32 0, %v335
        %v399 = vsel %vm397, %v398, %v335
        %v400 = vshrl.u32 %v399, 4
        %v401 = vand.u32 %v399, 15
        %v402 = vsub.s32 0, %v401
        %v403 = vsel %vm397, %v402, %v401
        %vm404 = vcmp.lt.s32.totalorder %v336, 0
        %v405 = vsub.s32 0, %v336
        %v406 = vsel %vm404, %v405, %v336
        %v407 = vshrl.u32 %v406, 4
        %v408 = vand.u32 %v406, 15
        %v409 = vsub.s32 0, %v408
        %v410 = vsel %vm404, %v409, %v408
        %vm411 = vcmp.lt.s32.totalorder %v337, 0
        %v412 = vsub.s32 0, %v337
        %v413 = vsel %vm411, %v412, %v337
        %v414 = vshrl.u32 %v413, 4
        %v415 = vand.u32 %v413, 15
        %v416 = vsub.s32 0, %v415
        %v417 = vsel %vm411, %v416, %v415
        %vm418 = vcmp.lt.s32.totalorder %v338, 0
        %v419 = vsub.s32 0, %v338
        %v420 = vsel %vm418, %v419, %v338
        %v421 = vshrl.u32 %v420, 4
        %v422 = vand.u32 %v420, 15
        %v423 = vsub.s32 0, %v422
        %v424 = vsel %vm418, %v423, %v422
        %vm425 = vcmp.lt.s32.totalorder %v339, 0
        %v426 = vsub.s32 0, %v339
        %v427 = vsel %vm425, %v426, %v339
        %v428 = vshrl.u32 %v427, 4
        %v429 = vand.u32 %v427, 15
        %v430 = vsub.s32 0, %v429
        %v431 = vsel %vm425, %v430, %v429
        %vm432 = vcmp.lt.s32.totalorder %v340, 0
        %v433 = vsub.s32 0, %v340
        %v434 = vsel %vm432, %v433, %v340
        %v435 = vshrl.u32 %v434, 4
        %v436 = vand.u32 %v434, 15
        %v437 = vsub.s32 0, %v436
        %v438 = vsel %vm432, %v437, %v436
        %vm439 = vcmp.lt.s32.totalorder %v341, 0
        %v440 = vsub.s32 0, %v341
        %v441 = vsel %vm439, %v440, %v341
        %v442 = vshrl.u32 %v441, 4
        %v443 = vand.u32 %v441, 15
        %v444 = vsub.s32 0, %v443
        %v445 = vsel %vm439, %v444, %v443
        %vm446 = vcmp.lt.s32.totalorder %v342, 0
        %v447 = vsub.s32 0, %v342
        %v448 = vsel %vm446, %v447, %v342
        %v449 = vshrl.u32 %v448, 4
        %v450 = vand.u32 %v448, 15
        %v451 = vsub.s32 0, %v450
        %v452 = vsel %vm446, %v451, %v450
        %vm453 = vcmp.lt.s32.totalorder %v343, 0
        %v454 = vsub.s32 0, %v343
        %v455 = vsel %vm453, %v454, %v343
        %v456 = vshrl.u32 %v455, 4
        %v457 = vand.u32 %v455, 15
        %v458 = vsub.s32 0, %v457
        %v459 = vsel %vm453, %v458, %v457
        %vm460 = vcmp.lt.s32.totalorder %v344, 0
        %v461 = vsub.s32 0, %v344
        %v462 = vsel %vm460, %v461, %v344
        %v463 = vshrl.u32 %v462, 4
        %v464 = vand.u32 %v462, 15
        %v465 = vsub.s32 0, %v464
        %v466 = vsel %vm460, %v465, %v464
        %vm467 = vcmp.lt.s32.totalorder %v345, 0
        %v468 = vsub.s32 0, %v345
        %v469 = vsel %vm467, %v468, %v345
        %v470 = vshrl.u32 %v469, 4
        %v471 = vand.u32 %v469, 15
        %v472 = vsub.s32 0, %v471
        %v473 = vsel %vm467, %v472, %v471
        %vm474 = vcmp.lt.s32.totalorder %v346, 0
        %v475 = vsub.s32 0, %v346
        %v476 = vsel %vm474, %v475, %v346
        %v477 = vshrl.u32 %v476, 4
        %v478 = vand.u32 %v476, 15
        %v479 = vsub.s32 0, %v478
        %v480 = vsel %vm474, %v479, %v478
        %vm481 = vcmp.lt.s32.totalorder %v347, 0
        %v482 = vsub.s32 0, %v347
        %v483 = vsel %vm481, %v482, %v347
        %v484 = vshrl.u32 %v483, 4
        %v485 = vand.u32 %v483, 15
        %v486 = vsub.s32 0, %v485
        %v487 = vsel %vm481, %v486, %v485
        %vm488 = vcmp.lt.s32.totalorder %v348, 0
        %v489 = vsub.s32 0, %v348
        %v490 = vsel %vm488, %v489, %v348
        %v491 = vshrl.u32 %v490, 4
        %v492 = vand.u32 %v490, 15
        %v493 = vsub.s32 0, %v492
        %v494 = vsel %vm488, %v493, %v492
        %vm495 = vcmp.lt.s32.totalorder %v349, 0
        %v496 = vsub.s32 0, %v349
        %v497 = vsel %vm495, %v496, %v349
        %v498 = vshrl.u32 %v497, 4
        %v499 = vand.u32 %v497, 15
        %v500 = vsub.s32 0, %v499
        %v501 = vsel %vm495, %v500, %v499
        %vm502 = vcmp.lt.s32.totalorder %v350, 0
        %v503 = vsub.s32 0, %v350
        %v504 = vsel %vm502, %v503, %v350
        %v505 = vshrl.u32 %v504, 4
        %v506 = vand.u32 %v504, 15
        %v507 = vsub.s32 0, %v506
        %v508 = vsel %vm502, %v507, %v506
        %vm509 = vcmp.lt.s32.totalorder %v351, 0
        %v510 = vsub.s32 0, %v351
        %v511 = vsel %vm509, %v510, %v351
        %v512 = vshrl.u32 %v511, 4
        %v513 = vand.u32 %v511, 15
        %v514 = vsub.s32 0, %v513
        %v515 = vsel %vm509, %v514, %v513
        %vm516 = vcmp.lt.s32.totalorder %v352, 0
        %v517 = vsub.s32 0, %v352
        %v518 = vsel %vm516, %v517, %v352
        %v519 = vshrl.u32 %v518, 4
        %v520 = vand.u32 %v518, 15
        %v521 = vsub.s32 0, %v520
        %v522 = vsel %vm516, %v521, %v520
        %vm523 = vcmp.lt.s32.totalorder %v353, 0
        %v524 = vsub.s32 0, %v353
        %v525 = vsel %vm523, %v524, %v353
        %v526 = vshrl.u32 %v525, 4
        %v527 = vand.u32 %v525, 15
        %v528 = vsub.s32 0, %v527
        %v529 = vsel %vm523, %v528, %v527
        %vm530 = vcmp.lt.s32.totalorder %v354, 0
        %v531 = vsub.s32 0, %v354
        %v532 = vsel %vm530, %v531, %v354
        %v533 = vshrl.u32 %v532, 4
        %v534 = vand.u32 %v532, 15
        %v535 = vsub.s32 0, %v534
        %v536 = vsel %vm530, %v535, %v534
        %vm537 = vcmp.lt.s32.totalorder %v355, 0
        %v538 = vsub.s32 0, %v355
        %v539 = vsel %vm537, %v538, %v355
        %v540 = vshrl.u32 %v539, 4
        %v541 = vand.u32 %v539, 15
        %v542 = vsub.s32 0, %v541
        %v543 = vsel %vm537, %v542, %v541
        %vm544 = vcmp.lt.s32.totalorder %v356, 0
        %v545 = vsub.s32 0, %v356
        %v546 = vsel %vm544, %v545, %v356
        %v547 = vshrl.u32 %v546, 4
        %v548 = vand.u32 %v546, 15
        %v549 = vsub.s32 0, %v548
        %v550 = vsel %vm544, %v549, %v548
        %vm551 = vcmp.lt.s32.totalorder %v357, 0
        %v552 = vsub.s32 0, %v357
        %v553 = vsel %vm551, %v552, %v357
        %v554 = vshrl.u32 %v553, 4
        %v555 = vand.u32 %v553, 15
        %v556 = vsub.s32 0, %v555
        %v557 = vsel %vm551, %v556, %v555
        %vm558 = vcmp.lt.s32.totalorder %v358, 0
        %v559 = vsub.s32 0, %v358
        %v560 = vsel %vm558, %v559, %v358
        %v561 = vshrl.u32 %v560, 4
        %v562 = vand.u32 %v560, 15
        %v563 = vsub.s32 0, %v562
        %v564 = vsel %vm558, %v563, %v562
        %vm565 = vcmp.lt.s32.totalorder %v359, 0
        %v566 = vsub.s32 0, %v359
        %v567 = vsel %vm565, %v566, %v359
        %v568 = vshrl.u32 %v567, 4
        %v569 = vand.u32 %v567, 15
        %v570 = vsub.s32 0, %v569
        %v571 = vsel %vm565, %v570, %v569
        %vm572 = vcmp.lt.s32.totalorder %v360, 0
        %v573 = vsub.s32 0, %v360
        %v574 = vsel %vm572, %v573, %v360
        %v575 = vshrl.u32 %v574, 4
        %v576 = vand.u32 %v574, 15
        %v577 = vsub.s32 0, %v576
        %v578 = vsel %vm572, %v577, %v576
        %vm579 = vcmp.lt.s32.totalorder %v361, 0
        %v580 = vsub.s32 0, %v361
        %v581 = vsel %vm579, %v580, %v361
        %v582 = vshrl.u32 %v581, 4
        %v583 = vand.u32 %v581, 15
        %v584 = vsub.s32 0, %v583
        %v585 = vsel %vm579, %v584, %v583
        %vm586 = vcmp.ne.s32.totalorder %v368, 0
        %vm587 = vcmp.ne.s32.totalorder %v375, 0
        %vm588 = vcmp.ne.s32.totalorder %v382, 0
        %vm589 = vcmp.ne.s32.totalorder %v389, 0
        %vm590 = vcmp.ne.s32.totalorder %v396, 0
        %vm591 = vcmp.ne.s32.totalorder %v403, 0
        %vm592 = vcmp.ne.s32.totalorder %v410, 0
        %vm593 = vcmp.ne.s32.totalorder %v417, 0
        %vm594 = vcmp.ne.s32.totalorder %v424, 0
        %vm595 = vcmp.ne.s32.totalorder %v431, 0
        %vm596 = vcmp.ne.s32.totalorder %v438, 0
        %vm597 = vcmp.ne.s32.totalorder %v445, 0
        %vm598 = vcmp.ne.s32.totalorder %v452, 0
        %vm599 = vcmp.ne.s32.totalorder %v459, 0
        %vm600 = vcmp.ne.s32.totalorder %v466, 0
        %vm601 = vcmp.ne.s32.totalorder %v473, 0
        %vm602 = vcmp.ne.s32.totalorder %v480, 0
        %vm603 = vcmp.ne.s32.totalorder %v487, 0
        %vm604 = vcmp.ne.s32.totalorder %v494, 0
        %vm605 = vcmp.ne.s32.totalorder %v501, 0
        %vm606 = vcmp.ne.s32.totalorder %v508, 0
        %vm607 = vcmp.ne.s32.totalorder %v515, 0
        %vm608 = vcmp.ne.s32.totalorder %v522, 0
        %vm609 = vcmp.ne.s32.totalorder %v529, 0
        %vm610 = vcmp.ne.s32.totalorder %v536, 0
        %vm611 = vcmp.ne.s32.totalorder %v543, 0
        %vm612 = vcmp.ne.s32.totalorder %v550, 0
        %vm613 = vcmp.ne.s32.totalorder %v557, 0
        %vm614 = vcmp.ne.s32.totalorder %v564, 0
        %vm615 = vcmp.ne.s32.totalorder %v571, 0
        %vm616 = vcmp.ne.s32.totalorder %v578, 0
        %vm617 = vcmp.ne.s32.totalorder %v585, 0
        %vm618 = vcmp.lt.s32.totalorder %v368, 0
        %vm619 = vcmp.lt.s32.totalorder %v375, 0
        %vm620 = vcmp.lt.s32.totalorder %v382, 0
        %vm621 = vcmp.lt.s32.totalorder %v389, 0
        %vm622 = vcmp.lt.s32.totalorder %v396, 0
        %vm623 = vcmp.lt.s32.totalorder %v403, 0
        %vm624 = vcmp.lt.s32.totalorder %v410, 0
        %vm625 = vcmp.lt.s32.totalorder %v417, 0
        %vm626 = vcmp.lt.s32.totalorder %v424, 0
        %vm627 = vcmp.lt.s32.totalorder %v431, 0
        %vm628 = vcmp.lt.s32.totalorder %v438, 0
        %vm629 = vcmp.lt.s32.totalorder %v445, 0
        %vm630 = vcmp.lt.s32.totalorder %v452, 0
        %vm631 = vcmp.lt.s32.totalorder %v459, 0
        %vm632 = vcmp.lt.s32.totalorder %v466, 0
        %vm633 = vcmp.lt.s32.totalorder %v473, 0
        %vm634 = vcmp.lt.s32.totalorder %v480, 0
        %vm635 = vcmp.lt.s32.totalorder %v487, 0
        %vm636 = vcmp.lt.s32.totalorder %v494, 0
        %vm637 = vcmp.lt.s32.totalorder %v501, 0
        %vm638 = vcmp.lt.s32.totalorder %v508, 0
        %vm639 = vcmp.lt.s32.totalorder %v515, 0
        %vm640 = vcmp.lt.s32.totalorder %v522, 0
        %vm641 = vcmp.lt.s32.totalorder %v529, 0
        %vm642 = vcmp.lt.s32.totalorder %v536, 0
        %vm643 = vcmp.lt.s32.totalorder %v543, 0
        %vm644 = vcmp.lt.s32.totalorder %v550, 0
        %vm645 = vcmp.lt.s32.totalorder %v557, 0
        %vm646 = vcmp.lt.s32.totalorder %v564, 0
        %vm647 = vcmp.lt.s32.totalorder %v571, 0
        %vm648 = vcmp.lt.s32.totalorder %v578, 0
        %vm649 = vcmp.lt.s32.totalorder %v585, 0
        %vm650 = vmand %vm618, %vm586
        %vm651 = vmand %vm619, %vm587
        %vm652 = vmand %vm620, %vm588
        %vm653 = vmand %vm621, %vm589
        %vm654 = vmand %vm622, %vm590
        %vm655 = vmand %vm623, %vm591
        %vm656 = vmand %vm624, %vm592
        %vm657 = vmand %vm625, %vm593
        %vm658 = vmand %vm626, %vm594
        %vm659 = vmand %vm627, %vm595
        %vm660 = vmand %vm628, %vm596
        %vm661 = vmand %vm629, %vm597
        %vm662 = vmand %vm630, %vm598
        %vm663 = vmand %vm631, %vm599
        %vm664 = vmand %vm632, %vm600
        %vm665 = vmand %vm633, %vm601
        %vm666 = vmand %vm634, %vm602
        %vm667 = vmand %vm635, %vm603
        %vm668 = vmand %vm636, %vm604
        %vm669 = vmand %vm637, %vm605
        %vm670 = vmand %vm638, %vm606
        %vm671 = vmand %vm639, %vm607
        %vm672 = vmand %vm640, %vm608
        %vm673 = vmand %vm641, %vm609
        %vm674 = vmand %vm642, %vm610
        %vm675 = vmand %vm643, %vm611
        %vm676 = vmand %vm644, %vm612
        %vm677 = vmand %vm645, %vm613
        %vm678 = vmand %vm646, %vm614
        %vm679 = vmand %vm647, %vm615
        %vm680 = vmand %vm648, %vm616
        %vm681 = vmand %vm649, %vm617
        %v682 = vadd.s32 %v368, 16
        %v683 = vadd.s32 %v375, 16
        %v684 = vadd.s32 %v382, 16
        %v685 = vadd.s32 %v389, 16
        %v686 = vadd.s32 %v396, 16
        %v687 = vadd.s32 %v403, 16
        %v688 = vadd.s32 %v410, 16
        %v689 = vadd.s32 %v417, 16
        %v690 = vadd.s32 %v424, 16
        %v691 = vadd.s32 %v431, 16
        %v692 = vadd.s32 %v438, 16
        %v693 = vadd.s32 %v445, 16
        %v694 = vadd.s32 %v452, 16
        %v695 = vadd.s32 %v459, 16
        %v696 = vadd.s32 %v466, 16
        %v697 = vadd.s32 %v473, 16
        %v698 = vadd.s32 %v480, 16
        %v699 = vadd.s32 %v487, 16
        %v700 = vadd.s32 %v494, 16
        %v701 = vadd.s32 %v501, 16
        %v702 = vadd.s32 %v508, 16
        %v703 = vadd.s32 %v515, 16
        %v704 = vadd.s32 %v522, 16
        %v705 = vadd.s32 %v529, 16
        %v706 = vadd.s32 %v536, 16
        %v707 = vadd.s32 %v543, 16
        %v708 = vadd.s32 %v550, 16
        %v709 = vadd.s32 %v557, 16
        %v710 = vadd.s32 %v564, 16
        %v711 = vadd.s32 %v571, 16
        %v712 = vadd.s32 %v578, 16
        %v713 = vadd.s32 %v585, 16
        %v714 = vsel %vm650, %v682, %v368
        %v715 = vsel %vm651, %v683, %v375
        %v716 = vsel %vm652, %v684, %v382
        %v717 = vsel %vm653, %v685, %v389
        %v718 = vsel %vm654, %v686, %v396
        %v719 = vsel %vm655, %v687, %v403
        %v720 = vsel %vm656, %v688, %v410
        %v721 = vsel %vm657, %v689, %v417
        %v722 = vsel %vm658, %v690, %v424
        %v723 = vsel %vm659, %v691, %v431
        %v724 = vsel %vm660, %v692, %v438
        %v725 = vsel %vm661, %v693, %v445
        %v726 = vsel %vm662, %v694, %v452
        %v727 = vsel %vm663, %v695, %v459
        %v728 = vsel %vm664, %v696, %v466
        %v729 = vsel %vm665, %v697, %v473
        %v730 = vsel %vm666, %v698, %v480
        %v731 = vsel %vm667, %v699, %v487
        %v732 = vsel %vm668, %v700, %v494
        %v733 = vsel %vm669, %v701, %v501
        %v734 = vsel %vm670, %v702, %v508
        %v735 = vsel %vm671, %v703, %v515
        %v736 = vsel %vm672, %v704, %v522
        %v737 = vsel %vm673, %v705, %v529
        %v738 = vsel %vm674, %v706, %v536
        %v739 = vsel %vm675, %v707, %v543
        %v740 = vsel %vm676, %v708, %v550
        %v741 = vsel %vm677, %v709, %v557
        %v742 = vsel %vm678, %v710, %v564
        %v743 = vsel %vm679, %v711, %v571
        %v744 = vsel %vm680, %v712, %v578
        %v745 = vsel %vm681, %v713, %v585
        %vm746 = vcmp.ge.s32.totalorder %v330, 16
        %vm747 = vcmp.ge.s32.totalorder %v331, 16
        %vm748 = vcmp.ge.s32.totalorder %v332, 16
        %vm749 = vcmp.ge.s32.totalorder %v333, 16
        %vm750 = vcmp.ge.s32.totalorder %v334, 16
        %vm751 = vcmp.ge.s32.totalorder %v335, 16
        %vm752 = vcmp.ge.s32.totalorder %v336, 16
        %vm753 = vcmp.ge.s32.totalorder %v337, 16
        %vm754 = vcmp.ge.s32.totalorder %v338, 16
        %vm755 = vcmp.ge.s32.totalorder %v339, 16
        %vm756 = vcmp.ge.s32.totalorder %v340, 16
        %vm757 = vcmp.ge.s32.totalorder %v341, 16
        %vm758 = vcmp.ge.s32.totalorder %v342, 16
        %vm759 = vcmp.ge.s32.totalorder %v343, 16
        %vm760 = vcmp.ge.s32.totalorder %v344, 16
        %vm761 = vcmp.ge.s32.totalorder %v345, 16
        %vm762 = vcmp.ge.s32.totalorder %v346, 16
        %vm763 = vcmp.ge.s32.totalorder %v347, 16
        %vm764 = vcmp.ge.s32.totalorder %v348, 16
        %vm765 = vcmp.ge.s32.totalorder %v349, 16
        %vm766 = vcmp.ge.s32.totalorder %v350, 16
        %vm767 = vcmp.ge.s32.totalorder %v351, 16
        %vm768 = vcmp.ge.s32.totalorder %v352, 16
        %vm769 = vcmp.ge.s32.totalorder %v353, 16
        %vm770 = vcmp.ge.s32.totalorder %v354, 16
        %vm771 = vcmp.ge.s32.totalorder %v355, 16
        %vm772 = vcmp.ge.s32.totalorder %v356, 16
        %vm773 = vcmp.ge.s32.totalorder %v357, 16
        %vm774 = vcmp.ge.s32.totalorder %v358, 16
        %vm775 = vcmp.ge.s32.totalorder %v359, 16
        %vm776 = vcmp.ge.s32.totalorder %v360, 16
        %vm777 = vcmp.ge.s32.totalorder %v361, 16
        %v778 = vsel %vm746, 1, 0
        %v779 = vsel %vm747, 1, 0
        %v780 = vsel %vm748, 1, 0
        %v781 = vsel %vm749, 1, 0
        %v782 = vsel %vm750, 1, 0
        %v783 = vsel %vm751, 1, 0
        %v784 = vsel %vm752, 1, 0
        %v785 = vsel %vm753, 1, 0
        %v786 = vsel %vm754, 1, 0
        %v787 = vsel %vm755, 1, 0
        %v788 = vsel %vm756, 1, 0
        %v789 = vsel %vm757, 1, 0
        %v790 = vsel %vm758, 1, 0
        %v791 = vsel %vm759, 1, 0
        %v792 = vsel %vm760, 1, 0
        %v793 = vsel %vm761, 1, 0
        %v794 = vsel %vm762, 1, 0
        %v795 = vsel %vm763, 1, 0
        %v796 = vsel %vm764, 1, 0
        %v797 = vsel %vm765, 1, 0
        %v798 = vsel %vm766, 1, 0
        %v799 = vsel %vm767, 1, 0
        %v800 = vsel %vm768, 1, 0
        %v801 = vsel %vm769, 1, 0
        %v802 = vsel %vm770, 1, 0
        %v803 = vsel %vm771, 1, 0
        %v804 = vsel %vm772, 1, 0
        %v805 = vsel %vm773, 1, 0
        %v806 = vsel %vm774, 1, 0
        %v807 = vsel %vm775, 1, 0
        %v808 = vsel %vm776, 1, 0
        %v809 = vsel %vm777, 1, 0
        %v810 = vcvt.s32.f32 %v778
        %v811 = vcvt.s32.f32 %v779
        %v812 = vcvt.s32.f32 %v780
        %v813 = vcvt.s32.f32 %v781
        %v814 = vcvt.s32.f32 %v782
        %v815 = vcvt.s32.f32 %v783
        %v816 = vcvt.s32.f32 %v784
        %v817 = vcvt.s32.f32 %v785
        %v818 = vcvt.s32.f32 %v786
        %v819 = vcvt.s32.f32 %v787
        %v820 = vcvt.s32.f32 %v788
        %v821 = vcvt.s32.f32 %v789
        %v822 = vcvt.s32.f32 %v790
        %v823 = vcvt.s32.f32 %v791
        %v824 = vcvt.s32.f32 %v792
        %v825 = vcvt.s32.f32 %v793
        %v826 = vcvt.s32.f32 %v794
        %v827 = vcvt.s32.f32 %v795
        %v828 = vcvt.s32.f32 %v796
        %v829 = vcvt.s32.f32 %v797
        %v830 = vcvt.s32.f32 %v798
        %v831 = vcvt.s32.f32 %v799
        %v832 = vcvt.s32.f32 %v800
        %v833 = vcvt.s32.f32 %v801
        %v834 = vcvt.s32.f32 %v802
        %v835 = vcvt.s32.f32 %v803
        %v836 = vcvt.s32.f32 %v804
        %v837 = vcvt.s32.f32 %v805
        %v838 = vcvt.s32.f32 %v806
        %v839 = vcvt.s32.f32 %v807
        %v840 = vcvt.s32.f32 %v808
        %v841 = vcvt.s32.f32 %v809
        %vm842 = vcmp.lt.s32.totalorder %v330, 240
        %vm843 = vcmp.lt.s32.totalorder %v331, 240
        %vm844 = vcmp.lt.s32.totalorder %v332, 240
        %vm845 = vcmp.lt.s32.totalorder %v333, 240
        %vm846 = vcmp.lt.s32.totalorder %v334, 240
        %vm847 = vcmp.lt.s32.totalorder %v335, 240
        %vm848 = vcmp.lt.s32.totalorder %v336, 240
        %vm849 = vcmp.lt.s32.totalorder %v337, 240
        %vm850 = vcmp.lt.s32.totalorder %v338, 240
        %vm851 = vcmp.lt.s32.totalorder %v339, 240
        %vm852 = vcmp.lt.s32.totalorder %v340, 240
        %vm853 = vcmp.lt.s32.totalorder %v341, 240
        %vm854 = vcmp.lt.s32.totalorder %v342, 240
        %vm855 = vcmp.lt.s32.totalorder %v343, 240
        %vm856 = vcmp.lt.s32.totalorder %v344, 240
        %vm857 = vcmp.lt.s32.totalorder %v345, 240
        %vm858 = vcmp.lt.s32.totalorder %v346, 240
        %vm859 = vcmp.lt.s32.totalorder %v347, 240
        %vm860 = vcmp.lt.s32.totalorder %v348, 240
        %vm861 = vcmp.lt.s32.totalorder %v349, 240
        %vm862 = vcmp.lt.s32.totalorder %v350, 240
        %vm863 = vcmp.lt.s32.totalorder %v351, 240
        %vm864 = vcmp.lt.s32.totalorder %v352, 240
        %vm865 = vcmp.lt.s32.totalorder %v353, 240
        %vm866 = vcmp.lt.s32.totalorder %v354, 240
        %vm867 = vcmp.lt.s32.totalorder %v355, 240
        %vm868 = vcmp.lt.s32.totalorder %v356, 240
        %vm869 = vcmp.lt.s32.totalorder %v357, 240
        %vm870 = vcmp.lt.s32.totalorder %v358, 240
        %vm871 = vcmp.lt.s32.totalorder %v359, 240
        %vm872 = vcmp.lt.s32.totalorder %v360, 240
        %vm873 = vcmp.lt.s32.totalorder %v361, 240
        %v874 = vsel %vm842, 1, 0
        %v875 = vsel %vm843, 1, 0
        %v876 = vsel %vm844, 1, 0
        %v877 = vsel %vm845, 1, 0
        %v878 = vsel %vm846, 1, 0
        %v879 = vsel %vm847, 1, 0
        %v880 = vsel %vm848, 1, 0
        %v881 = vsel %vm849, 1, 0
        %v882 = vsel %vm850, 1, 0
        %v883 = vsel %vm851, 1, 0
        %v884 = vsel %vm852, 1, 0
        %v885 = vsel %vm853, 1, 0
        %v886 = vsel %vm854, 1, 0
        %v887 = vsel %vm855, 1, 0
        %v888 = vsel %vm856, 1, 0
        %v889 = vsel %vm857, 1, 0
        %v890 = vsel %vm858, 1, 0
        %v891 = vsel %vm859, 1, 0
        %v892 = vsel %vm860, 1, 0
        %v893 = vsel %vm861, 1, 0
        %v894 = vsel %vm862, 1, 0
        %v895 = vsel %vm863, 1, 0
        %v896 = vsel %vm864, 1, 0
        %v897 = vsel %vm865, 1, 0
        %v898 = vsel %vm866, 1, 0
        %v899 = vsel %vm867, 1, 0
        %v900 = vsel %vm868, 1, 0
        %v901 = vsel %vm869, 1, 0
        %v902 = vsel %vm870, 1, 0
        %v903 = vsel %vm871, 1, 0
        %v904 = vsel %vm872, 1, 0
        %v905 = vsel %vm873, 1, 0
        %v906 = vcvt.s32.f32 %v874
        %v907 = vcvt.s32.f32 %v875
        %v908 = vcvt.s32.f32 %v876
        %v909 = vcvt.s32.f32 %v877
        %v910 = vcvt.s32.f32 %v878
        %v911 = vcvt.s32.f32 %v879
        %v912 = vcvt.s32.f32 %v880
        %v913 = vcvt.s32.f32 %v881
        %v914 = vcvt.s32.f32 %v882
        %v915 = vcvt.s32.f32 %v883
        %v916 = vcvt.s32.f32 %v884
        %v917 = vcvt.s32.f32 %v885
        %v918 = vcvt.s32.f32 %v886
        %v919 = vcvt.s32.f32 %v887
        %v920 = vcvt.s32.f32 %v888
        %v921 = vcvt.s32.f32 %v889
        %v922 = vcvt.s32.f32 %v890
        %v923 = vcvt.s32.f32 %v891
        %v924 = vcvt.s32.f32 %v892
        %v925 = vcvt.s32.f32 %v893
        %v926 = vcvt.s32.f32 %v894
        %v927 = vcvt.s32.f32 %v895
        %v928 = vcvt.s32.f32 %v896
        %v929 = vcvt.s32.f32 %v897
        %v930 = vcvt.s32.f32 %v898
        %v931 = vcvt.s32.f32 %v899
        %v932 = vcvt.s32.f32 %v900
        %v933 = vcvt.s32.f32 %v901
        %v934 = vcvt.s32.f32 %v902
        %v935 = vcvt.s32.f32 %v903
        %v936 = vcvt.s32.f32 %v904
        %v937 = vcvt.s32.f32 %v905
        %vm938 = vcmp.ne.s32.totalorder %v714, 0
        %vm939 = vcmp.ne.s32.totalorder %v715, 0
        %vm940 = vcmp.ne.s32.totalorder %v716, 0
        %vm941 = vcmp.ne.s32.totalorder %v717, 0
        %vm942 = vcmp.ne.s32.totalorder %v718, 0
        %vm943 = vcmp.ne.s32.totalorder %v719, 0
        %vm944 = vcmp.ne.s32.totalorder %v720, 0
        %vm945 = vcmp.ne.s32.totalorder %v721, 0
        %vm946 = vcmp.ne.s32.totalorder %v722, 0
        %vm947 = vcmp.ne.s32.totalorder %v723, 0
        %vm948 = vcmp.ne.s32.totalorder %v724, 0
        %vm949 = vcmp.ne.s32.totalorder %v725, 0
        %vm950 = vcmp.ne.s32.totalorder %v726, 0
        %vm951 = vcmp.ne.s32.totalorder %v727, 0
        %vm952 = vcmp.ne.s32.totalorder %v728, 0
        %vm953 = vcmp.ne.s32.totalorder %v729, 0
        %vm954 = vcmp.ne.s32.totalorder %v730, 0
        %vm955 = vcmp.ne.s32.totalorder %v731, 0
        %vm956 = vcmp.ne.s32.totalorder %v732, 0
        %vm957 = vcmp.ne.s32.totalorder %v733, 0
        %vm958 = vcmp.ne.s32.totalorder %v734, 0
        %vm959 = vcmp.ne.s32.totalorder %v735, 0
        %vm960 = vcmp.ne.s32.totalorder %v736, 0
        %vm961 = vcmp.ne.s32.totalorder %v737, 0
        %vm962 = vcmp.ne.s32.totalorder %v738, 0
        %vm963 = vcmp.ne.s32.totalorder %v739, 0
        %vm964 = vcmp.ne.s32.totalorder %v740, 0
        %vm965 = vcmp.ne.s32.totalorder %v741, 0
        %vm966 = vcmp.ne.s32.totalorder %v742, 0
        %vm967 = vcmp.ne.s32.totalorder %v743, 0
        %vm968 = vcmp.ne.s32.totalorder %v744, 0
        %vm969 = vcmp.ne.s32.totalorder %v745, 0
        %v970 = vsel %vm938, 1, 0
        %v971 = vsel %vm939, 1, 0
        %v972 = vsel %vm940, 1, 0
        %v973 = vsel %vm941, 1, 0
        %v974 = vsel %vm942, 1, 0
        %v975 = vsel %vm943, 1, 0
        %v976 = vsel %vm944, 1, 0
        %v977 = vsel %vm945, 1, 0
        %v978 = vsel %vm946, 1, 0
        %v979 = vsel %vm947, 1, 0
        %v980 = vsel %vm948, 1, 0
        %v981 = vsel %vm949, 1, 0
        %v982 = vsel %vm950, 1, 0
        %v983 = vsel %vm951, 1, 0
        %v984 = vsel %vm952, 1, 0
        %v985 = vsel %vm953, 1, 0
        %v986 = vsel %vm954, 1, 0
        %v987 = vsel %vm955, 1, 0
        %v988 = vsel %vm956, 1, 0
        %v989 = vsel %vm957, 1, 0
        %v990 = vsel %vm958, 1, 0
        %v991 = vsel %vm959, 1, 0
        %v992 = vsel %vm960, 1, 0
        %v993 = vsel %vm961, 1, 0
        %v994 = vsel %vm962, 1, 0
        %v995 = vsel %vm963, 1, 0
        %v996 = vsel %vm964, 1, 0
        %v997 = vsel %vm965, 1, 0
        %v998 = vsel %vm966, 1, 0
        %v999 = vsel %vm967, 1, 0
        %v1000 = vsel %vm968, 1, 0
        %v1001 = vsel %vm969, 1, 0
        %v1002 = vcvt.s32.f32 %v970
        %v1003 = vcvt.s32.f32 %v971
        %v1004 = vcvt.s32.f32 %v972
        %v1005 = vcvt.s32.f32 %v973
        %v1006 = vcvt.s32.f32 %v974
        %v1007 = vcvt.s32.f32 %v975
        %v1008 = vcvt.s32.f32 %v976
        %v1009 = vcvt.s32.f32 %v977
        %v1010 = vcvt.s32.f32 %v978
        %v1011 = vcvt.s32.f32 %v979
        %v1012 = vcvt.s32.f32 %v980
        %v1013 = vcvt.s32.f32 %v981
        %v1014 = vcvt.s32.f32 %v982
        %v1015 = vcvt.s32.f32 %v983
        %v1016 = vcvt.s32.f32 %v984
        %v1017 = vcvt.s32.f32 %v985
        %v1018 = vcvt.s32.f32 %v986
        %v1019 = vcvt.s32.f32 %v987
        %v1020 = vcvt.s32.f32 %v988
        %v1021 = vcvt.s32.f32 %v989
        %v1022 = vcvt.s32.f32 %v990
        %v1023 = vcvt.s32.f32 %v991
        %v1024 = vcvt.s32.f32 %v992
        %v1025 = vcvt.s32.f32 %v993
        %v1026 = vcvt.s32.f32 %v994
        %v1027 = vcvt.s32.f32 %v995
        %v1028 = vcvt.s32.f32 %v996
        %v1029 = vcvt.s32.f32 %v997
        %v1030 = vcvt.s32.f32 %v998
        %v1031 = vcvt.s32.f32 %v999
        %v1032 = vcvt.s32.f32 %v1000
        %v1033 = vcvt.s32.f32 %v1001
        %vm1034 = vcmp.ne.s32.totalorder %v714, 15
        %vm1035 = vcmp.ne.s32.totalorder %v715, 15
        %vm1036 = vcmp.ne.s32.totalorder %v716, 15
        %vm1037 = vcmp.ne.s32.totalorder %v717, 15
        %vm1038 = vcmp.ne.s32.totalorder %v718, 15
        %vm1039 = vcmp.ne.s32.totalorder %v719, 15
        %vm1040 = vcmp.ne.s32.totalorder %v720, 15
        %vm1041 = vcmp.ne.s32.totalorder %v721, 15
        %vm1042 = vcmp.ne.s32.totalorder %v722, 15
        %vm1043 = vcmp.ne.s32.totalorder %v723, 15
        %vm1044 = vcmp.ne.s32.totalorder %v724, 15
        %vm1045 = vcmp.ne.s32.totalorder %v725, 15
        %vm1046 = vcmp.ne.s32.totalorder %v726, 15
        %vm1047 = vcmp.ne.s32.totalorder %v727, 15
        %vm1048 = vcmp.ne.s32.totalorder %v728, 15
        %vm1049 = vcmp.ne.s32.totalorder %v729, 15
        %vm1050 = vcmp.ne.s32.totalorder %v730, 15
        %vm1051 = vcmp.ne.s32.totalorder %v731, 15
        %vm1052 = vcmp.ne.s32.totalorder %v732, 15
        %vm1053 = vcmp.ne.s32.totalorder %v733, 15
        %vm1054 = vcmp.ne.s32.totalorder %v734, 15
        %vm1055 = vcmp.ne.s32.totalorder %v735, 15
        %vm1056 = vcmp.ne.s32.totalorder %v736, 15
        %vm1057 = vcmp.ne.s32.totalorder %v737, 15
        %vm1058 = vcmp.ne.s32.totalorder %v738, 15
        %vm1059 = vcmp.ne.s32.totalorder %v739, 15
        %vm1060 = vcmp.ne.s32.totalorder %v740, 15
        %vm1061 = vcmp.ne.s32.totalorder %v741, 15
        %vm1062 = vcmp.ne.s32.totalorder %v742, 15
        %vm1063 = vcmp.ne.s32.totalorder %v743, 15
        %vm1064 = vcmp.ne.s32.totalorder %v744, 15
        %vm1065 = vcmp.ne.s32.totalorder %v745, 15
        %v1066 = vsel %vm1034, 1, 0
        %v1067 = vsel %vm1035, 1, 0
        %v1068 = vsel %vm1036, 1, 0
        %v1069 = vsel %vm1037, 1, 0
        %v1070 = vsel %vm1038, 1, 0
        %v1071 = vsel %vm1039, 1, 0
        %v1072 = vsel %vm1040, 1, 0
        %v1073 = vsel %vm1041, 1, 0
        %v1074 = vsel %vm1042, 1, 0
        %v1075 = vsel %vm1043, 1, 0
        %v1076 = vsel %vm1044, 1, 0
        %v1077 = vsel %vm1045, 1, 0
        %v1078 = vsel %vm1046, 1, 0
        %v1079 = vsel %vm1047, 1, 0
        %v1080 = vsel %vm1048, 1, 0
        %v1081 = vsel %vm1049, 1, 0
        %v1082 = vsel %vm1050, 1, 0
        %v1083 = vsel %vm1051, 1, 0
        %v1084 = vsel %vm1052, 1, 0
        %v1085 = vsel %vm1053, 1, 0
        %v1086 = vsel %vm1054, 1, 0
        %v1087 = vsel %vm1055, 1, 0
        %v1088 = vsel %vm1056, 1, 0
        %v1089 = vsel %vm1057, 1, 0
        %v1090 = vsel %vm1058, 1, 0
        %v1091 = vsel %vm1059, 1, 0
        %v1092 = vsel %vm1060, 1, 0
        %v1093 = vsel %vm1061, 1, 0
        %v1094 = vsel %vm1062, 1, 0
        %v1095 = vsel %vm1063, 1, 0
        %v1096 = vsel %vm1064, 1, 0
        %v1097 = vsel %vm1065, 1, 0
        %v1098 = vcvt.s32.f32 %v1066
        %v1099 = vcvt.s32.f32 %v1067
        %v1100 = vcvt.s32.f32 %v1068
        %v1101 = vcvt.s32.f32 %v1069
        %v1102 = vcvt.s32.f32 %v1070
        %v1103 = vcvt.s32.f32 %v1071
        %v1104 = vcvt.s32.f32 %v1072
        %v1105 = vcvt.s32.f32 %v1073
        %v1106 = vcvt.s32.f32 %v1074
        %v1107 = vcvt.s32.f32 %v1075
        %v1108 = vcvt.s32.f32 %v1076
        %v1109 = vcvt.s32.f32 %v1077
        %v1110 = vcvt.s32.f32 %v1078
        %v1111 = vcvt.s32.f32 %v1079
        %v1112 = vcvt.s32.f32 %v1080
        %v1113 = vcvt.s32.f32 %v1081
        %v1114 = vcvt.s32.f32 %v1082
        %v1115 = vcvt.s32.f32 %v1083
        %v1116 = vcvt.s32.f32 %v1084
        %v1117 = vcvt.s32.f32 %v1085
        %v1118 = vcvt.s32.f32 %v1086
        %v1119 = vcvt.s32.f32 %v1087
        %v1120 = vcvt.s32.f32 %v1088
        %v1121 = vcvt.s32.f32 %v1089
        %v1122 = vcvt.s32.f32 %v1090
        %v1123 = vcvt.s32.f32 %v1091
        %v1124 = vcvt.s32.f32 %v1092
        %v1125 = vcvt.s32.f32 %v1093
        %v1126 = vcvt.s32.f32 %v1094
        %v1127 = vcvt.s32.f32 %v1095
        %v1128 = vcvt.s32.f32 %v1096
        %v1129 = vcvt.s32.f32 %v1097
        %v1130 = vld [vmem:[%s287] sm:$0xff]
        %v1131 = vld [vmem:[%s287 + $0x8] sm:$0xff]
        %v1132 = vld [vmem:[%s287 + $0x10] sm:$0xff]
        %v1133 = vld [vmem:[%s287 + $0x18] sm:$0xff]
        %v1134 = vld [vmem:[%s287 + $0x20] sm:$0xff]
        %v1135 = vld [vmem:[%s287 + $0x28] sm:$0xff]
        %v1136 = vld [vmem:[%s287 + $0x30] sm:$0xff]
        %v1137 = vld [vmem:[%s287 + $0x38] sm:$0xff]
        %v1138 = vld [vmem:[%s287 + $0x40] sm:$0xff]
        %v1139 = vld [vmem:[%s287 + $0x48] sm:$0xff]
        %v1140 = vld [vmem:[%s287 + $0x50] sm:$0xff]
        %v1141 = vld [vmem:[%s287 + $0x58] sm:$0xff]
        %v1142 = vld [vmem:[%s287 + $0x60] sm:$0xff]
        %v1143 = vld [vmem:[%s287 + $0x68] sm:$0xff]
        %v1144 = vld [vmem:[%s287 + $0x70] sm:$0xff]
        %v1145 = vld [vmem:[%s287 + $0x78] sm:$0xff]
        %v1146 = vld [vmem:[%s287 + $0x80] sm:$0xff]
        %v1147 = vld [vmem:[%s287 + $0x88] sm:$0xff]
        %v1148 = vld [vmem:[%s287 + $0x90] sm:$0xff]
        %v1149 = vld [vmem:[%s287 + $0x98] sm:$0xff]
        %v1150 = vld [vmem:[%s287 + $0xa0] sm:$0xff]
        %v1151 = vld [vmem:[%s287 + $0xa8] sm:$0xff]
        %v1152 = vld [vmem:[%s287 + $0xb0] sm:$0xff]
        %v1153 = vld [vmem:[%s287 + $0xb8] sm:$0xff]
        %v1154 = vld [vmem:[%s287 + $0xc0] sm:$0xff]
        %v1155 = vld [vmem:[%s287 + $0xc8] sm:$0xff]
        %v1156 = vld [vmem:[%s287 + $0xd0] sm:$0xff]
        %v1157 = vld [vmem:[%s287 + $0xd8] sm:$0xff]
        %v1158 = vld [vmem:[%s287 + $0xe0] sm:$0xff]
        %v1159 = vld [vmem:[%s287 + $0xe8] sm:$0xff]
        %v1160 = vld [vmem:[%s287 + $0xf0] sm:$0xff]
        %v1161 = vld [vmem:[%s287 + $0xf8] sm:$0xff]
        %v1162 = vrot.slane %v1130, 7
        %v1163 = vrot.slane %v1131, 7
        %v1164 = vrot.slane %v1132, 7
        %v1165 = vrot.slane %v1133, 7
        %v1166 = vrot.slane %v1134, 7
        %v1167 = vrot.slane %v1135, 7
        %v1168 = vrot.slane %v1136, 7
        %v1169 = vrot.slane %v1137, 7
        %v1170 = vrot.slane %v1138, 7
        %v1171 = vrot.slane %v1139, 7
        %v1172 = vrot.slane %v1140, 7
        %v1173 = vrot.slane %v1141, 7
        %v1174 = vrot.slane %v1142, 7
        %v1175 = vrot.slane %v1143, 7
        %v1176 = vrot.slane %v1144, 7
        %v1177 = vrot.slane %v1145, 7
        %v1178 = vrot.slane %v1146, 7
        %v1179 = vrot.slane %v1147, 7
        %v1180 = vrot.slane %v1148, 7
        %v1181 = vrot.slane %v1149, 7
        %v1182 = vrot.slane %v1150, 7
        %v1183 = vrot.slane %v1151, 7
        %v1184 = vrot.slane %v1152, 7
        %v1185 = vrot.slane %v1153, 7
        %v1186 = vrot.slane %v1154, 7
        %v1187 = vrot.slane %v1155, 7
        %v1188 = vrot.slane %v1156, 7
        %v1189 = vrot.slane %v1157, 7
        %v1190 = vrot.slane %v1158, 7
        %v1191 = vrot.slane %v1159, 7
        %v1192 = vrot.slane %v1160, 7
        %v1193 = vrot.slane %v1161, 7
        %vm1194 = vcmp.lt.s32.totalorder %v330, 1
        %v1195 = vsel %vm1194, %v1192, %v1193
        %v1196 = vsel %vm1194, %v1191, %v1192
        %v1197 = vsel %vm1194, %v1190, %v1191
        %v1198 = vsel %vm1194, %v1189, %v1190
        %v1199 = vsel %vm1194, %v1188, %v1189
        %v1200 = vsel %vm1194, %v1187, %v1188
        %v1201 = vsel %vm1194, %v1186, %v1187
        %v1202 = vsel %vm1194, %v1185, %v1186
        %v1203 = vsel %vm1194, %v1184, %v1185
        %v1204 = vsel %vm1194, %v1183, %v1184
        %v1205 = vsel %vm1194, %v1182, %v1183
        %v1206 = vsel %vm1194, %v1181, %v1182
        %v1207 = vsel %vm1194, %v1180, %v1181
        %v1208 = vsel %vm1194, %v1179, %v1180
        %v1209 = vsel %vm1194, %v1178, %v1179
        %v1210 = vsel %vm1194, %v1177, %v1178
        %v1211 = vsel %vm1194, %v1176, %v1177
        %v1212 = vsel %vm1194, %v1175, %v1176
        %v1213 = vsel %vm1194, %v1174, %v1175
        %v1214 = vsel %vm1194, %v1173, %v1174
        %v1215 = vsel %vm1194, %v1172, %v1173
        %v1216 = vsel %vm1194, %v1171, %v1172
        %v1217 = vsel %vm1194, %v1170, %v1171
        %v1218 = vsel %vm1194, %v1169, %v1170
        %v1219 = vsel %vm1194, %v1168, %v1169
        %v1220 = vsel %vm1194, %v1167, %v1168
        %v1221 = vsel %vm1194, %v1166, %v1167
        %v1222 = vsel %vm1194, %v1165, %v1166
        %v1223 = vsel %vm1194, %v1164, %v1165
        %v1224 = vsel %vm1194, %v1163, %v1164
        %v1225 = vsel %vm1194, %v1162, %v1163
        %v1226 = vsel %vm1194, %v1193, %v1162
        %v1227 = vmul.f32 %v810, %v1002
        %v1228 = vmul.f32 %v811, %v1003
        %v1229 = vmul.f32 %v812, %v1004
        %v1230 = vmul.f32 %v813, %v1005
        %v1231 = vmul.f32 %v814, %v1006
        %v1232 = vmul.f32 %v815, %v1007
        %v1233 = vmul.f32 %v816, %v1008
        %v1234 = vmul.f32 %v817, %v1009
        %v1235 = vmul.f32 %v818, %v1010
        %v1236 = vmul.f32 %v819, %v1011
        %v1237 = vmul.f32 %v820, %v1012
        %v1238 = vmul.f32 %v821, %v1013
        %v1239 = vmul.f32 %v822, %v1014
        %v1240 = vmul.f32 %v823, %v1015
        %v1241 = vmul.f32 %v824, %v1016
        %v1242 = vmul.f32 %v825, %v1017
        %v1243 = vmul.f32 %v826, %v1018
        %v1244 = vmul.f32 %v827, %v1019
        %v1245 = vmul.f32 %v828, %v1020
        %v1246 = vmul.f32 %v829, %v1021
        %v1247 = vmul.f32 %v830, %v1022
        %v1248 = vmul.f32 %v831, %v1023
        %v1249 = vmul.f32 %v832, %v1024
        %v1250 = vmul.f32 %v833, %v1025
        %v1251 = vmul.f32 %v834, %v1026
        %v1252 = vmul.f32 %v835, %v1027
        %v1253 = vmul.f32 %v836, %v1028
        %v1254 = vmul.f32 %v837, %v1029
        %v1255 = vmul.f32 %v838, %v1030
        %v1256 = vmul.f32 %v839, %v1031
        %v1257 = vmul.f32 %v840, %v1032
        %v1258 = vmul.f32 %v841, %v1033
        %v1259 = vmul.f32 %v1196, %v1227
        %v1260 = vmul.f32 %v1195, %v1228
        %v1261 = vmul.f32 %v1226, %v1229
        %v1262 = vmul.f32 %v1225, %v1230
        %v1263 = vmul.f32 %v1224, %v1231
        %v1264 = vmul.f32 %v1223, %v1232
        %v1265 = vmul.f32 %v1222, %v1233
        %v1266 = vmul.f32 %v1221, %v1234
        %v1267 = vmul.f32 %v1220, %v1235
        %v1268 = vmul.f32 %v1219, %v1236
        %v1269 = vmul.f32 %v1218, %v1237
        %v1270 = vmul.f32 %v1217, %v1238
        %v1271 = vmul.f32 %v1216, %v1239
        %v1272 = vmul.f32 %v1215, %v1240
        %v1273 = vmul.f32 %v1214, %v1241
        %v1274 = vmul.f32 %v1213, %v1242
        %v1275 = vmul.f32 %v1212, %v1243
        %v1276 = vmul.f32 %v1211, %v1244
        %v1277 = vmul.f32 %v1210, %v1245
        %v1278 = vmul.f32 %v1209, %v1246
        %v1279 = vmul.f32 %v1208, %v1247
        %v1280 = vmul.f32 %v1207, %v1248
        %v1281 = vmul.f32 %v1206, %v1249
        %v1282 = vmul.f32 %v1205, %v1250
        %v1283 = vmul.f32 %v1204, %v1251
        %v1284 = vmul.f32 %v1203, %v1252
        %v1285 = vmul.f32 %v1202, %v1253
        %v1286 = vmul.f32 %v1201, %v1254
        %v1287 = vmul.f32 %v1200, %v1255
        %v1288 = vmul.f32 %v1199, %v1256
        %v1289 = vmul.f32 %v1198, %v1257
        %v1290 = vmul.f32 %v1197, %v1258
        %v1291 = vpack.c.bf16 %v1260, %v1259
        %v1292 = vpack.c.bf16 %v1262, %v1261
        %v1293 = vpack.c.bf16 %v1264, %v1263
        %v1294 = vpack.c.bf16 %v1266, %v1265
        %v1295 = vpack.c.bf16 %v1268, %v1267
        %v1296 = vpack.c.bf16 %v1270, %v1269
        %v1297 = vpack.c.bf16 %v1272, %v1271
        %v1298 = vpack.c.bf16 %v1274, %v1273
        %v1299 = vpack.c.bf16 %v1276, %v1275
        %v1300 = vpack.c.bf16 %v1278, %v1277
        %v1301 = vpack.c.bf16 %v1280, %v1279
        %v1302 = vpack.c.bf16 %v1282, %v1281
        %v1303 = vpack.c.bf16 %v1284, %v1283
        %v1304 = vpack.c.bf16 %v1286, %v1285
        %v1305 = vpack.c.bf16 %v1288, %v1287
        %v1306 = vpack.c.bf16 %v1290, %v1289
        %1307 = vst [vmem:[#allocation2] sm:$0xff] %v1291
        %1308 = vst [vmem:[#allocation2 + $0x48] sm:$0xff] %v1292
        %1309 = vst [vmem:[#allocation2 + $0x90] sm:$0xff] %v1293
        %1310 = vst [vmem:[#allocation2 + $0xd8] sm:$0xff] %v1294
        %1311 = vst [vmem:[#allocation2 + $0x120] sm:$0xff] %v1295
        %1312 = vst [vmem:[#allocation2 + $0x168] sm:$0xff] %v1296
        %1313 = vst [vmem:[#allocation2 + $0x1b0] sm:$0xff] %v1297
        %1314 = vst [vmem:[#allocation2 + $0x1f8] sm:$0xff] %v1298
        %1315 = vst [vmem:[#allocation2 + $0x240] sm:$0xff] %v1299
        %1316 = vst [vmem:[#allocation2 + $0x288] sm:$0xff] %v1300
        %1317 = vst [vmem:[#allocation2 + $0x2d0] sm:$0xff] %v1301
        %1318 = vst [vmem:[#allocation2 + $0x318] sm:$0xff] %v1302
        %1319 = vst [vmem:[#allocation2 + $0x360] sm:$0xff] %v1303
        %1320 = vst [vmem:[#allocation2 + $0x3a8] sm:$0xff] %v1304
        %1321 = vst [vmem:[#allocation2 + $0x3f0] sm:$0xff] %v1305
        %1322 = vst [vmem:[#allocation2 + $0x438] sm:$0xff] %v1306
        %v1323 = vmul.f32 %v1160, %v810
        %v1324 = vmul.f32 %v1161, %v811
        %v1325 = vmul.f32 %v1130, %v812
        %v1326 = vmul.f32 %v1131, %v813
        %v1327 = vmul.f32 %v1132, %v814
        %v1328 = vmul.f32 %v1133, %v815
        %v1329 = vmul.f32 %v1134, %v816
        %v1330 = vmul.f32 %v1135, %v817
        %v1331 = vmul.f32 %v1136, %v818
        %v1332 = vmul.f32 %v1137, %v819
        %v1333 = vmul.f32 %v1138, %v820
        %v1334 = vmul.f32 %v1139, %v821
        %v1335 = vmul.f32 %v1140, %v822
        %v1336 = vmul.f32 %v1141, %v823
        %v1337 = vmul.f32 %v1142, %v824
        %v1338 = vmul.f32 %v1143, %v825
        %v1339 = vmul.f32 %v1144, %v826
        %v1340 = vmul.f32 %v1145, %v827
        %v1341 = vmul.f32 %v1146, %v828
        %v1342 = vmul.f32 %v1147, %v829
        %v1343 = vmul.f32 %v1148, %v830
        %v1344 = vmul.f32 %v1149, %v831
        %v1345 = vmul.f32 %v1150, %v832
        %v1346 = vmul.f32 %v1151, %v833
        %v1347 = vmul.f32 %v1152, %v834
        %v1348 = vmul.f32 %v1153, %v835
        %v1349 = vmul.f32 %v1154, %v836
        %v1350 = vmul.f32 %v1155, %v837
        %v1351 = vmul.f32 %v1156, %v838
        %v1352 = vmul.f32 %v1157, %v839
        %v1353 = vmul.f32 %v1158, %v840
        %v1354 = vmul.f32 %v1159, %v841
        %v1355 = vpack.c.bf16 %v1324, %v1323
        %v1356 = vpack.c.bf16 %v1326, %v1325
        %v1357 = vpack.c.bf16 %v1328, %v1327
        %v1358 = vpack.c.bf16 %v1330, %v1329
        %v1359 = vpack.c.bf16 %v1332, %v1331
        %v1360 = vpack.c.bf16 %v1334, %v1333
        %v1361 = vpack.c.bf16 %v1336, %v1335
        %v1362 = vpack.c.bf16 %v1338, %v1337
        %v1363 = vpack.c.bf16 %v1340, %v1339
        %v1364 = vpack.c.bf16 %v1342, %v1341
        %v1365 = vpack.c.bf16 %v1344, %v1343
        %v1366 = vpack.c.bf16 %v1346, %v1345
        %v1367 = vpack.c.bf16 %v1348, %v1347
        %v1368 = vpack.c.bf16 %v1350, %v1349
        %v1369 = vpack.c.bf16 %v1352, %v1351
        %v1370 = vpack.c.bf16 %v1354, %v1353
        %1371 = vst [vmem:[#allocation2 + $0x8] sm:$0xff] %v1355
        %1372 = vst [vmem:[#allocation2 + $0x50] sm:$0xff] %v1356
        %1373 = vst [vmem:[#allocation2 + $0x98] sm:$0xff] %v1357
        %1374 = vst [vmem:[#allocation2 + $0xe0] sm:$0xff] %v1358
        %1375 = vst [vmem:[#allocation2 + $0x128] sm:$0xff] %v1359
        %1376 = vst [vmem:[#allocation2 + $0x170] sm:$0xff] %v1360
        %1377 = vst [vmem:[#allocation2 + $0x1b8] sm:$0xff] %v1361
        %1378 = vst [vmem:[#allocation2 + $0x200] sm:$0xff] %v1362
        %1379 = vst [vmem:[#allocation2 + $0x248] sm:$0xff] %v1363
        %1380 = vst [vmem:[#allocation2 + $0x290] sm:$0xff] %v1364
        %1381 = vst [vmem:[#allocation2 + $0x2d8] sm:$0xff] %v1365
        %1382 = vst [vmem:[#allocation2 + $0x320] sm:$0xff] %v1366
        %1383 = vst [vmem:[#allocation2 + $0x368] sm:$0xff] %v1367
        %1384 = vst [vmem:[#allocation2 + $0x3b0] sm:$0xff] %v1368
        %1385 = vst [vmem:[#allocation2 + $0x3f8] sm:$0xff] %v1369
        %1386 = vst [vmem:[#allocation2 + $0x440] sm:$0xff] %v1370
        %v1387 = vrot.slane %v1130, 1
        %v1388 = vrot.slane %v1131, 1
        %v1389 = vrot.slane %v1132, 1
        %v1390 = vrot.slane %v1133, 1
        %v1391 = vrot.slane %v1134, 1
        %v1392 = vrot.slane %v1135, 1
        %v1393 = vrot.slane %v1136, 1
        %v1394 = vrot.slane %v1137, 1
        %v1395 = vrot.slane %v1138, 1
        %v1396 = vrot.slane %v1139, 1
        %v1397 = vrot.slane %v1140, 1
        %v1398 = vrot.slane %v1141, 1
        %v1399 = vrot.slane %v1142, 1
        %v1400 = vrot.slane %v1143, 1
        %v1401 = vrot.slane %v1144, 1
        %v1402 = vrot.slane %v1145, 1
        %v1403 = vrot.slane %v1146, 1
        %v1404 = vrot.slane %v1147, 1
        %v1405 = vrot.slane %v1148, 1
        %v1406 = vrot.slane %v1149, 1
        %v1407 = vrot.slane %v1150, 1
        %v1408 = vrot.slane %v1151, 1
        %v1409 = vrot.slane %v1152, 1
        %v1410 = vrot.slane %v1153, 1
        %v1411 = vrot.slane %v1154, 1
        %v1412 = vrot.slane %v1155, 1
        %v1413 = vrot.slane %v1156, 1
        %v1414 = vrot.slane %v1157, 1
        %v1415 = vrot.slane %v1158, 1
        %v1416 = vrot.slane %v1159, 1
        %v1417 = vrot.slane %v1160, 1
        %v1418 = vrot.slane %v1161, 1
        %vm1419 = vcmp.lt.s32.totalorder %v330, 7
        %v1420 = vsel %vm1419, %v1417, %v1418
        %v1421 = vsel %vm1419, %v1416, %v1417
        %v1422 = vsel %vm1419, %v1415, %v1416
        %v1423 = vsel %vm1419, %v1414, %v1415
        %v1424 = vsel %vm1419, %v1413, %v1414
        %v1425 = vsel %vm1419, %v1412, %v1413
        %v1426 = vsel %vm1419, %v1411, %v1412
        %v1427 = vsel %vm1419, %v1410, %v1411
        %v1428 = vsel %vm1419, %v1409, %v1410
        %v1429 = vsel %vm1419, %v1408, %v1409
        %v1430 = vsel %vm1419, %v1407, %v1408
        %v1431 = vsel %vm1419, %v1406, %v1407
        %v1432 = vsel %vm1419, %v1405, %v1406
        %v1433 = vsel %vm1419, %v1404, %v1405
        %v1434 = vsel %vm1419, %v1403, %v1404
        %v1435 = vsel %vm1419, %v1402, %v1403
        %v1436 = vsel %vm1419, %v1401, %v1402
        %v1437 = vsel %vm1419, %v1400, %v1401
        %v1438 = vsel %vm1419, %v1399, %v1400
        %v1439 = vsel %vm1419, %v1398, %v1399
        %v1440 = vsel %vm1419, %v1397, %v1398
        %v1441 = vsel %vm1419, %v1396, %v1397
        %v1442 = vsel %vm1419, %v1395, %v1396
        %v1443 = vsel %vm1419, %v1394, %v1395
        %v1444 = vsel %vm1419, %v1393, %v1394
        %v1445 = vsel %vm1419, %v1392, %v1393
        %v1446 = vsel %vm1419, %v1391, %v1392
        %v1447 = vsel %vm1419, %v1390, %v1391
        %v1448 = vsel %vm1419, %v1389, %v1390
        %v1449 = vsel %vm1419, %v1388, %v1389
        %v1450 = vsel %vm1419, %v1387, %v1388
        %v1451 = vsel %vm1419, %v1418, %v1387
        %v1452 = vmul.f32 %v810, %v1098
        %v1453 = vmul.f32 %v811, %v1099
        %v1454 = vmul.f32 %v812, %v1100
        %v1455 = vmul.f32 %v813, %v1101
        %v1456 = vmul.f32 %v814, %v1102
        %v1457 = vmul.f32 %v815, %v1103
        %v1458 = vmul.f32 %v816, %v1104
        %v1459 = vmul.f32 %v817, %v1105
        %v1460 = vmul.f32 %v818, %v1106
        %v1461 = vmul.f32 %v819, %v1107
        %v1462 = vmul.f32 %v820, %v1108
        %v1463 = vmul.f32 %v821, %v1109
        %v1464 = vmul.f32 %v822, %v1110
        %v1465 = vmul.f32 %v823, %v1111
        %v1466 = vmul.f32 %v824, %v1112
        %v1467 = vmul.f32 %v825, %v1113
        %v1468 = vmul.f32 %v826, %v1114
        %v1469 = vmul.f32 %v827, %v1115
        %v1470 = vmul.f32 %v828, %v1116
        %v1471 = vmul.f32 %v829, %v1117
        %v1472 = vmul.f32 %v830, %v1118
        %v1473 = vmul.f32 %v831, %v1119
        %v1474 = vmul.f32 %v832, %v1120
        %v1475 = vmul.f32 %v833, %v1121
        %v1476 = vmul.f32 %v834, %v1122
        %v1477 = vmul.f32 %v835, %v1123
        %v1478 = vmul.f32 %v836, %v1124
        %v1479 = vmul.f32 %v837, %v1125
        %v1480 = vmul.f32 %v838, %v1126
        %v1481 = vmul.f32 %v839, %v1127
        %v1482 = vmul.f32 %v840, %v1128
        %v1483 = vmul.f32 %v841, %v1129
        %v1484 = vmul.f32 %v1420, %v1452
        %v1485 = vmul.f32 %v1451, %v1453
        %v1486 = vmul.f32 %v1450, %v1454
        %v1487 = vmul.f32 %v1449, %v1455
        %v1488 = vmul.f32 %v1448, %v1456
        %v1489 = vmul.f32 %v1447, %v1457
        %v1490 = vmul.f32 %v1446, %v1458
        %v1491 = vmul.f32 %v1445, %v1459
        %v1492 = vmul.f32 %v1444, %v1460
        %v1493 = vmul.f32 %v1443, %v1461
        %v1494 = vmul.f32 %v1442, %v1462
        %v1495 = vmul.f32 %v1441, %v1463
        %v1496 = vmul.f32 %v1440, %v1464
        %v1497 = vmul.f32 %v1439, %v1465
        %v1498 = vmul.f32 %v1438, %v1466
        %v1499 = vmul.f32 %v1437, %v1467
        %v1500 = vmul.f32 %v1436, %v1468
        %v1501 = vmul.f32 %v1435, %v1469
        %v1502 = vmul.f32 %v1434, %v1470
        %v1503 = vmul.f32 %v1433, %v1471
        %v1504 = vmul.f32 %v1432, %v1472
        %v1505 = vmul.f32 %v1431, %v1473
        %v1506 = vmul.f32 %v1430, %v1474
        %v1507 = vmul.f32 %v1429, %v1475
        %v1508 = vmul.f32 %v1428, %v1476
        %v1509 = vmul.f32 %v1427, %v1477
        %v1510 = vmul.f32 %v1426, %v1478
        %v1511 = vmul.f32 %v1425, %v1479
        %v1512 = vmul.f32 %v1424, %v1480
        %v1513 = vmul.f32 %v1423, %v1481
        %v1514 = vmul.f32 %v1422, %v1482
        %v1515 = vmul.f32 %v1421, %v1483
        %v1516 = vpack.c.bf16 %v1485, %v1484
        %v1517 = vpack.c.bf16 %v1487, %v1486
        %v1518 = vpack.c.bf16 %v1489, %v1488
        %v1519 = vpack.c.bf16 %v1491, %v1490
        %v1520 = vpack.c.bf16 %v1493, %v1492
        %v1521 = vpack.c.bf16 %v1495, %v1494
        %v1522 = vpack.c.bf16 %v1497, %v1496
        %v1523 = vpack.c.bf16 %v1499, %v1498
        %v1524 = vpack.c.bf16 %v1501, %v1500
        %v1525 = vpack.c.bf16 %v1503, %v1502
        %v1526 = vpack.c.bf16 %v1505, %v1504
        %v1527 = vpack.c.bf16 %v1507, %v1506
        %v1528 = vpack.c.bf16 %v1509, %v1508
        %v1529 = vpack.c.bf16 %v1511, %v1510
        %v1530 = vpack.c.bf16 %v1513, %v1512
        %v1531 = vpack.c.bf16 %v1515, %v1514
        %1532 = vst [vmem:[#allocation2 + $0x10] sm:$0xff] %v1516
        %1533 = vst [vmem:[#allocation2 + $0x58] sm:$0xff] %v1517
        %1534 = vst [vmem:[#allocation2 + $0xa0] sm:$0xff] %v1518
        %1535 = vst [vmem:[#allocation2 + $0xe8] sm:$0xff] %v1519
        %1536 = vst [vmem:[#allocation2 + $0x130] sm:$0xff] %v1520
        %1537 = vst [vmem:[#allocation2 + $0x178] sm:$0xff] %v1521
        %1538 = vst [vmem:[#allocation2 + $0x1c0] sm:$0xff] %v1522
        %1539 = vst [vmem:[#allocation2 + $0x208] sm:$0xff] %v1523
        %1540 = vst [vmem:[#allocation2 + $0x250] sm:$0xff] %v1524
        %1541 = vst [vmem:[#allocation2 + $0x298] sm:$0xff] %v1525
        %1542 = vst [vmem:[#allocation2 + $0x2e0] sm:$0xff] %v1526
        %1543 = vst [vmem:[#allocation2 + $0x328] sm:$0xff] %v1527
        %1544 = vst [vmem:[#allocation2 + $0x370] sm:$0xff] %v1528
        %1545 = vst [vmem:[#allocation2 + $0x3b8] sm:$0xff] %v1529
        %1546 = vst [vmem:[#allocation2 + $0x400] sm:$0xff] %v1530
        %1547 = vst [vmem:[#allocation2 + $0x448] sm:$0xff] %v1531
        %v1548 = vmul.f32 %v1226, %v1002
        %v1549 = vmul.f32 %v1225, %v1003
        %v1550 = vmul.f32 %v1224, %v1004
        %v1551 = vmul.f32 %v1223, %v1005
        %v1552 = vmul.f32 %v1222, %v1006
        %v1553 = vmul.f32 %v1221, %v1007
        %v1554 = vmul.f32 %v1220, %v1008
        %v1555 = vmul.f32 %v1219, %v1009
        %v1556 = vmul.f32 %v1218, %v1010
        %v1557 = vmul.f32 %v1217, %v1011
        %v1558 = vmul.f32 %v1216, %v1012
        %v1559 = vmul.f32 %v1215, %v1013
        %v1560 = vmul.f32 %v1214, %v1014
        %v1561 = vmul.f32 %v1213, %v1015
        %v1562 = vmul.f32 %v1212, %v1016
        %v1563 = vmul.f32 %v1211, %v1017
        %v1564 = vmul.f32 %v1210, %v1018
        %v1565 = vmul.f32 %v1209, %v1019
        %v1566 = vmul.f32 %v1208, %v1020
        %v1567 = vmul.f32 %v1207, %v1021
        %v1568 = vmul.f32 %v1206, %v1022
        %v1569 = vmul.f32 %v1205, %v1023
        %v1570 = vmul.f32 %v1204, %v1024
        %v1571 = vmul.f32 %v1203, %v1025
        %v1572 = vmul.f32 %v1202, %v1026
        %v1573 = vmul.f32 %v1201, %v1027
        %v1574 = vmul.f32 %v1200, %v1028
        %v1575 = vmul.f32 %v1199, %v1029
        %v1576 = vmul.f32 %v1198, %v1030
        %v1577 = vmul.f32 %v1197, %v1031
        %v1578 = vmul.f32 %v1196, %v1032
        %v1579 = vmul.f32 %v1195, %v1033
        %v1580 = vpack.c.bf16 %v1549, %v1548
        %v1581 = vpack.c.bf16 %v1551, %v1550
        %v1582 = vpack.c.bf16 %v1553, %v1552
        %v1583 = vpack.c.bf16 %v1555, %v1554
        %v1584 = vpack.c.bf16 %v1557, %v1556
        %v1585 = vpack.c.bf16 %v1559, %v1558
        %v1586 = vpack.c.bf16 %v1561, %v1560
        %v1587 = vpack.c.bf16 %v1563, %v1562
        %v1588 = vpack.c.bf16 %v1565, %v1564
        %v1589 = vpack.c.bf16 %v1567, %v1566
        %v1590 = vpack.c.bf16 %v1569, %v1568
        %v1591 = vpack.c.bf16 %v1571, %v1570
        %v1592 = vpack.c.bf16 %v1573, %v1572
        %v1593 = vpack.c.bf16 %v1575, %v1574
        %v1594 = vpack.c.bf16 %v1577, %v1576
        %v1595 = vpack.c.bf16 %v1579, %v1578
        %1596 = vst [vmem:[#allocation2 + $0x18] sm:$0xff] %v1580
        %1597 = vst [vmem:[#allocation2 + $0x60] sm:$0xff] %v1581
        %1598 = vst [vmem:[#allocation2 + $0xa8] sm:$0xff] %v1582
        %1599 = vst [vmem:[#allocation2 + $0xf0] sm:$0xff] %v1583
        %1600 = vst [vmem:[#allocation2 + $0x138] sm:$0xff] %v1584
        %1601 = vst [vmem:[#allocation2 + $0x180] sm:$0xff] %v1585
        %1602 = vst [vmem:[#allocation2 + $0x1c8] sm:$0xff] %v1586
        %1603 = vst [vmem:[#allocation2 + $0x210] sm:$0xff] %v1587
        %1604 = vst [vmem:[#allocation2 + $0x258] sm:$0xff] %v1588
        %1605 = vst [vmem:[#allocation2 + $0x2a0] sm:$0xff] %v1589
        %1606 = vst [vmem:[#allocation2 + $0x2e8] sm:$0xff] %v1590
        %1607 = vst [vmem:[#allocation2 + $0x330] sm:$0xff] %v1591
        %1608 = vst [vmem:[#allocation2 + $0x378] sm:$0xff] %v1592
        %1609 = vst [vmem:[#allocation2 + $0x3c0] sm:$0xff] %v1593
        %1610 = vst [vmem:[#allocation2 + $0x408] sm:$0xff] %v1594
        %1611 = vst [vmem:[#allocation2 + $0x450] sm:$0xff] %v1595
        %v1612 = vpack.c.bf16 %v1131, %v1130
        %v1613 = vpack.c.bf16 %v1133, %v1132
        %v1614 = vpack.c.bf16 %v1135, %v1134
        %v1615 = vpack.c.bf16 %v1137, %v1136
        %v1616 = vpack.c.bf16 %v1139, %v1138
        %v1617 = vpack.c.bf16 %v1141, %v1140
        %v1618 = vpack.c.bf16 %v1143, %v1142
        %v1619 = vpack.c.bf16 %v1145, %v1144
        %v1620 = vpack.c.bf16 %v1147, %v1146
        %v1621 = vpack.c.bf16 %v1149, %v1148
        %v1622 = vpack.c.bf16 %v1151, %v1150
        %v1623 = vpack.c.bf16 %v1153, %v1152
        %v1624 = vpack.c.bf16 %v1155, %v1154
        %v1625 = vpack.c.bf16 %v1157, %v1156
        %v1626 = vpack.c.bf16 %v1159, %v1158
        %v1627 = vpack.c.bf16 %v1161, %v1160
        %1628 = vst [vmem:[#allocation2 + $0x20] sm:$0xff] %v1612
        %1629 = vst [vmem:[#allocation2 + $0x68] sm:$0xff] %v1613
        %1630 = vst [vmem:[#allocation2 + $0xb0] sm:$0xff] %v1614
        %1631 = vst [vmem:[#allocation2 + $0xf8] sm:$0xff] %v1615
        %1632 = vst [vmem:[#allocation2 + $0x140] sm:$0xff] %v1616
        %1633 = vst [vmem:[#allocation2 + $0x188] sm:$0xff] %v1617
        %1634 = vst [vmem:[#allocation2 + $0x1d0] sm:$0xff] %v1618
        %1635 = vst [vmem:[#allocation2 + $0x218] sm:$0xff] %v1619
        %1636 = vst [vmem:[#allocation2 + $0x260] sm:$0xff] %v1620
        %1637 = vst [vmem:[#allocation2 + $0x2a8] sm:$0xff] %v1621
        %1638 = vst [vmem:[#allocation2 + $0x2f0] sm:$0xff] %v1622
        %1639 = vst [vmem:[#allocation2 + $0x338] sm:$0xff] %v1623
        %1640 = vst [vmem:[#allocation2 + $0x380] sm:$0xff] %v1624
        %1641 = vst [vmem:[#allocation2 + $0x3c8] sm:$0xff] %v1625
        %1642 = vst [vmem:[#allocation2 + $0x410] sm:$0xff] %v1626
        %1643 = vst [vmem:[#allocation2 + $0x458] sm:$0xff] %v1627
        %v1644 = vmul.f32 %v1450, %v1098
        %v1645 = vmul.f32 %v1449, %v1099
        %v1646 = vmul.f32 %v1448, %v1100
        %v1647 = vmul.f32 %v1447, %v1101
        %v1648 = vmul.f32 %v1446, %v1102
        %v1649 = vmul.f32 %v1445, %v1103
        %v1650 = vmul.f32 %v1444, %v1104
        %v1651 = vmul.f32 %v1443, %v1105
        %v1652 = vmul.f32 %v1442, %v1106
        %v1653 = vmul.f32 %v1441, %v1107
        %v1654 = vmul.f32 %v1440, %v1108
        %v1655 = vmul.f32 %v1439, %v1109
        %v1656 = vmul.f32 %v1438, %v1110
        %v1657 = vmul.f32 %v1437, %v1111
        %v1658 = vmul.f32 %v1436, %v1112
        %v1659 = vmul.f32 %v1435, %v1113
        %v1660 = vmul.f32 %v1434, %v1114
        %v1661 = vmul.f32 %v1433, %v1115
        %v1662 = vmul.f32 %v1432, %v1116
        %v1663 = vmul.f32 %v1431, %v1117
        %v1664 = vmul.f32 %v1430, %v1118
        %v1665 = vmul.f32 %v1429, %v1119
        %v1666 = vmul.f32 %v1428, %v1120
        %v1667 = vmul.f32 %v1427, %v1121
        %v1668 = vmul.f32 %v1426, %v1122
        %v1669 = vmul.f32 %v1425, %v1123
        %v1670 = vmul.f32 %v1424, %v1124
        %v1671 = vmul.f32 %v1423, %v1125
        %v1672 = vmul.f32 %v1422, %v1126
        %v1673 = vmul.f32 %v1421, %v1127
        %v1674 = vmul.f32 %v1420, %v1128
        %v1675 = vmul.f32 %v1451, %v1129
        %v1676 = vpack.c.bf16 %v1645, %v1644
        %v1677 = vpack.c.bf16 %v1647, %v1646
        %v1678 = vpack.c.bf16 %v1649, %v1648
        %v1679 = vpack.c.bf16 %v1651, %v1650
        %v1680 = vpack.c.bf16 %v1653, %v1652
        %v1681 = vpack.c.bf16 %v1655, %v1654
        %v1682 = vpack.c.bf16 %v1657, %v1656
        %v1683 = vpack.c.bf16 %v1659, %v1658
        %v1684 = vpack.c.bf16 %v1661, %v1660
        %v1685 = vpack.c.bf16 %v1663, %v1662
        %v1686 = vpack.c.bf16 %v1665, %v1664
        %v1687 = vpack.c.bf16 %v1667, %v1666
        %v1688 = vpack.c.bf16 %v1669, %v1668
        %v1689 = vpack.c.bf16 %v1671, %v1670
        %v1690 = vpack.c.bf16 %v1673, %v1672
        %v1691 = vpack.c.bf16 %v1675, %v1674
        %1692 = vst [vmem:[#allocation2 + $0x28] sm:$0xff] %v1676
        %1693 = vst [vmem:[#allocation2 + $0x70] sm:$0xff] %v1677
        %1694 = vst [vmem:[#allocation2 + $0xb8] sm:$0xff] %v1678
        %1695 = vst [vmem:[#allocation2 + $0x100] sm:$0xff] %v1679
        %1696 = vst [vmem:[#allocation2 + $0x148] sm:$0xff] %v1680
        %1697 = vst [vmem:[#allocation2 + $0x190] sm:$0xff] %v1681
        %1698 = vst [vmem:[#allocation2 + $0x1d8] sm:$0xff] %v1682
        %1699 = vst [vmem:[#allocation2 + $0x220] sm:$0xff] %v1683
        %1700 = vst [vmem:[#allocation2 + $0x268] sm:$0xff] %v1684
        %1701 = vst [vmem:[#allocation2 + $0x2b0] sm:$0xff] %v1685
        %1702 = vst [vmem:[#allocation2 + $0x2f8] sm:$0xff] %v1686
        %1703 = vst [vmem:[#allocation2 + $0x340] sm:$0xff] %v1687
        %1704 = vst [vmem:[#allocation2 + $0x388] sm:$0xff] %v1688
        %1705 = vst [vmem:[#allocation2 + $0x3d0] sm:$0xff] %v1689
        %1706 = vst [vmem:[#allocation2 + $0x418] sm:$0xff] %v1690
        %1707 = vst [vmem:[#allocation2 + $0x460] sm:$0xff] %v1691
        %v1708 = vmul.f32 %v906, %v1002
        %v1709 = vmul.f32 %v907, %v1003
        %v1710 = vmul.f32 %v908, %v1004
        %v1711 = vmul.f32 %v909, %v1005
        %v1712 = vmul.f32 %v910, %v1006
        %v1713 = vmul.f32 %v911, %v1007
        %v1714 = vmul.f32 %v912, %v1008
        %v1715 = vmul.f32 %v913, %v1009
        %v1716 = vmul.f32 %v914, %v1010
        %v1717 = vmul.f32 %v915, %v1011
        %v1718 = vmul.f32 %v916, %v1012
        %v1719 = vmul.f32 %v917, %v1013
        %v1720 = vmul.f32 %v918, %v1014
        %v1721 = vmul.f32 %v919, %v1015
        %v1722 = vmul.f32 %v920, %v1016
        %v1723 = vmul.f32 %v921, %v1017
        %v1724 = vmul.f32 %v922, %v1018
        %v1725 = vmul.f32 %v923, %v1019
        %v1726 = vmul.f32 %v924, %v1020
        %v1727 = vmul.f32 %v925, %v1021
        %v1728 = vmul.f32 %v926, %v1022
        %v1729 = vmul.f32 %v927, %v1023
        %v1730 = vmul.f32 %v928, %v1024
        %v1731 = vmul.f32 %v929, %v1025
        %v1732 = vmul.f32 %v930, %v1026
        %v1733 = vmul.f32 %v931, %v1027
        %v1734 = vmul.f32 %v932, %v1028
        %v1735 = vmul.f32 %v933, %v1029
        %v1736 = vmul.f32 %v934, %v1030
        %v1737 = vmul.f32 %v935, %v1031
        %v1738 = vmul.f32 %v936, %v1032
        %v1739 = vmul.f32 %v937, %v1033
        %v1740 = vmul.f32 %v1224, %v1708
        %v1741 = vmul.f32 %v1223, %v1709
        %v1742 = vmul.f32 %v1222, %v1710
        %v1743 = vmul.f32 %v1221, %v1711
        %v1744 = vmul.f32 %v1220, %v1712
        %v1745 = vmul.f32 %v1219, %v1713
        %v1746 = vmul.f32 %v1218, %v1714
        %v1747 = vmul.f32 %v1217, %v1715
        %v1748 = vmul.f32 %v1216, %v1716
        %v1749 = vmul.f32 %v1215, %v1717
        %v1750 = vmul.f32 %v1214, %v1718
        %v1751 = vmul.f32 %v1213, %v1719
        %v1752 = vmul.f32 %v1212, %v1720
        %v1753 = vmul.f32 %v1211, %v1721
        %v1754 = vmul.f32 %v1210, %v1722
        %v1755 = vmul.f32 %v1209, %v1723
        %v1756 = vmul.f32 %v1208, %v1724
        %v1757 = vmul.f32 %v1207, %v1725
        %v1758 = vmul.f32 %v1206, %v1726
        %v1759 = vmul.f32 %v1205, %v1727
        %v1760 = vmul.f32 %v1204, %v1728
        %v1761 = vmul.f32 %v1203, %v1729
        %v1762 = vmul.f32 %v1202, %v1730
        %v1763 = vmul.f32 %v1201, %v1731
        %v1764 = vmul.f32 %v1200, %v1732
        %v1765 = vmul.f32 %v1199, %v1733
        %v1766 = vmul.f32 %v1198, %v1734
        %v1767 = vmul.f32 %v1197, %v1735
        %v1768 = vmul.f32 %v1196, %v1736
        %v1769 = vmul.f32 %v1195, %v1737
        %v1770 = vmul.f32 %v1226, %v1738
        %v1771 = vmul.f32 %v1225, %v1739
        %v1772 = vpack.c.bf16 %v1741, %v1740
        %v1773 = vpack.c.bf16 %v1743, %v1742
        %v1774 = vpack.c.bf16 %v1745, %v1744
        %v1775 = vpack.c.bf16 %v1747, %v1746
        %v1776 = vpack.c.bf16 %v1749, %v1748
        %v1777 = vpack.c.bf16 %v1751, %v1750
        %v1778 = vpack.c.bf16 %v1753, %v1752
        %v1779 = vpack.c.bf16 %v1755, %v1754
        %v1780 = vpack.c.bf16 %v1757, %v1756
        %v1781 = vpack.c.bf16 %v1759, %v1758
        %v1782 = vpack.c.bf16 %v1761, %v1760
        %v1783 = vpack.c.bf16 %v1763, %v1762
        %v1784 = vpack.c.bf16 %v1765, %v1764
        %v1785 = vpack.c.bf16 %v1767, %v1766
        %v1786 = vpack.c.bf16 %v1769, %v1768
        %v1787 = vpack.c.bf16 %v1771, %v1770
        %1788 = vst [vmem:[#allocation2 + $0x30] sm:$0xff] %v1772
        %1789 = vst [vmem:[#allocation2 + $0x78] sm:$0xff] %v1773
        %1790 = vst [vmem:[#allocation2 + $0xc0] sm:$0xff] %v1774
        %1791 = vst [vmem:[#allocation2 + $0x108] sm:$0xff] %v1775
        %1792 = vst [vmem:[#allocation2 + $0x150] sm:$0xff] %v1776
        %1793 = vst [vmem:[#allocation2 + $0x198] sm:$0xff] %v1777
        %1794 = vst [vmem:[#allocation2 + $0x1e0] sm:$0xff] %v1778
        %1795 = vst [vmem:[#allocation2 + $0x228] sm:$0xff] %v1779
        %1796 = vst [vmem:[#allocation2 + $0x270] sm:$0xff] %v1780
        %1797 = vst [vmem:[#allocation2 + $0x2b8] sm:$0xff] %v1781
        %1798 = vst [vmem:[#allocation2 + $0x300] sm:$0xff] %v1782
        %1799 = vst [vmem:[#allocation2 + $0x348] sm:$0xff] %v1783
        %1800 = vst [vmem:[#allocation2 + $0x390] sm:$0xff] %v1784
        %1801 = vst [vmem:[#allocation2 + $0x3d8] sm:$0xff] %v1785
        %1802 = vst [vmem:[#allocation2 + $0x420] sm:$0xff] %v1786
        %1803 = vst [vmem:[#allocation2 + $0x468] sm:$0xff] %v1787
        %v1804 = vmul.f32 %v1132, %v906
        %v1805 = vmul.f32 %v1133, %v907
        %v1806 = vmul.f32 %v1134, %v908
        %v1807 = vmul.f32 %v1135, %v909
        %v1808 = vmul.f32 %v1136, %v910
        %v1809 = vmul.f32 %v1137, %v911
        %v1810 = vmul.f32 %v1138, %v912
        %v1811 = vmul.f32 %v1139, %v913
        %v1812 = vmul.f32 %v1140, %v914
        %v1813 = vmul.f32 %v1141, %v915
        %v1814 = vmul.f32 %v1142, %v916
        %v1815 = vmul.f32 %v1143, %v917
        %v1816 = vmul.f32 %v1144, %v918
        %v1817 = vmul.f32 %v1145, %v919
        %v1818 = vmul.f32 %v1146, %v920
        %v1819 = vmul.f32 %v1147, %v921
        %v1820 = vmul.f32 %v1148, %v922
        %v1821 = vmul.f32 %v1149, %v923
        %v1822 = vmul.f32 %v1150, %v924
        %v1823 = vmul.f32 %v1151, %v925
        %v1824 = vmul.f32 %v1152, %v926
        %v1825 = vmul.f32 %v1153, %v927
        %v1826 = vmul.f32 %v1154, %v928
        %v1827 = vmul.f32 %v1155, %v929
        %v1828 = vmul.f32 %v1156, %v930
        %v1829 = vmul.f32 %v1157, %v931
        %v1830 = vmul.f32 %v1158, %v932
        %v1831 = vmul.f32 %v1159, %v933
        %v1832 = vmul.f32 %v1160, %v934
        %v1833 = vmul.f32 %v1161, %v935
        %v1834 = vmul.f32 %v1130, %v936
        %v1835 = vmul.f32 %v1131, %v937
        %v1836 = vpack.c.bf16 %v1805, %v1804
        %v1837 = vpack.c.bf16 %v1807, %v1806
        %v1838 = vpack.c.bf16 %v1809, %v1808
        %v1839 = vpack.c.bf16 %v1811, %v1810
        %v1840 = vpack.c.bf16 %v1813, %v1812
        %v1841 = vpack.c.bf16 %v1815, %v1814
        %v1842 = vpack.c.bf16 %v1817, %v1816
        %v1843 = vpack.c.bf16 %v1819, %v1818
        %v1844 = vpack.c.bf16 %v1821, %v1820
        %v1845 = vpack.c.bf16 %v1823, %v1822
        %v1846 = vpack.c.bf16 %v1825, %v1824
        %v1847 = vpack.c.bf16 %v1827, %v1826
        %v1848 = vpack.c.bf16 %v1829, %v1828
        %v1849 = vpack.c.bf16 %v1831, %v1830
        %v1850 = vpack.c.bf16 %v1833, %v1832
        %v1851 = vpack.c.bf16 %v1835, %v1834
        %1852 = vst [vmem:[#allocation2 + $0x38] sm:$0xff] %v1836
        %1853 = vst [vmem:[#allocation2 + $0x80] sm:$0xff] %v1837
        %1854 = vst [vmem:[#allocation2 + $0xc8] sm:$0xff] %v1838
        %1855 = vst [vmem:[#allocation2 + $0x110] sm:$0xff] %v1839
        %1856 = vst [vmem:[#allocation2 + $0x158] sm:$0xff] %v1840
        %1857 = vst [vmem:[#allocation2 + $0x1a0] sm:$0xff] %v1841
        %1858 = vst [vmem:[#allocation2 + $0x1e8] sm:$0xff] %v1842
        %1859 = vst [vmem:[#allocation2 + $0x230] sm:$0xff] %v1843
        %1860 = vst [vmem:[#allocation2 + $0x278] sm:$0xff] %v1844
        %1861 = vst [vmem:[#allocation2 + $0x2c0] sm:$0xff] %v1845
        %1862 = vst [vmem:[#allocation2 + $0x308] sm:$0xff] %v1846
        %1863 = vst [vmem:[#allocation2 + $0x350] sm:$0xff] %v1847
        %1864 = vst [vmem:[#allocation2 + $0x398] sm:$0xff] %v1848
        %1865 = vst [vmem:[#allocation2 + $0x3e0] sm:$0xff] %v1849
        %1866 = vst [vmem:[#allocation2 + $0x428] sm:$0xff] %v1850
        %1867 = vst [vmem:[#allocation2 + $0x470] sm:$0xff] %v1851
        %v1868 = vmul.f32 %v906, %v1098
        %v1869 = vmul.f32 %v907, %v1099
        %v1870 = vmul.f32 %v908, %v1100
        %v1871 = vmul.f32 %v909, %v1101
        %v1872 = vmul.f32 %v910, %v1102
        %v1873 = vmul.f32 %v911, %v1103
        %v1874 = vmul.f32 %v912, %v1104
        %v1875 = vmul.f32 %v913, %v1105
        %v1876 = vmul.f32 %v914, %v1106
        %v1877 = vmul.f32 %v915, %v1107
        %v1878 = vmul.f32 %v916, %v1108
        %v1879 = vmul.f32 %v917, %v1109
        %v1880 = vmul.f32 %v918, %v1110
        %v1881 = vmul.f32 %v919, %v1111
        %v1882 = vmul.f32 %v920, %v1112
        %v1883 = vmul.f32 %v921, %v1113
        %v1884 = vmul.f32 %v922, %v1114
        %v1885 = vmul.f32 %v923, %v1115
        %v1886 = vmul.f32 %v924, %v1116
        %v1887 = vmul.f32 %v925, %v1117
        %v1888 = vmul.f32 %v926, %v1118
        %v1889 = vmul.f32 %v927, %v1119
        %v1890 = vmul.f32 %v928, %v1120
        %v1891 = vmul.f32 %v929, %v1121
        %v1892 = vmul.f32 %v930, %v1122
        %v1893 = vmul.f32 %v931, %v1123
        %v1894 = vmul.f32 %v932, %v1124
        %v1895 = vmul.f32 %v933, %v1125
        %v1896 = vmul.f32 %v934, %v1126
        %v1897 = vmul.f32 %v935, %v1127
        %v1898 = vmul.f32 %v936, %v1128
        %v1899 = vmul.f32 %v937, %v1129
        %v1900 = vmul.f32 %v1448, %v1868
        %v1901 = vmul.f32 %v1447, %v1869
        %v1902 = vmul.f32 %v1446, %v1870
        %v1903 = vmul.f32 %v1445, %v1871
        %v1904 = vmul.f32 %v1444, %v1872
        %v1905 = vmul.f32 %v1443, %v1873
        %v1906 = vmul.f32 %v1442, %v1874
        %v1907 = vmul.f32 %v1441, %v1875
        %v1908 = vmul.f32 %v1440, %v1876
        %v1909 = vmul.f32 %v1439, %v1877
        %v1910 = vmul.f32 %v1438, %v1878
        %v1911 = vmul.f32 %v1437, %v1879
        %v1912 = vmul.f32 %v1436, %v1880
        %v1913 = vmul.f32 %v1435, %v1881
        %v1914 = vmul.f32 %v1434, %v1882
        %v1915 = vmul.f32 %v1433, %v1883
        %v1916 = vmul.f32 %v1432, %v1884
        %v1917 = vmul.f32 %v1431, %v1885
        %v1918 = vmul.f32 %v1430, %v1886
        %v1919 = vmul.f32 %v1429, %v1887
        %v1920 = vmul.f32 %v1428, %v1888
        %v1921 = vmul.f32 %v1427, %v1889
        %v1922 = vmul.f32 %v1426, %v1890
        %v1923 = vmul.f32 %v1425, %v1891
        %v1924 = vmul.f32 %v1424, %v1892
        %v1925 = vmul.f32 %v1423, %v1893
        %v1926 = vmul.f32 %v1422, %v1894
        %v1927 = vmul.f32 %v1421, %v1895
        %v1928 = vmul.f32 %v1420, %v1896
        %v1929 = vmul.f32 %v1451, %v1897
        %v1930 = vmul.f32 %v1450, %v1898
        %v1931 = vmul.f32 %v1449, %v1899
        %v1932 = vpack.c.bf16 %v1901, %v1900
        %v1933 = vpack.c.bf16 %v1903, %v1902
        %v1934 = vpack.c.bf16 %v1905, %v1904
        %v1935 = vpack.c.bf16 %v1907, %v1906
        %v1936 = vpack.c.bf16 %v1909, %v1908
        %v1937 = vpack.c.bf16 %v1911, %v1910
        %v1938 = vpack.c.bf16 %v1913, %v1912
        %v1939 = vpack.c.bf16 %v1915, %v1914
        %v1940 = vpack.c.bf16 %v1917, %v1916
        %v1941 = vpack.c.bf16 %v1919, %v1918
        %v1942 = vpack.c.bf16 %v1921, %v1920
        %v1943 = vpack.c.bf16 %v1923, %v1922
        %v1944 = vpack.c.bf16 %v1925, %v1924
        %v1945 = vpack.c.bf16 %v1927, %v1926
        %v1946 = vpack.c.bf16 %v1929, %v1928
        %v1947 = vpack.c.bf16 %v1931, %v1930
        %1948 = vst [vmem:[#allocation2 + $0x40] sm:$0xff] %v1932
        %1949 = vst [vmem:[#allocation2 + $0x88] sm:$0xff] %v1933
        %1950 = vst [vmem:[#allocation2 + $0xd0] sm:$0xff] %v1934
        %1951 = vst [vmem:[#allocation2 + $0x118] sm:$0xff] %v1935
        %1952 = vst [vmem:[#allocation2 + $0x160] sm:$0xff] %v1936
        %1953 = vst [vmem:[#allocation2 + $0x1a8] sm:$0xff] %v1937
        %1954 = vst [vmem:[#allocation2 + $0x1f0] sm:$0xff] %v1938
        %1955 = vst [vmem:[#allocation2 + $0x238] sm:$0xff] %v1939
        %1956 = vst [vmem:[#allocation2 + $0x280] sm:$0xff] %v1940
        %1957 = vst [vmem:[#allocation2 + $0x2c8] sm:$0xff] %v1941
        %1958 = vst [vmem:[#allocation2 + $0x310] sm:$0xff] %v1942
        %1959 = vst [vmem:[#allocation2 + $0x358] sm:$0xff] %v1943
        %1960 = vst [vmem:[#allocation2 + $0x3a0] sm:$0xff] %v1944
        %1961 = vst [vmem:[#allocation2 + $0x3e8] sm:$0xff] %v1945
        %1962 = vst [vmem:[#allocation2 + $0x430] sm:$0xff] %v1946
        %1963 = vst [vmem:[#allocation2 + $0x478] sm:$0xff] %v1947
        %v1964 = vld [vmem:[#allocation2] sm:$0xff]
        %v1965 = vld [vmem:[#allocation2 + $0x8] sm:$0xff]
        %v1966 = vld [vmem:[#allocation2 + $0x10] sm:$0xff]
        %v1967 = vld [vmem:[#allocation2 + $0x18] sm:$0xff]
        %v1968 = vld [vmem:[#allocation2 + $0x20] sm:$0xff]
        %v1969 = vld [vmem:[#allocation2 + $0x28] sm:$0xff]
        %v1970 = vld [vmem:[#allocation2 + $0x30] sm:$0xff]
        %v1971 = vld [vmem:[#allocation2 + $0x38] sm:$0xff]
        %v1972 = vld [vmem:[#allocation2 + $0x40] sm:$0xff]
        %v1973 = vld [vmem:[#allocation2 + $0x48] sm:$0xff]
        %v1974 = vld [vmem:[#allocation2 + $0x50] sm:$0xff]
        %v1975 = vld [vmem:[#allocation2 + $0x58] sm:$0xff]
        %v1976 = vld [vmem:[#allocation2 + $0x60] sm:$0xff]
        %v1977 = vld [vmem:[#allocation2 + $0x68] sm:$0xff]
        %v1978 = vld [vmem:[#allocation2 + $0x70] sm:$0xff]
        %v1979 = vld [vmem:[#allocation2 + $0x78] sm:$0xff]
        %v1980 = vld [vmem:[#allocation2 + $0x80] sm:$0xff]
        %v1981 = vld [vmem:[#allocation2 + $0x88] sm:$0xff]
        %v1982 = vld [vmem:[#allocation2 + $0x90] sm:$0xff]
        %v1983 = vld [vmem:[#allocation2 + $0x98] sm:$0xff]
        %v1984 = vld [vmem:[#allocation2 + $0xa0] sm:$0xff]
        %v1985 = vld [vmem:[#allocation2 + $0xa8] sm:$0xff]
        %v1986 = vld [vmem:[#allocation2 + $0xb0] sm:$0xff]
        %v1987 = vld [vmem:[#allocation2 + $0xb8] sm:$0xff]
        %v1988 = vld [vmem:[#allocation2 + $0xc0] sm:$0xff]
        %v1989 = vld [vmem:[#allocation2 + $0xc8] sm:$0xff]
        %v1990 = vld [vmem:[#allocation2 + $0xd0] sm:$0xff]
        %v1991 = vld [vmem:[#allocation2 + $0xd8] sm:$0xff]
        %v1992 = vld [vmem:[#allocation2 + $0xe0] sm:$0xff]
        %v1993 = vld [vmem:[#allocation2 + $0xe8] sm:$0xff]
        %v1994 = vld [vmem:[#allocation2 + $0xf0] sm:$0xff]
        %v1995 = vld [vmem:[#allocation2 + $0xf8] sm:$0xff]
        %v1996 = vld [vmem:[#allocation2 + $0x100] sm:$0xff]
        %v1997 = vld [vmem:[#allocation2 + $0x108] sm:$0xff]
        %v1998 = vld [vmem:[#allocation2 + $0x110] sm:$0xff]
        %v1999 = vld [vmem:[#allocation2 + $0x118] sm:$0xff]
        %v2000 = vld [vmem:[#allocation2 + $0x120] sm:$0xff]
        %v2001 = vld [vmem:[#allocation2 + $0x128] sm:$0xff]
        %v2002 = vld [vmem:[#allocation2 + $0x130] sm:$0xff]
        %v2003 = vld [vmem:[#allocation2 + $0x138] sm:$0xff]
        %v2004 = vld [vmem:[#allocation2 + $0x140] sm:$0xff]
        %v2005 = vld [vmem:[#allocation2 + $0x148] sm:$0xff]
        %v2006 = vld [vmem:[#allocation2 + $0x150] sm:$0xff]
        %v2007 = vld [vmem:[#allocation2 + $0x158] sm:$0xff]
        %v2008 = vld [vmem:[#allocation2 + $0x160] sm:$0xff]
        %v2009 = vld [vmem:[#allocation2 + $0x168] sm:$0xff]
        %v2010 = vld [vmem:[#allocation2 + $0x170] sm:$0xff]
        %v2011 = vld [vmem:[#allocation2 + $0x178] sm:$0xff]
        %v2012 = vld [vmem:[#allocation2 + $0x180] sm:$0xff]
        %v2013 = vld [vmem:[#allocation2 + $0x188] sm:$0xff]
        %v2014 = vld [vmem:[#allocation2 + $0x190] sm:$0xff]
        %v2015 = vld [vmem:[#allocation2 + $0x198] sm:$0xff]
        %v2016 = vld [vmem:[#allocation2 + $0x1a0] sm:$0xff]
        %v2017 = vld [vmem:[#allocation2 + $0x1a8] sm:$0xff]
        %v2018 = vld [vmem:[#allocation2 + $0x1b0] sm:$0xff]
        %v2019 = vld [vmem:[#allocation2 + $0x1b8] sm:$0xff]
        %v2020 = vld [vmem:[#allocation2 + $0x1c0] sm:$0xff]
        %v2021 = vld [vmem:[#allocation2 + $0x1c8] sm:$0xff]
        %v2022 = vld [vmem:[#allocation2 + $0x1d0] sm:$0xff]
        %v2023 = vld [vmem:[#allocation2 + $0x1d8] sm:$0xff]
        %v2024 = vld [vmem:[#allocation2 + $0x1e0] sm:$0xff]
        %v2025 = vld [vmem:[#allocation2 + $0x1e8] sm:$0xff]
        %v2026 = vld [vmem:[#allocation2 + $0x1f0] sm:$0xff]
        %v2027 = vld [vmem:[#allocation2 + $0x1f8] sm:$0xff]
        %v2028 = vld [vmem:[#allocation2 + $0x200] sm:$0xff]
        %v2029 = vld [vmem:[#allocation2 + $0x208] sm:$0xff]
        %v2030 = vld [vmem:[#allocation2 + $0x210] sm:$0xff]
        %v2031 = vld [vmem:[#allocation2 + $0x218] sm:$0xff]
        %v2032 = vld [vmem:[#allocation2 + $0x220] sm:$0xff]
        %v2033 = vld [vmem:[#allocation2 + $0x228] sm:$0xff]
        %v2034 = vld [vmem:[#allocation2 + $0x230] sm:$0xff]
        %v2035 = vld [vmem:[#allocation2 + $0x238] sm:$0xff]
        %v2036 = vld [vmem:[#allocation2 + $0x240] sm:$0xff]
        %v2037 = vld [vmem:[#allocation2 + $0x248] sm:$0xff]
        %v2038 = vld [vmem:[#allocation2 + $0x250] sm:$0xff]
        %v2039 = vld [vmem:[#allocation2 + $0x258] sm:$0xff]
        %v2040 = vld [vmem:[#allocation2 + $0x260] sm:$0xff]
        %v2041 = vld [vmem:[#allocation2 + $0x268] sm:$0xff]
        %v2042 = vld [vmem:[#allocation2 + $0x270] sm:$0xff]
        %v2043 = vld [vmem:[#allocation2 + $0x278] sm:$0xff]
        %v2044 = vld [vmem:[#allocation2 + $0x280] sm:$0xff]
        %v2045 = vld [vmem:[#allocation2 + $0x288] sm:$0xff]
        %v2046 = vld [vmem:[#allocation2 + $0x290] sm:$0xff]
        %v2047 = vld [vmem:[#allocation2 + $0x298] sm:$0xff]
        %v2048 = vld [vmem:[#allocation2 + $0x2a0] sm:$0xff]
        %v2049 = vld [vmem:[#allocation2 + $0x2a8] sm:$0xff]
        %v2050 = vld [vmem:[#allocation2 + $0x2b0] sm:$0xff]
        %v2051 = vld [vmem:[#allocation2 + $0x2b8] sm:$0xff]
        %v2052 = vld [vmem:[#allocation2 + $0x2c0] sm:$0xff]
        %v2053 = vld [vmem:[#allocation2 + $0x2c8] sm:$0xff]
        %v2054 = vld [vmem:[#allocation2 + $0x2d0] sm:$0xff]
        %v2055 = vld [vmem:[#allocation2 + $0x2d8] sm:$0xff]
        %v2056 = vld [vmem:[#allocation2 + $0x2e0] sm:$0xff]
        %v2057 = vld [vmem:[#allocation2 + $0x2e8] sm:$0xff]
        %v2058 = vld [vmem:[#allocation2 + $0x2f0] sm:$0xff]
        %v2059 = vld [vmem:[#allocation2 + $0x2f8] sm:$0xff]
        %v2060 = vld [vmem:[#allocation2 + $0x300] sm:$0xff]
        %v2061 = vld [vmem:[#allocation2 + $0x308] sm:$0xff]
        %v2062 = vld [vmem:[#allocation2 + $0x310] sm:$0xff]
        %v2063 = vld [vmem:[#allocation2 + $0x318] sm:$0xff]
        %v2064 = vld [vmem:[#allocation2 + $0x320] sm:$0xff]
        %v2065 = vld [vmem:[#allocation2 + $0x328] sm:$0xff]
        %v2066 = vld [vmem:[#allocation2 + $0x330] sm:$0xff]
        %v2067 = vld [vmem:[#allocation2 + $0x338] sm:$0xff]
        %v2068 = vld [vmem:[#allocation2 + $0x340] sm:$0xff]
        %v2069 = vld [vmem:[#allocation2 + $0x348] sm:$0xff]
        %v2070 = vld [vmem:[#allocation2 + $0x350] sm:$0xff]
        %v2071 = vld [vmem:[#allocation2 + $0x358] sm:$0xff]
        %v2072 = vld [vmem:[#allocation2 + $0x360] sm:$0xff]
        %v2073 = vld [vmem:[#allocation2 + $0x368] sm:$0xff]
        %v2074 = vld [vmem:[#allocation2 + $0x370] sm:$0xff]
        %v2075 = vld [vmem:[#allocation2 + $0x378] sm:$0xff]
        %v2076 = vld [vmem:[#allocation2 + $0x380] sm:$0xff]
        %v2077 = vld [vmem:[#allocation2 + $0x388] sm:$0xff]
        %v2078 = vld [vmem:[#allocation2 + $0x390] sm:$0xff]
        %v2079 = vld [vmem:[#allocation2 + $0x398] sm:$0xff]
        %v2080 = vld [vmem:[#allocation2 + $0x3a0] sm:$0xff]
        %v2081 = vld [vmem:[#allocation2 + $0x3a8] sm:$0xff]
        %v2082 = vld [vmem:[#allocation2 + $0x3b0] sm:$0xff]
        %v2083 = vld [vmem:[#allocation2 + $0x3b8] sm:$0xff]
        %v2084 = vld [vmem:[#allocation2 + $0x3c0] sm:$0xff]
        %v2085 = vld [vmem:[#allocation2 + $0x3c8] sm:$0xff]
        %v2086 = vld [vmem:[#allocation2 + $0x3d0] sm:$0xff]
        %v2087 = vld [vmem:[#allocation2 + $0x3d8] sm:$0xff]
        %v2088 = vld [vmem:[#allocation2 + $0x3e0] sm:$0xff]
        %v2089 = vld [vmem:[#allocation2 + $0x3e8] sm:$0xff]
        %v2090 = vld [vmem:[#allocation2 + $0x3f0] sm:$0xff]
        %v2091 = vld [vmem:[#allocation2 + $0x3f8] sm:$0xff]
        %v2092 = vld [vmem:[#allocation2 + $0x400] sm:$0xff]
        %v2093 = vld [vmem:[#allocation2 + $0x408] sm:$0xff]
        %v2094 = vld [vmem:[#allocation2 + $0x410] sm:$0xff]
        %v2095 = vld [vmem:[#allocation2 + $0x418] sm:$0xff]
        %v2096 = vld [vmem:[#allocation2 + $0x420] sm:$0xff]
        %v2097 = vld [vmem:[#allocation2 + $0x428] sm:$0xff]
        %v2098 = vld [vmem:[#allocation2 + $0x430] sm:$0xff]
        %v2099 = vld [vmem:[#allocation2 + $0x438] sm:$0xff]
        %v2100 = vld [vmem:[#allocation2 + $0x440] sm:$0xff]
        %v2101 = vld [vmem:[#allocation2 + $0x448] sm:$0xff]
        %v2102 = vld [vmem:[#allocation2 + $0x450] sm:$0xff]
        %v2103 = vld [vmem:[#allocation2 + $0x458] sm:$0xff]
        %v2104 = vld [vmem:[#allocation2 + $0x460] sm:$0xff]
        %v2105 = vld [vmem:[#allocation2 + $0x468] sm:$0xff]
        %v2106 = vld [vmem:[#allocation2 + $0x470] sm:$0xff]
        %v2107 = vld [vmem:[#allocation2 + $0x478] sm:$0xff]
        %v2108 = vld [vmem:[#allocation6] sm:$0xf]
        %v2109 = vld [vmem:[#allocation6 + $0x4] sm:$0xf]
        %v2110 = vld [vmem:[#allocation6 + $0x8] sm:$0xf]
        %v2111 = vld [vmem:[#allocation6 + $0xc] sm:$0xf]
        %v2112 = vld [vmem:[#allocation6 + $0x10] sm:$0xf]
        %v2113 = vld [vmem:[#allocation6 + $0x14] sm:$0xf]
        %v2114 = vld [vmem:[#allocation6 + $0x18] sm:$0xf]
        %v2115 = vld [vmem:[#allocation6 + $0x1c] sm:$0xf]
        %v2116 = vld [vmem:[#allocation6 + $0x20] sm:$0xf]
        %v2117 = vld [vmem:[#allocation6 + $0x24] sm:$0xf]
        %v2118 = vld [vmem:[#allocation6 + $0x28] sm:$0xf]
        %v2119 = vld [vmem:[#allocation6 + $0x2c] sm:$0xf]
        %v2120 = vld [vmem:[#allocation6 + $0x30] sm:$0xf]
        %v2121 = vld [vmem:[#allocation6 + $0x34] sm:$0xf]
        %v2122 = vld [vmem:[#allocation6 + $0x38] sm:$0xf]
        %v2123 = vld [vmem:[#allocation6 + $0x3c] sm:$0xf]
        %v2124 = vld [vmem:[#allocation6 + $0x40] sm:$0xf]
        %v2125 = vld [vmem:[#allocation6 + $0x44] sm:$0xf]
        %v2126 = vld [vmem:[#allocation6 + $0x48] sm:$0xf]
        %v2127 = vld [vmem:[#allocation6 + $0x4c] sm:$0xf]
        %v2128 = vld [vmem:[#allocation6 + $0x50] sm:$0xf]
        %v2129 = vld [vmem:[#allocation6 + $0x54] sm:$0xf]
        %v2130 = vld [vmem:[#allocation6 + $0x58] sm:$0xf]
        %v2131 = vld [vmem:[#allocation6 + $0x5c] sm:$0xf]
        %v2132 = vld [vmem:[#allocation6 + $0x60] sm:$0xf]
        %v2133 = vld [vmem:[#allocation6 + $0x64] sm:$0xf]
        %v2134 = vld [vmem:[#allocation6 + $0x68] sm:$0xf]
        %v2135 = vld [vmem:[#allocation6 + $0x6c] sm:$0xf]
        %v2136 = vld [vmem:[#allocation6 + $0x70] sm:$0xf]
        %v2137 = vld [vmem:[#allocation6 + $0x74] sm:$0xf]
        %v2138 = vld [vmem:[#allocation6 + $0x78] sm:$0xf]
        %v2139 = vld [vmem:[#allocation6 + $0x7c] sm:$0xf]
        %v2140 = vld [vmem:[#allocation6 + $0x80] sm:$0xf]
        %v2141 = vld [vmem:[#allocation6 + $0x84] sm:$0xf]
        %v2142 = vld [vmem:[#allocation6 + $0x88] sm:$0xf]
        %v2143 = vld [vmem:[#allocation6 + $0x8c] sm:$0xf]
        %v2144 = vld [vmem:[#allocation6 + $0x90] sm:$0xf]
        %v2145 = vld [vmem:[#allocation6 + $0x94] sm:$0xf]
        %v2146 = vld [vmem:[#allocation6 + $0x98] sm:$0xf]
        %v2147 = vld [vmem:[#allocation6 + $0x9c] sm:$0xf]
        %v2148 = vld [vmem:[#allocation6 + $0xa0] sm:$0xf]
        %v2149 = vld [vmem:[#allocation6 + $0xa4] sm:$0xf]
        %v2150 = vld [vmem:[#allocation6 + $0xa8] sm:$0xf]
        %v2151 = vld [vmem:[#allocation6 + $0xac] sm:$0xf]
        %v2152 = vld [vmem:[#allocation6 + $0xb0] sm:$0xf]
        %v2153 = vld [vmem:[#allocation6 + $0xb4] sm:$0xf]
        %v2154 = vld [vmem:[#allocation6 + $0xb8] sm:$0xf]
        %v2155 = vld [vmem:[#allocation6 + $0xbc] sm:$0xf]
        %v2156 = vld [vmem:[#allocation6 + $0xc0] sm:$0xf]
        %v2157 = vld [vmem:[#allocation6 + $0xc4] sm:$0xf]
        %v2158 = vld [vmem:[#allocation6 + $0xc8] sm:$0xf]
        %v2159 = vld [vmem:[#allocation6 + $0xcc] sm:$0xf]
        %v2160 = vld [vmem:[#allocation6 + $0xd0] sm:$0xf]
        %v2161 = vld [vmem:[#allocation6 + $0xd4] sm:$0xf]
        %v2162 = vld [vmem:[#allocation6 + $0xd8] sm:$0xf]
        %v2163 = vld [vmem:[#allocation6 + $0xdc] sm:$0xf]
        %v2164 = vld [vmem:[#allocation6 + $0xe0] sm:$0xf]
        %v2165 = vld [vmem:[#allocation6 + $0xe4] sm:$0xf]
        %v2166 = vld [vmem:[#allocation6 + $0xe8] sm:$0xf]
        %v2167 = vld [vmem:[#allocation6 + $0xec] sm:$0xf]
        %v2168 = vld [vmem:[#allocation6 + $0xf0] sm:$0xf]
        %v2169 = vld [vmem:[#allocation6 + $0xf4] sm:$0xf]
        %v2170 = vld [vmem:[#allocation6 + $0xf8] sm:$0xf]
        %v2171 = vld [vmem:[#allocation6 + $0xfc] sm:$0xf]
        %v2172 = vld [vmem:[#allocation6 + $0x100] sm:$0xf]
        %v2173 = vld [vmem:[#allocation6 + $0x104] sm:$0xf]
        %v2174 = vld [vmem:[#allocation6 + $0x108] sm:$0xf]
        %v2175 = vld [vmem:[#allocation6 + $0x10c] sm:$0xf]
        %v2176 = vld [vmem:[#allocation6 + $0x110] sm:$0xf]
        %v2177 = vld [vmem:[#allocation6 + $0x114] sm:$0xf]
        %v2178 = vld [vmem:[#allocation6 + $0x118] sm:$0xf]
        %v2179 = vld [vmem:[#allocation6 + $0x11c] sm:$0xf]
        %v2180 = vld [vmem:[#allocation6 + $0x120] sm:$0xf]
        %v2181 = vld [vmem:[#allocation6 + $0x124] sm:$0xf]
        %v2182 = vld [vmem:[#allocation6 + $0x128] sm:$0xf]
        %v2183 = vld [vmem:[#allocation6 + $0x12c] sm:$0xf]
        %v2184 = vld [vmem:[#allocation6 + $0x130] sm:$0xf]
        %v2185 = vld [vmem:[#allocation6 + $0x134] sm:$0xf]
        %v2186 = vld [vmem:[#allocation6 + $0x138] sm:$0xf]
        %v2187 = vld [vmem:[#allocation6 + $0x13c] sm:$0xf]
        %v2188 = vld [vmem:[#allocation6 + $0x140] sm:$0xf]
        %v2189 = vld [vmem:[#allocation6 + $0x144] sm:$0xf]
        %v2190 = vld [vmem:[#allocation6 + $0x148] sm:$0xf]
        %v2191 = vld [vmem:[#allocation6 + $0x14c] sm:$0xf]
        %v2192 = vld [vmem:[#allocation6 + $0x150] sm:$0xf]
        %v2193 = vld [vmem:[#allocation6 + $0x154] sm:$0xf]
        %v2194 = vld [vmem:[#allocation6 + $0x158] sm:$0xf]
        %v2195 = vld [vmem:[#allocation6 + $0x15c] sm:$0xf]
        %v2196 = vld [vmem:[#allocation6 + $0x160] sm:$0xf]
        %v2197 = vld [vmem:[#allocation6 + $0x164] sm:$0xf]
        %v2198 = vld [vmem:[#allocation6 + $0x168] sm:$0xf]
        %v2199 = vld [vmem:[#allocation6 + $0x16c] sm:$0xf]
        %v2200 = vld [vmem:[#allocation6 + $0x170] sm:$0xf]
        %v2201 = vld [vmem:[#allocation6 + $0x174] sm:$0xf]
        %v2202 = vld [vmem:[#allocation6 + $0x178] sm:$0xf]
        %v2203 = vld [vmem:[#allocation6 + $0x17c] sm:$0xf]
        %v2204 = vld [vmem:[#allocation6 + $0x180] sm:$0xf]
        %v2205 = vld [vmem:[#allocation6 + $0x184] sm:$0xf]
        %v2206 = vld [vmem:[#allocation6 + $0x188] sm:$0xf]
        %v2207 = vld [vmem:[#allocation6 + $0x18c] sm:$0xf]
        %v2208 = vld [vmem:[#allocation6 + $0x190] sm:$0xf]
        %v2209 = vld [vmem:[#allocation6 + $0x194] sm:$0xf]
        %v2210 = vld [vmem:[#allocation6 + $0x198] sm:$0xf]
        %v2211 = vld [vmem:[#allocation6 + $0x19c] sm:$0xf]
        %v2212 = vld [vmem:[#allocation6 + $0x1a0] sm:$0xf]
        %v2213 = vld [vmem:[#allocation6 + $0x1a4] sm:$0xf]
        %v2214 = vld [vmem:[#allocation6 + $0x1a8] sm:$0xf]
        %v2215 = vld [vmem:[#allocation6 + $0x1ac] sm:$0xf]
        %v2216 = vld [vmem:[#allocation6 + $0x1b0] sm:$0xf]
        %v2217 = vld [vmem:[#allocation6 + $0x1b4] sm:$0xf]
        %v2218 = vld [vmem:[#allocation6 + $0x1b8] sm:$0xf]
        %v2219 = vld [vmem:[#allocation6 + $0x1bc] sm:$0xf]
        %v2220 = vld [vmem:[#allocation6 + $0x1c0] sm:$0xf]
        %v2221 = vld [vmem:[#allocation6 + $0x1c4] sm:$0xf]
        %v2222 = vld [vmem:[#allocation6 + $0x1c8] sm:$0xf]
        %v2223 = vld [vmem:[#allocation6 + $0x1cc] sm:$0xf]
        %v2224 = vld [vmem:[#allocation6 + $0x1d0] sm:$0xf]
        %v2225 = vld [vmem:[#allocation6 + $0x1d4] sm:$0xf]
        %v2226 = vld [vmem:[#allocation6 + $0x1d8] sm:$0xf]
        %v2227 = vld [vmem:[#allocation6 + $0x1dc] sm:$0xf]
        %v2228 = vld [vmem:[#allocation6 + $0x1e0] sm:$0xf]
        %v2229 = vld [vmem:[#allocation6 + $0x1e4] sm:$0xf]
        %v2230 = vld [vmem:[#allocation6 + $0x1e8] sm:$0xf]
        %v2231 = vld [vmem:[#allocation6 + $0x1ec] sm:$0xf]
        %v2232 = vld [vmem:[#allocation6 + $0x1f0] sm:$0xf]
        %v2233 = vld [vmem:[#allocation6 + $0x1f4] sm:$0xf]
        %v2234 = vld [vmem:[#allocation6 + $0x1f8] sm:$0xf]
        %v2235 = vld [vmem:[#allocation6 + $0x1fc] sm:$0xf]
        %v2236 = vld [vmem:[#allocation6 + $0x200] sm:$0xf]
        %v2237 = vld [vmem:[#allocation6 + $0x204] sm:$0xf]
        %v2238 = vld [vmem:[#allocation6 + $0x208] sm:$0xf]
        %v2239 = vld [vmem:[#allocation6 + $0x20c] sm:$0xf]
        %v2240 = vld [vmem:[#allocation6 + $0x210] sm:$0xf]
        %v2241 = vld [vmem:[#allocation6 + $0x214] sm:$0xf]
        %v2242 = vld [vmem:[#allocation6 + $0x218] sm:$0xf]
        %v2243 = vld [vmem:[#allocation6 + $0x21c] sm:$0xf]
        %v2244 = vld [vmem:[#allocation6 + $0x220] sm:$0xf]
        %v2245 = vld [vmem:[#allocation6 + $0x224] sm:$0xf]
        %v2246 = vld [vmem:[#allocation6 + $0x228] sm:$0xf]
        %v2247 = vld [vmem:[#allocation6 + $0x22c] sm:$0xf]
        %v2248 = vld [vmem:[#allocation6 + $0x230] sm:$0xf]
        %v2249 = vld [vmem:[#allocation6 + $0x234] sm:$0xf]
        %v2250 = vld [vmem:[#allocation6 + $0x238] sm:$0xf]
        %v2251 = vld [vmem:[#allocation6 + $0x23c] sm:$0xf]
        %v2396 = vunpack.c.l.b16 %v2108
        %v2397 = vunpack.c.l.b16 %v2109
        %v2398 = vunpack.c.l.b16 %v2110
        %v2399 = vunpack.c.l.b16 %v2111
        %v2400 = vunpack.c.l.b16 %v2112
        %v2401 = vunpack.c.l.b16 %v2113
        %v2402 = vunpack.c.l.b16 %v2114
        %v2403 = vunpack.c.l.b16 %v2115
        %v2404 = vunpack.c.l.b16 %v2116
        %v2405 = vunpack.c.l.b16 %v2117
        %v2406 = vunpack.c.l.b16 %v2118
        %v2407 = vunpack.c.l.b16 %v2119
        %v2408 = vunpack.c.l.b16 %v2120
        %v2409 = vunpack.c.l.b16 %v2121
        %v2410 = vunpack.c.l.b16 %v2122
        %v2411 = vunpack.c.l.b16 %v2123
        %v2412 = vunpack.c.l.b16 %v2124
        %v2413 = vunpack.c.l.b16 %v2125
        %v2414 = vunpack.c.l.b16 %v2126
        %v2415 = vunpack.c.l.b16 %v2127
        %v2416 = vunpack.c.l.b16 %v2128
        %v2417 = vunpack.c.l.b16 %v2129
        %v2418 = vunpack.c.l.b16 %v2130
        %v2419 = vunpack.c.l.b16 %v2131
        %v2420 = vunpack.c.l.b16 %v2132
        %v2421 = vunpack.c.l.b16 %v2133
        %v2422 = vunpack.c.l.b16 %v2134
        %v2423 = vunpack.c.l.b16 %v2135
        %v2424 = vunpack.c.l.b16 %v2136
        %v2425 = vunpack.c.l.b16 %v2137
        %v2426 = vunpack.c.l.b16 %v2138
        %v2427 = vunpack.c.l.b16 %v2139
        %v2428 = vunpack.c.l.b16 %v2140
        %v2429 = vunpack.c.l.b16 %v2141
        %v2430 = vunpack.c.l.b16 %v2142
        %v2431 = vunpack.c.l.b16 %v2143
        %v2432 = vunpack.c.l.b16 %v2144
        %v2433 = vunpack.c.l.b16 %v2145
        %v2434 = vunpack.c.l.b16 %v2146
        %v2435 = vunpack.c.l.b16 %v2147
        %v2436 = vunpack.c.l.b16 %v2148
        %v2437 = vunpack.c.l.b16 %v2149
        %v2438 = vunpack.c.l.b16 %v2150
        %v2439 = vunpack.c.l.b16 %v2151
        %v2440 = vunpack.c.l.b16 %v2152
        %v2441 = vunpack.c.l.b16 %v2153
        %v2442 = vunpack.c.l.b16 %v2154
        %v2443 = vunpack.c.l.b16 %v2155
        %v2444 = vunpack.c.l.b16 %v2156
        %v2445 = vunpack.c.l.b16 %v2157
        %v2446 = vunpack.c.l.b16 %v2158
        %v2447 = vunpack.c.l.b16 %v2159
        %v2448 = vunpack.c.l.b16 %v2160
        %v2449 = vunpack.c.l.b16 %v2161
        %v2450 = vunpack.c.l.b16 %v2162
        %v2451 = vunpack.c.l.b16 %v2163
        %v2452 = vunpack.c.l.b16 %v2164
        %v2453 = vunpack.c.l.b16 %v2165
        %v2454 = vunpack.c.l.b16 %v2166
        %v2455 = vunpack.c.l.b16 %v2167
        %v2456 = vunpack.c.l.b16 %v2168
        %v2457 = vunpack.c.l.b16 %v2169
        %v2458 = vunpack.c.l.b16 %v2170
        %v2459 = vunpack.c.l.b16 %v2171
        %v2460 = vunpack.c.l.b16 %v2172
        %v2461 = vunpack.c.l.b16 %v2173
        %v2462 = vunpack.c.l.b16 %v2174
        %v2463 = vunpack.c.l.b16 %v2175
        %v2464 = vunpack.c.l.b16 %v2176
        %v2465 = vunpack.c.l.b16 %v2177
        %v2466 = vunpack.c.l.b16 %v2178
        %v2467 = vunpack.c.l.b16 %v2179
        %v2468 = vunpack.c.l.b16 %v2180
        %v2469 = vunpack.c.l.b16 %v2181
        %v2470 = vunpack.c.l.b16 %v2182
        %v2471 = vunpack.c.l.b16 %v2183
        %v2472 = vunpack.c.l.b16 %v2184
        %v2473 = vunpack.c.l.b16 %v2185
        %v2474 = vunpack.c.l.b16 %v2186
        %v2475 = vunpack.c.l.b16 %v2187
        %v2476 = vunpack.c.l.b16 %v2188
        %v2477 = vunpack.c.l.b16 %v2189
        %v2478 = vunpack.c.l.b16 %v2190
        %v2479 = vunpack.c.l.b16 %v2191
        %v2480 = vunpack.c.l.b16 %v2192
        %v2481 = vunpack.c.l.b16 %v2193
        %v2482 = vunpack.c.l.b16 %v2194
        %v2483 = vunpack.c.l.b16 %v2195
        %v2484 = vunpack.c.l.b16 %v2196
        %v2485 = vunpack.c.l.b16 %v2197
        %v2486 = vunpack.c.l.b16 %v2198
        %v2487 = vunpack.c.l.b16 %v2199
        %v2488 = vunpack.c.l.b16 %v2200
        %v2489 = vunpack.c.l.b16 %v2201
        %v2490 = vunpack.c.l.b16 %v2202
        %v2491 = vunpack.c.l.b16 %v2203
        %v2492 = vunpack.c.l.b16 %v2204
        %v2493 = vunpack.c.l.b16 %v2205
        %v2494 = vunpack.c.l.b16 %v2206
        %v2495 = vunpack.c.l.b16 %v2207
        %v2496 = vunpack.c.l.b16 %v2208
        %v2497 = vunpack.c.l.b16 %v2209
        %v2498 = vunpack.c.l.b16 %v2210
        %v2499 = vunpack.c.l.b16 %v2211
        %v2500 = vunpack.c.l.b16 %v2212
        %v2501 = vunpack.c.l.b16 %v2213
        %v2502 = vunpack.c.l.b16 %v2214
        %v2503 = vunpack.c.l.b16 %v2215
        %v2504 = vunpack.c.l.b16 %v2216
        %v2505 = vunpack.c.l.b16 %v2217
        %v2506 = vunpack.c.l.b16 %v2218
        %v2507 = vunpack.c.l.b16 %v2219
        %v2508 = vunpack.c.l.b16 %v2220
        %v2509 = vunpack.c.l.b16 %v2221
        %v2510 = vunpack.c.l.b16 %v2222
        %v2511 = vunpack.c.l.b16 %v2223
        %v2512 = vunpack.c.l.b16 %v2224
        %v2513 = vunpack.c.l.b16 %v2225
        %v2514 = vunpack.c.l.b16 %v2226
        %v2515 = vunpack.c.l.b16 %v2227
        %v2516 = vunpack.c.l.b16 %v2228
        %v2517 = vunpack.c.l.b16 %v2229
        %v2518 = vunpack.c.l.b16 %v2230
        %v2519 = vunpack.c.l.b16 %v2231
        %v2520 = vunpack.c.l.b16 %v2232
        %v2521 = vunpack.c.l.b16 %v2233
        %v2522 = vunpack.c.l.b16 %v2234
        %v2523 = vunpack.c.l.b16 %v2235
        %v2524 = vunpack.c.l.b16 %v2236
        %v2525 = vunpack.c.l.b16 %v2237
        %v2526 = vunpack.c.l.b16 %v2238
        %v2527 = vunpack.c.l.b16 %v2239
        %v2528 = vunpack.c.l.b16 %v2240
        %v2529 = vunpack.c.l.b16 %v2241
        %v2530 = vunpack.c.l.b16 %v2242
        %v2531 = vunpack.c.l.b16 %v2243
        %v2532 = vunpack.c.l.b16 %v2244
        %v2533 = vunpack.c.l.b16 %v2245
        %v2534 = vunpack.c.l.b16 %v2246
        %v2535 = vunpack.c.l.b16 %v2247
        %v2536 = vunpack.c.l.b16 %v2248
        %v2537 = vunpack.c.l.b16 %v2249
        %v2538 = vunpack.c.l.b16 %v2250
        %v2539 = vunpack.c.l.b16 %v2251
        %v2540 = vpack.c.b16 %v2397, %v2396
        %v2541 = vpack.c.b16 %v2399, %v2398
        %v2542 = vpack.c.b16 %v2401, %v2400
        %v2543 = vpack.c.b16 %v2403, %v2402
        %v2544 = vpack.c.b16 %v2405, %v2404
        %v2545 = vpack.c.b16 %v2407, %v2406
        %v2546 = vpack.c.b16 %v2409, %v2408
        %v2547 = vpack.c.b16 %v2411, %v2410
        %v2548 = vpack.c.b16 %v2413, %v2412
        %v2549 = vpack.c.b16 %v2415, %v2414
        %v2550 = vpack.c.b16 %v2417, %v2416
        %v2551 = vpack.c.b16 %v2419, %v2418
        %v2552 = vpack.c.b16 %v2421, %v2420
        %v2553 = vpack.c.b16 %v2423, %v2422
        %v2554 = vpack.c.b16 %v2425, %v2424
        %v2555 = vpack.c.b16 %v2427, %v2426
        %v2556 = vpack.c.b16 %v2429, %v2428
        %v2557 = vpack.c.b16 %v2431, %v2430
        %v2558 = vpack.c.b16 %v2433, %v2432
        %v2559 = vpack.c.b16 %v2435, %v2434
        %v2560 = vpack.c.b16 %v2437, %v2436
        %v2561 = vpack.c.b16 %v2439, %v2438
        %v2562 = vpack.c.b16 %v2441, %v2440
        %v2563 = vpack.c.b16 %v2443, %v2442
        %v2564 = vpack.c.b16 %v2445, %v2444
        %v2565 = vpack.c.b16 %v2447, %v2446
        %v2566 = vpack.c.b16 %v2449, %v2448
        %v2567 = vpack.c.b16 %v2451, %v2450
        %v2568 = vpack.c.b16 %v2453, %v2452
        %v2569 = vpack.c.b16 %v2455, %v2454
        %v2570 = vpack.c.b16 %v2457, %v2456
        %v2571 = vpack.c.b16 %v2459, %v2458
        %v2572 = vpack.c.b16 %v2461, %v2460
        %v2573 = vpack.c.b16 %v2463, %v2462
        %v2574 = vpack.c.b16 %v2465, %v2464
        %v2575 = vpack.c.b16 %v2467, %v2466
        %v2576 = vpack.c.b16 %v2469, %v2468
        %v2577 = vpack.c.b16 %v2471, %v2470
        %v2578 = vpack.c.b16 %v2473, %v2472
        %v2579 = vpack.c.b16 %v2475, %v2474
        %v2580 = vpack.c.b16 %v2477, %v2476
        %v2581 = vpack.c.b16 %v2479, %v2478
        %v2582 = vpack.c.b16 %v2481, %v2480
        %v2583 = vpack.c.b16 %v2483, %v2482
        %v2584 = vpack.c.b16 %v2485, %v2484
        %v2585 = vpack.c.b16 %v2487, %v2486
        %v2586 = vpack.c.b16 %v2489, %v2488
        %v2587 = vpack.c.b16 %v2491, %v2490
        %v2588 = vpack.c.b16 %v2493, %v2492
        %v2589 = vpack.c.b16 %v2495, %v2494
        %v2590 = vpack.c.b16 %v2497, %v2496
        %v2591 = vpack.c.b16 %v2499, %v2498
        %v2592 = vpack.c.b16 %v2501, %v2500
        %v2593 = vpack.c.b16 %v2503, %v2502
        %v2594 = vpack.c.b16 %v2505, %v2504
        %v2595 = vpack.c.b16 %v2507, %v2506
        %v2596 = vpack.c.b16 %v2509, %v2508
        %v2597 = vpack.c.b16 %v2511, %v2510
        %v2598 = vpack.c.b16 %v2513, %v2512
        %v2599 = vpack.c.b16 %v2515, %v2514
        %v2600 = vpack.c.b16 %v2517, %v2516
        %v2601 = vpack.c.b16 %v2519, %v2518
        %v2602 = vpack.c.b16 %v2521, %v2520
        %v2603 = vpack.c.b16 %v2523, %v2522
        %v2604 = vpack.c.b16 %v2525, %v2524
        %v2605 = vpack.c.b16 %v2527, %v2526
        %v2606 = vpack.c.b16 %v2529, %v2528
        %v2607 = vpack.c.b16 %v2531, %v2530
        %v2608 = vpack.c.b16 %v2533, %v2532
        %v2609 = vpack.c.b16 %v2535, %v2534
        %v2610 = vpack.c.b16 %v2537, %v2536
        %v2611 = vpack.c.b16 %v2539, %v2538
        %2684 = vmatprep.subr.bf16.mxu0 0
        %2685 = vmatpush1.bf16.msra.mxu0 %v2540
        %2686 = vmatprep.subr.bf16.mxu0 0
        %2687 = vmatpush1.bf16.msra.mxu0 %v2541
        %2688 = vmatprep.subr.bf16.mxu0 0
        %2689 = vmatpush1.bf16.msra.mxu0 %v2542
        %2690 = vmatprep.subr.bf16.mxu0 0
        %2691 = vmatpush1.bf16.msra.mxu0 %v2543
        %2692 = vmatprep.subr.bf16.mxu0 0
        %2693 = vmatpush1.bf16.msra.mxu0 %v2544
        %2694 = vmatprep.subr.bf16.mxu0 0
        %2695 = vmatpush1.bf16.msra.mxu0 %v2545
        %2696 = vmatprep.subr.bf16.mxu0 0
        %2697 = vmatpush1.bf16.msra.mxu0 %v2546
        %2698 = vmatprep.subr.bf16.mxu0 0
        %2699 = vmatpush1.bf16.msra.mxu0 %v2547
        %2700 = vmatprep.subr.bf16.mxu0 0
        %2701 = vmatpush1.bf16.msra.mxu0 %v2548
        %2702 = vmatprep.subr.bf16.mxu0 0
        %2703 = vmatpush1.bf16.msra.mxu0 %v2549
        %2704 = vmatprep.subr.bf16.mxu0 0
        %2705 = vmatpush1.bf16.msra.mxu0 %v2550
        %2706 = vmatprep.subr.bf16.mxu0 0
        %2707 = vmatpush1.bf16.msra.mxu0 %v2551
        %2708 = vmatprep.subr.bf16.mxu0 0
        %2709 = vmatpush1.bf16.msra.mxu0 %v2552
        %2710 = vmatprep.subr.bf16.mxu0 0
        %2711 = vmatpush1.bf16.msra.mxu0 %v2553
        %2712 = vmatprep.subr.bf16.mxu0 0
        %2713 = vmatpush1.bf16.msra.mxu0 %v2554
        %2714 = vmatprep.subr.bf16.mxu0 0
        %2715 = vmatpush1.bf16.msra.mxu0 %v2555
        %2716 = vmatprep.mubr.bf16.mxu0 %v1965
        %2717 = vmatmul.mubr.bf16.gmra.mrb[0].mxu0 %v1964
        %v2718 = vpop.f32.mrb[0].mxu0
        %v2719 = vadd.f32 0.0, %v2718
        %v2720 = vpop.f32.mrb[0].mxu0
        %v2721 = vpop.f32.mrb[0].mxu0
        %v2722 = vadd.f32 0.0, %v2721
        %v2723 = vpop.f32.mrb[0].mxu0
        %2724 = vmatprep.mubr.bf16.mxu0 %v1974
        %2725 = vmatmul.mubr.bf16.gmra.mrb[0].mxu0 %v1973
        %v2726 = vpop.f32.mrb[0].mxu0
        %v2727 = vadd.f32 0.0, %v2726
        %v2728 = vpop.f32.mrb[0].mxu0
        %v2729 = vpop.f32.mrb[0].mxu0
        %v2730 = vadd.f32 0.0, %v2729
        %v2731 = vpop.f32.mrb[0].mxu0
        %2732 = vmatprep.mubr.bf16.mxu0 %v1983
        %2733 = vmatmul.mubr.bf16.gmra.mrb[0].mxu0 %v1982
        %v2734 = vpop.f32.mrb[0].mxu0
        %v2735 = vadd.f32 0.0, %v2734
        %v2736 = vpop.f32.mrb[0].mxu0
        %v2737 = vpop.f32.mrb[0].mxu0
        %v2738 = vadd.f32 0.0, %v2737
        %v2739 = vpop.f32.mrb[0].mxu0
        %2740 = vmatprep.mubr.bf16.mxu0 %v1992
        %2741 = vmatmul.mubr.bf16.gmra.mrb[0].mxu0 %v1991
        %v2742 = vpop.f32.mrb[0].mxu0
        %v2743 = vadd.f32 0.0, %v2742
        %v2744 = vpop.f32.mrb[0].mxu0
        %v2745 = vpop.f32.mrb[0].mxu0
        %v2746 = vadd.f32 0.0, %v2745
        %v2747 = vpop.f32.mrb[0].mxu0
        %2748 = vmatprep.mubr.bf16.mxu0 %v2001
        %2749 = vmatmul.mubr.bf16.gmra.mrb[0].mxu0 %v2000
        %v2750 = vpop.f32.mrb[0].mxu0
        %v2751 = vadd.f32 0.0, %v2750
        %v2752 = vpop.f32.mrb[0].mxu0
        %v2753 = vpop.f32.mrb[0].mxu0
        %v2754 = vadd.f32 0.0, %v2753
        %v2755 = vpop.f32.mrb[0].mxu0
        %2756 = vmatprep.mubr.bf16.mxu0 %v2010
        %2757 = vmatmul.mubr.bf16.gmra.mrb[0].mxu0 %v2009
        %v2758 = vpop.f32.mrb[0].mxu0
        %v2759 = vadd.f32 0.0, %v2758
        %v2760 = vpop.f32.mrb[0].mxu0
        %v2761 = vpop.f32.mrb[0].mxu0
        %v2762 = vadd.f32 0.0, %v2761
        %v2763 = vpop.f32.mrb[0].mxu0
        %2764 = vmatprep.mubr.bf16.mxu0 %v2019
        %2765 = vmatmul.mubr.bf16.gmra.mrb[0].mxu0 %v2018
        %v2766 = vpop.f32.mrb[0].mxu0
        %v2767 = vadd.f32 0.0, %v2766
        %v2768 = vpop.f32.mrb[0].mxu0
        %v2769 = vpop.f32.mrb[0].mxu0
        %v2770 = vadd.f32 0.0, %v2769
        %v2771 = vpop.f32.mrb[0].mxu0
        %2772 = vmatprep.mubr.bf16.mxu0 %v2028
        %2773 = vmatmul.mubr.bf16.gmra.mrb[0].mxu0 %v2027
        %v2774 = vpop.f32.mrb[0].mxu0
        %v2775 = vadd.f32 0.0, %v2774
        %v2776 = vpop.f32.mrb[0].mxu0
        %v2777 = vpop.f32.mrb[0].mxu0
        %v2778 = vadd.f32 0.0, %v2777
        %v2779 = vpop.f32.mrb[0].mxu0
        %2780 = vmatprep.mubr.bf16.mxu0 %v2037
        %2781 = vmatmul.mubr.bf16.gmra.mrb[0].mxu0 %v2036
        %v2782 = vpop.f32.mrb[0].mxu0
        %v2783 = vadd.f32 0.0, %v2782
        %v2784 = vpop.f32.mrb[0].mxu0
        %v2785 = vpop.f32.mrb[0].mxu0
        %v2786 = vadd.f32 0.0, %v2785
        %v2787 = vpop.f32.mrb[0].mxu0
        %2788 = vmatprep.mubr.bf16.mxu0 %v2046
        %2789 = vmatmul.mubr.bf16.gmra.mrb[0].mxu0 %v2045
        %v2790 = vpop.f32.mrb[0].mxu0
        %v2791 = vadd.f32 0.0, %v2790
        %v2792 = vpop.f32.mrb[0].mxu0
        %v2793 = vpop.f32.mrb[0].mxu0
        %v2794 = vadd.f32 0.0, %v2793
        %v2795 = vpop.f32.mrb[0].mxu0
        %2796 = vmatprep.mubr.bf16.mxu0 %v2055
        %2797 = vmatmul.mubr.bf16.gmra.mrb[0].mxu0 %v2054
        %v2798 = vpop.f32.mrb[0].mxu0
        %v2799 = vadd.f32 0.0, %v2798
        %v2800 = vpop.f32.mrb[0].mxu0
        %v2801 = vpop.f32.mrb[0].mxu0
        %v2802 = vadd.f32 0.0, %v2801
        %v2803 = vpop.f32.mrb[0].mxu0
        %2804 = vmatprep.mubr.bf16.mxu0 %v2064
        %2805 = vmatmul.mubr.bf16.gmra.mrb[0].mxu0 %v2063
        %v2806 = vpop.f32.mrb[0].mxu0
        %v2807 = vadd.f32 0.0, %v2806
        %v2808 = vpop.f32.mrb[0].mxu0
        %v2809 = vpop.f32.mrb[0].mxu0
        %v2810 = vadd.f32 0.0, %v2809
        %v2811 = vpop.f32.mrb[0].mxu0
        %2812 = vmatprep.mubr.bf16.mxu0 %v2073
        %2813 = vmatmul.mubr.bf16.gmra.mrb[0].mxu0 %v2072
        %v2814 = vpop.f32.mrb[0].mxu0
        %v2815 = vadd.f32 0.0, %v2814
        %v2816 = vpop.f32.mrb[0].mxu0
        %v2817 = vpop.f32.mrb[0].mxu0
        %v2818 = vadd.f32 0.0, %v2817
        %v2819 = vpop.f32.mrb[0].mxu0
        %2820 = vmatprep.mubr.bf16.mxu0 %v2082
        %2821 = vmatmul.mubr.bf16.gmra.mrb[0].mxu0 %v2081
        %v2822 = vpop.f32.mrb[0].mxu0
        %v2823 = vadd.f32 0.0, %v2822
        %v2824 = vpop.f32.mrb[0].mxu0
        %v2825 = vpop.f32.mrb[0].mxu0
        %v2826 = vadd.f32 0.0, %v2825
        %v2827 = vpop.f32.mrb[0].mxu0
        %2828 = vmatprep.mubr.bf16.mxu0 %v2091
        %2829 = vmatmul.mubr.bf16.gmra.mrb[0].mxu0 %v2090
        %v2830 = vpop.f32.mrb[0].mxu0
        %v2831 = vadd.f32 0.0, %v2830
        %v2832 = vpop.f32.mrb[0].mxu0
        %v2833 = vpop.f32.mrb[0].mxu0
        %v2834 = vadd.f32 0.0, %v2833
        %v2835 = vpop.f32.mrb[0].mxu0
        %2836 = vmatprep.mubr.bf16.mxu0 %v2100
        %2837 = vmatmul.mubr.bf16.gmra.mrb[0].mxu0 %v2099
        %v2838 = vpop.f32.mrb[0].mxu0
        %v2839 = vadd.f32 0.0, %v2838
        %v2840 = vpop.f32.mrb[0].mxu0
        %v2841 = vpop.f32.mrb[0].mxu0
        %v2842 = vadd.f32 0.0, %v2841
        %v2843 = vpop.f32.mrb[0].mxu0
        %2844 = vdwg.mxu0
        %2845 = vmatprep.subr.bf16.mxu0 0
        %2846 = vmatpush1.bf16.msra.mxu0 %v2556
        %2847 = vmatprep.subr.bf16.mxu0 0
        %2848 = vmatpush1.bf16.msra.mxu0 %v2557
        %2849 = vmatprep.subr.bf16.mxu0 0
        %2850 = vmatpush1.bf16.msra.mxu0 %v2558
        %2851 = vmatprep.subr.bf16.mxu0 0
        %2852 = vmatpush1.bf16.msra.mxu0 %v2559
        %2853 = vmatprep.subr.bf16.mxu0 0
        %2854 = vmatpush1.bf16.msra.mxu0 %v2560
        %2855 = vmatprep.subr.bf16.mxu0 0
        %2856 = vmatpush1.bf16.msra.mxu0 %v2561
        %2857 = vmatprep.subr.bf16.mxu0 0
        %2858 = vmatpush1.bf16.msra.mxu0 %v2562
        %2859 = vmatprep.subr.bf16.mxu0 0
        %2860 = vmatpush1.bf16.msra.mxu0 %v2563
        %2861 = vmatprep.subr.bf16.mxu0 0
        %2862 = vmatpush1.bf16.msra.mxu0 %v2564
        %2863 = vmatprep.subr.bf16.mxu0 0
        %2864 = vmatpush1.bf16.msra.mxu0 %v2565
        %2865 = vmatprep.subr.bf16.mxu0 0
        %2866 = vmatpush1.bf16.msra.mxu0 %v2566
        %2867 = vmatprep.subr.bf16.mxu0 0
        %2868 = vmatpush1.bf16.msra.mxu0 %v2567
        %2869 = vmatprep.subr.bf16.mxu0 0
        %2870 = vmatpush1.bf16.msra.mxu0 %v2568
        %2871 = vmatprep.subr.bf16.mxu0 0
        %2872 = vmatpush1.bf16.msra.mxu0 %v2569
        %2873 = vmatprep.subr.bf16.mxu0 0
        %2874 = vmatpush1.bf16.msra.mxu0 %v2570
        %2875 = vmatprep.subr.bf16.mxu0 0
        %2876 = vmatpush1.bf16.msra.mxu0 %v2571
        %2877 = vmatprep.mubr.bf16.mxu0 %v1967
        %2878 = vmatmul.mubr.bf16.gmra.mrb[0].mxu0 %v1966
        %v2879 = vpop.f32.mrb[0].mxu0
        %v2880 = vadd.f32 %v2719, %v2879
        %v2881 = vpop.f32.mrb[0].mxu0
        %v2882 = vpop.f32.mrb[0].mxu0
        %v2883 = vadd.f32 %v2722, %v2882
        %v2884 = vpop.f32.mrb[0].mxu0
        %2885 = vmatprep.mubr.bf16.mxu0 %v1976
        %2886 = vmatmul.mubr.bf16.gmra.mrb[0].mxu0 %v1975
        %v2887 = vpop.f32.mrb[0].mxu0
        %v2888 = vadd.f32 %v2727, %v2887
        %v2889 = vpop.f32.mrb[0].mxu0
        %v2890 = vpop.f32.mrb[0].mxu0
        %v2891 = vadd.f32 %v2730, %v2890
        %v2892 = vpop.f32.mrb[0].mxu0
        %2893 = vmatprep.mubr.bf16.mxu0 %v1985
        %2894 = vmatmul.mubr.bf16.gmra.mrb[0].mxu0 %v1984
        %v2895 = vpop.f32.mrb[0].mxu0
        %v2896 = vadd.f32 %v2735, %v2895
        %v2897 = vpop.f32.mrb[0].mxu0
        %v2898 = vpop.f32.mrb[0].mxu0
        %v2899 = vadd.f32 %v2738, %v2898
        %v2900 = vpop.f32.mrb[0].mxu0
        %2901 = vmatprep.mubr.bf16.mxu0 %v1994
        %2902 = vmatmul.mubr.bf16.gmra.mrb[0].mxu0 %v1993
        %v2903 = vpop.f32.mrb[0].mxu0
        %v2904 = vadd.f32 %v2743, %v2903
        %v2905 = vpop.f32.mrb[0].mxu0
        %v2906 = vpop.f32.mrb[0].mxu0
        %v2907 = vadd.f32 %v2746, %v2906
        %v2908 = vpop.f32.mrb[0].mxu0
        %2909 = vmatprep.mubr.bf16.mxu0 %v2003
        %2910 = vmatmul.mubr.bf16.gmra.mrb[0].mxu0 %v2002
        %v2911 = vpop.f32.mrb[0].mxu0
        %v2912 = vadd.f32 %v2751, %v2911
        %v2913 = vpop.f32.mrb[0].mxu0
        %v2914 = vpop.f32.mrb[0].mxu0
        %v2915 = vadd.f32 %v2754, %v2914
        %v2916 = vpop.f32.mrb[0].mxu0
        %2917 = vmatprep.mubr.bf16.mxu0 %v2012
        %2918 = vmatmul.mubr.bf16.gmra.mrb[0].mxu0 %v2011
        %v2919 = vpop.f32.mrb[0].mxu0
        %v2920 = vadd.f32 %v2759, %v2919
        %v2921 = vpop.f32.mrb[0].mxu0
        %v2922 = vpop.f32.mrb[0].mxu0
        %v2923 = vadd.f32 %v2762, %v2922
        %v2924 = vpop.f32.mrb[0].mxu0
        %2925 = vmatprep.mubr.bf16.mxu0 %v2021
        %2926 = vmatmul.mubr.bf16.gmra.mrb[0].mxu0 %v2020
        %v2927 = vpop.f32.mrb[0].mxu0
        %v2928 = vadd.f32 %v2767, %v2927
        %v2929 = vpop.f32.mrb[0].mxu0
        %v2930 = vpop.f32.mrb[0].mxu0
        %v2931 = vadd.f32 %v2770, %v2930
        %v2932 = vpop.f32.mrb[0].mxu0
        %2933 = vmatprep.mubr.bf16.mxu0 %v2030
        %2934 = vmatmul.mubr.bf16.gmra.mrb[0].mxu0 %v2029
        %v2935 = vpop.f32.mrb[0].mxu0
        %v2936 = vadd.f32 %v2775, %v2935
        %v2937 = vpop.f32.mrb[0].mxu0
        %v2938 = vpop.f32.mrb[0].mxu0
        %v2939 = vadd.f32 %v2778, %v2938
        %v2940 = vpop.f32.mrb[0].mxu0
        %2941 = vmatprep.mubr.bf16.mxu0 %v2039
        %2942 = vmatmul.mubr.bf16.gmra.mrb[0].mxu0 %v2038
        %v2943 = vpop.f32.mrb[0].mxu0
        %v2944 = vadd.f32 %v2783, %v2943
        %v2945 = vpop.f32.mrb[0].mxu0
        %v2946 = vpop.f32.mrb[0].mxu0
        %v2947 = vadd.f32 %v2786, %v2946
        %v2948 = vpop.f32.mrb[0].mxu0
        %2949 = vmatprep.mubr.bf16.mxu0 %v2048
        %2950 = vmatmul.mubr.bf16.gmra.mrb[0].mxu0 %v2047
        %v2951 = vpop.f32.mrb[0].mxu0
        %v2952 = vadd.f32 %v2791, %v2951
        %v2953 = vpop.f32.mrb[0].mxu0
        %v2954 = vpop.f32.mrb[0].mxu0
        %v2955 = vadd.f32 %v2794, %v2954
        %v2956 = vpop.f32.mrb[0].mxu0
        %2957 = vmatprep.mubr.bf16.mxu0 %v2057
        %2958 = vmatmul.mubr.bf16.gmra.mrb[0].mxu0 %v2056
        %v2959 = vpop.f32.mrb[0].mxu0
        %v2960 = vadd.f32 %v2799, %v2959
        %v2961 = vpop.f32.mrb[0].mxu0
        %v2962 = vpop.f32.mrb[0].mxu0
        %v2963 = vadd.f32 %v2802, %v2962
        %v2964 = vpop.f32.mrb[0].mxu0
        %2965 = vmatprep.mubr.bf16.mxu0 %v2066
        %2966 = vmatmul.mubr.bf16.gmra.mrb[0].mxu0 %v2065
        %v2967 = vpop.f32.mrb[0].mxu0
        %v2968 = vadd.f32 %v2807, %v2967
        %v2969 = vpop.f32.mrb[0].mxu0
        %v2970 = vpop.f32.mrb[0].mxu0
        %v2971 = vadd.f32 %v2810, %v2970
        %v2972 = vpop.f32.mrb[0].mxu0
        %2973 = vmatprep.mubr.bf16.mxu0 %v2075
        %2974 = vmatmul.mubr.bf16.gmra.mrb[0].mxu0 %v2074
        %v2975 = vpop.f32.mrb[0].mxu0
        %v2976 = vadd.f32 %v2815, %v2975
        %v2977 = vpop.f32.mrb[0].mxu0
        %v2978 = vpop.f32.mrb[0].mxu0
        %v2979 = vadd.f32 %v2818, %v2978
        %v2980 = vpop.f32.mrb[0].mxu0
        %2981 = vmatprep.mubr.bf16.mxu0 %v2084
        %2982 = vmatmul.mubr.bf16.gmra.mrb[0].mxu0 %v2083
        %v2983 = vpop.f32.mrb[0].mxu0
        %v2984 = vadd.f32 %v2823, %v2983
        %v2985 = vpop.f32.mrb[0].mxu0
        %v2986 = vpop.f32.mrb[0].mxu0
        %v2987 = vadd.f32 %v2826, %v2986
        %v2988 = vpop.f32.mrb[0].mxu0
        %2989 = vmatprep.mubr.bf16.mxu0 %v2093
        %2990 = vmatmul.mubr.bf16.gmra.mrb[0].mxu0 %v2092
        %v2991 = vpop.f32.mrb[0].mxu0
        %v2992 = vadd.f32 %v2831, %v2991
        %v2993 = vpop.f32.mrb[0].mxu0
        %v2994 = vpop.f32.mrb[0].mxu0
        %v2995 = vadd.f32 %v2834, %v2994
        %v2996 = vpop.f32.mrb[0].mxu0
        %2997 = vmatprep.mubr.bf16.mxu0 %v2102
        %2998 = vmatmul.mubr.bf16.gmra.mrb[0].mxu0 %v2101
        %v2999 = vpop.f32.mrb[0].mxu0
        %v3000 = vadd.f32 %v2839, %v2999
        %v3001 = vpop.f32.mrb[0].mxu0
        %v3002 = vpop.f32.mrb[0].mxu0
        %v3003 = vadd.f32 %v2842, %v3002
        %v3004 = vpop.f32.mrb[0].mxu0
        %3005 = vdwg.mxu0
        %3006 = vmatprep.subr.bf16.mxu0 0
        %3007 = vmatpush1.bf16.msra.mxu0 %v2572
        %3008 = vmatprep.subr.bf16.mxu0 0
        %3009 = vmatpush1.bf16.msra.mxu0 %v2573
        %3010 = vmatprep.subr.bf16.mxu0 0
        %3011 = vmatpush1.bf16.msra.mxu0 %v2574
        %3012 = vmatprep.subr.bf16.mxu0 0
        %3013 = vmatpush1.bf16.msra.mxu0 %v2575
        %3014 = vmatprep.subr.bf16.mxu0 0
        %3015 = vmatpush1.bf16.msra.mxu0 %v2576
        %3016 = vmatprep.subr.bf16.mxu0 0
        %3017 = vmatpush1.bf16.msra.mxu0 %v2577
        %3018 = vmatprep.subr.bf16.mxu0 0
        %3019 = vmatpush1.bf16.msra.mxu0 %v2578
        %3020 = vmatprep.subr.bf16.mxu0 0
        %3021 = vmatpush1.bf16.msra.mxu0 %v2579
        %3022 = vmatprep.subr.bf16.mxu0 0
        %3023 = vmatpush1.bf16.msra.mxu0 %v2580
        %3024 = vmatprep.subr.bf16.mxu0 0
        %3025 = vmatpush1.bf16.msra.mxu0 %v2581
        %3026 = vmatprep.subr.bf16.mxu0 0
        %3027 = vmatpush1.bf16.msra.mxu0 %v2582
        %3028 = vmatprep.subr.bf16.mxu0 0
        %3029 = vmatpush1.bf16.msra.mxu0 %v2583
        %3030 = vmatprep.subr.bf16.mxu0 0
        %3031 = vmatpush1.bf16.msra.mxu0 %v2584
        %3032 = vmatprep.subr.bf16.mxu0 0
        %3033 = vmatpush1.bf16.msra.mxu0 %v2585
        %3034 = vmatprep.subr.bf16.mxu0 0
        %3035 = vmatpush1.bf16.msra.mxu0 %v2586
        %3036 = vmatprep.subr.bf16.mxu0 0
        %3037 = vmatpush1.bf16.msra.mxu0 %v2587
        %3038 = vmatprep.mubr.bf16.mxu0 %v1969
        %3039 = vmatmul.mubr.bf16.gmra.mrb[0].mxu0 %v1968
        %v3040 = vpop.f32.mrb[0].mxu0
        %v3041 = vadd.f32 %v2880, %v3040
        %v3042 = vpop.f32.mrb[0].mxu0
        %v3043 = vpop.f32.mrb[0].mxu0
        %v3044 = vadd.f32 %v2883, %v3043
        %v3045 = vpop.f32.mrb[0].mxu0
        %3046 = vmatprep.mubr.bf16.mxu0 %v1978
        %3047 = vmatmul.mubr.bf16.gmra.mrb[0].mxu0 %v1977
        %v3048 = vpop.f32.mrb[0].mxu0
        %v3049 = vadd.f32 %v2888, %v3048
        %v3050 = vpop.f32.mrb[0].mxu0
        %v3051 = vpop.f32.mrb[0].mxu0
        %v3052 = vadd.f32 %v2891, %v3051
        %v3053 = vpop.f32.mrb[0].mxu0
        %3054 = vmatprep.mubr.bf16.mxu0 %v1987
        %3055 = vmatmul.mubr.bf16.gmra.mrb[0].mxu0 %v1986
        %v3056 = vpop.f32.mrb[0].mxu0
        %v3057 = vadd.f32 %v2896, %v3056
        %v3058 = vpop.f32.mrb[0].mxu0
        %v3059 = vpop.f32.mrb[0].mxu0
        %v3060 = vadd.f32 %v2899, %v3059
        %v3061 = vpop.f32.mrb[0].mxu0
        %3062 = vmatprep.mubr.bf16.mxu0 %v1996
        %3063 = vmatmul.mubr.bf16.gmra.mrb[0].mxu0 %v1995
        %v3064 = vpop.f32.mrb[0].mxu0
        %v3065 = vadd.f32 %v2904, %v3064
        %v3066 = vpop.f32.mrb[0].mxu0
        %v3067 = vpop.f32.mrb[0].mxu0
        %v3068 = vadd.f32 %v2907, %v3067
        %v3069 = vpop.f32.mrb[0].mxu0
        %3070 = vmatprep.mubr.bf16.mxu0 %v2005
        %3071 = vmatmul.mubr.bf16.gmra.mrb[0].mxu0 %v2004
        %v3072 = vpop.f32.mrb[0].mxu0
        %v3073 = vadd.f32 %v2912, %v3072
        %v3074 = vpop.f32.mrb[0].mxu0
        %v3075 = vpop.f32.mrb[0].mxu0
        %v3076 = vadd.f32 %v2915, %v3075
        %v3077 = vpop.f32.mrb[0].mxu0
        %3078 = vmatprep.mubr.bf16.mxu0 %v2014
        %3079 = vmatmul.mubr.bf16.gmra.mrb[0].mxu0 %v2013
        %v3080 = vpop.f32.mrb[0].mxu0
        %v3081 = vadd.f32 %v2920, %v3080
        %v3082 = vpop.f32.mrb[0].mxu0
        %v3083 = vpop.f32.mrb[0].mxu0
        %v3084 = vadd.f32 %v2923, %v3083
        %v3085 = vpop.f32.mrb[0].mxu0
        %3086 = vmatprep.mubr.bf16.mxu0 %v2023
        %3087 = vmatmul.mubr.bf16.gmra.mrb[0].mxu0 %v2022
        %v3088 = vpop.f32.mrb[0].mxu0
        %v3089 = vadd.f32 %v2928, %v3088
        %v3090 = vpop.f32.mrb[0].mxu0
        %v3091 = vpop.f32.mrb[0].mxu0
        %v3092 = vadd.f32 %v2931, %v3091
        %v3093 = vpop.f32.mrb[0].mxu0
        %3094 = vmatprep.mubr.bf16.mxu0 %v2032
        %3095 = vmatmul.mubr.bf16.gmra.mrb[0].mxu0 %v2031
        %v3096 = vpop.f32.mrb[0].mxu0
        %v3097 = vadd.f32 %v2936, %v3096
        %v3098 = vpop.f32.mrb[0].mxu0
        %v3099 = vpop.f32.mrb[0].mxu0
        %v3100 = vadd.f32 %v2939, %v3099
        %v3101 = vpop.f32.mrb[0].mxu0
        %3102 = vmatprep.mubr.bf16.mxu0 %v2041
        %3103 = vmatmul.mubr.bf16.gmra.mrb[0].mxu0 %v2040
        %v3104 = vpop.f32.mrb[0].mxu0
        %v3105 = vadd.f32 %v2944, %v3104
        %v3106 = vpop.f32.mrb[0].mxu0
        %v3107 = vpop.f32.mrb[0].mxu0
        %v3108 = vadd.f32 %v2947, %v3107
        %v3109 = vpop.f32.mrb[0].mxu0
        %3110 = vmatprep.mubr.bf16.mxu0 %v2050
        %3111 = vmatmul.mubr.bf16.gmra.mrb[0].mxu0 %v2049
        %v3112 = vpop.f32.mrb[0].mxu0
        %v3113 = vadd.f32 %v2952, %v3112
        %v3114 = vpop.f32.mrb[0].mxu0
        %v3115 = vpop.f32.mrb[0].mxu0
        %v3116 = vadd.f32 %v2955, %v3115
        %v3117 = vpop.f32.mrb[0].mxu0
        %3118 = vmatprep.mubr.bf16.mxu0 %v2059
        %3119 = vmatmul.mubr.bf16.gmra.mrb[0].mxu0 %v2058
        %v3120 = vpop.f32.mrb[0].mxu0
        %v3121 = vadd.f32 %v2960, %v3120
        %v3122 = vpop.f32.mrb[0].mxu0
        %v3123 = vpop.f32.mrb[0].mxu0
        %v3124 = vadd.f32 %v2963, %v3123
        %v3125 = vpop.f32.mrb[0].mxu0
        %3126 = vmatprep.mubr.bf16.mxu0 %v2068
        %3127 = vmatmul.mubr.bf16.gmra.mrb[0].mxu0 %v2067
        %v3128 = vpop.f32.mrb[0].mxu0
        %v3129 = vadd.f32 %v2968, %v3128
        %v3130 = vpop.f32.mrb[0].mxu0
        %v3131 = vpop.f32.mrb[0].mxu0
        %v3132 = vadd.f32 %v2971, %v3131
        %v3133 = vpop.f32.mrb[0].mxu0
        %3134 = vmatprep.mubr.bf16.mxu0 %v2077
        %3135 = vmatmul.mubr.bf16.gmra.mrb[0].mxu0 %v2076
        %v3136 = vpop.f32.mrb[0].mxu0
        %v3137 = vadd.f32 %v2976, %v3136
        %v3138 = vpop.f32.mrb[0].mxu0
        %v3139 = vpop.f32.mrb[0].mxu0
        %v3140 = vadd.f32 %v2979, %v3139
        %v3141 = vpop.f32.mrb[0].mxu0
        %3142 = vmatprep.mubr.bf16.mxu0 %v2086
        %3143 = vmatmul.mubr.bf16.gmra.mrb[0].mxu0 %v2085
        %v3144 = vpop.f32.mrb[0].mxu0
        %v3145 = vadd.f32 %v2984, %v3144
        %v3146 = vpop.f32.mrb[0].mxu0
        %v3147 = vpop.f32.mrb[0].mxu0
        %v3148 = vadd.f32 %v2987, %v3147
        %v3149 = vpop.f32.mrb[0].mxu0
        %3150 = vmatprep.mubr.bf16.mxu0 %v2095
        %3151 = vmatmul.mubr.bf16.gmra.mrb[0].mxu0 %v2094
        %v3152 = vpop.f32.mrb[0].mxu0
        %v3153 = vadd.f32 %v2992, %v3152
        %v3154 = vpop.f32.mrb[0].mxu0
        %v3155 = vpop.f32.mrb[0].mxu0
        %v3156 = vadd.f32 %v2995, %v3155
        %v3157 = vpop.f32.mrb[0].mxu0
        %3158 = vmatprep.mubr.bf16.mxu0 %v2104
        %3159 = vmatmul.mubr.bf16.gmra.mrb[0].mxu0 %v2103
        %v3160 = vpop.f32.mrb[0].mxu0
        %v3161 = vadd.f32 %v3000, %v3160
        %v3162 = vpop.f32.mrb[0].mxu0
        %v3163 = vpop.f32.mrb[0].mxu0
        %v3164 = vadd.f32 %v3003, %v3163
        %v3165 = vpop.f32.mrb[0].mxu0
        %3166 = vdwg.mxu0
        %3167 = vmatprep.subr.bf16.mxu0 0
        %3168 = vmatpush1.bf16.msra.mxu0 %v2588
        %3169 = vmatprep.subr.bf16.mxu0 0
        %3170 = vmatpush1.bf16.msra.mxu0 %v2589
        %3171 = vmatprep.subr.bf16.mxu0 0
        %3172 = vmatpush1.bf16.msra.mxu0 %v2590
        %3173 = vmatprep.subr.bf16.mxu0 0
        %3174 = vmatpush1.bf16.msra.mxu0 %v2591
        %3175 = vmatprep.subr.bf16.mxu0 0
        %3176 = vmatpush1.bf16.msra.mxu0 %v2592
        %3177 = vmatprep.subr.bf16.mxu0 0
        %3178 = vmatpush1.bf16.msra.mxu0 %v2593
        %3179 = vmatprep.subr.bf16.mxu0 0
        %3180 = vmatpush1.bf16.msra.mxu0 %v2594
        %3181 = vmatprep.subr.bf16.mxu0 0
        %3182 = vmatpush1.bf16.msra.mxu0 %v2595
        %3183 = vmatprep.subr.bf16.mxu0 0
        %3184 = vmatpush1.bf16.msra.mxu0 %v2596
        %3185 = vmatprep.subr.bf16.mxu0 0
        %3186 = vmatpush1.bf16.msra.mxu0 %v2597
        %3187 = vmatprep.subr.bf16.mxu0 0
        %3188 = vmatpush1.bf16.msra.mxu0 %v2598
        %3189 = vmatprep.subr.bf16.mxu0 0
        %3190 = vmatpush1.bf16.msra.mxu0 %v2599
        %3191 = vmatprep.subr.bf16.mxu0 0
        %3192 = vmatpush1.bf16.msra.mxu0 %v2600
        %3193 = vmatprep.subr.bf16.mxu0 0
        %3194 = vmatpush1.bf16.msra.mxu0 %v2601
        %3195 = vmatprep.subr.bf16.mxu0 0
        %3196 = vmatpush1.bf16.msra.mxu0 %v2602
        %3197 = vmatprep.subr.bf16.mxu0 0
        %3198 = vmatpush1.bf16.msra.mxu0 %v2603
        %3199 = vmatprep.mubr.bf16.mxu0 %v1971
        %3200 = vmatmul.mubr.bf16.gmra.mrb[0].mxu0 %v1970
        %v3201 = vpop.f32.mrb[0].mxu0
        %v3202 = vadd.f32 %v3041, %v3201
        %v3203 = vpop.f32.mrb[0].mxu0
        %v3204 = vpop.f32.mrb[0].mxu0
        %v3205 = vadd.f32 %v3044, %v3204
        %v3206 = vpop.f32.mrb[0].mxu0
        %3207 = vmatprep.mubr.bf16.mxu0 %v1980
        %3208 = vmatmul.mubr.bf16.gmra.mrb[0].mxu0 %v1979
        %v3209 = vpop.f32.mrb[0].mxu0
        %v3210 = vadd.f32 %v3049, %v3209
        %v3211 = vpop.f32.mrb[0].mxu0
        %v3212 = vpop.f32.mrb[0].mxu0
        %v3213 = vadd.f32 %v3052, %v3212
        %v3214 = vpop.f32.mrb[0].mxu0
        %3215 = vmatprep.mubr.bf16.mxu0 %v1989
        %3216 = vmatmul.mubr.bf16.gmra.mrb[0].mxu0 %v1988
        %v3217 = vpop.f32.mrb[0].mxu0
        %v3218 = vadd.f32 %v3057, %v3217
        %v3219 = vpop.f32.mrb[0].mxu0
        %v3220 = vpop.f32.mrb[0].mxu0
        %v3221 = vadd.f32 %v3060, %v3220
        %v3222 = vpop.f32.mrb[0].mxu0
        %3223 = vmatprep.mubr.bf16.mxu0 %v1998
        %3224 = vmatmul.mubr.bf16.gmra.mrb[0].mxu0 %v1997
        %v3225 = vpop.f32.mrb[0].mxu0
        %v3226 = vadd.f32 %v3065, %v3225
        %v3227 = vpop.f32.mrb[0].mxu0
        %v3228 = vpop.f32.mrb[0].mxu0
        %v3229 = vadd.f32 %v3068, %v3228
        %v3230 = vpop.f32.mrb[0].mxu0
        %3231 = vmatprep.mubr.bf16.mxu0 %v2007
        %3232 = vmatmul.mubr.bf16.gmra.mrb[0].mxu0 %v2006
        %v3233 = vpop.f32.mrb[0].mxu0
        %v3234 = vadd.f32 %v3073, %v3233
        %v3235 = vpop.f32.mrb[0].mxu0
        %v3236 = vpop.f32.mrb[0].mxu0
        %v3237 = vadd.f32 %v3076, %v3236
        %v3238 = vpop.f32.mrb[0].mxu0
        %3239 = vmatprep.mubr.bf16.mxu0 %v2016
        %3240 = vmatmul.mubr.bf16.gmra.mrb[0].mxu0 %v2015
        %v3241 = vpop.f32.mrb[0].mxu0
        %v3242 = vadd.f32 %v3081, %v3241
        %v3243 = vpop.f32.mrb[0].mxu0
        %v3244 = vpop.f32.mrb[0].mxu0
        %v3245 = vadd.f32 %v3084, %v3244
        %v3246 = vpop.f32.mrb[0].mxu0
        %3247 = vmatprep.mubr.bf16.mxu0 %v2025
        %3248 = vmatmul.mubr.bf16.gmra.mrb[0].mxu0 %v2024
        %v3249 = vpop.f32.mrb[0].mxu0
        %v3250 = vadd.f32 %v3089, %v3249
        %v3251 = vpop.f32.mrb[0].mxu0
        %v3252 = vpop.f32.mrb[0].mxu0
        %v3253 = vadd.f32 %v3092, %v3252
        %v3254 = vpop.f32.mrb[0].mxu0
        %3255 = vmatprep.mubr.bf16.mxu0 %v2034
        %3256 = vmatmul.mubr.bf16.gmra.mrb[0].mxu0 %v2033
        %v3257 = vpop.f32.mrb[0].mxu0
        %v3258 = vadd.f32 %v3097, %v3257
        %v3259 = vpop.f32.mrb[0].mxu0
        %v3260 = vpop.f32.mrb[0].mxu0
        %v3261 = vadd.f32 %v3100, %v3260
        %v3262 = vpop.f32.mrb[0].mxu0
        %3263 = vmatprep.mubr.bf16.mxu0 %v2043
        %3264 = vmatmul.mubr.bf16.gmra.mrb[0].mxu0 %v2042
        %v3265 = vpop.f32.mrb[0].mxu0
        %v3266 = vadd.f32 %v3105, %v3265
        %v3267 = vpop.f32.mrb[0].mxu0
        %v3268 = vpop.f32.mrb[0].mxu0
        %v3269 = vadd.f32 %v3108, %v3268
        %v3270 = vpop.f32.mrb[0].mxu0
        %3271 = vmatprep.mubr.bf16.mxu0 %v2052
        %3272 = vmatmul.mubr.bf16.gmra.mrb[0].mxu0 %v2051
        %v3273 = vpop.f32.mrb[0].mxu0
        %v3274 = vadd.f32 %v3113, %v3273
        %v3275 = vpop.f32.mrb[0].mxu0
        %v3276 = vpop.f32.mrb[0].mxu0
        %v3277 = vadd.f32 %v3116, %v3276
        %v3278 = vpop.f32.mrb[0].mxu0
        %3279 = vmatprep.mubr.bf16.mxu0 %v2061
        %3280 = vmatmul.mubr.bf16.gmra.mrb[0].mxu0 %v2060
        %v3281 = vpop.f32.mrb[0].mxu0
        %v3282 = vadd.f32 %v3121, %v3281
        %v3283 = vpop.f32.mrb[0].mxu0
        %v3284 = vpop.f32.mrb[0].mxu0
        %v3285 = vadd.f32 %v3124, %v3284
        %v3286 = vpop.f32.mrb[0].mxu0
        %3287 = vmatprep.mubr.bf16.mxu0 %v2070
        %3288 = vmatmul.mubr.bf16.gmra.mrb[0].mxu0 %v2069
        %v3289 = vpop.f32.mrb[0].mxu0
        %v3290 = vadd.f32 %v3129, %v3289
        %v3291 = vpop.f32.mrb[0].mxu0
        %v3292 = vpop.f32.mrb[0].mxu0
        %v3293 = vadd.f32 %v3132, %v3292
        %v3294 = vpop.f32.mrb[0].mxu0
        %3295 = vmatprep.mubr.bf16.mxu0 %v2079
        %3296 = vmatmul.mubr.bf16.gmra.mrb[0].mxu0 %v2078
        %v3297 = vpop.f32.mrb[0].mxu0
        %v3298 = vadd.f32 %v3137, %v3297
        %v3299 = vpop.f32.mrb[0].mxu0
        %v3300 = vpop.f32.mrb[0].mxu0
        %v3301 = vadd.f32 %v3140, %v3300
        %v3302 = vpop.f32.mrb[0].mxu0
        %3303 = vmatprep.mubr.bf16.mxu0 %v2088
        %3304 = vmatmul.mubr.bf16.gmra.mrb[0].mxu0 %v2087
        %v3305 = vpop.f32.mrb[0].mxu0
        %v3306 = vadd.f32 %v3145, %v3305
        %v3307 = vpop.f32.mrb[0].mxu0
        %v3308 = vpop.f32.mrb[0].mxu0
        %v3309 = vadd.f32 %v3148, %v3308
        %v3310 = vpop.f32.mrb[0].mxu0
        %3311 = vmatprep.mubr.bf16.mxu0 %v2097
        %3312 = vmatmul.mubr.bf16.gmra.mrb[0].mxu0 %v2096
        %v3313 = vpop.f32.mrb[0].mxu0
        %v3314 = vadd.f32 %v3153, %v3313
        %v3315 = vpop.f32.mrb[0].mxu0
        %v3316 = vpop.f32.mrb[0].mxu0
        %v3317 = vadd.f32 %v3156, %v3316
        %v3318 = vpop.f32.mrb[0].mxu0
        %3319 = vmatprep.mubr.bf16.mxu0 %v2106
        %3320 = vmatmul.mubr.bf16.gmra.mrb[0].mxu0 %v2105
        %v3321 = vpop.f32.mrb[0].mxu0
        %v3322 = vadd.f32 %v3161, %v3321
        %v3323 = vpop.f32.mrb[0].mxu0
        %v3324 = vpop.f32.mrb[0].mxu0
        %v3325 = vadd.f32 %v3164, %v3324
        %v3326 = vpop.f32.mrb[0].mxu0
        %3327 = vdwg.mxu0
        %3328 = vmatprep.subr.bf16.mxu0 0
        %3329 = vmatpush1.bf16.msra.mxu0 %v2604
        %3330 = vmatprep.subr.bf16.mxu0 0
        %3331 = vmatpush1.bf16.msra.mxu0 %v2605
        %3332 = vmatprep.subr.bf16.mxu0 0
        %3333 = vmatpush1.bf16.msra.mxu0 %v2606
        %3334 = vmatprep.subr.bf16.mxu0 0
        %3335 = vmatpush1.bf16.msra.mxu0 %v2607
        %3336 = vmatprep.subr.bf16.mxu0 0
        %3337 = vmatpush1.bf16.msra.mxu0 %v2608
        %3338 = vmatprep.subr.bf16.mxu0 0
        %3339 = vmatpush1.bf16.msra.mxu0 %v2609
        %3340 = vmatprep.subr.bf16.mxu0 0
        %3341 = vmatpush1.bf16.msra.mxu0 %v2610
        %3342 = vmatprep.subr.bf16.mxu0 0
        %3343 = vmatpush1.bf16.msra.mxu0 %v2611
        %3344 = vmatprep.subr.bf16.mxu0 0
        %3345 = vmatpush1.bf16.msra.mxu0 0
        %3346 = vmatprep.subr.bf16.mxu0 0
        %3347 = vmatpush1.bf16.msra.mxu0 0
        %3348 = vmatprep.subr.bf16.mxu0 0
        %3349 = vmatpush1.bf16.msra.mxu0 0
        %3350 = vmatprep.subr.bf16.mxu0 0
        %3351 = vmatpush1.bf16.msra.mxu0 0
        %3352 = vmatprep.subr.bf16.mxu0 0
        %3353 = vmatpush1.bf16.msra.mxu0 0
        %3354 = vmatprep.subr.bf16.mxu0 0
        %3355 = vmatpush1.bf16.msra.mxu0 0
        %3356 = vmatprep.subr.bf16.mxu0 0
        %3357 = vmatpush1.bf16.msra.mxu0 0
        %3358 = vmatprep.subr.bf16.mxu0 0
        %3359 = vmatpush1.bf16.msra.mxu0 0
        %3360 = vmatprep.mubr.bf16.mxu0 0
        %3361 = vmatmul.mubr.bf16.gmra.mrb[0].mxu0 %v1972
        %v3362 = vpop.f32.mrb[0].mxu0
        %v3363 = vadd.f32 %v3202, %v3362
        %v3364 = vpop.f32.mrb[0].mxu0
        %v3365 = vpop.f32.mrb[0].mxu0
        %v3366 = vadd.f32 %v3205, %v3365
        %v3367 = vpop.f32.mrb[0].mxu0
        %3368 = vmatprep.mubr.bf16.mxu0 0
        %3369 = vmatmul.mubr.bf16.gmra.mrb[0].mxu0 %v1981
        %v3370 = vpop.f32.mrb[0].mxu0
        %v3371 = vadd.f32 %v3210, %v3370
        %v3372 = vpop.f32.mrb[0].mxu0
        %v3373 = vpop.f32.mrb[0].mxu0
        %v3374 = vadd.f32 %v3213, %v3373
        %v3375 = vpop.f32.mrb[0].mxu0
        %3376 = vmatprep.mubr.bf16.mxu0 0
        %3377 = vmatmul.mubr.bf16.gmra.mrb[0].mxu0 %v1990
        %v3378 = vpop.f32.mrb[0].mxu0
        %v3379 = vadd.f32 %v3218, %v3378
        %v3380 = vpop.f32.mrb[0].mxu0
        %v3381 = vpop.f32.mrb[0].mxu0
        %v3382 = vadd.f32 %v3221, %v3381
        %v3383 = vpop.f32.mrb[0].mxu0
        %3384 = vmatprep.mubr.bf16.mxu0 0
        %3385 = vmatmul.mubr.bf16.gmra.mrb[0].mxu0 %v1999
        %v3386 = vpop.f32.mrb[0].mxu0
        %v3387 = vadd.f32 %v3226, %v3386
        %v3388 = vpop.f32.mrb[0].mxu0
        %v3389 = vpop.f32.mrb[0].mxu0
        %v3390 = vadd.f32 %v3229, %v3389
        %v3391 = vpop.f32.mrb[0].mxu0
        %3392 = vmatprep.mubr.bf16.mxu0 0
        %3393 = vmatmul.mubr.bf16.gmra.mrb[0].mxu0 %v2008
        %v3394 = vpop.f32.mrb[0].mxu0
        %v3395 = vadd.f32 %v3234, %v3394
        %v3396 = vpop.f32.mrb[0].mxu0
        %v3397 = vpop.f32.mrb[0].mxu0
        %v3398 = vadd.f32 %v3237, %v3397
        %v3399 = vpop.f32.mrb[0].mxu0
        %3400 = vmatprep.mubr.bf16.mxu0 0
        %3401 = vmatmul.mubr.bf16.gmra.mrb[0].mxu0 %v2017
        %v3402 = vpop.f32.mrb[0].mxu0
        %v3403 = vadd.f32 %v3242, %v3402
        %v3404 = vpop.f32.mrb[0].mxu0
        %v3405 = vpop.f32.mrb[0].mxu0
        %v3406 = vadd.f32 %v3245, %v3405
        %v3407 = vpop.f32.mrb[0].mxu0
        %3408 = vmatprep.mubr.bf16.mxu0 0
        %3409 = vmatmul.mubr.bf16.gmra.mrb[0].mxu0 %v2026
        %v3410 = vpop.f32.mrb[0].mxu0
        %v3411 = vadd.f32 %v3250, %v3410
        %v3412 = vpop.f32.mrb[0].mxu0
        %v3413 = vpop.f32.mrb[0].mxu0
        %v3414 = vadd.f32 %v3253, %v3413
        %v3415 = vpop.f32.mrb[0].mxu0
        %3416 = vmatprep.mubr.bf16.mxu0 0
        %3417 = vmatmul.mubr.bf16.gmra.mrb[0].mxu0 %v2035
        %v3418 = vpop.f32.mrb[0].mxu0
        %v3419 = vadd.f32 %v3258, %v3418
        %v3420 = vpop.f32.mrb[0].mxu0
        %v3421 = vpop.f32.mrb[0].mxu0
        %v3422 = vadd.f32 %v3261, %v3421
        %v3423 = vpop.f32.mrb[0].mxu0
        %3424 = vmatprep.mubr.bf16.mxu0 0
        %3425 = vmatmul.mubr.bf16.gmra.mrb[0].mxu0 %v2044
        %v3426 = vpop.f32.mrb[0].mxu0
        %v3427 = vadd.f32 %v3266, %v3426
        %v3428 = vpop.f32.mrb[0].mxu0
        %v3429 = vpop.f32.mrb[0].mxu0
        %v3430 = vadd.f32 %v3269, %v3429
        %v3431 = vpop.f32.mrb[0].mxu0
        %3432 = vmatprep.mubr.bf16.mxu0 0
        %3433 = vmatmul.mubr.bf16.gmra.mrb[0].mxu0 %v2053
        %v3434 = vpop.f32.mrb[0].mxu0
        %v3435 = vadd.f32 %v3274, %v3434
        %v3436 = vpop.f32.mrb[0].mxu0
        %v3437 = vpop.f32.mrb[0].mxu0
        %v3438 = vadd.f32 %v3277, %v3437
        %v3439 = vpop.f32.mrb[0].mxu0
        %3440 = vmatprep.mubr.bf16.mxu0 0
        %3441 = vmatmul.mubr.bf16.gmra.mrb[0].mxu0 %v2062
        %v3442 = vpop.f32.mrb[0].mxu0
        %v3443 = vadd.f32 %v3282, %v3442
        %v3444 = vpop.f32.mrb[0].mxu0
        %v3445 = vpop.f32.mrb[0].mxu0
        %v3446 = vadd.f32 %v3285, %v3445
        %v3447 = vpop.f32.mrb[0].mxu0
        %3448 = vmatprep.mubr.bf16.mxu0 0
        %3449 = vmatmul.mubr.bf16.gmra.mrb[0].mxu0 %v2071
        %v3450 = vpop.f32.mrb[0].mxu0
        %v3451 = vadd.f32 %v3290, %v3450
        %v3452 = vpop.f32.mrb[0].mxu0
        %v3453 = vpop.f32.mrb[0].mxu0
        %v3454 = vadd.f32 %v3293, %v3453
        %v3455 = vpop.f32.mrb[0].mxu0
        %3456 = vmatprep.mubr.bf16.mxu0 0
        %3457 = vmatmul.mubr.bf16.gmra.mrb[0].mxu0 %v2080
        %v3458 = vpop.f32.mrb[0].mxu0
        %v3459 = vadd.f32 %v3298, %v3458
        %v3460 = vpop.f32.mrb[0].mxu0
        %v3461 = vpop.f32.mrb[0].mxu0
        %v3462 = vadd.f32 %v3301, %v3461
        %v3463 = vpop.f32.mrb[0].mxu0
        %3464 = vmatprep.mubr.bf16.mxu0 0
        %3465 = vmatmul.mubr.bf16.gmra.mrb[0].mxu0 %v2089
        %v3466 = vpop.f32.mrb[0].mxu0
        %v3467 = vadd.f32 %v3306, %v3466
        %v3468 = vpop.f32.mrb[0].mxu0
        %v3469 = vpop.f32.mrb[0].mxu0
        %v3470 = vadd.f32 %v3309, %v3469
        %v3471 = vpop.f32.mrb[0].mxu0
        %3472 = vmatprep.mubr.bf16.mxu0 0
        %3473 = vmatmul.mubr.bf16.gmra.mrb[0].mxu0 %v2098
        %v3474 = vpop.f32.mrb[0].mxu0
        %v3475 = vadd.f32 %v3314, %v3474
        %v3476 = vpop.f32.mrb[0].mxu0
        %v3477 = vpop.f32.mrb[0].mxu0
        %v3478 = vadd.f32 %v3317, %v3477
        %v3479 = vpop.f32.mrb[0].mxu0
        %3480 = vmatprep.mubr.bf16.mxu0 0
        %3481 = vmatmul.mubr.bf16.gmra.mrb[0].mxu0 %v2107
        %v3482 = vpop.f32.mrb[0].mxu0
        %v3483 = vadd.f32 %v3322, %v3482
        %v3484 = vpop.f32.mrb[0].mxu0
        %v3485 = vpop.f32.mrb[0].mxu0
        %v3486 = vadd.f32 %v3325, %v3485
        %v3487 = vpop.f32.mrb[0].mxu0
        %3488 = vdwg.mxu0
        %v3489 = vld [vmem:[%s2] sm:$0x1]
        %v3491 = vlaneseq
        %v3492 = vshrl.u32 %v3491, 7
        %v3493 = vsub.s32 0, %v3492
        %v3494 = vrot.slane %v3489, %v3493
        %v3496 = vmul.f32 %v3363, %v3494
        %v3497 = vmul.f32 %v3366, %v3494
        %v3498 = vmul.f32 %v3371, %v3494
        %v3499 = vmul.f32 %v3374, %v3494
        %v3500 = vmul.f32 %v3379, %v3494
        %v3501 = vmul.f32 %v3382, %v3494
        %v3502 = vmul.f32 %v3387, %v3494
        %v3503 = vmul.f32 %v3390, %v3494
        %v3504 = vmul.f32 %v3395, %v3494
        %v3505 = vmul.f32 %v3398, %v3494
        %v3506 = vmul.f32 %v3403, %v3494
        %v3507 = vmul.f32 %v3406, %v3494
        %v3508 = vmul.f32 %v3411, %v3494
        %v3509 = vmul.f32 %v3414, %v3494
        %v3510 = vmul.f32 %v3419, %v3494
        %v3511 = vmul.f32 %v3422, %v3494
        %v3512 = vmul.f32 %v3427, %v3494
        %v3513 = vmul.f32 %v3430, %v3494
        %v3514 = vmul.f32 %v3435, %v3494
        %v3515 = vmul.f32 %v3438, %v3494
        %v3516 = vmul.f32 %v3443, %v3494
        %v3517 = vmul.f32 %v3446, %v3494
        %v3518 = vmul.f32 %v3451, %v3494
        %v3519 = vmul.f32 %v3454, %v3494
        %v3520 = vmul.f32 %v3459, %v3494
        %v3521 = vmul.f32 %v3462, %v3494
        %v3522 = vmul.f32 %v3467, %v3494
        %v3523 = vmul.f32 %v3470, %v3494
        %v3524 = vmul.f32 %v3475, %v3494
        %v3525 = vmul.f32 %v3478, %v3494
        %v3526 = vmul.f32 %v3483, %v3494
        %v3527 = vmul.f32 %v3486, %v3494
        %v3528 = vld [vmem:[%s3] sm:$0x1]
        %v3530 = vlaneseq
        %v3531 = vshrl.u32 %v3530, 7
        %v3532 = vsub.s32 0, %v3531
        %v3533 = vrot.slane %v3528, %v3532
        %v3535 = vadd.f32 %v3496, %v3533
        %v3536 = vadd.f32 %v3497, %v3533
        %v3537 = vadd.f32 %v3498, %v3533
        %v3538 = vadd.f32 %v3499, %v3533
        %v3539 = vadd.f32 %v3500, %v3533
        %v3540 = vadd.f32 %v3501, %v3533
        %v3541 = vadd.f32 %v3502, %v3533
        %v3542 = vadd.f32 %v3503, %v3533
        %v3543 = vadd.f32 %v3504, %v3533
        %v3544 = vadd.f32 %v3505, %v3533
        %v3545 = vadd.f32 %v3506, %v3533
        %v3546 = vadd.f32 %v3507, %v3533
        %v3547 = vadd.f32 %v3508, %v3533
        %v3548 = vadd.f32 %v3509, %v3533
        %v3549 = vadd.f32 %v3510, %v3533
        %v3550 = vadd.f32 %v3511, %v3533
        %v3551 = vadd.f32 %v3512, %v3533
        %v3552 = vadd.f32 %v3513, %v3533
        %v3553 = vadd.f32 %v3514, %v3533
        %v3554 = vadd.f32 %v3515, %v3533
        %v3555 = vadd.f32 %v3516, %v3533
        %v3556 = vadd.f32 %v3517, %v3533
        %v3557 = vadd.f32 %v3518, %v3533
        %v3558 = vadd.f32 %v3519, %v3533
        %v3559 = vadd.f32 %v3520, %v3533
        %v3560 = vadd.f32 %v3521, %v3533
        %v3561 = vadd.f32 %v3522, %v3533
        %v3562 = vadd.f32 %v3523, %v3533
        %v3563 = vadd.f32 %v3524, %v3533
        %v3564 = vadd.f32 %v3525, %v3533
        %v3565 = vadd.f32 %v3526, %v3533
        %v3566 = vadd.f32 %v3527, %v3533
        %v3567 = vmax.f32 %v3535, 0.0
        %v3568 = vmax.f32 %v3536, 0.0
        %v3569 = vmax.f32 %v3537, 0.0
        %v3570 = vmax.f32 %v3538, 0.0
        %v3571 = vmax.f32 %v3539, 0.0
        %v3572 = vmax.f32 %v3540, 0.0
        %v3573 = vmax.f32 %v3541, 0.0
        %v3574 = vmax.f32 %v3542, 0.0
        %v3575 = vmax.f32 %v3543, 0.0
        %v3576 = vmax.f32 %v3544, 0.0
        %v3577 = vmax.f32 %v3545, 0.0
        %v3578 = vmax.f32 %v3546, 0.0
        %v3579 = vmax.f32 %v3547, 0.0
        %v3580 = vmax.f32 %v3548, 0.0
        %v3581 = vmax.f32 %v3549, 0.0
        %v3582 = vmax.f32 %v3550, 0.0
        %v3583 = vmax.f32 %v3551, 0.0
        %v3584 = vmax.f32 %v3552, 0.0
        %v3585 = vmax.f32 %v3553, 0.0
        %v3586 = vmax.f32 %v3554, 0.0
        %v3587 = vmax.f32 %v3555, 0.0
        %v3588 = vmax.f32 %v3556, 0.0
        %v3589 = vmax.f32 %v3557, 0.0
        %v3590 = vmax.f32 %v3558, 0.0
        %v3591 = vmax.f32 %v3559, 0.0
        %v3592 = vmax.f32 %v3560, 0.0
        %v3593 = vmax.f32 %v3561, 0.0
        %v3594 = vmax.f32 %v3562, 0.0
        %v3595 = vmax.f32 %v3563, 0.0
        %v3596 = vmax.f32 %v3564, 0.0
        %v3597 = vmax.f32 %v3565, 0.0
        %v3598 = vmax.f32 %v3566, 0.0
        %v3599 = vrot.slane %v3567, 7
        %v3600 = vrot.slane %v3568, 7
        %v3601 = vrot.slane %v3569, 7
        %v3602 = vrot.slane %v3570, 7
        %v3603 = vrot.slane %v3571, 7
        %v3604 = vrot.slane %v3572, 7
        %v3605 = vrot.slane %v3573, 7
        %v3606 = vrot.slane %v3574, 7
        %v3607 = vrot.slane %v3575, 7
        %v3608 = vrot.slane %v3576, 7
        %v3609 = vrot.slane %v3577, 7
        %v3610 = vrot.slane %v3578, 7
        %v3611 = vrot.slane %v3579, 7
        %v3612 = vrot.slane %v3580, 7
        %v3613 = vrot.slane %v3581, 7
        %v3614 = vrot.slane %v3582, 7
        %v3615 = vrot.slane %v3583, 7
        %v3616 = vrot.slane %v3584, 7
        %v3617 = vrot.slane %v3585, 7
        %v3618 = vrot.slane %v3586, 7
        %v3619 = vrot.slane %v3587, 7
        %v3620 = vrot.slane %v3588, 7
        %v3621 = vrot.slane %v3589, 7
        %v3622 = vrot.slane %v3590, 7
        %v3623 = vrot.slane %v3591, 7
        %v3624 = vrot.slane %v3592, 7
        %v3625 = vrot.slane %v3593, 7
        %v3626 = vrot.slane %v3594, 7
        %v3627 = vrot.slane %v3595, 7
        %v3628 = vrot.slane %v3596, 7
        %v3629 = vrot.slane %v3597, 7
        %v3630 = vrot.slane %v3598, 7
        %v3631 = vsel %vm1194, %v3629, %v3630
        %v3632 = vsel %vm1194, %v3628, %v3629
        %v3633 = vsel %vm1194, %v3627, %v3628
        %v3634 = vsel %vm1194, %v3626, %v3627
        %v3635 = vsel %vm1194, %v3625, %v3626
        %v3636 = vsel %vm1194, %v3624, %v3625
        %v3637 = vsel %vm1194, %v3623, %v3624
        %v3638 = vsel %vm1194, %v3622, %v3623
        %v3639 = vsel %vm1194, %v3621, %v3622
        %v3640 = vsel %vm1194, %v3620, %v3621
        %v3641 = vsel %vm1194, %v3619, %v3620
        %v3642 = vsel %vm1194, %v3618, %v3619
        %v3643 = vsel %vm1194, %v3617, %v3618
        %v3644 = vsel %vm1194, %v3616, %v3617
        %v3645 = vsel %vm1194, %v3615, %v3616
        %v3646 = vsel %vm1194, %v3614, %v3615
        %v3647 = vsel %vm1194, %v3613, %v3614
        %v3648 = vsel %vm1194, %v3612, %v3613
        %v3649 = vsel %vm1194, %v3611, %v3612
        %v3650 = vsel %vm1194, %v3610, %v3611
        %v3651 = vsel %vm1194, %v3609, %v3610
        %v3652 = vsel %vm1194, %v3608, %v3609
        %v3653 = vsel %vm1194, %v3607, %v3608
        %v3654 = vsel %vm1194, %v3606, %v3607
        %v3655 = vsel %vm1194, %v3605, %v3606
        %v3656 = vsel %vm1194, %v3604, %v3605
        %v3657 = vsel %vm1194, %v3603, %v3604
        %v3658 = vsel %vm1194, %v3602, %v3603
        %v3659 = vsel %vm1194, %v3601, %v3602
        %v3660 = vsel %vm1194, %v3600, %v3601
        %v3661 = vsel %vm1194, %v3599, %v3600
        %v3662 = vsel %vm1194, %v3630, %v3599
        %v3663 = vmul.f32 %v3632, %v1227
        %v3664 = vmul.f32 %v3631, %v1228
        %v3665 = vmul.f32 %v3662, %v1229
        %v3666 = vmul.f32 %v3661, %v1230
        %v3667 = vmul.f32 %v3660, %v1231
        %v3668 = vmul.f32 %v3659, %v1232
        %v3669 = vmul.f32 %v3658, %v1233
        %v3670 = vmul.f32 %v3657, %v1234
        %v3671 = vmul.f32 %v3656, %v1235
        %v3672 = vmul.f32 %v3655, %v1236
        %v3673 = vmul.f32 %v3654, %v1237
        %v3674 = vmul.f32 %v3653, %v1238
        %v3675 = vmul.f32 %v3652, %v1239
        %v3676 = vmul.f32 %v3651, %v1240
        %v3677 = vmul.f32 %v3650, %v1241
        %v3678 = vmul.f32 %v3649, %v1242
        %v3679 = vmul.f32 %v3648, %v1243
        %v3680 = vmul.f32 %v3647, %v1244
        %v3681 = vmul.f32 %v3646, %v1245
        %v3682 = vmul.f32 %v3645, %v1246
        %v3683 = vmul.f32 %v3644, %v1247
        %v3684 = vmul.f32 %v3643, %v1248
        %v3685 = vmul.f32 %v3642, %v1249
        %v3686 = vmul.f32 %v3641, %v1250
        %v3687 = vmul.f32 %v3640, %v1251
        %v3688 = vmul.f32 %v3639, %v1252
        %v3689 = vmul.f32 %v3638, %v1253
        %v3690 = vmul.f32 %v3637, %v1254
        %v3691 = vmul.f32 %v3636, %v1255
        %v3692 = vmul.f32 %v3635, %v1256
        %v3693 = vmul.f32 %v3634, %v1257
        %v3694 = vmul.f32 %v3633, %v1258
        %v3695 = vpack.c.bf16 %v3664, %v3663
        %v3696 = vpack.c.bf16 %v3666, %v3665
        %v3697 = vpack.c.bf16 %v3668, %v3667
        %v3698 = vpack.c.bf16 %v3670, %v3669
        %v3699 = vpack.c.bf16 %v3672, %v3671
        %v3700 = vpack.c.bf16 %v3674, %v3673
        %v3701 = vpack.c.bf16 %v3676, %v3675
        %v3702 = vpack.c.bf16 %v3678, %v3677
        %v3703 = vpack.c.bf16 %v3680, %v3679
        %v3704 = vpack.c.bf16 %v3682, %v3681
        %v3705 = vpack.c.bf16 %v3684, %v3683
        %v3706 = vpack.c.bf16 %v3686, %v3685
        %v3707 = vpack.c.bf16 %v3688, %v3687
        %v3708 = vpack.c.bf16 %v3690, %v3689
        %v3709 = vpack.c.bf16 %v3692, %v3691
        %v3710 = vpack.c.bf16 %v3694, %v3693
        %3711 = vst [vmem:[#allocation2] sm:$0xff] %v3695
        %3712 = vst [vmem:[#allocation2 + $0x48] sm:$0xff] %v3696
        %3713 = vst [vmem:[#allocation2 + $0x90] sm:$0xff] %v3697
        %3714 = vst [vmem:[#allocation2 + $0xd8] sm:$0xff] %v3698
        %3715 = vst [vmem:[#allocation2 + $0x120] sm:$0xff] %v3699
        %3716 = vst [vmem:[#allocation2 + $0x168] sm:$0xff] %v3700
        %3717 = vst [vmem:[#allocation2 + $0x1b0] sm:$0xff] %v3701
        %3718 = vst [vmem:[#allocation2 + $0x1f8] sm:$0xff] %v3702
        %3719 = vst [vmem:[#allocation2 + $0x240] sm:$0xff] %v3703
        %3720 = vst [vmem:[#allocation2 + $0x288] sm:$0xff] %v3704
        %3721 = vst [vmem:[#allocation2 + $0x2d0] sm:$0xff] %v3705
        %3722 = vst [vmem:[#allocation2 + $0x318] sm:$0xff] %v3706
        %3723 = vst [vmem:[#allocation2 + $0x360] sm:$0xff] %v3707
        %3724 = vst [vmem:[#allocation2 + $0x3a8] sm:$0xff] %v3708
        %3725 = vst [vmem:[#allocation2 + $0x3f0] sm:$0xff] %v3709
        %3726 = vst [vmem:[#allocation2 + $0x438] sm:$0xff] %v3710
        %v3727 = vmul.f32 %v3597, %v810
        %v3728 = vmul.f32 %v3598, %v811
        %v3729 = vmul.f32 %v3567, %v812
        %v3730 = vmul.f32 %v3568, %v813
        %v3731 = vmul.f32 %v3569, %v814
        %v3732 = vmul.f32 %v3570, %v815
        %v3733 = vmul.f32 %v3571, %v816
        %v3734 = vmul.f32 %v3572, %v817
        %v3735 = vmul.f32 %v3573, %v818
        %v3736 = vmul.f32 %v3574, %v819
        %v3737 = vmul.f32 %v3575, %v820
        %v3738 = vmul.f32 %v3576, %v821
        %v3739 = vmul.f32 %v3577, %v822
        %v3740 = vmul.f32 %v3578, %v823
        %v3741 = vmul.f32 %v3579, %v824
        %v3742 = vmul.f32 %v3580, %v825
        %v3743 = vmul.f32 %v3581, %v826
        %v3744 = vmul.f32 %v3582, %v827
        %v3745 = vmul.f32 %v3583, %v828
        %v3746 = vmul.f32 %v3584, %v829
        %v3747 = vmul.f32 %v3585, %v830
        %v3748 = vmul.f32 %v3586, %v831
        %v3749 = vmul.f32 %v3587, %v832
        %v3750 = vmul.f32 %v3588, %v833
        %v3751 = vmul.f32 %v3589, %v834
        %v3752 = vmul.f32 %v3590, %v835
        %v3753 = vmul.f32 %v3591, %v836
        %v3754 = vmul.f32 %v3592, %v837
        %v3755 = vmul.f32 %v3593, %v838
        %v3756 = vmul.f32 %v3594, %v839
        %v3757 = vmul.f32 %v3595, %v840
        %v3758 = vmul.f32 %v3596, %v841
        %v3759 = vpack.c.bf16 %v3728, %v3727
        %v3760 = vpack.c.bf16 %v3730, %v3729
        %v3761 = vpack.c.bf16 %v3732, %v3731
        %v3762 = vpack.c.bf16 %v3734, %v3733
        %v3763 = vpack.c.bf16 %v3736, %v3735
        %v3764 = vpack.c.bf16 %v3738, %v3737
        %v3765 = vpack.c.bf16 %v3740, %v3739
        %v3766 = vpack.c.bf16 %v3742, %v3741
        %v3767 = vpack.c.bf16 %v3744, %v3743
        %v3768 = vpack.c.bf16 %v3746, %v3745
        %v3769 = vpack.c.bf16 %v3748, %v3747
        %v3770 = vpack.c.bf16 %v3750, %v3749
        %v3771 = vpack.c.bf16 %v3752, %v3751
        %v3772 = vpack.c.bf16 %v3754, %v3753
        %v3773 = vpack.c.bf16 %v3756, %v3755
        %v3774 = vpack.c.bf16 %v3758, %v3757
        %3775 = vst [vmem:[#allocation2 + $0x8] sm:$0xff] %v3759
        %3776 = vst [vmem:[#allocation2 + $0x50] sm:$0xff] %v3760
        %3777 = vst [vmem:[#allocation2 + $0x98] sm:$0xff] %v3761
        %3778 = vst [vmem:[#allocation2 + $0xe0] sm:$0xff] %v3762
        %3779 = vst [vmem:[#allocation2 + $0x128] sm:$0xff] %v3763
        %3780 = vst [vmem:[#allocation2 + $0x170] sm:$0xff] %v3764
        %3781 = vst [vmem:[#allocation2 + $0x1b8] sm:$0xff] %v3765
        %3782 = vst [vmem:[#allocation2 + $0x200] sm:$0xff] %v3766
        %3783 = vst [vmem:[#allocation2 + $0x248] sm:$0xff] %v3767
        %3784 = vst [vmem:[#allocation2 + $0x290] sm:$0xff] %v3768
        %3785 = vst [vmem:[#allocation2 + $0x2d8] sm:$0xff] %v3769
        %3786 = vst [vmem:[#allocation2 + $0x320] sm:$0xff] %v3770
        %3787 = vst [vmem:[#allocation2 + $0x368] sm:$0xff] %v3771
        %3788 = vst [vmem:[#allocation2 + $0x3b0] sm:$0xff] %v3772
        %3789 = vst [vmem:[#allocation2 + $0x3f8] sm:$0xff] %v3773
        %3790 = vst [vmem:[#allocation2 + $0x440] sm:$0xff] %v3774
        %v3791 = vrot.slane %v3567, 1
        %v3792 = vrot.slane %v3568, 1
        %v3793 = vrot.slane %v3569, 1
        %v3794 = vrot.slane %v3570, 1
        %v3795 = vrot.slane %v3571, 1
        %v3796 = vrot.slane %v3572, 1
        %v3797 = vrot.slane %v3573, 1
        %v3798 = vrot.slane %v3574, 1
        %v3799 = vrot.slane %v3575, 1
        %v3800 = vrot.slane %v3576, 1
        %v3801 = vrot.slane %v3577, 1
        %v3802 = vrot.slane %v3578, 1
        %v3803 = vrot.slane %v3579, 1
        %v3804 = vrot.slane %v3580, 1
        %v3805 = vrot.slane %v3581, 1
        %v3806 = vrot.slane %v3582, 1
        %v3807 = vrot.slane %v3583, 1
        %v3808 = vrot.slane %v3584, 1
        %v3809 = vrot.slane %v3585, 1
        %v3810 = vrot.slane %v3586, 1
        %v3811 = vrot.slane %v3587, 1
        %v3812 = vrot.slane %v3588, 1
        %v3813 = vrot.slane %v3589, 1
        %v3814 = vrot.slane %v3590, 1
        %v3815 = vrot.slane %v3591, 1
        %v3816 = vrot.slane %v3592, 1
        %v3817 = vrot.slane %v3593, 1
        %v3818 = vrot.slane %v3594, 1
        %v3819 = vrot.slane %v3595, 1
        %v3820 = vrot.slane %v3596, 1
        %v3821 = vrot.slane %v3597, 1
        %v3822 = vrot.slane %v3598, 1
        %v3823 = vsel %vm1419, %v3821, %v3822
        %v3824 = vsel %vm1419, %v3820, %v3821
        %v3825 = vsel %vm1419, %v3819, %v3820
        %v3826 = vsel %vm1419, %v3818, %v3819
        %v3827 = vsel %vm1419, %v3817, %v3818
        %v3828 = vsel %vm1419, %v3816, %v3817
        %v3829 = vsel %vm1419, %v3815, %v3816
        %v3830 = vsel %vm1419, %v3814, %v3815
        %v3831 = vsel %vm1419, %v3813, %v3814
        %v3832 = vsel %vm1419, %v3812, %v3813
        %v3833 = vsel %vm1419, %v3811, %v3812
        %v3834 = vsel %vm1419, %v3810, %v3811
        %v3835 = vsel %vm1419, %v3809, %v3810
        %v3836 = vsel %vm1419, %v3808, %v3809
        %v3837 = vsel %vm1419, %v3807, %v3808
        %v3838 = vsel %vm1419, %v3806, %v3807
        %v3839 = vsel %vm1419, %v3805, %v3806
        %v3840 = vsel %vm1419, %v3804, %v3805
        %v3841 = vsel %vm1419, %v3803, %v3804
        %v3842 = vsel %vm1419, %v3802, %v3803
        %v3843 = vsel %vm1419, %v3801, %v3802
        %v3844 = vsel %vm1419, %v3800, %v3801
        %v3845 = vsel %vm1419, %v3799, %v3800
        %v3846 = vsel %vm1419, %v3798, %v3799
        %v3847 = vsel %vm1419, %v3797, %v3798
        %v3848 = vsel %vm1419, %v3796, %v3797
        %v3849 = vsel %vm1419, %v3795, %v3796
        %v3850 = vsel %vm1419, %v3794, %v3795
        %v3851 = vsel %vm1419, %v3793, %v3794
        %v3852 = vsel %vm1419, %v3792, %v3793
        %v3853 = vsel %vm1419, %v3791, %v3792
        %v3854 = vsel %vm1419, %v3822, %v3791
        %v3855 = vmul.f32 %v3823, %v1452
        %v3856 = vmul.f32 %v3854, %v1453
        %v3857 = vmul.f32 %v3853, %v1454
        %v3858 = vmul.f32 %v3852, %v1455
        %v3859 = vmul.f32 %v3851, %v1456
        %v3860 = vmul.f32 %v3850, %v1457
        %v3861 = vmul.f32 %v3849, %v1458
        %v3862 = vmul.f32 %v3848, %v1459
        %v3863 = vmul.f32 %v3847, %v1460
        %v3864 = vmul.f32 %v3846, %v1461
        %v3865 = vmul.f32 %v3845, %v1462
        %v3866 = vmul.f32 %v3844, %v1463
        %v3867 = vmul.f32 %v3843, %v1464
        %v3868 = vmul.f32 %v3842, %v1465
        %v3869 = vmul.f32 %v3841, %v1466
        %v3870 = vmul.f32 %v3840, %v1467
        %v3871 = vmul.f32 %v3839, %v1468
        %v3872 = vmul.f32 %v3838, %v1469
        %v3873 = vmul.f32 %v3837, %v1470
        %v3874 = vmul.f32 %v3836, %v1471
        %v3875 = vmul.f32 %v3835, %v1472
        %v3876 = vmul.f32 %v3834, %v1473
        %v3877 = vmul.f32 %v3833, %v1474
        %v3878 = vmul.f32 %v3832, %v1475
        %v3879 = vmul.f32 %v3831, %v1476
        %v3880 = vmul.f32 %v3830, %v1477
        %v3881 = vmul.f32 %v3829, %v1478
        %v3882 = vmul.f32 %v3828, %v1479
        %v3883 = vmul.f32 %v3827, %v1480
        %v3884 = vmul.f32 %v3826, %v1481
        %v3885 = vmul.f32 %v3825, %v1482
        %v3886 = vmul.f32 %v3824, %v1483
        %v3887 = vpack.c.bf16 %v3856, %v3855
        %v3888 = vpack.c.bf16 %v3858, %v3857
        %v3889 = vpack.c.bf16 %v3860, %v3859
        %v3890 = vpack.c.bf16 %v3862, %v3861
        %v3891 = vpack.c.bf16 %v3864, %v3863
        %v3892 = vpack.c.bf16 %v3866, %v3865
        %v3893 = vpack.c.bf16 %v3868, %v3867
        %v3894 = vpack.c.bf16 %v3870, %v3869
        %v3895 = vpack.c.bf16 %v3872, %v3871
        %v3896 = vpack.c.bf16 %v3874, %v3873
        %v3897 = vpack.c.bf16 %v3876, %v3875
        %v3898 = vpack.c.bf16 %v3878, %v3877
        %v3899 = vpack.c.bf16 %v3880, %v3879
        %v3900 = vpack.c.bf16 %v3882, %v3881
        %v3901 = vpack.c.bf16 %v3884, %v3883
        %v3902 = vpack.c.bf16 %v3886, %v3885
        %3903 = vst [vmem:[#allocation2 + $0x10] sm:$0xff] %v3887
        %3904 = vst [vmem:[#allocation2 + $0x58] sm:$0xff] %v3888
        %3905 = vst [vmem:[#allocation2 + $0xa0] sm:$0xff] %v3889
        %3906 = vst [vmem:[#allocation2 + $0xe8] sm:$0xff] %v3890
        %3907 = vst [vmem:[#allocation2 + $0x130] sm:$0xff] %v3891
        %3908 = vst [vmem:[#allocation2 + $0x178] sm:$0xff] %v3892
        %3909 = vst [vmem:[#allocation2 + $0x1c0] sm:$0xff] %v3893
        %3910 = vst [vmem:[#allocation2 + $0x208] sm:$0xff] %v3894
        %3911 = vst [vmem:[#allocation2 + $0x250] sm:$0xff] %v3895
        %3912 = vst [vmem:[#allocation2 + $0x298] sm:$0xff] %v3896
        %3913 = vst [vmem:[#allocation2 + $0x2e0] sm:$0xff] %v3897
        %3914 = vst [vmem:[#allocation2 + $0x328] sm:$0xff] %v3898
        %3915 = vst [vmem:[#allocation2 + $0x370] sm:$0xff] %v3899
        %3916 = vst [vmem:[#allocation2 + $0x3b8] sm:$0xff] %v3900
        %3917 = vst [vmem:[#allocation2 + $0x400] sm:$0xff] %v3901
        %3918 = vst [vmem:[#allocation2 + $0x448] sm:$0xff] %v3902
        %v3919 = vmul.f32 %v3662, %v1002
        %v3920 = vmul.f32 %v3661, %v1003
        %v3921 = vmul.f32 %v3660, %v1004
        %v3922 = vmul.f32 %v3659, %v1005
        %v3923 = vmul.f32 %v3658, %v1006
        %v3924 = vmul.f32 %v3657, %v1007
        %v3925 = vmul.f32 %v3656, %v1008
        %v3926 = vmul.f32 %v3655, %v1009
        %v3927 = vmul.f32 %v3654, %v1010
        %v3928 = vmul.f32 %v3653, %v1011
        %v3929 = vmul.f32 %v3652, %v1012
        %v3930 = vmul.f32 %v3651, %v1013
        %v3931 = vmul.f32 %v3650, %v1014
        %v3932 = vmul.f32 %v3649, %v1015
        %v3933 = vmul.f32 %v3648, %v1016
        %v3934 = vmul.f32 %v3647, %v1017
        %v3935 = vmul.f32 %v3646, %v1018
        %v3936 = vmul.f32 %v3645, %v1019
        %v3937 = vmul.f32 %v3644, %v1020
        %v3938 = vmul.f32 %v3643, %v1021
        %v3939 = vmul.f32 %v3642, %v1022
        %v3940 = vmul.f32 %v3641, %v1023
        %v3941 = vmul.f32 %v3640, %v1024
        %v3942 = vmul.f32 %v3639, %v1025
        %v3943 = vmul.f32 %v3638, %v1026
        %v3944 = vmul.f32 %v3637, %v1027
        %v3945 = vmul.f32 %v3636, %v1028
        %v3946 = vmul.f32 %v3635, %v1029
        %v3947 = vmul.f32 %v3634, %v1030
        %v3948 = vmul.f32 %v3633, %v1031
        %v3949 = vmul.f32 %v3632, %v1032
        %v3950 = vmul.f32 %v3631, %v1033
        %v3951 = vpack.c.bf16 %v3920, %v3919
        %v3952 = vpack.c.bf16 %v3922, %v3921
        %v3953 = vpack.c.bf16 %v3924, %v3923
        %v3954 = vpack.c.bf16 %v3926, %v3925
        %v3955 = vpack.c.bf16 %v3928, %v3927
        %v3956 = vpack.c.bf16 %v3930, %v3929
        %v3957 = vpack.c.bf16 %v3932, %v3931
        %v3958 = vpack.c.bf16 %v3934, %v3933
        %v3959 = vpack.c.bf16 %v3936, %v3935
        %v3960 = vpack.c.bf16 %v3938, %v3937
        %v3961 = vpack.c.bf16 %v3940, %v3939
        %v3962 = vpack.c.bf16 %v3942, %v3941
        %v3963 = vpack.c.bf16 %v3944, %v3943
        %v3964 = vpack.c.bf16 %v3946, %v3945
        %v3965 = vpack.c.bf16 %v3948, %v3947
        %v3966 = vpack.c.bf16 %v3950, %v3949
        %3967 = vst [vmem:[#allocation2 + $0x18] sm:$0xff] %v3951
        %3968 = vst [vmem:[#allocation2 + $0x60] sm:$0xff] %v3952
        %3969 = vst [vmem:[#allocation2 + $0xa8] sm:$0xff] %v3953
        %3970 = vst [vmem:[#allocation2 + $0xf0] sm:$0xff] %v3954
        %3971 = vst [vmem:[#allocation2 + $0x138] sm:$0xff] %v3955
        %3972 = vst [vmem:[#allocation2 + $0x180] sm:$0xff] %v3956
        %3973 = vst [vmem:[#allocation2 + $0x1c8] sm:$0xff] %v3957
        %3974 = vst [vmem:[#allocation2 + $0x210] sm:$0xff] %v3958
        %3975 = vst [vmem:[#allocation2 + $0x258] sm:$0xff] %v3959
        %3976 = vst [vmem:[#allocation2 + $0x2a0] sm:$0xff] %v3960
        %3977 = vst [vmem:[#allocation2 + $0x2e8] sm:$0xff] %v3961
        %3978 = vst [vmem:[#allocation2 + $0x330] sm:$0xff] %v3962
        %3979 = vst [vmem:[#allocation2 + $0x378] sm:$0xff] %v3963
        %3980 = vst [vmem:[#allocation2 + $0x3c0] sm:$0xff] %v3964
        %3981 = vst [vmem:[#allocation2 + $0x408] sm:$0xff] %v3965
        %3982 = vst [vmem:[#allocation2 + $0x450] sm:$0xff] %v3966
        %v3983 = vpack.c.bf16 %v3568, %v3567
        %v3984 = vpack.c.bf16 %v3570, %v3569
        %v3985 = vpack.c.bf16 %v3572, %v3571
        %v3986 = vpack.c.bf16 %v3574, %v3573
        %v3987 = vpack.c.bf16 %v3576, %v3575
        %v3988 = vpack.c.bf16 %v3578, %v3577
        %v3989 = vpack.c.bf16 %v3580, %v3579
        %v3990 = vpack.c.bf16 %v3582, %v3581
        %v3991 = vpack.c.bf16 %v3584, %v3583
        %v3992 = vpack.c.bf16 %v3586, %v3585
        %v3993 = vpack.c.bf16 %v3588, %v3587
        %v3994 = vpack.c.bf16 %v3590, %v3589
        %v3995 = vpack.c.bf16 %v3592, %v3591
        %v3996 = vpack.c.bf16 %v3594, %v3593
        %v3997 = vpack.c.bf16 %v3596, %v3595
        %v3998 = vpack.c.bf16 %v3598, %v3597
        %3999 = vst [vmem:[#allocation2 + $0x20] sm:$0xff] %v3983
        %4000 = vst [vmem:[#allocation2 + $0x68] sm:$0xff] %v3984
        %4001 = vst [vmem:[#allocation2 + $0xb0] sm:$0xff] %v3985
        %4002 = vst [vmem:[#allocation2 + $0xf8] sm:$0xff] %v3986
        %4003 = vst [vmem:[#allocation2 + $0x140] sm:$0xff] %v3987
        %4004 = vst [vmem:[#allocation2 + $0x188] sm:$0xff] %v3988
        %4005 = vst [vmem:[#allocation2 + $0x1d0] sm:$0xff] %v3989
        %4006 = vst [vmem:[#allocation2 + $0x218] sm:$0xff] %v3990
        %4007 = vst [vmem:[#allocation2 + $0x260] sm:$0xff] %v3991
        %4008 = vst [vmem:[#allocation2 + $0x2a8] sm:$0xff] %v3992
        %4009 = vst [vmem:[#allocation2 + $0x2f0] sm:$0xff] %v3993
        %4010 = vst [vmem:[#allocation2 + $0x338] sm:$0xff] %v3994
        %4011 = vst [vmem:[#allocation2 + $0x380] sm:$0xff] %v3995
        %4012 = vst [vmem:[#allocation2 + $0x3c8] sm:$0xff] %v3996
        %4013 = vst [vmem:[#allocation2 + $0x410] sm:$0xff] %v3997
        %4014 = vst [vmem:[#allocation2 + $0x458] sm:$0xff] %v3998
        %v4015 = vmul.f32 %v3853, %v1098
        %v4016 = vmul.f32 %v3852, %v1099
        %v4017 = vmul.f32 %v3851, %v1100
        %v4018 = vmul.f32 %v3850, %v1101
        %v4019 = vmul.f32 %v3849, %v1102
        %v4020 = vmul.f32 %v3848, %v1103
        %v4021 = vmul.f32 %v3847, %v1104
        %v4022 = vmul.f32 %v3846, %v1105
        %v4023 = vmul.f32 %v3845, %v1106
        %v4024 = vmul.f32 %v3844, %v1107
        %v4025 = vmul.f32 %v3843, %v1108
        %v4026 = vmul.f32 %v3842, %v1109
        %v4027 = vmul.f32 %v3841, %v1110
        %v4028 = vmul.f32 %v3840, %v1111
        %v4029 = vmul.f32 %v3839, %v1112
        %v4030 = vmul.f32 %v3838, %v1113
        %v4031 = vmul.f32 %v3837, %v1114
        %v4032 = vmul.f32 %v3836, %v1115
        %v4033 = vmul.f32 %v3835, %v1116
        %v4034 = vmul.f32 %v3834, %v1117
        %v4035 = vmul.f32 %v3833, %v1118
        %v4036 = vmul.f32 %v3832, %v1119
        %v4037 = vmul.f32 %v3831, %v1120
        %v4038 = vmul.f32 %v3830, %v1121
        %v4039 = vmul.f32 %v3829, %v1122
        %v4040 = vmul.f32 %v3828, %v1123
        %v4041 = vmul.f32 %v3827, %v1124
        %v4042 = vmul.f32 %v3826, %v1125
        %v4043 = vmul.f32 %v3825, %v1126
        %v4044 = vmul.f32 %v3824, %v1127
        %v4045 = vmul.f32 %v3823, %v1128
        %v4046 = vmul.f32 %v3854, %v1129
        %v4047 = vpack.c.bf16 %v4016, %v4015
        %v4048 = vpack.c.bf16 %v4018, %v4017
        %v4049 = vpack.c.bf16 %v4020, %v4019
        %v4050 = vpack.c.bf16 %v4022, %v4021
        %v4051 = vpack.c.bf16 %v4024, %v4023
        %v4052 = vpack.c.bf16 %v4026, %v4025
        %v4053 = vpack.c.bf16 %v4028, %v4027
        %v4054 = vpack.c.bf16 %v4030, %v4029
        %v4055 = vpack.c.bf16 %v4032, %v4031
        %v4056 = vpack.c.bf16 %v4034, %v4033
        %v4057 = vpack.c.bf16 %v4036, %v4035
        %v4058 = vpack.c.bf16 %v4038, %v4037
        %v4059 = vpack.c.bf16 %v4040, %v4039
        %v4060 = vpack.c.bf16 %v4042, %v4041
        %v4061 = vpack.c.bf16 %v4044, %v4043
        %v4062 = vpack.c.bf16 %v4046, %v4045
        %4063 = vst [vmem:[#allocation2 + $0x28] sm:$0xff] %v4047
        %4064 = vst [vmem:[#allocation2 + $0x70] sm:$0xff] %v4048
        %4065 = vst [vmem:[#allocation2 + $0xb8] sm:$0xff] %v4049
        %4066 = vst [vmem:[#allocation2 + $0x100] sm:$0xff] %v4050
        %4067 = vst [vmem:[#allocation2 + $0x148] sm:$0xff] %v4051
        %4068 = vst [vmem:[#allocation2 + $0x190] sm:$0xff] %v4052
        %4069 = vst [vmem:[#allocation2 + $0x1d8] sm:$0xff] %v4053
        %4070 = vst [vmem:[#allocation2 + $0x220] sm:$0xff] %v4054
        %4071 = vst [vmem:[#allocation2 + $0x268] sm:$0xff] %v4055
        %4072 = vst [vmem:[#allocation2 + $0x2b0] sm:$0xff] %v4056
        %4073 = vst [vmem:[#allocation2 + $0x2f8] sm:$0xff] %v4057
        %4074 = vst [vmem:[#allocation2 + $0x340] sm:$0xff] %v4058
        %4075 = vst [vmem:[#allocation2 + $0x388] sm:$0xff] %v4059
        %4076 = vst [vmem:[#allocation2 + $0x3d0] sm:$0xff] %v4060
        %4077 = vst [vmem:[#allocation2 + $0x418] sm:$0xff] %v4061
        %4078 = vst [vmem:[#allocation2 + $0x460] sm:$0xff] %v4062
        %v4079 = vmul.f32 %v3660, %v1708
        %v4080 = vmul.f32 %v3659, %v1709
        %v4081 = vmul.f32 %v3658, %v1710
        %v4082 = vmul.f32 %v3657, %v1711
        %v4083 = vmul.f32 %v3656, %v1712
        %v4084 = vmul.f32 %v3655, %v1713
        %v4085 = vmul.f32 %v3654, %v1714
        %v4086 = vmul.f32 %v3653, %v1715
        %v4087 = vmul.f32 %v3652, %v1716
        %v4088 = vmul.f32 %v3651, %v1717
        %v4089 = vmul.f32 %v3650, %v1718
        %v4090 = vmul.f32 %v3649, %v1719
        %v4091 = vmul.f32 %v3648, %v1720
        %v4092 = vmul.f32 %v3647, %v1721
        %v4093 = vmul.f32 %v3646, %v1722
        %v4094 = vmul.f32 %v3645, %v1723
        %v4095 = vmul.f32 %v3644, %v1724
        %v4096 = vmul.f32 %v3643, %v1725
        %v4097 = vmul.f32 %v3642, %v1726
        %v4098 = vmul.f32 %v3641, %v1727
        %v4099 = vmul.f32 %v3640, %v1728
        %v4100 = vmul.f32 %v3639, %v1729
        %v4101 = vmul.f32 %v3638, %v1730
        %v4102 = vmul.f32 %v3637, %v1731
        %v4103 = vmul.f32 %v3636, %v1732
        %v4104 = vmul.f32 %v3635, %v1733
        %v4105 = vmul.f32 %v3634, %v1734
        %v4106 = vmul.f32 %v3633, %v1735
        %v4107 = vmul.f32 %v3632, %v1736
        %v4108 = vmul.f32 %v3631, %v1737
        %v4109 = vmul.f32 %v3662, %v1738
        %v4110 = vmul.f32 %v3661, %v1739
        %v4111 = vpack.c.bf16 %v4080, %v4079
        %v4112 = vpack.c.bf16 %v4082, %v4081
        %v4113 = vpack.c.bf16 %v4084, %v4083
        %v4114 = vpack.c.bf16 %v4086, %v4085
        %v4115 = vpack.c.bf16 %v4088, %v4087
        %v4116 = vpack.c.bf16 %v4090, %v4089
        %v4117 = vpack.c.bf16 %v4092, %v4091
        %v4118 = vpack.c.bf16 %v4094, %v4093
        %v4119 = vpack.c.bf16 %v4096, %v4095
        %v4120 = vpack.c.bf16 %v4098, %v4097
        %v4121 = vpack.c.bf16 %v4100, %v4099
        %v4122 = vpack.c.bf16 %v4102, %v4101
        %v4123 = vpack.c.bf16 %v4104, %v4103
        %v4124 = vpack.c.bf16 %v4106, %v4105
        %v4125 = vpack.c.bf16 %v4108, %v4107
        %v4126 = vpack.c.bf16 %v4110, %v4109
        %4127 = vst [vmem:[#allocation2 + $0x30] sm:$0xff] %v4111
        %4128 = vst [vmem:[#allocation2 + $0x78] sm:$0xff] %v4112
        %4129 = vst [vmem:[#allocation2 + $0xc0] sm:$0xff] %v4113
        %4130 = vst [vmem:[#allocation2 + $0x108] sm:$0xff] %v4114
        %4131 = vst [vmem:[#allocation2 + $0x150] sm:$0xff] %v4115
        %4132 = vst [vmem:[#allocation2 + $0x198] sm:$0xff] %v4116
        %4133 = vst [vmem:[#allocation2 + $0x1e0] sm:$0xff] %v4117
        %4134 = vst [vmem:[#allocation2 + $0x228] sm:$0xff] %v4118
        %4135 = vst [vmem:[#allocation2 + $0x270] sm:$0xff] %v4119
        %4136 = vst [vmem:[#allocation2 + $0x2b8] sm:$0xff] %v4120
        %4137 = vst [vmem:[#allocation2 + $0x300] sm:$0xff] %v4121
        %4138 = vst [vmem:[#allocation2 + $0x348] sm:$0xff] %v4122
        %4139 = vst [vmem:[#allocation2 + $0x390] sm:$0xff] %v4123
        %4140 = vst [vmem:[#allocation2 + $0x3d8] sm:$0xff] %v4124
        %4141 = vst [vmem:[#allocation2 + $0x420] sm:$0xff] %v4125
        %4142 = vst [vmem:[#allocation2 + $0x468] sm:$0xff] %v4126
        %v4143 = vmul.f32 %v3569, %v906
        %v4144 = vmul.f32 %v3570, %v907
        %v4145 = vmul.f32 %v3571, %v908
        %v4146 = vmul.f32 %v3572, %v909
        %v4147 = vmul.f32 %v3573, %v910
        %v4148 = vmul.f32 %v3574, %v911
        %v4149 = vmul.f32 %v3575, %v912
        %v4150 = vmul.f32 %v3576, %v913
        %v4151 = vmul.f32 %v3577, %v914
        %v4152 = vmul.f32 %v3578, %v915
        %v4153 = vmul.f32 %v3579, %v916
        %v4154 = vmul.f32 %v3580, %v917
        %v4155 = vmul.f32 %v3581, %v918
        %v4156 = vmul.f32 %v3582, %v919
        %v4157 = vmul.f32 %v3583, %v920
        %v4158 = vmul.f32 %v3584, %v921
        %v4159 = vmul.f32 %v3585, %v922
        %v4160 = vmul.f32 %v3586, %v923
        %v4161 = vmul.f32 %v3587, %v924
        %v4162 = vmul.f32 %v3588, %v925
        %v4163 = vmul.f32 %v3589, %v926
        %v4164 = vmul.f32 %v3590, %v927
        %v4165 = vmul.f32 %v3591, %v928
        %v4166 = vmul.f32 %v3592, %v929
        %v4167 = vmul.f32 %v3593, %v930
        %v4168 = vmul.f32 %v3594, %v931
        %v4169 = vmul.f32 %v3595, %v932
        %v4170 = vmul.f32 %v3596, %v933
        %v4171 = vmul.f32 %v3597, %v934
        %v4172 = vmul.f32 %v3598, %v935
        %v4173 = vmul.f32 %v3567, %v936
        %v4174 = vmul.f32 %v3568, %v937
        %v4175 = vpack.c.bf16 %v4144, %v4143
        %v4176 = vpack.c.bf16 %v4146, %v4145
        %v4177 = vpack.c.bf16 %v4148, %v4147
        %v4178 = vpack.c.bf16 %v4150, %v4149
        %v4179 = vpack.c.bf16 %v4152, %v4151
        %v4180 = vpack.c.bf16 %v4154, %v4153
        %v4181 = vpack.c.bf16 %v4156, %v4155
        %v4182 = vpack.c.bf16 %v4158, %v4157
        %v4183 = vpack.c.bf16 %v4160, %v4159
        %v4184 = vpack.c.bf16 %v4162, %v4161
        %v4185 = vpack.c.bf16 %v4164, %v4163
        %v4186 = vpack.c.bf16 %v4166, %v4165
        %v4187 = vpack.c.bf16 %v4168, %v4167
        %v4188 = vpack.c.bf16 %v4170, %v4169
        %v4189 = vpack.c.bf16 %v4172, %v4171
        %v4190 = vpack.c.bf16 %v4174, %v4173
        %4191 = vst [vmem:[#allocation2 + $0x38] sm:$0xff] %v4175
        %4192 = vst [vmem:[#allocation2 + $0x80] sm:$0xff] %v4176
        %4193 = vst [vmem:[#allocation2 + $0xc8] sm:$0xff] %v4177
        %4194 = vst [vmem:[#allocation2 + $0x110] sm:$0xff] %v4178
        %4195 = vst [vmem:[#allocation2 + $0x158] sm:$0xff] %v4179
        %4196 = vst [vmem:[#allocation2 + $0x1a0] sm:$0xff] %v4180
        %4197 = vst [vmem:[#allocation2 + $0x1e8] sm:$0xff] %v4181
        %4198 = vst [vmem:[#allocation2 + $0x230] sm:$0xff] %v4182
        %4199 = vst [vmem:[#allocation2 + $0x278] sm:$0xff] %v4183
        %4200 = vst [vmem:[#allocation2 + $0x2c0] sm:$0xff] %v4184
        %4201 = vst [vmem:[#allocation2 + $0x308] sm:$0xff] %v4185
        %4202 = vst [vmem:[#allocation2 + $0x350] sm:$0xff] %v4186
        %4203 = vst [vmem:[#allocation2 + $0x398] sm:$0xff] %v4187
        %4204 = vst [vmem:[#allocation2 + $0x3e0] sm:$0xff] %v4188
        %4205 = vst [vmem:[#allocation2 + $0x428] sm:$0xff] %v4189
        %4206 = vst [vmem:[#allocation2 + $0x470] sm:$0xff] %v4190
        %v4207 = vmul.f32 %v3851, %v1868
        %v4208 = vmul.f32 %v3850, %v1869
        %v4209 = vmul.f32 %v3849, %v1870
        %v4210 = vmul.f32 %v3848, %v1871
        %v4211 = vmul.f32 %v3847, %v1872
        %v4212 = vmul.f32 %v3846, %v1873
        %v4213 = vmul.f32 %v3845, %v1874
        %v4214 = vmul.f32 %v3844, %v1875
        %v4215 = vmul.f32 %v3843, %v1876
        %v4216 = vmul.f32 %v3842, %v1877
        %v4217 = vmul.f32 %v3841, %v1878
        %v4218 = vmul.f32 %v3840, %v1879
        %v4219 = vmul.f32 %v3839, %v1880
        %v4220 = vmul.f32 %v3838, %v1881
        %v4221 = vmul.f32 %v3837, %v1882
        %v4222 = vmul.f32 %v3836, %v1883
        %v4223 = vmul.f32 %v3835, %v1884
        %v4224 = vmul.f32 %v3834, %v1885
        %v4225 = vmul.f32 %v3833, %v1886
        %v4226 = vmul.f32 %v3832, %v1887
        %v4227 = vmul.f32 %v3831, %v1888
        %v4228 = vmul.f32 %v3830, %v1889
        %v4229 = vmul.f32 %v3829, %v1890
        %v4230 = vmul.f32 %v3828, %v1891
        %v4231 = vmul.f32 %v3827, %v1892
        %v4232 = vmul.f32 %v3826, %v1893
        %v4233 = vmul.f32 %v3825, %v1894
        %v4234 = vmul.f32 %v3824, %v1895
        %v4235 = vmul.f32 %v3823, %v1896
        %v4236 = vmul.f32 %v3854, %v1897
        %v4237 = vmul.f32 %v3853, %v1898
        %v4238 = vmul.f32 %v3852, %v1899
        %v4239 = vpack.c.bf16 %v4208, %v4207
        %v4240 = vpack.c.bf16 %v4210, %v4209
        %v4241 = vpack.c.bf16 %v4212, %v4211
        %v4242 = vpack.c.bf16 %v4214, %v4213
        %v4243 = vpack.c.bf16 %v4216, %v4215
        %v4244 = vpack.c.bf16 %v4218, %v4217
        %v4245 = vpack.c.bf16 %v4220, %v4219
        %v4246 = vpack.c.bf16 %v4222, %v4221
        %v4247 = vpack.c.bf16 %v4224, %v4223
        %v4248 = vpack.c.bf16 %v4226, %v4225
        %v4249 = vpack.c.bf16 %v4228, %v4227
        %v4250 = vpack.c.bf16 %v4230, %v4229
        %v4251 = vpack.c.bf16 %v4232, %v4231
        %v4252 = vpack.c.bf16 %v4234, %v4233
        %v4253 = vpack.c.bf16 %v4236, %v4235
        %v4254 = vpack.c.bf16 %v4238, %v4237
        %4255 = vst [vmem:[#allocation2 + $0x40] sm:$0xff] %v4239
        %4256 = vst [vmem:[#allocation2 + $0x88] sm:$0xff] %v4240
        %4257 = vst [vmem:[#allocation2 + $0xd0] sm:$0xff] %v4241
        %4258 = vst [vmem:[#allocation2 + $0x118] sm:$0xff] %v4242
        %4259 = vst [vmem:[#allocation2 + $0x160] sm:$0xff] %v4243
        %4260 = vst [vmem:[#allocation2 + $0x1a8] sm:$0xff] %v4244
        %4261 = vst [vmem:[#allocation2 + $0x1f0] sm:$0xff] %v4245
        %4262 = vst [vmem:[#allocation2 + $0x238] sm:$0xff] %v4246
        %4263 = vst [vmem:[#allocation2 + $0x280] sm:$0xff] %v4247
        %4264 = vst [vmem:[#allocation2 + $0x2c8] sm:$0xff] %v4248
        %4265 = vst [vmem:[#allocation2 + $0x310] sm:$0xff] %v4249
        %4266 = vst [vmem:[#allocation2 + $0x358] sm:$0xff] %v4250
        %4267 = vst [vmem:[#allocation2 + $0x3a0] sm:$0xff] %v4251
        %4268 = vst [vmem:[#allocation2 + $0x3e8] sm:$0xff] %v4252
        %4269 = vst [vmem:[#allocation2 + $0x430] sm:$0xff] %v4253
        %4270 = vst [vmem:[#allocation2 + $0x478] sm:$0xff] %v4254
        %v4271 = vld [vmem:[#allocation2] sm:$0xff]
        %v4272 = vld [vmem:[#allocation2 + $0x8] sm:$0xff]
        %v4273 = vld [vmem:[#allocation2 + $0x10] sm:$0xff]
        %v4274 = vld [vmem:[#allocation2 + $0x18] sm:$0xff]
        %v4275 = vld [vmem:[#allocation2 + $0x20] sm:$0xff]
        %v4276 = vld [vmem:[#allocation2 + $0x28] sm:$0xff]
        %v4277 = vld [vmem:[#allocation2 + $0x30] sm:$0xff]
        %v4278 = vld [vmem:[#allocation2 + $0x38] sm:$0xff]
        %v4279 = vld [vmem:[#allocation2 + $0x40] sm:$0xff]
        %v4280 = vld [vmem:[#allocation2 + $0x48] sm:$0xff]
        %v4281 = vld [vmem:[#allocation2 + $0x50] sm:$0xff]
        %v4282 = vld [vmem:[#allocation2 + $0x58] sm:$0xff]
        %v4283 = vld [vmem:[#allocation2 + $0x60] sm:$0xff]
        %v4284 = vld [vmem:[#allocation2 + $0x68] sm:$0xff]
        %v4285 = vld [vmem:[#allocation2 + $0x70] sm:$0xff]
        %v4286 = vld [vmem:[#allocation2 + $0x78] sm:$0xff]
        %v4287 = vld [vmem:[#allocation2 + $0x80] sm:$0xff]
        %v4288 = vld [vmem:[#allocation2 + $0x88] sm:$0xff]
        %v4289 = vld [vmem:[#allocation2 + $0x90] sm:$0xff]
        %v4290 = vld [vmem:[#allocation2 + $0x98] sm:$0xff]
        %v4291 = vld [vmem:[#allocation2 + $0xa0] sm:$0xff]
        %v4292 = vld [vmem:[#allocation2 + $0xa8] sm:$0xff]
        %v4293 = vld [vmem:[#allocation2 + $0xb0] sm:$0xff]
        %v4294 = vld [vmem:[#allocation2 + $0xb8] sm:$0xff]
        %v4295 = vld [vmem:[#allocation2 + $0xc0] sm:$0xff]
        %v4296 = vld [vmem:[#allocation2 + $0xc8] sm:$0xff]
        %v4297 = vld [vmem:[#allocation2 + $0xd0] sm:$0xff]
        %v4298 = vld [vmem:[#allocation2 + $0xd8] sm:$0xff]
        %v4299 = vld [vmem:[#allocation2 + $0xe0] sm:$0xff]
        %v4300 = vld [vmem:[#allocation2 + $0xe8] sm:$0xff]
        %v4301 = vld [vmem:[#allocation2 + $0xf0] sm:$0xff]
        %v4302 = vld [vmem:[#allocation2 + $0xf8] sm:$0xff]
        %v4303 = vld [vmem:[#allocation2 + $0x100] sm:$0xff]
        %v4304 = vld [vmem:[#allocation2 + $0x108] sm:$0xff]
        %v4305 = vld [vmem:[#allocation2 + $0x110] sm:$0xff]
        %v4306 = vld [vmem:[#allocation2 + $0x118] sm:$0xff]
        %v4307 = vld [vmem:[#allocation2 + $0x120] sm:$0xff]
        %v4308 = vld [vmem:[#allocation2 + $0x128] sm:$0xff]
        %v4309 = vld [vmem:[#allocation2 + $0x130] sm:$0xff]
        %v4310 = vld [vmem:[#allocation2 + $0x138] sm:$0xff]
        %v4311 = vld [vmem:[#allocation2 + $0x140] sm:$0xff]
        %v4312 = vld [vmem:[#allocation2 + $0x148] sm:$0xff]
        %v4313 = vld [vmem:[#allocation2 + $0x150] sm:$0xff]
        %v4314 = vld [vmem:[#allocation2 + $0x158] sm:$0xff]
        %v4315 = vld [vmem:[#allocation2 + $0x160] sm:$0xff]
        %v4316 = vld [vmem:[#allocation2 + $0x168] sm:$0xff]
        %v4317 = vld [vmem:[#allocation2 + $0x170] sm:$0xff]
        %v4318 = vld [vmem:[#allocation2 + $0x178] sm:$0xff]
        %v4319 = vld [vmem:[#allocation2 + $0x180] sm:$0xff]
        %v4320 = vld [vmem:[#allocation2 + $0x188] sm:$0xff]
        %v4321 = vld [vmem:[#allocation2 + $0x190] sm:$0xff]
        %v4322 = vld [vmem:[#allocation2 + $0x198] sm:$0xff]
        %v4323 = vld [vmem:[#allocation2 + $0x1a0] sm:$0xff]
        %v4324 = vld [vmem:[#allocation2 + $0x1a8] sm:$0xff]
        %v4325 = vld [vmem:[#allocation2 + $0x1b0] sm:$0xff]
        %v4326 = vld [vmem:[#allocation2 + $0x1b8] sm:$0xff]
        %v4327 = vld [vmem:[#allocation2 + $0x1c0] sm:$0xff]
        %v4328 = vld [vmem:[#allocation2 + $0x1c8] sm:$0xff]
        %v4329 = vld [vmem:[#allocation2 + $0x1d0] sm:$0xff]
        %v4330 = vld [vmem:[#allocation2 + $0x1d8] sm:$0xff]
        %v4331 = vld [vmem:[#allocation2 + $0x1e0] sm:$0xff]
        %v4332 = vld [vmem:[#allocation2 + $0x1e8] sm:$0xff]
        %v4333 = vld [vmem:[#allocation2 + $0x1f0] sm:$0xff]
        %v4334 = vld [vmem:[#allocation2 + $0x1f8] sm:$0xff]
        %v4335 = vld [vmem:[#allocation2 + $0x200] sm:$0xff]
        %v4336 = vld [vmem:[#allocation2 + $0x208] sm:$0xff]
        %v4337 = vld [vmem:[#allocation2 + $0x210] sm:$0xff]
        %v4338 = vld [vmem:[#allocation2 + $0x218] sm:$0xff]
        %v4339 = vld [vmem:[#allocation2 + $0x220] sm:$0xff]
        %v4340 = vld [vmem:[#allocation2 + $0x228] sm:$0xff]
        %v4341 = vld [vmem:[#allocation2 + $0x230] sm:$0xff]
        %v4342 = vld [vmem:[#allocation2 + $0x238] sm:$0xff]
        %v4343 = vld [vmem:[#allocation2 + $0x240] sm:$0xff]
        %v4344 = vld [vmem:[#allocation2 + $0x248] sm:$0xff]
        %v4345 = vld [vmem:[#allocation2 + $0x250] sm:$0xff]
        %v4346 = vld [vmem:[#allocation2 + $0x258] sm:$0xff]
        %v4347 = vld [vmem:[#allocation2 + $0x260] sm:$0xff]
        %v4348 = vld [vmem:[#allocation2 + $0x268] sm:$0xff]
        %v4349 = vld [vmem:[#allocation2 + $0x270] sm:$0xff]
        %v4350 = vld [vmem:[#allocation2 + $0x278] sm:$0xff]
        %v4351 = vld [vmem:[#allocation2 + $0x280] sm:$0xff]
        %v4352 = vld [vmem:[#allocation2 + $0x288] sm:$0xff]
        %v4353 = vld [vmem:[#allocation2 + $0x290] sm:$0xff]
        %v4354 = vld [vmem:[#allocation2 + $0x298] sm:$0xff]
        %v4355 = vld [vmem:[#allocation2 + $0x2a0] sm:$0xff]
        %v4356 = vld [vmem:[#allocation2 + $0x2a8] sm:$0xff]
        %v4357 = vld [vmem:[#allocation2 + $0x2b0] sm:$0xff]
        %v4358 = vld [vmem:[#allocation2 + $0x2b8] sm:$0xff]
        %v4359 = vld [vmem:[#allocation2 + $0x2c0] sm:$0xff]
        %v4360 = vld [vmem:[#allocation2 + $0x2c8] sm:$0xff]
        %v4361 = vld [vmem:[#allocation2 + $0x2d0] sm:$0xff]
        %v4362 = vld [vmem:[#allocation2 + $0x2d8] sm:$0xff]
        %v4363 = vld [vmem:[#allocation2 + $0x2e0] sm:$0xff]
        %v4364 = vld [vmem:[#allocation2 + $0x2e8] sm:$0xff]
        %v4365 = vld [vmem:[#allocation2 + $0x2f0] sm:$0xff]
        %v4366 = vld [vmem:[#allocation2 + $0x2f8] sm:$0xff]
        %v4367 = vld [vmem:[#allocation2 + $0x300] sm:$0xff]
        %v4368 = vld [vmem:[#allocation2 + $0x308] sm:$0xff]
        %v4369 = vld [vmem:[#allocation2 + $0x310] sm:$0xff]
        %v4370 = vld [vmem:[#allocation2 + $0x318] sm:$0xff]
        %v4371 = vld [vmem:[#allocation2 + $0x320] sm:$0xff]
        %v4372 = vld [vmem:[#allocation2 + $0x328] sm:$0xff]
        %v4373 = vld [vmem:[#allocation2 + $0x330] sm:$0xff]
        %v4374 = vld [vmem:[#allocation2 + $0x338] sm:$0xff]
        %v4375 = vld [vmem:[#allocation2 + $0x340] sm:$0xff]
        %v4376 = vld [vmem:[#allocation2 + $0x348] sm:$0xff]
        %v4377 = vld [vmem:[#allocation2 + $0x350] sm:$0xff]
        %v4378 = vld [vmem:[#allocation2 + $0x358] sm:$0xff]
        %v4379 = vld [vmem:[#allocation2 + $0x360] sm:$0xff]
        %v4380 = vld [vmem:[#allocation2 + $0x368] sm:$0xff]
        %v4381 = vld [vmem:[#allocation2 + $0x370] sm:$0xff]
        %v4382 = vld [vmem:[#allocation2 + $0x378] sm:$0xff]
        %v4383 = vld [vmem:[#allocation2 + $0x380] sm:$0xff]
        %v4384 = vld [vmem:[#allocation2 + $0x388] sm:$0xff]
        %v4385 = vld [vmem:[#allocation2 + $0x390] sm:$0xff]
        %v4386 = vld [vmem:[#allocation2 + $0x398] sm:$0xff]
        %v4387 = vld [vmem:[#allocation2 + $0x3a0] sm:$0xff]
        %v4388 = vld [vmem:[#allocation2 + $0x3a8] sm:$0xff]
        %v4389 = vld [vmem:[#allocation2 + $0x3b0] sm:$0xff]
        %v4390 = vld [vmem:[#allocation2 + $0x3b8] sm:$0xff]
        %v4391 = vld [vmem:[#allocation2 + $0x3c0] sm:$0xff]
        %v4392 = vld [vmem:[#allocation2 + $0x3c8] sm:$0xff]
        %v4393 = vld [vmem:[#allocation2 + $0x3d0] sm:$0xff]
        %v4394 = vld [vmem:[#allocation2 + $0x3d8] sm:$0xff]
        %v4395 = vld [vmem:[#allocation2 + $0x3e0] sm:$0xff]
        %v4396 = vld [vmem:[#allocation2 + $0x3e8] sm:$0xff]
        %v4397 = vld [vmem:[#allocation2 + $0x3f0] sm:$0xff]
        %v4398 = vld [vmem:[#allocation2 + $0x3f8] sm:$0xff]
        %v4399 = vld [vmem:[#allocation2 + $0x400] sm:$0xff]
        %v4400 = vld [vmem:[#allocation2 + $0x408] sm:$0xff]
        %v4401 = vld [vmem:[#allocation2 + $0x410] sm:$0xff]
        %v4402 = vld [vmem:[#allocation2 + $0x418] sm:$0xff]
        %v4403 = vld [vmem:[#allocation2 + $0x420] sm:$0xff]
        %v4404 = vld [vmem:[#allocation2 + $0x428] sm:$0xff]
        %v4405 = vld [vmem:[#allocation2 + $0x430] sm:$0xff]
        %v4406 = vld [vmem:[#allocation2 + $0x438] sm:$0xff]
        %v4407 = vld [vmem:[#allocation2 + $0x440] sm:$0xff]
        %v4408 = vld [vmem:[#allocation2 + $0x448] sm:$0xff]
        %v4409 = vld [vmem:[#allocation2 + $0x450] sm:$0xff]
        %v4410 = vld [vmem:[#allocation2 + $0x458] sm:$0xff]
        %v4411 = vld [vmem:[#allocation2 + $0x460] sm:$0xff]
        %v4412 = vld [vmem:[#allocation2 + $0x468] sm:$0xff]
        %v4413 = vld [vmem:[#allocation2 + $0x470] sm:$0xff]
        %v4414 = vld [vmem:[#allocation2 + $0x478] sm:$0xff]
        %v4415 = vld [vmem:[#allocation8] sm:$0xf]
        %v4416 = vld [vmem:[#allocation8 + $0x4] sm:$0xf]
        %v4417 = vld [vmem:[#allocation8 + $0x8] sm:$0xf]
        %v4418 = vld [vmem:[#allocation8 + $0xc] sm:$0xf]
        %v4419 = vld [vmem:[#allocation8 + $0x10] sm:$0xf]
        %v4420 = vld [vmem:[#allocation8 + $0x14] sm:$0xf]
        %v4421 = vld [vmem:[#allocation8 + $0x18] sm:$0xf]
        %v4422 = vld [vmem:[#allocation8 + $0x1c] sm:$0xf]
        %v4423 = vld [vmem:[#allocation8 + $0x20] sm:$0xf]
        %v4424 = vld [vmem:[#allocation8 + $0x24] sm:$0xf]
        %v4425 = vld [vmem:[#allocation8 + $0x28] sm:$0xf]
        %v4426 = vld [vmem:[#allocation8 + $0x2c] sm:$0xf]
        %v4427 = vld [vmem:[#allocation8 + $0x30] sm:$0xf]
        %v4428 = vld [vmem:[#allocation8 + $0x34] sm:$0xf]
        %v4429 = vld [vmem:[#allocation8 + $0x38] sm:$0xf]
        %v4430 = vld [vmem:[#allocation8 + $0x3c] sm:$0xf]
        %v4431 = vld [vmem:[#allocation8 + $0x40] sm:$0xf]
        %v4432 = vld [vmem:[#allocation8 + $0x44] sm:$0xf]
        %v4433 = vld [vmem:[#allocation8 + $0x48] sm:$0xf]
        %v4434 = vld [vmem:[#allocation8 + $0x4c] sm:$0xf]
        %v4435 = vld [vmem:[#allocation8 + $0x50] sm:$0xf]
        %v4436 = vld [vmem:[#allocation8 + $0x54] sm:$0xf]
        %v4437 = vld [vmem:[#allocation8 + $0x58] sm:$0xf]
        %v4438 = vld [vmem:[#allocation8 + $0x5c] sm:$0xf]
        %v4439 = vld [vmem:[#allocation8 + $0x60] sm:$0xf]
        %v4440 = vld [vmem:[#allocation8 + $0x64] sm:$0xf]
        %v4441 = vld [vmem:[#allocation8 + $0x68] sm:$0xf]
        %v4442 = vld [vmem:[#allocation8 + $0x6c] sm:$0xf]
        %v4443 = vld [vmem:[#allocation8 + $0x70] sm:$0xf]
        %v4444 = vld [vmem:[#allocation8 + $0x74] sm:$0xf]
        %v4445 = vld [vmem:[#allocation8 + $0x78] sm:$0xf]
        %v4446 = vld [vmem:[#allocation8 + $0x7c] sm:$0xf]
        %v4447 = vld [vmem:[#allocation8 + $0x80] sm:$0xf]
        %v4448 = vld [vmem:[#allocation8 + $0x84] sm:$0xf]
        %v4449 = vld [vmem:[#allocation8 + $0x88] sm:$0xf]
        %v4450 = vld [vmem:[#allocation8 + $0x8c] sm:$0xf]
        %v4451 = vld [vmem:[#allocation8 + $0x90] sm:$0xf]
        %v4452 = vld [vmem:[#allocation8 + $0x94] sm:$0xf]
        %v4453 = vld [vmem:[#allocation8 + $0x98] sm:$0xf]
        %v4454 = vld [vmem:[#allocation8 + $0x9c] sm:$0xf]
        %v4455 = vld [vmem:[#allocation8 + $0xa0] sm:$0xf]
        %v4456 = vld [vmem:[#allocation8 + $0xa4] sm:$0xf]
        %v4457 = vld [vmem:[#allocation8 + $0xa8] sm:$0xf]
        %v4458 = vld [vmem:[#allocation8 + $0xac] sm:$0xf]
        %v4459 = vld [vmem:[#allocation8 + $0xb0] sm:$0xf]
        %v4460 = vld [vmem:[#allocation8 + $0xb4] sm:$0xf]
        %v4461 = vld [vmem:[#allocation8 + $0xb8] sm:$0xf]
        %v4462 = vld [vmem:[#allocation8 + $0xbc] sm:$0xf]
        %v4463 = vld [vmem:[#allocation8 + $0xc0] sm:$0xf]
        %v4464 = vld [vmem:[#allocation8 + $0xc4] sm:$0xf]
        %v4465 = vld [vmem:[#allocation8 + $0xc8] sm:$0xf]
        %v4466 = vld [vmem:[#allocation8 + $0xcc] sm:$0xf]
        %v4467 = vld [vmem:[#allocation8 + $0xd0] sm:$0xf]
        %v4468 = vld [vmem:[#allocation8 + $0xd4] sm:$0xf]
        %v4469 = vld [vmem:[#allocation8 + $0xd8] sm:$0xf]
        %v4470 = vld [vmem:[#allocation8 + $0xdc] sm:$0xf]
        %v4471 = vld [vmem:[#allocation8 + $0xe0] sm:$0xf]
        %v4472 = vld [vmem:[#allocation8 + $0xe4] sm:$0xf]
        %v4473 = vld [vmem:[#allocation8 + $0xe8] sm:$0xf]
        %v4474 = vld [vmem:[#allocation8 + $0xec] sm:$0xf]
        %v4475 = vld [vmem:[#allocation8 + $0xf0] sm:$0xf]
        %v4476 = vld [vmem:[#allocation8 + $0xf4] sm:$0xf]
        %v4477 = vld [vmem:[#allocation8 + $0xf8] sm:$0xf]
        %v4478 = vld [vmem:[#allocation8 + $0xfc] sm:$0xf]
        %v4479 = vld [vmem:[#allocation8 + $0x100] sm:$0xf]
        %v4480 = vld [vmem:[#allocation8 + $0x104] sm:$0xf]
        %v4481 = vld [vmem:[#allocation8 + $0x108] sm:$0xf]
        %v4482 = vld [vmem:[#allocation8 + $0x10c] sm:$0xf]
        %v4483 = vld [vmem:[#allocation8 + $0x110] sm:$0xf]
        %v4484 = vld [vmem:[#allocation8 + $0x114] sm:$0xf]
        %v4485 = vld [vmem:[#allocation8 + $0x118] sm:$0xf]
        %v4486 = vld [vmem:[#allocation8 + $0x11c] sm:$0xf]
        %v4487 = vld [vmem:[#allocation8 + $0x120] sm:$0xf]
        %v4488 = vld [vmem:[#allocation8 + $0x124] sm:$0xf]
        %v4489 = vld [vmem:[#allocation8 + $0x128] sm:$0xf]
        %v4490 = vld [vmem:[#allocation8 + $0x12c] sm:$0xf]
        %v4491 = vld [vmem:[#allocation8 + $0x130] sm:$0xf]
        %v4492 = vld [vmem:[#allocation8 + $0x134] sm:$0xf]
        %v4493 = vld [vmem:[#allocation8 + $0x138] sm:$0xf]
        %v4494 = vld [vmem:[#allocation8 + $0x13c] sm:$0xf]
        %v4495 = vld [vmem:[#allocation8 + $0x140] sm:$0xf]
        %v4496 = vld [vmem:[#allocation8 + $0x144] sm:$0xf]
        %v4497 = vld [vmem:[#allocation8 + $0x148] sm:$0xf]
        %v4498 = vld [vmem:[#allocation8 + $0x14c] sm:$0xf]
        %v4499 = vld [vmem:[#allocation8 + $0x150] sm:$0xf]
        %v4500 = vld [vmem:[#allocation8 + $0x154] sm:$0xf]
        %v4501 = vld [vmem:[#allocation8 + $0x158] sm:$0xf]
        %v4502 = vld [vmem:[#allocation8 + $0x15c] sm:$0xf]
        %v4503 = vld [vmem:[#allocation8 + $0x160] sm:$0xf]
        %v4504 = vld [vmem:[#allocation8 + $0x164] sm:$0xf]
        %v4505 = vld [vmem:[#allocation8 + $0x168] sm:$0xf]
        %v4506 = vld [vmem:[#allocation8 + $0x16c] sm:$0xf]
        %v4507 = vld [vmem:[#allocation8 + $0x170] sm:$0xf]
        %v4508 = vld [vmem:[#allocation8 + $0x174] sm:$0xf]
        %v4509 = vld [vmem:[#allocation8 + $0x178] sm:$0xf]
        %v4510 = vld [vmem:[#allocation8 + $0x17c] sm:$0xf]
        %v4511 = vld [vmem:[#allocation8 + $0x180] sm:$0xf]
        %v4512 = vld [vmem:[#allocation8 + $0x184] sm:$0xf]
        %v4513 = vld [vmem:[#allocation8 + $0x188] sm:$0xf]
        %v4514 = vld [vmem:[#allocation8 + $0x18c] sm:$0xf]
        %v4515 = vld [vmem:[#allocation8 + $0x190] sm:$0xf]
        %v4516 = vld [vmem:[#allocation8 + $0x194] sm:$0xf]
        %v4517 = vld [vmem:[#allocation8 + $0x198] sm:$0xf]
        %v4518 = vld [vmem:[#allocation8 + $0x19c] sm:$0xf]
        %v4519 = vld [vmem:[#allocation8 + $0x1a0] sm:$0xf]
        %v4520 = vld [vmem:[#allocation8 + $0x1a4] sm:$0xf]
        %v4521 = vld [vmem:[#allocation8 + $0x1a8] sm:$0xf]
        %v4522 = vld [vmem:[#allocation8 + $0x1ac] sm:$0xf]
        %v4523 = vld [vmem:[#allocation8 + $0x1b0] sm:$0xf]
        %v4524 = vld [vmem:[#allocation8 + $0x1b4] sm:$0xf]
        %v4525 = vld [vmem:[#allocation8 + $0x1b8] sm:$0xf]
        %v4526 = vld [vmem:[#allocation8 + $0x1bc] sm:$0xf]
        %v4527 = vld [vmem:[#allocation8 + $0x1c0] sm:$0xf]
        %v4528 = vld [vmem:[#allocation8 + $0x1c4] sm:$0xf]
        %v4529 = vld [vmem:[#allocation8 + $0x1c8] sm:$0xf]
        %v4530 = vld [vmem:[#allocation8 + $0x1cc] sm:$0xf]
        %v4531 = vld [vmem:[#allocation8 + $0x1d0] sm:$0xf]
        %v4532 = vld [vmem:[#allocation8 + $0x1d4] sm:$0xf]
        %v4533 = vld [vmem:[#allocation8 + $0x1d8] sm:$0xf]
        %v4534 = vld [vmem:[#allocation8 + $0x1dc] sm:$0xf]
        %v4535 = vld [vmem:[#allocation8 + $0x1e0] sm:$0xf]
        %v4536 = vld [vmem:[#allocation8 + $0x1e4] sm:$0xf]
        %v4537 = vld [vmem:[#allocation8 + $0x1e8] sm:$0xf]
        %v4538 = vld [vmem:[#allocation8 + $0x1ec] sm:$0xf]
        %v4539 = vld [vmem:[#allocation8 + $0x1f0] sm:$0xf]
        %v4540 = vld [vmem:[#allocation8 + $0x1f4] sm:$0xf]
        %v4541 = vld [vmem:[#allocation8 + $0x1f8] sm:$0xf]
        %v4542 = vld [vmem:[#allocation8 + $0x1fc] sm:$0xf]
        %v4543 = vld [vmem:[#allocation8 + $0x200] sm:$0xf]
        %v4544 = vld [vmem:[#allocation8 + $0x204] sm:$0xf]
        %v4545 = vld [vmem:[#allocation8 + $0x208] sm:$0xf]
        %v4546 = vld [vmem:[#allocation8 + $0x20c] sm:$0xf]
        %v4547 = vld [vmem:[#allocation8 + $0x210] sm:$0xf]
        %v4548 = vld [vmem:[#allocation8 + $0x214] sm:$0xf]
        %v4549 = vld [vmem:[#allocation8 + $0x218] sm:$0xf]
        %v4550 = vld [vmem:[#allocation8 + $0x21c] sm:$0xf]
        %v4551 = vld [vmem:[#allocation8 + $0x220] sm:$0xf]
        %v4552 = vld [vmem:[#allocation8 + $0x224] sm:$0xf]
        %v4553 = vld [vmem:[#allocation8 + $0x228] sm:$0xf]
        %v4554 = vld [vmem:[#allocation8 + $0x22c] sm:$0xf]
        %v4555 = vld [vmem:[#allocation8 + $0x230] sm:$0xf]
        %v4556 = vld [vmem:[#allocation8 + $0x234] sm:$0xf]
        %v4557 = vld [vmem:[#allocation8 + $0x238] sm:$0xf]
        %v4558 = vld [vmem:[#allocation8 + $0x23c] sm:$0xf]
        %v4703 = vunpack.c.l.b16 %v4415
        %v4704 = vunpack.c.l.b16 %v4416
        %v4705 = vunpack.c.l.b16 %v4417
        %v4706 = vunpack.c.l.b16 %v4418
        %v4707 = vunpack.c.l.b16 %v4419
        %v4708 = vunpack.c.l.b16 %v4420
        %v4709 = vunpack.c.l.b16 %v4421
        %v4710 = vunpack.c.l.b16 %v4422
        %v4711 = vunpack.c.l.b16 %v4423
        %v4712 = vunpack.c.l.b16 %v4424
        %v4713 = vunpack.c.l.b16 %v4425
        %v4714 = vunpack.c.l.b16 %v4426
        %v4715 = vunpack.c.l.b16 %v4427
        %v4716 = vunpack.c.l.b16 %v4428
        %v4717 = vunpack.c.l.b16 %v4429
        %v4718 = vunpack.c.l.b16 %v4430
        %v4719 = vunpack.c.l.b16 %v4431
        %v4720 = vunpack.c.l.b16 %v4432
        %v4721 = vunpack.c.l.b16 %v4433
        %v4722 = vunpack.c.l.b16 %v4434
        %v4723 = vunpack.c.l.b16 %v4435
        %v4724 = vunpack.c.l.b16 %v4436
        %v4725 = vunpack.c.l.b16 %v4437
        %v4726 = vunpack.c.l.b16 %v4438
        %v4727 = vunpack.c.l.b16 %v4439
        %v4728 = vunpack.c.l.b16 %v4440
        %v4729 = vunpack.c.l.b16 %v4441
        %v4730 = vunpack.c.l.b16 %v4442
        %v4731 = vunpack.c.l.b16 %v4443
        %v4732 = vunpack.c.l.b16 %v4444
        %v4733 = vunpack.c.l.b16 %v4445
        %v4734 = vunpack.c.l.b16 %v4446
        %v4735 = vunpack.c.l.b16 %v4447
        %v4736 = vunpack.c.l.b16 %v4448
        %v4737 = vunpack.c.l.b16 %v4449
        %v4738 = vunpack.c.l.b16 %v4450
        %v4739 = vunpack.c.l.b16 %v4451
        %v4740 = vunpack.c.l.b16 %v4452
        %v4741 = vunpack.c.l.b16 %v4453
        %v4742 = vunpack.c.l.b16 %v4454
        %v4743 = vunpack.c.l.b16 %v4455
        %v4744 = vunpack.c.l.b16 %v4456
        %v4745 = vunpack.c.l.b16 %v4457
        %v4746 = vunpack.c.l.b16 %v4458
        %v4747 = vunpack.c.l.b16 %v4459
        %v4748 = vunpack.c.l.b16 %v4460
        %v4749 = vunpack.c.l.b16 %v4461
        %v4750 = vunpack.c.l.b16 %v4462
        %v4751 = vunpack.c.l.b16 %v4463
        %v4752 = vunpack.c.l.b16 %v4464
        %v4753 = vunpack.c.l.b16 %v4465
        %v4754 = vunpack.c.l.b16 %v4466
        %v4755 = vunpack.c.l.b16 %v4467
        %v4756 = vunpack.c.l.b16 %v4468
        %v4757 = vunpack.c.l.b16 %v4469
        %v4758 = vunpack.c.l.b16 %v4470
        %v4759 = vunpack.c.l.b16 %v4471
        %v4760 = vunpack.c.l.b16 %v4472
        %v4761 = vunpack.c.l.b16 %v4473
        %v4762 = vunpack.c.l.b16 %v4474
        %v4763 = vunpack.c.l.b16 %v4475
        %v4764 = vunpack.c.l.b16 %v4476
        %v4765 = vunpack.c.l.b16 %v4477
        %v4766 = vunpack.c.l.b16 %v4478
        %v4767 = vunpack.c.l.b16 %v4479
        %v4768 = vunpack.c.l.b16 %v4480
        %v4769 = vunpack.c.l.b16 %v4481
        %v4770 = vunpack.c.l.b16 %v4482
        %v4771 = vunpack.c.l.b16 %v4483
        %v4772 = vunpack.c.l.b16 %v4484
        %v4773 = vunpack.c.l.b16 %v4485
        %v4774 = vunpack.c.l.b16 %v4486
        %v4775 = vunpack.c.l.b16 %v4487
        %v4776 = vunpack.c.l.b16 %v4488
        %v4777 = vunpack.c.l.b16 %v4489
        %v4778 = vunpack.c.l.b16 %v4490
        %v4779 = vunpack.c.l.b16 %v4491
        %v4780 = vunpack.c.l.b16 %v4492
        %v4781 = vunpack.c.l.b16 %v4493
        %v4782 = vunpack.c.l.b16 %v4494
        %v4783 = vunpack.c.l.b16 %v4495
        %v4784 = vunpack.c.l.b16 %v4496
        %v4785 = vunpack.c.l.b16 %v4497
        %v4786 = vunpack.c.l.b16 %v4498
        %v4787 = vunpack.c.l.b16 %v4499
        %v4788 = vunpack.c.l.b16 %v4500
        %v4789 = vunpack.c.l.b16 %v4501
        %v4790 = vunpack.c.l.b16 %v4502
        %v4791 = vunpack.c.l.b16 %v4503
        %v4792 = vunpack.c.l.b16 %v4504
        %v4793 = vunpack.c.l.b16 %v4505
        %v4794 = vunpack.c.l.b16 %v4506
        %v4795 = vunpack.c.l.b16 %v4507
        %v4796 = vunpack.c.l.b16 %v4508
        %v4797 = vunpack.c.l.b16 %v4509
        %v4798 = vunpack.c.l.b16 %v4510
        %v4799 = vunpack.c.l.b16 %v4511
        %v4800 = vunpack.c.l.b16 %v4512
        %v4801 = vunpack.c.l.b16 %v4513
        %v4802 = vunpack.c.l.b16 %v4514
        %v4803 = vunpack.c.l.b16 %v4515
        %v4804 = vunpack.c.l.b16 %v4516
        %v4805 = vunpack.c.l.b16 %v4517
        %v4806 = vunpack.c.l.b16 %v4518
        %v4807 = vunpack.c.l.b16 %v4519
        %v4808 = vunpack.c.l.b16 %v4520
        %v4809 = vunpack.c.l.b16 %v4521
        %v4810 = vunpack.c.l.b16 %v4522
        %v4811 = vunpack.c.l.b16 %v4523
        %v4812 = vunpack.c.l.b16 %v4524
        %v4813 = vunpack.c.l.b16 %v4525
        %v4814 = vunpack.c.l.b16 %v4526
        %v4815 = vunpack.c.l.b16 %v4527
        %v4816 = vunpack.c.l.b16 %v4528
        %v4817 = vunpack.c.l.b16 %v4529
        %v4818 = vunpack.c.l.b16 %v4530
        %v4819 = vunpack.c.l.b16 %v4531
        %v4820 = vunpack.c.l.b16 %v4532
        %v4821 = vunpack.c.l.b16 %v4533
        %v4822 = vunpack.c.l.b16 %v4534
        %v4823 = vunpack.c.l.b16 %v4535
        %v4824 = vunpack.c.l.b16 %v4536
        %v4825 = vunpack.c.l.b16 %v4537
        %v4826 = vunpack.c.l.b16 %v4538
        %v4827 = vunpack.c.l.b16 %v4539
        %v4828 = vunpack.c.l.b16 %v4540
        %v4829 = vunpack.c.l.b16 %v4541
        %v4830 = vunpack.c.l.b16 %v4542
        %v4831 = vunpack.c.l.b16 %v4543
        %v4832 = vunpack.c.l.b16 %v4544
        %v4833 = vunpack.c.l.b16 %v4545
        %v4834 = vunpack.c.l.b16 %v4546
        %v4835 = vunpack.c.l.b16 %v4547
        %v4836 = vunpack.c.l.b16 %v4548
        %v4837 = vunpack.c.l.b16 %v4549
        %v4838 = vunpack.c.l.b16 %v4550
        %v4839 = vunpack.c.l.b16 %v4551
        %v4840 = vunpack.c.l.b16 %v4552
        %v4841 = vunpack.c.l.b16 %v4553
        %v4842 = vunpack.c.l.b16 %v4554
        %v4843 = vunpack.c.l.b16 %v4555
        %v4844 = vunpack.c.l.b16 %v4556
        %v4845 = vunpack.c.l.b16 %v4557
        %v4846 = vunpack.c.l.b16 %v4558
        %v4847 = vpack.c.b16 %v4704, %v4703
        %v4848 = vpack.c.b16 %v4706, %v4705
        %v4849 = vpack.c.b16 %v4708, %v4707
        %v4850 = vpack.c.b16 %v4710, %v4709
        %v4851 = vpack.c.b16 %v4712, %v4711
        %v4852 = vpack.c.b16 %v4714, %v4713
        %v4853 = vpack.c.b16 %v4716, %v4715
        %v4854 = vpack.c.b16 %v4718, %v4717
        %v4855 = vpack.c.b16 %v4720, %v4719
        %v4856 = vpack.c.b16 %v4722, %v4721
        %v4857 = vpack.c.b16 %v4724, %v4723
        %v4858 = vpack.c.b16 %v4726, %v4725
        %v4859 = vpack.c.b16 %v4728, %v4727
        %v4860 = vpack.c.b16 %v4730, %v4729
        %v4861 = vpack.c.b16 %v4732, %v4731
        %v4862 = vpack.c.b16 %v4734, %v4733
        %v4863 = vpack.c.b16 %v4736, %v4735
        %v4864 = vpack.c.b16 %v4738, %v4737
        %v4865 = vpack.c.b16 %v4740, %v4739
        %v4866 = vpack.c.b16 %v4742, %v4741
        %v4867 = vpack.c.b16 %v4744, %v4743
        %v4868 = vpack.c.b16 %v4746, %v4745
        %v4869 = vpack.c.b16 %v4748, %v4747
        %v4870 = vpack.c.b16 %v4750, %v4749
        %v4871 = vpack.c.b16 %v4752, %v4751
        %v4872 = vpack.c.b16 %v4754, %v4753
        %v4873 = vpack.c.b16 %v4756, %v4755
        %v4874 = vpack.c.b16 %v4758, %v4757
        %v4875 = vpack.c.b16 %v4760, %v4759
        %v4876 = vpack.c.b16 %v4762, %v4761
        %v4877 = vpack.c.b16 %v4764, %v4763
        %v4878 = vpack.c.b16 %v4766, %v4765
        %v4879 = vpack.c.b16 %v4768, %v4767
        %v4880 = vpack.c.b16 %v4770, %v4769
        %v4881 = vpack.c.b16 %v4772, %v4771
        %v4882 = vpack.c.b16 %v4774, %v4773
        %v4883 = vpack.c.b16 %v4776, %v4775
        %v4884 = vpack.c.b16 %v4778, %v4777
        %v4885 = vpack.c.b16 %v4780, %v4779
        %v4886 = vpack.c.b16 %v4782, %v4781
        %v4887 = vpack.c.b16 %v4784, %v4783
        %v4888 = vpack.c.b16 %v4786, %v4785
        %v4889 = vpack.c.b16 %v4788, %v4787
        %v4890 = vpack.c.b16 %v4790, %v4789
        %v4891 = vpack.c.b16 %v4792, %v4791
        %v4892 = vpack.c.b16 %v4794, %v4793
        %v4893 = vpack.c.b16 %v4796, %v4795
        %v4894 = vpack.c.b16 %v4798, %v4797
        %v4895 = vpack.c.b16 %v4800, %v4799
        %v4896 = vpack.c.b16 %v4802, %v4801
        %v4897 = vpack.c.b16 %v4804, %v4803
        %v4898 = vpack.c.b16 %v4806, %v4805
        %v4899 = vpack.c.b16 %v4808, %v4807
        %v4900 = vpack.c.b16 %v4810, %v4809
        %v4901 = vpack.c.b16 %v4812, %v4811
        %v4902 = vpack.c.b16 %v4814, %v4813
        %v4903 = vpack.c.b16 %v4816, %v4815
        %v4904 = vpack.c.b16 %v4818, %v4817
        %v4905 = vpack.c.b16 %v4820, %v4819
        %v4906 = vpack.c.b16 %v4822, %v4821
        %v4907 = vpack.c.b16 %v4824, %v4823
        %v4908 = vpack.c.b16 %v4826, %v4825
        %v4909 = vpack.c.b16 %v4828, %v4827
        %v4910 = vpack.c.b16 %v4830, %v4829
        %v4911 = vpack.c.b16 %v4832, %v4831
        %v4912 = vpack.c.b16 %v4834, %v4833
        %v4913 = vpack.c.b16 %v4836, %v4835
        %v4914 = vpack.c.b16 %v4838, %v4837
        %v4915 = vpack.c.b16 %v4840, %v4839
        %v4916 = vpack.c.b16 %v4842, %v4841
        %v4917 = vpack.c.b16 %v4844, %v4843
        %v4918 = vpack.c.b16 %v4846, %v4845
        %4991 = vmatprep.subr.bf16.mxu0 0
        %4992 = vmatpush1.bf16.msra.mxu0 %v4847
        %4993 = vmatprep.subr.bf16.mxu0 0
        %4994 = vmatpush1.bf16.msra.mxu0 %v4848
        %4995 = vmatprep.subr.bf16.mxu0 0
        %4996 = vmatpush1.bf16.msra.mxu0 %v4849
        %4997 = vmatprep.subr.bf16.mxu0 0
        %4998 = vmatpush1.bf16.msra.mxu0 %v4850
        %4999 = vmatprep.subr.bf16.mxu0 0
        %5000 = vmatpush1.bf16.msra.mxu0 %v4851
        %5001 = vmatprep.subr.bf16.mxu0 0
        %5002 = vmatpush1.bf16.msra.mxu0 %v4852
        %5003 = vmatprep.subr.bf16.mxu0 0
        %5004 = vmatpush1.bf16.msra.mxu0 %v4853
        %5005 = vmatprep.subr.bf16.mxu0 0
        %5006 = vmatpush1.bf16.msra.mxu0 %v4854
        %5007 = vmatprep.subr.bf16.mxu0 0
        %5008 = vmatpush1.bf16.msra.mxu0 %v4855
        %5009 = vmatprep.subr.bf16.mxu0 0
        %5010 = vmatpush1.bf16.msra.mxu0 %v4856
        %5011 = vmatprep.subr.bf16.mxu0 0
        %5012 = vmatpush1.bf16.msra.mxu0 %v4857
        %5013 = vmatprep.subr.bf16.mxu0 0
        %5014 = vmatpush1.bf16.msra.mxu0 %v4858
        %5015 = vmatprep.subr.bf16.mxu0 0
        %5016 = vmatpush1.bf16.msra.mxu0 %v4859
        %5017 = vmatprep.subr.bf16.mxu0 0
        %5018 = vmatpush1.bf16.msra.mxu0 %v4860
        %5019 = vmatprep.subr.bf16.mxu0 0
        %5020 = vmatpush1.bf16.msra.mxu0 %v4861
        %5021 = vmatprep.subr.bf16.mxu0 0
        %5022 = vmatpush1.bf16.msra.mxu0 %v4862
        %5023 = vmatprep.mubr.bf16.mxu0 %v4272
        %5024 = vmatmul.mubr.bf16.gmra.mrb[0].mxu0 %v4271
        %v5025 = vpop.f32.mrb[0].mxu0
        %v5026 = vadd.f32 0.0, %v5025
        %v5027 = vpop.f32.mrb[0].mxu0
        %v5028 = vpop.f32.mrb[0].mxu0
        %v5029 = vadd.f32 0.0, %v5028
        %v5030 = vpop.f32.mrb[0].mxu0
        %5031 = vmatprep.mubr.bf16.mxu0 %v4281
        %5032 = vmatmul.mubr.bf16.gmra.mrb[0].mxu0 %v4280
        %v5033 = vpop.f32.mrb[0].mxu0
        %v5034 = vadd.f32 0.0, %v5033
        %v5035 = vpop.f32.mrb[0].mxu0
        %v5036 = vpop.f32.mrb[0].mxu0
        %v5037 = vadd.f32 0.0, %v5036
        %v5038 = vpop.f32.mrb[0].mxu0
        %5039 = vmatprep.mubr.bf16.mxu0 %v4290
        %5040 = vmatmul.mubr.bf16.gmra.mrb[0].mxu0 %v4289
        %v5041 = vpop.f32.mrb[0].mxu0
        %v5042 = vadd.f32 0.0, %v5041
        %v5043 = vpop.f32.mrb[0].mxu0
        %v5044 = vpop.f32.mrb[0].mxu0
        %v5045 = vadd.f32 0.0, %v5044
        %v5046 = vpop.f32.mrb[0].mxu0
        %5047 = vmatprep.mubr.bf16.mxu0 %v4299
        %5048 = vmatmul.mubr.bf16.gmra.mrb[0].mxu0 %v4298
        %v5049 = vpop.f32.mrb[0].mxu0
        %v5050 = vadd.f32 0.0, %v5049
        %v5051 = vpop.f32.mrb[0].mxu0
        %v5052 = vpop.f32.mrb[0].mxu0
        %v5053 = vadd.f32 0.0, %v5052
        %v5054 = vpop.f32.mrb[0].mxu0
        %5055 = vmatprep.mubr.bf16.mxu0 %v4308
        %5056 = vmatmul.mubr.bf16.gmra.mrb[0].mxu0 %v4307
        %v5057 = vpop.f32.mrb[0].mxu0
        %v5058 = vadd.f32 0.0, %v5057
        %v5059 = vpop.f32.mrb[0].mxu0
        %v5060 = vpop.f32.mrb[0].mxu0
        %v5061 = vadd.f32 0.0, %v5060
        %v5062 = vpop.f32.mrb[0].mxu0
        %5063 = vmatprep.mubr.bf16.mxu0 %v4317
        %5064 = vmatmul.mubr.bf16.gmra.mrb[0].mxu0 %v4316
        %v5065 = vpop.f32.mrb[0].mxu0
        %v5066 = vadd.f32 0.0, %v5065
        %v5067 = vpop.f32.mrb[0].mxu0
        %v5068 = vpop.f32.mrb[0].mxu0
        %v5069 = vadd.f32 0.0, %v5068
        %v5070 = vpop.f32.mrb[0].mxu0
        %5071 = vmatprep.mubr.bf16.mxu0 %v4326
        %5072 = vmatmul.mubr.bf16.gmra.mrb[0].mxu0 %v4325
        %v5073 = vpop.f32.mrb[0].mxu0
        %v5074 = vadd.f32 0.0, %v5073
        %v5075 = vpop.f32.mrb[0].mxu0
        %v5076 = vpop.f32.mrb[0].mxu0
        %v5077 = vadd.f32 0.0, %v5076
        %v5078 = vpop.f32.mrb[0].mxu0
        %5079 = vmatprep.mubr.bf16.mxu0 %v4335
        %5080 = vmatmul.mubr.bf16.gmra.mrb[0].mxu0 %v4334
        %v5081 = vpop.f32.mrb[0].mxu0
        %v5082 = vadd.f32 0.0, %v5081
        %v5083 = vpop.f32.mrb[0].mxu0
        %v5084 = vpop.f32.mrb[0].mxu0
        %v5085 = vadd.f32 0.0, %v5084
        %v5086 = vpop.f32.mrb[0].mxu0
        %5087 = vmatprep.mubr.bf16.mxu0 %v4344
        %5088 = vmatmul.mubr.bf16.gmra.mrb[0].mxu0 %v4343
        %v5089 = vpop.f32.mrb[0].mxu0
        %v5090 = vadd.f32 0.0, %v5089
        %v5091 = vpop.f32.mrb[0].mxu0
        %v5092 = vpop.f32.mrb[0].mxu0
        %v5093 = vadd.f32 0.0, %v5092
        %v5094 = vpop.f32.mrb[0].mxu0
        %5095 = vmatprep.mubr.bf16.mxu0 %v4353
        %5096 = vmatmul.mubr.bf16.gmra.mrb[0].mxu0 %v4352
        %v5097 = vpop.f32.mrb[0].mxu0
        %v5098 = vadd.f32 0.0, %v5097
        %v5099 = vpop.f32.mrb[0].mxu0
        %v5100 = vpop.f32.mrb[0].mxu0
        %v5101 = vadd.f32 0.0, %v5100
        %v5102 = vpop.f32.mrb[0].mxu0
        %5103 = vmatprep.mubr.bf16.mxu0 %v4362
        %5104 = vmatmul.mubr.bf16.gmra.mrb[0].mxu0 %v4361
        %v5105 = vpop.f32.mrb[0].mxu0
        %v5106 = vadd.f32 0.0, %v5105
        %v5107 = vpop.f32.mrb[0].mxu0
        %v5108 = vpop.f32.mrb[0].mxu0
        %v5109 = vadd.f32 0.0, %v5108
        %v5110 = vpop.f32.mrb[0].mxu0
        %5111 = vmatprep.mubr.bf16.mxu0 %v4371
        %5112 = vmatmul.mubr.bf16.gmra.mrb[0].mxu0 %v4370
        %v5113 = vpop.f32.mrb[0].mxu0
        %v5114 = vadd.f32 0.0, %v5113
        %v5115 = vpop.f32.mrb[0].mxu0
        %v5116 = vpop.f32.mrb[0].mxu0
        %v5117 = vadd.f32 0.0, %v5116
        %v5118 = vpop.f32.mrb[0].mxu0
        %5119 = vmatprep.mubr.bf16.mxu0 %v4380
        %5120 = vmatmul.mubr.bf16.gmra.mrb[0].mxu0 %v4379
        %v5121 = vpop.f32.mrb[0].mxu0
        %v5122 = vadd.f32 0.0, %v5121
        %v5123 = vpop.f32.mrb[0].mxu0
        %v5124 = vpop.f32.mrb[0].mxu0
        %v5125 = vadd.f32 0.0, %v5124
        %v5126 = vpop.f32.mrb[0].mxu0
        %5127 = vmatprep.mubr.bf16.mxu0 %v4389
        %5128 = vmatmul.mubr.bf16.gmra.mrb[0].mxu0 %v4388
        %v5129 = vpop.f32.mrb[0].mxu0
        %v5130 = vadd.f32 0.0, %v5129
        %v5131 = vpop.f32.mrb[0].mxu0
        %v5132 = vpop.f32.mrb[0].mxu0
        %v5133 = vadd.f32 0.0, %v5132
        %v5134 = vpop.f32.mrb[0].mxu0
        %5135 = vmatprep.mubr.bf16.mxu0 %v4398
        %5136 = vmatmul.mubr.bf16.gmra.mrb[0].mxu0 %v4397
        %v5137 = vpop.f32.mrb[0].mxu0
        %v5138 = vadd.f32 0.0, %v5137
        %v5139 = vpop.f32.mrb[0].mxu0
        %v5140 = vpop.f32.mrb[0].mxu0
        %v5141 = vadd.f32 0.0, %v5140
        %v5142 = vpop.f32.mrb[0].mxu0
        %5143 = vmatprep.mubr.bf16.mxu0 %v4407
        %5144 = vmatmul.mubr.bf16.gmra.mrb[0].mxu0 %v4406
        %v5145 = vpop.f32.mrb[0].mxu0
        %v5146 = vadd.f32 0.0, %v5145
        %v5147 = vpop.f32.mrb[0].mxu0
        %v5148 = vpop.f32.mrb[0].mxu0
        %v5149 = vadd.f32 0.0, %v5148
        %v5150 = vpop.f32.mrb[0].mxu0
        %5151 = vdwg.mxu0
        %5152 = vmatprep.subr.bf16.mxu0 0
        %5153 = vmatpush1.bf16.msra.mxu0 %v4863
        %5154 = vmatprep.subr.bf16.mxu0 0
        %5155 = vmatpush1.bf16.msra.mxu0 %v4864
        %5156 = vmatprep.subr.bf16.mxu0 0
        %5157 = vmatpush1.bf16.msra.mxu0 %v4865
        %5158 = vmatprep.subr.bf16.mxu0 0
        %5159 = vmatpush1.bf16.msra.mxu0 %v4866
        %5160 = vmatprep.subr.bf16.mxu0 0
        %5161 = vmatpush1.bf16.msra.mxu0 %v4867
        %5162 = vmatprep.subr.bf16.mxu0 0
        %5163 = vmatpush1.bf16.msra.mxu0 %v4868
        %5164 = vmatprep.subr.bf16.mxu0 0
        %5165 = vmatpush1.bf16.msra.mxu0 %v4869
        %5166 = vmatprep.subr.bf16.mxu0 0
        %5167 = vmatpush1.bf16.msra.mxu0 %v4870
        %5168 = vmatprep.subr.bf16.mxu0 0
        %5169 = vmatpush1.bf16.msra.mxu0 %v4871
        %5170 = vmatprep.subr.bf16.mxu0 0
        %5171 = vmatpush1.bf16.msra.mxu0 %v4872
        %5172 = vmatprep.subr.bf16.mxu0 0
        %5173 = vmatpush1.bf16.msra.mxu0 %v4873
        %5174 = vmatprep.subr.bf16.mxu0 0
        %5175 = vmatpush1.bf16.msra.mxu0 %v4874
        %5176 = vmatprep.subr.bf16.mxu0 0
        %5177 = vmatpush1.bf16.msra.mxu0 %v4875
        %5178 = vmatprep.subr.bf16.mxu0 0
        %5179 = vmatpush1.bf16.msra.mxu0 %v4876
        %5180 = vmatprep.subr.bf16.mxu0 0
        %5181 = vmatpush1.bf16.msra.mxu0 %v4877
        %5182 = vmatprep.subr.bf16.mxu0 0
        %5183 = vmatpush1.bf16.msra.mxu0 %v4878
        %5184 = vmatprep.mubr.bf16.mxu0 %v4274
        %5185 = vmatmul.mubr.bf16.gmra.mrb[0].mxu0 %v4273
        %v5186 = vpop.f32.mrb[0].mxu0
        %v5187 = vadd.f32 %v5026, %v5186
        %v5188 = vpop.f32.mrb[0].mxu0
        %v5189 = vpop.f32.mrb[0].mxu0
        %v5190 = vadd.f32 %v5029, %v5189
        %v5191 = vpop.f32.mrb[0].mxu0
        %5192 = vmatprep.mubr.bf16.mxu0 %v4283
        %5193 = vmatmul.mubr.bf16.gmra.mrb[0].mxu0 %v4282
        %v5194 = vpop.f32.mrb[0].mxu0
        %v5195 = vadd.f32 %v5034, %v5194
        %v5196 = vpop.f32.mrb[0].mxu0
        %v5197 = vpop.f32.mrb[0].mxu0
        %v5198 = vadd.f32 %v5037, %v5197
        %v5199 = vpop.f32.mrb[0].mxu0
        %5200 = vmatprep.mubr.bf16.mxu0 %v4292
        %5201 = vmatmul.mubr.bf16.gmra.mrb[0].mxu0 %v4291
        %v5202 = vpop.f32.mrb[0].mxu0
        %v5203 = vadd.f32 %v5042, %v5202
        %v5204 = vpop.f32.mrb[0].mxu0
        %v5205 = vpop.f32.mrb[0].mxu0
        %v5206 = vadd.f32 %v5045, %v5205
        %v5207 = vpop.f32.mrb[0].mxu0
        %5208 = vmatprep.mubr.bf16.mxu0 %v4301
        %5209 = vmatmul.mubr.bf16.gmra.mrb[0].mxu0 %v4300
        %v5210 = vpop.f32.mrb[0].mxu0
        %v5211 = vadd.f32 %v5050, %v5210
        %v5212 = vpop.f32.mrb[0].mxu0
        %v5213 = vpop.f32.mrb[0].mxu0
        %v5214 = vadd.f32 %v5053, %v5213
        %v5215 = vpop.f32.mrb[0].mxu0
        %5216 = vmatprep.mubr.bf16.mxu0 %v4310
        %5217 = vmatmul.mubr.bf16.gmra.mrb[0].mxu0 %v4309
        %v5218 = vpop.f32.mrb[0].mxu0
        %v5219 = vadd.f32 %v5058, %v5218
        %v5220 = vpop.f32.mrb[0].mxu0
        %v5221 = vpop.f32.mrb[0].mxu0
        %v5222 = vadd.f32 %v5061, %v5221
        %v5223 = vpop.f32.mrb[0].mxu0
        %5224 = vmatprep.mubr.bf16.mxu0 %v4319
        %5225 = vmatmul.mubr.bf16.gmra.mrb[0].mxu0 %v4318
        %v5226 = vpop.f32.mrb[0].mxu0
        %v5227 = vadd.f32 %v5066, %v5226
        %v5228 = vpop.f32.mrb[0].mxu0
        %v5229 = vpop.f32.mrb[0].mxu0
        %v5230 = vadd.f32 %v5069, %v5229
        %v5231 = vpop.f32.mrb[0].mxu0
        %5232 = vmatprep.mubr.bf16.mxu0 %v4328
        %5233 = vmatmul.mubr.bf16.gmra.mrb[0].mxu0 %v4327
        %v5234 = vpop.f32.mrb[0].mxu0
        %v5235 = vadd.f32 %v5074, %v5234
        %v5236 = vpop.f32.mrb[0].mxu0
        %v5237 = vpop.f32.mrb[0].mxu0
        %v5238 = vadd.f32 %v5077, %v5237
        %v5239 = vpop.f32.mrb[0].mxu0
        %5240 = vmatprep.mubr.bf16.mxu0 %v4337
        %5241 = vmatmul.mubr.bf16.gmra.mrb[0].mxu0 %v4336
        %v5242 = vpop.f32.mrb[0].mxu0
        %v5243 = vadd.f32 %v5082, %v5242
        %v5244 = vpop.f32.mrb[0].mxu0
        %v5245 = vpop.f32.mrb[0].mxu0
        %v5246 = vadd.f32 %v5085, %v5245
        %v5247 = vpop.f32.mrb[0].mxu0
        %5248 = vmatprep.mubr.bf16.mxu0 %v4346
        %5249 = vmatmul.mubr.bf16.gmra.mrb[0].mxu0 %v4345
        %v5250 = vpop.f32.mrb[0].mxu0
        %v5251 = vadd.f32 %v5090, %v5250
        %v5252 = vpop.f32.mrb[0].mxu0
        %v5253 = vpop.f32.mrb[0].mxu0
        %v5254 = vadd.f32 %v5093, %v5253
        %v5255 = vpop.f32.mrb[0].mxu0
        %5256 = vmatprep.mubr.bf16.mxu0 %v4355
        %5257 = vmatmul.mubr.bf16.gmra.mrb[0].mxu0 %v4354
        %v5258 = vpop.f32.mrb[0].mxu0
        %v5259 = vadd.f32 %v5098, %v5258
        %v5260 = vpop.f32.mrb[0].mxu0
        %v5261 = vpop.f32.mrb[0].mxu0
        %v5262 = vadd.f32 %v5101, %v5261
        %v5263 = vpop.f32.mrb[0].mxu0
        %5264 = vmatprep.mubr.bf16.mxu0 %v4364
        %5265 = vmatmul.mubr.bf16.gmra.mrb[0].mxu0 %v4363
        %v5266 = vpop.f32.mrb[0].mxu0
        %v5267 = vadd.f32 %v5106, %v5266
        %v5268 = vpop.f32.mrb[0].mxu0
        %v5269 = vpop.f32.mrb[0].mxu0
        %v5270 = vadd.f32 %v5109, %v5269
        %v5271 = vpop.f32.mrb[0].mxu0
        %5272 = vmatprep.mubr.bf16.mxu0 %v4373
        %5273 = vmatmul.mubr.bf16.gmra.mrb[0].mxu0 %v4372
        %v5274 = vpop.f32.mrb[0].mxu0
        %v5275 = vadd.f32 %v5114, %v5274
        %v5276 = vpop.f32.mrb[0].mxu0
        %v5277 = vpop.f32.mrb[0].mxu0
        %v5278 = vadd.f32 %v5117, %v5277
        %v5279 = vpop.f32.mrb[0].mxu0
        %5280 = vmatprep.mubr.bf16.mxu0 %v4382
        %5281 = vmatmul.mubr.bf16.gmra.mrb[0].mxu0 %v4381
        %v5282 = vpop.f32.mrb[0].mxu0
        %v5283 = vadd.f32 %v5122, %v5282
        %v5284 = vpop.f32.mrb[0].mxu0
        %v5285 = vpop.f32.mrb[0].mxu0
        %v5286 = vadd.f32 %v5125, %v5285
        %v5287 = vpop.f32.mrb[0].mxu0
        %5288 = vmatprep.mubr.bf16.mxu0 %v4391
        %5289 = vmatmul.mubr.bf16.gmra.mrb[0].mxu0 %v4390
        %v5290 = vpop.f32.mrb[0].mxu0
        %v5291 = vadd.f32 %v5130, %v5290
        %v5292 = vpop.f32.mrb[0].mxu0
        %v5293 = vpop.f32.mrb[0].mxu0
        %v5294 = vadd.f32 %v5133, %v5293
        %v5295 = vpop.f32.mrb[0].mxu0
        %5296 = vmatprep.mubr.bf16.mxu0 %v4400
        %5297 = vmatmul.mubr.bf16.gmra.mrb[0].mxu0 %v4399
        %v5298 = vpop.f32.mrb[0].mxu0
        %v5299 = vadd.f32 %v5138, %v5298
        %v5300 = vpop.f32.mrb[0].mxu0
        %v5301 = vpop.f32.mrb[0].mxu0
        %v5302 = vadd.f32 %v5141, %v5301
        %v5303 = vpop.f32.mrb[0].mxu0
        %5304 = vmatprep.mubr.bf16.mxu0 %v4409
        %5305 = vmatmul.mubr.bf16.gmra.mrb[0].mxu0 %v4408
        %v5306 = vpop.f32.mrb[0].mxu0
        %v5307 = vadd.f32 %v5146, %v5306
        %v5308 = vpop.f32.mrb[0].mxu0
        %v5309 = vpop.f32.mrb[0].mxu0
        %v5310 = vadd.f32 %v5149, %v5309
        %v5311 = vpop.f32.mrb[0].mxu0
        %5312 = vdwg.mxu0
        %5313 = vmatprep.subr.bf16.mxu0 0
        %5314 = vmatpush1.bf16.msra.mxu0 %v4879
        %5315 = vmatprep.subr.bf16.mxu0 0
        %5316 = vmatpush1.bf16.msra.mxu0 %v4880
        %5317 = vmatprep.subr.bf16.mxu0 0
        %5318 = vmatpush1.bf16.msra.mxu0 %v4881
        %5319 = vmatprep.subr.bf16.mxu0 0
        %5320 = vmatpush1.bf16.msra.mxu0 %v4882
        %5321 = vmatprep.subr.bf16.mxu0 0
        %5322 = vmatpush1.bf16.msra.mxu0 %v4883
        %5323 = vmatprep.subr.bf16.mxu0 0
        %5324 = vmatpush1.bf16.msra.mxu0 %v4884
        %5325 = vmatprep.subr.bf16.mxu0 0
        %5326 = vmatpush1.bf16.msra.mxu0 %v4885
        %5327 = vmatprep.subr.bf16.mxu0 0
        %5328 = vmatpush1.bf16.msra.mxu0 %v4886
        %5329 = vmatprep.subr.bf16.mxu0 0
        %5330 = vmatpush1.bf16.msra.mxu0 %v4887
        %5331 = vmatprep.subr.bf16.mxu0 0
        %5332 = vmatpush1.bf16.msra.mxu0 %v4888
        %5333 = vmatprep.subr.bf16.mxu0 0
        %5334 = vmatpush1.bf16.msra.mxu0 %v4889
        %5335 = vmatprep.subr.bf16.mxu0 0
        %5336 = vmatpush1.bf16.msra.mxu0 %v4890
        %5337 = vmatprep.subr.bf16.mxu0 0
        %5338 = vmatpush1.bf16.msra.mxu0 %v4891
        %5339 = vmatprep.subr.bf16.mxu0 0
        %5340 = vmatpush1.bf16.msra.mxu0 %v4892
        %5341 = vmatprep.subr.bf16.mxu0 0
        %5342 = vmatpush1.bf16.msra.mxu0 %v4893
        %5343 = vmatprep.subr.bf16.mxu0 0
        %5344 = vmatpush1.bf16.msra.mxu0 %v4894
        %5345 = vmatprep.mubr.bf16.mxu0 %v4276
        %5346 = vmatmul.mubr.bf16.gmra.mrb[0].mxu0 %v4275
        %v5347 = vpop.f32.mrb[0].mxu0
        %v5348 = vadd.f32 %v5187, %v5347
        %v5349 = vpop.f32.mrb[0].mxu0
        %v5350 = vpop.f32.mrb[0].mxu0
        %v5351 = vadd.f32 %v5190, %v5350
        %v5352 = vpop.f32.mrb[0].mxu0
        %5353 = vmatprep.mubr.bf16.mxu0 %v4285
        %5354 = vmatmul.mubr.bf16.gmra.mrb[0].mxu0 %v4284
        %v5355 = vpop.f32.mrb[0].mxu0
        %v5356 = vadd.f32 %v5195, %v5355
        %v5357 = vpop.f32.mrb[0].mxu0
        %v5358 = vpop.f32.mrb[0].mxu0
        %v5359 = vadd.f32 %v5198, %v5358
        %v5360 = vpop.f32.mrb[0].mxu0
        %5361 = vmatprep.mubr.bf16.mxu0 %v4294
        %5362 = vmatmul.mubr.bf16.gmra.mrb[0].mxu0 %v4293
        %v5363 = vpop.f32.mrb[0].mxu0
        %v5364 = vadd.f32 %v5203, %v5363
        %v5365 = vpop.f32.mrb[0].mxu0
        %v5366 = vpop.f32.mrb[0].mxu0
        %v5367 = vadd.f32 %v5206, %v5366
        %v5368 = vpop.f32.mrb[0].mxu0
        %5369 = vmatprep.mubr.bf16.mxu0 %v4303
        %5370 = vmatmul.mubr.bf16.gmra.mrb[0].mxu0 %v4302
        %v5371 = vpop.f32.mrb[0].mxu0
        %v5372 = vadd.f32 %v5211, %v5371
        %v5373 = vpop.f32.mrb[0].mxu0
        %v5374 = vpop.f32.mrb[0].mxu0
        %v5375 = vadd.f32 %v5214, %v5374
        %v5376 = vpop.f32.mrb[0].mxu0
        %5377 = vmatprep.mubr.bf16.mxu0 %v4312
        %5378 = vmatmul.mubr.bf16.gmra.mrb[0].mxu0 %v4311
        %v5379 = vpop.f32.mrb[0].mxu0
        %v5380 = vadd.f32 %v5219, %v5379
        %v5381 = vpop.f32.mrb[0].mxu0
        %v5382 = vpop.f32.mrb[0].mxu0
        %v5383 = vadd.f32 %v5222, %v5382
        %v5384 = vpop.f32.mrb[0].mxu0
        %5385 = vmatprep.mubr.bf16.mxu0 %v4321
        %5386 = vmatmul.mubr.bf16.gmra.mrb[0].mxu0 %v4320
        %v5387 = vpop.f32.mrb[0].mxu0
        %v5388 = vadd.f32 %v5227, %v5387
        %v5389 = vpop.f32.mrb[0].mxu0
        %v5390 = vpop.f32.mrb[0].mxu0
        %v5391 = vadd.f32 %v5230, %v5390
        %v5392 = vpop.f32.mrb[0].mxu0
        %5393 = vmatprep.mubr.bf16.mxu0 %v4330
        %5394 = vmatmul.mubr.bf16.gmra.mrb[0].mxu0 %v4329
        %v5395 = vpop.f32.mrb[0].mxu0
        %v5396 = vadd.f32 %v5235, %v5395
        %v5397 = vpop.f32.mrb[0].mxu0
        %v5398 = vpop.f32.mrb[0].mxu0
        %v5399 = vadd.f32 %v5238, %v5398
        %v5400 = vpop.f32.mrb[0].mxu0
        %5401 = vmatprep.mubr.bf16.mxu0 %v4339
        %5402 = vmatmul.mubr.bf16.gmra.mrb[0].mxu0 %v4338
        %v5403 = vpop.f32.mrb[0].mxu0
        %v5404 = vadd.f32 %v5243, %v5403
        %v5405 = vpop.f32.mrb[0].mxu0
        %v5406 = vpop.f32.mrb[0].mxu0
        %v5407 = vadd.f32 %v5246, %v5406
        %v5408 = vpop.f32.mrb[0].mxu0
        %5409 = vmatprep.mubr.bf16.mxu0 %v4348
        %5410 = vmatmul.mubr.bf16.gmra.mrb[0].mxu0 %v4347
        %v5411 = vpop.f32.mrb[0].mxu0
        %v5412 = vadd.f32 %v5251, %v5411
        %v5413 = vpop.f32.mrb[0].mxu0
        %v5414 = vpop.f32.mrb[0].mxu0
        %v5415 = vadd.f32 %v5254, %v5414
        %v5416 = vpop.f32.mrb[0].mxu0
        %5417 = vmatprep.mubr.bf16.mxu0 %v4357
        %5418 = vmatmul.mubr.bf16.gmra.mrb[0].mxu0 %v4356
        %v5419 = vpop.f32.mrb[0].mxu0
        %v5420 = vadd.f32 %v5259, %v5419
        %v5421 = vpop.f32.mrb[0].mxu0
        %v5422 = vpop.f32.mrb[0].mxu0
        %v5423 = vadd.f32 %v5262, %v5422
        %v5424 = vpop.f32.mrb[0].mxu0
        %5425 = vmatprep.mubr.bf16.mxu0 %v4366
        %5426 = vmatmul.mubr.bf16.gmra.mrb[0].mxu0 %v4365
        %v5427 = vpop.f32.mrb[0].mxu0
        %v5428 = vadd.f32 %v5267, %v5427
        %v5429 = vpop.f32.mrb[0].mxu0
        %v5430 = vpop.f32.mrb[0].mxu0
        %v5431 = vadd.f32 %v5270, %v5430
        %v5432 = vpop.f32.mrb[0].mxu0
        %5433 = vmatprep.mubr.bf16.mxu0 %v4375
        %5434 = vmatmul.mubr.bf16.gmra.mrb[0].mxu0 %v4374
        %v5435 = vpop.f32.mrb[0].mxu0
        %v5436 = vadd.f32 %v5275, %v5435
        %v5437 = vpop.f32.mrb[0].mxu0
        %v5438 = vpop.f32.mrb[0].mxu0
        %v5439 = vadd.f32 %v5278, %v5438
        %v5440 = vpop.f32.mrb[0].mxu0
        %5441 = vmatprep.mubr.bf16.mxu0 %v4384
        %5442 = vmatmul.mubr.bf16.gmra.mrb[0].mxu0 %v4383
        %v5443 = vpop.f32.mrb[0].mxu0
        %v5444 = vadd.f32 %v5283, %v5443
        %v5445 = vpop.f32.mrb[0].mxu0
        %v5446 = vpop.f32.mrb[0].mxu0
        %v5447 = vadd.f32 %v5286, %v5446
        %v5448 = vpop.f32.mrb[0].mxu0
        %5449 = vmatprep.mubr.bf16.mxu0 %v4393
        %5450 = vmatmul.mubr.bf16.gmra.mrb[0].mxu0 %v4392
        %v5451 = vpop.f32.mrb[0].mxu0
        %v5452 = vadd.f32 %v5291, %v5451
        %v5453 = vpop.f32.mrb[0].mxu0
        %v5454 = vpop.f32.mrb[0].mxu0
        %v5455 = vadd.f32 %v5294, %v5454
        %v5456 = vpop.f32.mrb[0].mxu0
        %5457 = vmatprep.mubr.bf16.mxu0 %v4402
        %5458 = vmatmul.mubr.bf16.gmra.mrb[0].mxu0 %v4401
        %v5459 = vpop.f32.mrb[0].mxu0
        %v5460 = vadd.f32 %v5299, %v5459
        %v5461 = vpop.f32.mrb[0].mxu0
        %v5462 = vpop.f32.mrb[0].mxu0
        %v5463 = vadd.f32 %v5302, %v5462
        %v5464 = vpop.f32.mrb[0].mxu0
        %5465 = vmatprep.mubr.bf16.mxu0 %v4411
        %5466 = vmatmul.mubr.bf16.gmra.mrb[0].mxu0 %v4410
        %v5467 = vpop.f32.mrb[0].mxu0
        %v5468 = vadd.f32 %v5307, %v5467
        %v5469 = vpop.f32.mrb[0].mxu0
        %v5470 = vpop.f32.mrb[0].mxu0
        %v5471 = vadd.f32 %v5310, %v5470
        %v5472 = vpop.f32.mrb[0].mxu0
        %5473 = vdwg.mxu0
        %5474 = vmatprep.subr.bf16.mxu0 0
        %5475 = vmatpush1.bf16.msra.mxu0 %v4895
        %5476 = vmatprep.subr.bf16.mxu0 0
        %5477 = vmatpush1.bf16.msra.mxu0 %v4896
        %5478 = vmatprep.subr.bf16.mxu0 0
        %5479 = vmatpush1.bf16.msra.mxu0 %v4897
        %5480 = vmatprep.subr.bf16.mxu0 0
        %5481 = vmatpush1.bf16.msra.mxu0 %v4898
        %5482 = vmatprep.subr.bf16.mxu0 0
        %5483 = vmatpush1.bf16.msra.mxu0 %v4899
        %5484 = vmatprep.subr.bf16.mxu0 0
        %5485 = vmatpush1.bf16.msra.mxu0 %v4900
        %5486 = vmatprep.subr.bf16.mxu0 0
        %5487 = vmatpush1.bf16.msra.mxu0 %v4901
        %5488 = vmatprep.subr.bf16.mxu0 0
        %5489 = vmatpush1.bf16.msra.mxu0 %v4902
        %5490 = vmatprep.subr.bf16.mxu0 0
        %5491 = vmatpush1.bf16.msra.mxu0 %v4903
        %5492 = vmatprep.subr.bf16.mxu0 0
        %5493 = vmatpush1.bf16.msra.mxu0 %v4904
        %5494 = vmatprep.subr.bf16.mxu0 0
        %5495 = vmatpush1.bf16.msra.mxu0 %v4905
        %5496 = vmatprep.subr.bf16.mxu0 0
        %5497 = vmatpush1.bf16.msra.mxu0 %v4906
        %5498 = vmatprep.subr.bf16.mxu0 0
        %5499 = vmatpush1.bf16.msra.mxu0 %v4907
        %5500 = vmatprep.subr.bf16.mxu0 0
        %5501 = vmatpush1.bf16.msra.mxu0 %v4908
        %5502 = vmatprep.subr.bf16.mxu0 0
        %5503 = vmatpush1.bf16.msra.mxu0 %v4909
        %5504 = vmatprep.subr.bf16.mxu0 0
        %5505 = vmatpush1.bf16.msra.mxu0 %v4910
        %5506 = vmatprep.mubr.bf16.mxu0 %v4278
        %5507 = vmatmul.mubr.bf16.gmra.mrb[0].mxu0 %v4277
        %v5508 = vpop.f32.mrb[0].mxu0
        %v5509 = vadd.f32 %v5348, %v5508
        %v5510 = vpop.f32.mrb[0].mxu0
        %v5511 = vpop.f32.mrb[0].mxu0
        %v5512 = vadd.f32 %v5351, %v5511
        %v5513 = vpop.f32.mrb[0].mxu0
        %5514 = vmatprep.mubr.bf16.mxu0 %v4287
        %5515 = vmatmul.mubr.bf16.gmra.mrb[0].mxu0 %v4286
        %v5516 = vpop.f32.mrb[0].mxu0
        %v5517 = vadd.f32 %v5356, %v5516
        %v5518 = vpop.f32.mrb[0].mxu0
        %v5519 = vpop.f32.mrb[0].mxu0
        %v5520 = vadd.f32 %v5359, %v5519
        %v5521 = vpop.f32.mrb[0].mxu0
        %5522 = vmatprep.mubr.bf16.mxu0 %v4296
        %5523 = vmatmul.mubr.bf16.gmra.mrb[0].mxu0 %v4295
        %v5524 = vpop.f32.mrb[0].mxu0
        %v5525 = vadd.f32 %v5364, %v5524
        %v5526 = vpop.f32.mrb[0].mxu0
        %v5527 = vpop.f32.mrb[0].mxu0
        %v5528 = vadd.f32 %v5367, %v5527
        %v5529 = vpop.f32.mrb[0].mxu0
        %5530 = vmatprep.mubr.bf16.mxu0 %v4305
        %5531 = vmatmul.mubr.bf16.gmra.mrb[0].mxu0 %v4304
        %v5532 = vpop.f32.mrb[0].mxu0
        %v5533 = vadd.f32 %v5372, %v5532
        %v5534 = vpop.f32.mrb[0].mxu0
        %v5535 = vpop.f32.mrb[0].mxu0
        %v5536 = vadd.f32 %v5375, %v5535
        %v5537 = vpop.f32.mrb[0].mxu0
        %5538 = vmatprep.mubr.bf16.mxu0 %v4314
        %5539 = vmatmul.mubr.bf16.gmra.mrb[0].mxu0 %v4313
        %v5540 = vpop.f32.mrb[0].mxu0
        %v5541 = vadd.f32 %v5380, %v5540
        %v5542 = vpop.f32.mrb[0].mxu0
        %v5543 = vpop.f32.mrb[0].mxu0
        %v5544 = vadd.f32 %v5383, %v5543
        %v5545 = vpop.f32.mrb[0].mxu0
        %5546 = vmatprep.mubr.bf16.mxu0 %v4323
        %5547 = vmatmul.mubr.bf16.gmra.mrb[0].mxu0 %v4322
        %v5548 = vpop.f32.mrb[0].mxu0
        %v5549 = vadd.f32 %v5388, %v5548
        %v5550 = vpop.f32.mrb[0].mxu0
        %v5551 = vpop.f32.mrb[0].mxu0
        %v5552 = vadd.f32 %v5391, %v5551
        %v5553 = vpop.f32.mrb[0].mxu0
        %5554 = vmatprep.mubr.bf16.mxu0 %v4332
        %5555 = vmatmul.mubr.bf16.gmra.mrb[0].mxu0 %v4331
        %v5556 = vpop.f32.mrb[0].mxu0
        %v5557 = vadd.f32 %v5396, %v5556
        %v5558 = vpop.f32.mrb[0].mxu0
        %v5559 = vpop.f32.mrb[0].mxu0
        %v5560 = vadd.f32 %v5399, %v5559
        %v5561 = vpop.f32.mrb[0].mxu0
        %5562 = vmatprep.mubr.bf16.mxu0 %v4341
        %5563 = vmatmul.mubr.bf16.gmra.mrb[0].mxu0 %v4340
        %v5564 = vpop.f32.mrb[0].mxu0
        %v5565 = vadd.f32 %v5404, %v5564
        %v5566 = vpop.f32.mrb[0].mxu0
        %v5567 = vpop.f32.mrb[0].mxu0
        %v5568 = vadd.f32 %v5407, %v5567
        %v5569 = vpop.f32.mrb[0].mxu0
        %5570 = vmatprep.mubr.bf16.mxu0 %v4350
        %5571 = vmatmul.mubr.bf16.gmra.mrb[0].mxu0 %v4349
        %v5572 = vpop.f32.mrb[0].mxu0
        %v5573 = vadd.f32 %v5412, %v5572
        %v5574 = vpop.f32.mrb[0].mxu0
        %v5575 = vpop.f32.mrb[0].mxu0
        %v5576 = vadd.f32 %v5415, %v5575
        %v5577 = vpop.f32.mrb[0].mxu0
        %5578 = vmatprep.mubr.bf16.mxu0 %v4359
        %5579 = vmatmul.mubr.bf16.gmra.mrb[0].mxu0 %v4358
        %v5580 = vpop.f32.mrb[0].mxu0
        %v5581 = vadd.f32 %v5420, %v5580
        %v5582 = vpop.f32.mrb[0].mxu0
        %v5583 = vpop.f32.mrb[0].mxu0
        %v5584 = vadd.f32 %v5423, %v5583
        %v5585 = vpop.f32.mrb[0].mxu0
        %5586 = vmatprep.mubr.bf16.mxu0 %v4368
        %5587 = vmatmul.mubr.bf16.gmra.mrb[0].mxu0 %v4367
        %v5588 = vpop.f32.mrb[0].mxu0
        %v5589 = vadd.f32 %v5428, %v5588
        %v5590 = vpop.f32.mrb[0].mxu0
        %v5591 = vpop.f32.mrb[0].mxu0
        %v5592 = vadd.f32 %v5431, %v5591
        %v5593 = vpop.f32.mrb[0].mxu0
        %5594 = vmatprep.mubr.bf16.mxu0 %v4377
        %5595 = vmatmul.mubr.bf16.gmra.mrb[0].mxu0 %v4376
        %v5596 = vpop.f32.mrb[0].mxu0
        %v5597 = vadd.f32 %v5436, %v5596
        %v5598 = vpop.f32.mrb[0].mxu0
        %v5599 = vpop.f32.mrb[0].mxu0
        %v5600 = vadd.f32 %v5439, %v5599
        %v5601 = vpop.f32.mrb[0].mxu0
        %5602 = vmatprep.mubr.bf16.mxu0 %v4386
        %5603 = vmatmul.mubr.bf16.gmra.mrb[0].mxu0 %v4385
        %v5604 = vpop.f32.mrb[0].mxu0
        %v5605 = vadd.f32 %v5444, %v5604
        %v5606 = vpop.f32.mrb[0].mxu0
        %v5607 = vpop.f32.mrb[0].mxu0
        %v5608 = vadd.f32 %v5447, %v5607
        %v5609 = vpop.f32.mrb[0].mxu0
        %5610 = vmatprep.mubr.bf16.mxu0 %v4395
        %5611 = vmatmul.mubr.bf16.gmra.mrb[0].mxu0 %v4394
        %v5612 = vpop.f32.mrb[0].mxu0
        %v5613 = vadd.f32 %v5452, %v5612
        %v5614 = vpop.f32.mrb[0].mxu0
        %v5615 = vpop.f32.mrb[0].mxu0
        %v5616 = vadd.f32 %v5455, %v5615
        %v5617 = vpop.f32.mrb[0].mxu0
        %5618 = vmatprep.mubr.bf16.mxu0 %v4404
        %5619 = vmatmul.mubr.bf16.gmra.mrb[0].mxu0 %v4403
        %v5620 = vpop.f32.mrb[0].mxu0
        %v5621 = vadd.f32 %v5460, %v5620
        %v5622 = vpop.f32.mrb[0].mxu0
        %v5623 = vpop.f32.mrb[0].mxu0
        %v5624 = vadd.f32 %v5463, %v5623
        %v5625 = vpop.f32.mrb[0].mxu0
        %5626 = vmatprep.mubr.bf16.mxu0 %v4413
        %5627 = vmatmul.mubr.bf16.gmra.mrb[0].mxu0 %v4412
        %v5628 = vpop.f32.mrb[0].mxu0
        %v5629 = vadd.f32 %v5468, %v5628
        %v5630 = vpop.f32.mrb[0].mxu0
        %v5631 = vpop.f32.mrb[0].mxu0
        %v5632 = vadd.f32 %v5471, %v5631
        %v5633 = vpop.f32.mrb[0].mxu0
        %5634 = vdwg.mxu0
        %5635 = vmatprep.subr.bf16.mxu0 0
        %5636 = vmatpush1.bf16.msra.mxu0 %v4911
        %5637 = vmatprep.subr.bf16.mxu0 0
        %5638 = vmatpush1.bf16.msra.mxu0 %v4912
        %5639 = vmatprep.subr.bf16.mxu0 0
        %5640 = vmatpush1.bf16.msra.mxu0 %v4913
        %5641 = vmatprep.subr.bf16.mxu0 0
        %5642 = vmatpush1.bf16.msra.mxu0 %v4914
        %5643 = vmatprep.subr.bf16.mxu0 0
        %5644 = vmatpush1.bf16.msra.mxu0 %v4915
        %5645 = vmatprep.subr.bf16.mxu0 0
        %5646 = vmatpush1.bf16.msra.mxu0 %v4916
        %5647 = vmatprep.subr.bf16.mxu0 0
        %5648 = vmatpush1.bf16.msra.mxu0 %v4917
        %5649 = vmatprep.subr.bf16.mxu0 0
        %5650 = vmatpush1.bf16.msra.mxu0 %v4918
        %5651 = vmatprep.subr.bf16.mxu0 0
        %5652 = vmatpush1.bf16.msra.mxu0 0
        %5653 = vmatprep.subr.bf16.mxu0 0
        %5654 = vmatpush1.bf16.msra.mxu0 0
        %5655 = vmatprep.subr.bf16.mxu0 0
        %5656 = vmatpush1.bf16.msra.mxu0 0
        %5657 = vmatprep.subr.bf16.mxu0 0
        %5658 = vmatpush1.bf16.msra.mxu0 0
        %5659 = vmatprep.subr.bf16.mxu0 0
        %5660 = vmatpush1.bf16.msra.mxu0 0
        %5661 = vmatprep.subr.bf16.mxu0 0
        %5662 = vmatpush1.bf16.msra.mxu0 0
        %5663 = vmatprep.subr.bf16.mxu0 0
        %5664 = vmatpush1.bf16.msra.mxu0 0
        %5665 = vmatprep.subr.bf16.mxu0 0
        %5666 = vmatpush1.bf16.msra.mxu0 0
        %5667 = vmatprep.mubr.bf16.mxu0 0
        %5668 = vmatmul.mubr.bf16.gmra.mrb[0].mxu0 %v4279
        %v5669 = vpop.f32.mrb[0].mxu0
        %v5670 = vadd.f32 %v5509, %v5669
        %v5671 = vpop.f32.mrb[0].mxu0
        %v5672 = vpop.f32.mrb[0].mxu0
        %v5673 = vadd.f32 %v5512, %v5672
        %v5674 = vpop.f32.mrb[0].mxu0
        %5675 = vmatprep.mubr.bf16.mxu0 0
        %5676 = vmatmul.mubr.bf16.gmra.mrb[0].mxu0 %v4288
        %v5677 = vpop.f32.mrb[0].mxu0
        %v5678 = vadd.f32 %v5517, %v5677
        %v5679 = vpop.f32.mrb[0].mxu0
        %v5680 = vpop.f32.mrb[0].mxu0
        %v5681 = vadd.f32 %v5520, %v5680
        %v5682 = vpop.f32.mrb[0].mxu0
        %5683 = vmatprep.mubr.bf16.mxu0 0
        %5684 = vmatmul.mubr.bf16.gmra.mrb[0].mxu0 %v4297
        %v5685 = vpop.f32.mrb[0].mxu0
        %v5686 = vadd.f32 %v5525, %v5685
        %v5687 = vpop.f32.mrb[0].mxu0
        %v5688 = vpop.f32.mrb[0].mxu0
        %v5689 = vadd.f32 %v5528, %v5688
        %v5690 = vpop.f32.mrb[0].mxu0
        %5691 = vmatprep.mubr.bf16.mxu0 0
        %5692 = vmatmul.mubr.bf16.gmra.mrb[0].mxu0 %v4306
        %v5693 = vpop.f32.mrb[0].mxu0
        %v5694 = vadd.f32 %v5533, %v5693
        %v5695 = vpop.f32.mrb[0].mxu0
        %v5696 = vpop.f32.mrb[0].mxu0
        %v5697 = vadd.f32 %v5536, %v5696
        %v5698 = vpop.f32.mrb[0].mxu0
        %5699 = vmatprep.mubr.bf16.mxu0 0
        %5700 = vmatmul.mubr.bf16.gmra.mrb[0].mxu0 %v4315
        %v5701 = vpop.f32.mrb[0].mxu0
        %v5702 = vadd.f32 %v5541, %v5701
        %v5703 = vpop.f32.mrb[0].mxu0
        %v5704 = vpop.f32.mrb[0].mxu0
        %v5705 = vadd.f32 %v5544, %v5704
        %v5706 = vpop.f32.mrb[0].mxu0
        %5707 = vmatprep.mubr.bf16.mxu0 0
        %5708 = vmatmul.mubr.bf16.gmra.mrb[0].mxu0 %v4324
        %v5709 = vpop.f32.mrb[0].mxu0
        %v5710 = vadd.f32 %v5549, %v5709
        %v5711 = vpop.f32.mrb[0].mxu0
        %v5712 = vpop.f32.mrb[0].mxu0
        %v5713 = vadd.f32 %v5552, %v5712
        %v5714 = vpop.f32.mrb[0].mxu0
        %5715 = vmatprep.mubr.bf16.mxu0 0
        %5716 = vmatmul.mubr.bf16.gmra.mrb[0].mxu0 %v4333
        %v5717 = vpop.f32.mrb[0].mxu0
        %v5718 = vadd.f32 %v5557, %v5717
        %v5719 = vpop.f32.mrb[0].mxu0
        %v5720 = vpop.f32.mrb[0].mxu0
        %v5721 = vadd.f32 %v5560, %v5720
        %v5722 = vpop.f32.mrb[0].mxu0
        %5723 = vmatprep.mubr.bf16.mxu0 0
        %5724 = vmatmul.mubr.bf16.gmra.mrb[0].mxu0 %v4342
        %v5725 = vpop.f32.mrb[0].mxu0
        %v5726 = vadd.f32 %v5565, %v5725
        %v5727 = vpop.f32.mrb[0].mxu0
        %v5728 = vpop.f32.mrb[0].mxu0
        %v5729 = vadd.f32 %v5568, %v5728
        %v5730 = vpop.f32.mrb[0].mxu0
        %5731 = vmatprep.mubr.bf16.mxu0 0
        %5732 = vmatmul.mubr.bf16.gmra.mrb[0].mxu0 %v4351
        %v5733 = vpop.f32.mrb[0].mxu0
        %v5734 = vadd.f32 %v5573, %v5733
        %v5735 = vpop.f32.mrb[0].mxu0
        %v5736 = vpop.f32.mrb[0].mxu0
        %v5737 = vadd.f32 %v5576, %v5736
        %v5738 = vpop.f32.mrb[0].mxu0
        %5739 = vmatprep.mubr.bf16.mxu0 0
        %5740 = vmatmul.mubr.bf16.gmra.mrb[0].mxu0 %v4360
        %v5741 = vpop.f32.mrb[0].mxu0
        %v5742 = vadd.f32 %v5581, %v5741
        %v5743 = vpop.f32.mrb[0].mxu0
        %v5744 = vpop.f32.mrb[0].mxu0
        %v5745 = vadd.f32 %v5584, %v5744
        %v5746 = vpop.f32.mrb[0].mxu0
        %5747 = vmatprep.mubr.bf16.mxu0 0
        %5748 = vmatmul.mubr.bf16.gmra.mrb[0].mxu0 %v4369
        %v5749 = vpop.f32.mrb[0].mxu0
        %v5750 = vadd.f32 %v5589, %v5749
        %v5751 = vpop.f32.mrb[0].mxu0
        %v5752 = vpop.f32.mrb[0].mxu0
        %v5753 = vadd.f32 %v5592, %v5752
        %v5754 = vpop.f32.mrb[0].mxu0
        %5755 = vmatprep.mubr.bf16.mxu0 0
        %5756 = vmatmul.mubr.bf16.gmra.mrb[0].mxu0 %v4378
        %v5757 = vpop.f32.mrb[0].mxu0
        %v5758 = vadd.f32 %v5597, %v5757
        %v5759 = vpop.f32.mrb[0].mxu0
        %v5760 = vpop.f32.mrb[0].mxu0
        %v5761 = vadd.f32 %v5600, %v5760
        %v5762 = vpop.f32.mrb[0].mxu0
        %5763 = vmatprep.mubr.bf16.mxu0 0
        %5764 = vmatmul.mubr.bf16.gmra.mrb[0].mxu0 %v4387
        %v5765 = vpop.f32.mrb[0].mxu0
        %v5766 = vadd.f32 %v5605, %v5765
        %v5767 = vpop.f32.mrb[0].mxu0
        %v5768 = vpop.f32.mrb[0].mxu0
        %v5769 = vadd.f32 %v5608, %v5768
        %v5770 = vpop.f32.mrb[0].mxu0
        %5771 = vmatprep.mubr.bf16.mxu0 0
        %5772 = vmatmul.mubr.bf16.gmra.mrb[0].mxu0 %v4396
        %v5773 = vpop.f32.mrb[0].mxu0
        %v5774 = vadd.f32 %v5613, %v5773
        %v5775 = vpop.f32.mrb[0].mxu0
        %v5776 = vpop.f32.mrb[0].mxu0
        %v5777 = vadd.f32 %v5616, %v5776
        %v5778 = vpop.f32.mrb[0].mxu0
        %5779 = vmatprep.mubr.bf16.mxu0 0
        %5780 = vmatmul.mubr.bf16.gmra.mrb[0].mxu0 %v4405
        %v5781 = vpop.f32.mrb[0].mxu0
        %v5782 = vadd.f32 %v5621, %v5781
        %v5783 = vpop.f32.mrb[0].mxu0
        %v5784 = vpop.f32.mrb[0].mxu0
        %v5785 = vadd.f32 %v5624, %v5784
        %v5786 = vpop.f32.mrb[0].mxu0
        %5787 = vmatprep.mubr.bf16.mxu0 0
        %5788 = vmatmul.mubr.bf16.gmra.mrb[0].mxu0 %v4414
        %v5789 = vpop.f32.mrb[0].mxu0
        %v5790 = vadd.f32 %v5629, %v5789
        %v5791 = vpop.f32.mrb[0].mxu0
        %v5792 = vpop.f32.mrb[0].mxu0
        %v5793 = vadd.f32 %v5632, %v5792
        %v5794 = vpop.f32.mrb[0].mxu0
        %5795 = vdwg.mxu0
        %v5796 = vld [vmem:[%s5] sm:$0x1]
        %v5798 = vlaneseq
        %v5799 = vshrl.u32 %v5798, 7
        %v5800 = vsub.s32 0, %v5799
        %v5801 = vrot.slane %v5796, %v5800
        %v5803 = vmul.f32 %v5670, %v5801
        %v5804 = vmul.f32 %v5673, %v5801
        %v5805 = vmul.f32 %v5678, %v5801
        %v5806 = vmul.f32 %v5681, %v5801
        %v5807 = vmul.f32 %v5686, %v5801
        %v5808 = vmul.f32 %v5689, %v5801
        %v5809 = vmul.f32 %v5694, %v5801
        %v5810 = vmul.f32 %v5697, %v5801
        %v5811 = vmul.f32 %v5702, %v5801
        %v5812 = vmul.f32 %v5705, %v5801
        %v5813 = vmul.f32 %v5710, %v5801
        %v5814 = vmul.f32 %v5713, %v5801
        %v5815 = vmul.f32 %v5718, %v5801
        %v5816 = vmul.f32 %v5721, %v5801
        %v5817 = vmul.f32 %v5726, %v5801
        %v5818 = vmul.f32 %v5729, %v5801
        %v5819 = vmul.f32 %v5734, %v5801
        %v5820 = vmul.f32 %v5737, %v5801
        %v5821 = vmul.f32 %v5742, %v5801
        %v5822 = vmul.f32 %v5745, %v5801
        %v5823 = vmul.f32 %v5750, %v5801
        %v5824 = vmul.f32 %v5753, %v5801
        %v5825 = vmul.f32 %v5758, %v5801
        %v5826 = vmul.f32 %v5761, %v5801
        %v5827 = vmul.f32 %v5766, %v5801
        %v5828 = vmul.f32 %v5769, %v5801
        %v5829 = vmul.f32 %v5774, %v5801
        %v5830 = vmul.f32 %v5777, %v5801
        %v5831 = vmul.f32 %v5782, %v5801
        %v5832 = vmul.f32 %v5785, %v5801
        %v5833 = vmul.f32 %v5790, %v5801
        %v5834 = vmul.f32 %v5793, %v5801
        %v5835 = vld [vmem:[%s6] sm:$0x1]
        %v5837 = vlaneseq
        %v5838 = vshrl.u32 %v5837, 7
        %v5839 = vsub.s32 0, %v5838
        %v5840 = vrot.slane %v5835, %v5839
        %v5842 = vadd.f32 %v5803, %v5840
        %v5843 = vadd.f32 %v5804, %v5840
        %v5844 = vadd.f32 %v5805, %v5840
        %v5845 = vadd.f32 %v5806, %v5840
        %v5846 = vadd.f32 %v5807, %v5840
        %v5847 = vadd.f32 %v5808, %v5840
        %v5848 = vadd.f32 %v5809, %v5840
        %v5849 = vadd.f32 %v5810, %v5840
        %v5850 = vadd.f32 %v5811, %v5840
        %v5851 = vadd.f32 %v5812, %v5840
        %v5852 = vadd.f32 %v5813, %v5840
        %v5853 = vadd.f32 %v5814, %v5840
        %v5854 = vadd.f32 %v5815, %v5840
        %v5855 = vadd.f32 %v5816, %v5840
        %v5856 = vadd.f32 %v5817, %v5840
        %v5857 = vadd.f32 %v5818, %v5840
        %v5858 = vadd.f32 %v5819, %v5840
        %v5859 = vadd.f32 %v5820, %v5840
        %v5860 = vadd.f32 %v5821, %v5840
        %v5861 = vadd.f32 %v5822, %v5840
        %v5862 = vadd.f32 %v5823, %v5840
        %v5863 = vadd.f32 %v5824, %v5840
        %v5864 = vadd.f32 %v5825, %v5840
        %v5865 = vadd.f32 %v5826, %v5840
        %v5866 = vadd.f32 %v5827, %v5840
        %v5867 = vadd.f32 %v5828, %v5840
        %v5868 = vadd.f32 %v5829, %v5840
        %v5869 = vadd.f32 %v5830, %v5840
        %v5870 = vadd.f32 %v5831, %v5840
        %v5871 = vadd.f32 %v5832, %v5840
        %v5872 = vadd.f32 %v5833, %v5840
        %v5873 = vadd.f32 %v5834, %v5840
        %v5874 = vld [vmem:[%s287] sm:$0xff]
        %v5875 = vld [vmem:[%s287 + $0x8] sm:$0xff]
        %v5876 = vld [vmem:[%s287 + $0x10] sm:$0xff]
        %v5877 = vld [vmem:[%s287 + $0x18] sm:$0xff]
        %v5878 = vld [vmem:[%s287 + $0x20] sm:$0xff]
        %v5879 = vld [vmem:[%s287 + $0x28] sm:$0xff]
        %v5880 = vld [vmem:[%s287 + $0x30] sm:$0xff]
        %v5881 = vld [vmem:[%s287 + $0x38] sm:$0xff]
        %v5882 = vld [vmem:[%s287 + $0x40] sm:$0xff]
        %v5883 = vld [vmem:[%s287 + $0x48] sm:$0xff]
        %v5884 = vld [vmem:[%s287 + $0x50] sm:$0xff]
        %v5885 = vld [vmem:[%s287 + $0x58] sm:$0xff]
        %v5886 = vld [vmem:[%s287 + $0x60] sm:$0xff]
        %v5887 = vld [vmem:[%s287 + $0x68] sm:$0xff]
        %v5888 = vld [vmem:[%s287 + $0x70] sm:$0xff]
        %v5889 = vld [vmem:[%s287 + $0x78] sm:$0xff]
        %v5890 = vld [vmem:[%s287 + $0x80] sm:$0xff]
        %v5891 = vld [vmem:[%s287 + $0x88] sm:$0xff]
        %v5892 = vld [vmem:[%s287 + $0x90] sm:$0xff]
        %v5893 = vld [vmem:[%s287 + $0x98] sm:$0xff]
        %v5894 = vld [vmem:[%s287 + $0xa0] sm:$0xff]
        %v5895 = vld [vmem:[%s287 + $0xa8] sm:$0xff]
        %v5896 = vld [vmem:[%s287 + $0xb0] sm:$0xff]
        %v5897 = vld [vmem:[%s287 + $0xb8] sm:$0xff]
        %v5898 = vld [vmem:[%s287 + $0xc0] sm:$0xff]
        %v5899 = vld [vmem:[%s287 + $0xc8] sm:$0xff]
        %v5900 = vld [vmem:[%s287 + $0xd0] sm:$0xff]
        %v5901 = vld [vmem:[%s287 + $0xd8] sm:$0xff]
        %v5902 = vld [vmem:[%s287 + $0xe0] sm:$0xff]
        %v5903 = vld [vmem:[%s287 + $0xe8] sm:$0xff]
        %v5904 = vld [vmem:[%s287 + $0xf0] sm:$0xff]
        %v5905 = vld [vmem:[%s287 + $0xf8] sm:$0xff]
        %v5906 = vadd.f32 %v5842, %v5874
        %v5907 = vadd.f32 %v5843, %v5875
        %v5908 = vadd.f32 %v5844, %v5876
        %v5909 = vadd.f32 %v5845, %v5877
        %v5910 = vadd.f32 %v5846, %v5878
        %v5911 = vadd.f32 %v5847, %v5879
        %v5912 = vadd.f32 %v5848, %v5880
        %v5913 = vadd.f32 %v5849, %v5881
        %v5914 = vadd.f32 %v5850, %v5882
        %v5915 = vadd.f32 %v5851, %v5883
        %v5916 = vadd.f32 %v5852, %v5884
        %v5917 = vadd.f32 %v5853, %v5885
        %v5918 = vadd.f32 %v5854, %v5886
        %v5919 = vadd.f32 %v5855, %v5887
        %v5920 = vadd.f32 %v5856, %v5888
        %v5921 = vadd.f32 %v5857, %v5889
        %v5922 = vadd.f32 %v5858, %v5890
        %v5923 = vadd.f32 %v5859, %v5891
        %v5924 = vadd.f32 %v5860, %v5892
        %v5925 = vadd.f32 %v5861, %v5893
        %v5926 = vadd.f32 %v5862, %v5894
        %v5927 = vadd.f32 %v5863, %v5895
        %v5928 = vadd.f32 %v5864, %v5896
        %v5929 = vadd.f32 %v5865, %v5897
        %v5930 = vadd.f32 %v5866, %v5898
        %v5931 = vadd.f32 %v5867, %v5899
        %v5932 = vadd.f32 %v5868, %v5900
        %v5933 = vadd.f32 %v5869, %v5901
        %v5934 = vadd.f32 %v5870, %v5902
        %v5935 = vadd.f32 %v5871, %v5903
        %v5936 = vadd.f32 %v5872, %v5904
        %v5937 = vadd.f32 %v5873, %v5905
        %v5938 = vmax.f32 %v5906, 0.0
        %v5939 = vmax.f32 %v5907, 0.0
        %v5940 = vmax.f32 %v5908, 0.0
        %v5941 = vmax.f32 %v5909, 0.0
        %v5942 = vmax.f32 %v5910, 0.0
        %v5943 = vmax.f32 %v5911, 0.0
        %v5944 = vmax.f32 %v5912, 0.0
        %v5945 = vmax.f32 %v5913, 0.0
        %v5946 = vmax.f32 %v5914, 0.0
        %v5947 = vmax.f32 %v5915, 0.0
        %v5948 = vmax.f32 %v5916, 0.0
        %v5949 = vmax.f32 %v5917, 0.0
        %v5950 = vmax.f32 %v5918, 0.0
        %v5951 = vmax.f32 %v5919, 0.0
        %v5952 = vmax.f32 %v5920, 0.0
        %v5953 = vmax.f32 %v5921, 0.0
        %v5954 = vmax.f32 %v5922, 0.0
        %v5955 = vmax.f32 %v5923, 0.0
        %v5956 = vmax.f32 %v5924, 0.0
        %v5957 = vmax.f32 %v5925, 0.0
        %v5958 = vmax.f32 %v5926, 0.0
        %v5959 = vmax.f32 %v5927, 0.0
        %v5960 = vmax.f32 %v5928, 0.0
        %v5961 = vmax.f32 %v5929, 0.0
        %v5962 = vmax.f32 %v5930, 0.0
        %v5963 = vmax.f32 %v5931, 0.0
        %v5964 = vmax.f32 %v5932, 0.0
        %v5965 = vmax.f32 %v5933, 0.0
        %v5966 = vmax.f32 %v5934, 0.0
        %v5967 = vmax.f32 %v5935, 0.0
        %v5968 = vmax.f32 %v5936, 0.0
        %v5969 = vmax.f32 %v5937, 0.0
        %5970 = vst [vmem:[%s325] sm:$0xff] %v5938
        %5971 = vst [vmem:[%s325 + $0x8] sm:$0xff] %v5939
        %5972 = vst [vmem:[%s325 + $0x10] sm:$0xff] %v5940
        %5973 = vst [vmem:[%s325 + $0x18] sm:$0xff] %v5941
        %5974 = vst [vmem:[%s325 + $0x20] sm:$0xff] %v5942
        %5975 = vst [vmem:[%s325 + $0x28] sm:$0xff] %v5943
        %5976 = vst [vmem:[%s325 + $0x30] sm:$0xff] %v5944
        %5977 = vst [vmem:[%s325 + $0x38] sm:$0xff] %v5945
        %5978 = vst [vmem:[%s325 + $0x40] sm:$0xff] %v5946
        %5979 = vst [vmem:[%s325 + $0x48] sm:$0xff] %v5947
        %5980 = vst [vmem:[%s325 + $0x50] sm:$0xff] %v5948
        %5981 = vst [vmem:[%s325 + $0x58] sm:$0xff] %v5949
        %5982 = vst [vmem:[%s325 + $0x60] sm:$0xff] %v5950
        %5983 = vst [vmem:[%s325 + $0x68] sm:$0xff] %v5951
        %5984 = vst [vmem:[%s325 + $0x70] sm:$0xff] %v5952
        %5985 = vst [vmem:[%s325 + $0x78] sm:$0xff] %v5953
        %5986 = vst [vmem:[%s325 + $0x80] sm:$0xff] %v5954
        %5987 = vst [vmem:[%s325 + $0x88] sm:$0xff] %v5955
        %5988 = vst [vmem:[%s325 + $0x90] sm:$0xff] %v5956
        %5989 = vst [vmem:[%s325 + $0x98] sm:$0xff] %v5957
        %5990 = vst [vmem:[%s325 + $0xa0] sm:$0xff] %v5958
        %5991 = vst [vmem:[%s325 + $0xa8] sm:$0xff] %v5959
        %5992 = vst [vmem:[%s325 + $0xb0] sm:$0xff] %v5960
        %5993 = vst [vmem:[%s325 + $0xb8] sm:$0xff] %v5961
        %5994 = vst [vmem:[%s325 + $0xc0] sm:$0xff] %v5962
        %5995 = vst [vmem:[%s325 + $0xc8] sm:$0xff] %v5963
        %5996 = vst [vmem:[%s325 + $0xd0] sm:$0xff] %v5964
        %5997 = vst [vmem:[%s325 + $0xd8] sm:$0xff] %v5965
        %5998 = vst [vmem:[%s325 + $0xe0] sm:$0xff] %v5966
        %5999 = vst [vmem:[%s325 + $0xe8] sm:$0xff] %v5967
        %6000 = vst [vmem:[%s325 + $0xf0] sm:$0xff] %v5968
        %6001 = vst [vmem:[%s325 + $0xf8] sm:$0xff] %v5969
        %s6002 = sand.u32 %s185, 1
        %s6003 = scalar_lea.sflag [#allocation5], %s6002
        %s6004 = sand.u32 %s185, 1
        %s6005 = smul.addr %s6004, 256
        %s6006 = scalar_lea.vmem [#allocation9], %s6005
        // Predicated region
        $region61: #{_lambda_.1} parent=47 // pred_check
          %p6007 = pneg %p195
        $region62: #{_lambda_.1} parent=47 // pred_check_branch
          %6009 = sbr.rel (%p6007) target = $region64
        $region63: #{_lambda_.1} parent=47 // pred_region
          %s6010 = smul.u32 32, %s25
          %s6012 = ssub.s32 4096, 4096
          %6013 = vsyncadd %s6003, %s6012
          %s6014 = smul.addr %s6010, 128
          %s6015 = scalar_lea.hbm %s7, %s6014
          %s6016 = sshll.u32 %s6006, 4
          %s6017 = int_to_ptr.vmem [resolvable:$true] %s6016
          %6022 = dma.vmem_to_hbm [thread:$0]  %s6017, 4096, %s6015, %s6003, 128, 128, 8
        $region64: #{_lambda_.1} parent=47 // pred_fallthru
          _
      $region48: #{_lambda_.1} parent=5 // pred_fallthru
        _
      %p6023 = scmp.le.s32.totalorder 2, %s20
      // Predicated region
      $region65: #{_lambda_.1} parent=5 // pred_check
        %p6024 = pneg %p6023
      $region66: #{_lambda_.1} parent=5 // pred_check_branch
        %6026 = sbr.rel (%p6024) target = $region68
      $region67: #{_lambda_.1} parent=5 // pred_region
        %s6027 = ssub.s32 %s20, 2
        // Predicated region
        $region69: #{_lambda_.1} parent=67 // pred_check
          %p6028 = pneg %p201
        $region70: #{_lambda_.1} parent=67 // pred_check_branch
          %6030 = sbr.rel (%p6028) target = $region72
        $region71: #{_lambda_.1} parent=67 // pred_region
          %s6031 = sand.u32 %s186, 1
          %s6032 = scalar_lea.sflag [#allocation5], %s6031
          %s6033 = sand.u32 %s186, 1
          %s6034 = smul.addr %s6033, 256
          %s6035 = scalar_lea.vmem [#allocation9], %s6034
          %6036 = dma.done %s6032, 4096
        $region72: #{_lambda_.1} parent=67 // pred_fallthru
          _
      $region68: #{_lambda_.1} parent=5 // pred_fallthru
        _
    $region6: #{_lambda_.1} parent=1 // loop_footer
      %s24 = sadd.s32 1, %s20
    $region7: #{_lambda_.1} parent=1 // loop_footer_branch
      %19 = sbr.rel target = $region3
    $region8: #{_lambda_.1} parent=1 // loop_exit
      _
    %6037 = vsyncpa [#allocation4], 1
    %s6038 = scalar_lea.sflag [#allocation4], 1
    %6039 = vsyncpa %s6038, 1
    %6040 = vsyncpa [#allocation7], 1
    %6041 = vsyncpa [#allocation5], 1
    %s6042 = scalar_lea.sflag [#allocation5], 1
    %6043 = vsyncpa %s6042, 1

</llo_original>
